<compile_context>
chip_gen: v6e
topology: v6e:2x2x1
jax: 0.10.0
libtpu: 0.0.40
codegen_flags: <defaults>
</compile_context>

<pallas_src>
import functools

import jax
import jax.numpy as jnp
from jax import lax
from jax.experimental import pallas as pl
from jax.experimental.pallas import tpu as pltpu

LEAKY_SLOPE = 0.2
BN_EPS = 1e-5
KW = 4        # Conv2d kernel_size in the PyTorch module
PADW = 1      # Conv2d padding
LANE = 128    # channel dims padded to a multiple of the TPU lane width
VMEM_LIMIT = 32 * 1024 * 1024   # >= default scoped VMEM on v5e/v6e/v7x, << physical


def _round_up(x, m):
    return (x + m - 1) // m * m


# ---------------------------------------------------------------------------
# Kernel 1: direct conv (Kh*Kw tap loop of 2-D MXU matmuls) + optional bias /
# LeakyReLU, plus (for BN layers) accumulation of per-channel sum & sum-of-sq.
# Grid = (N, Ho); one lane-dense output row (Wo, Coutp) per step.  The padded
# input image of the current batch element stays resident in VMEM across the
# whole Ho axis (its index_map ignores r) -> no im2col read amplification.
# ---------------------------------------------------------------------------
def _conv_kernel(x_ref, w_ref, b_ref, o_ref, *stats_refs,
                 kh, kw, wo, use_bias, use_act, use_bn):
    r = pl.program_id(1)
    acc = None
    for ky in range(kh):
        for kx in range(kw):
            lhs = x_ref[r + ky, pl.ds(kx, wo), :]        # (Wo, Ck)   bf16
            wt = w_ref[ky * kw + kx]                     # (Ck, Coutp) bf16
            d = jnp.dot(lhs, wt, preferred_element_type=jnp.float32)
            acc = d if acc is None else acc + d
    if use_bias:
        acc = acc + b_ref[...]
    if use_act:
        acc = jnp.where(acc > 0, acc, LEAKY_SLOPE * acc)
    o_ref[...] = acc.astype(o_ref.dtype)

    if use_bn:
        sum_ref, sq_ref = stats_refs

        @pl.when(jnp.logical_and(pl.program_id(0) == 0, r == 0))
        def _init():
            sum_ref[...] = jnp.zeros_like(sum_ref)
            sq_ref[...] = jnp.zeros_like(sq_ref)

        sum_ref[...] += jnp.sum(acc, axis=0, keepdims=True)
        sq_ref[...] += jnp.sum(acc * acc, axis=0, keepdims=True)


# ---------------------------------------------------------------------------
# Kernel 2: BatchNorm finalize (one-pass stats: var = E[y^2] - mean^2) +
# LeakyReLU; elementwise, fully parallel grid, bf16 output.
# ---------------------------------------------------------------------------
def _bn_act_kernel(y_ref, s_ref, q_ref, g_ref, b_ref, o_ref, *, count, use_act):
    inv_n = 1.0 / count
    mean = s_ref[...] * inv_n
    var = q_ref[...] * inv_n - mean * mean
    scale = g_ref[...] * lax.rsqrt(var + BN_EPS)
    shift = b_ref[...] - mean * scale
    y = y_ref[...] * scale + shift
    if use_act:
        y = jnp.where(y > 0, y, LEAKY_SLOPE * y)
    o_ref[...] = y.astype(o_ref.dtype)


# ---------------------------------------------------------------------------
# Plain-JAX glue (cheap, no data inflation): spatial pad, space-to-depth for
# stride-2 layers, weight repack, channel zero-padding, bf16 casts.
# ---------------------------------------------------------------------------
def _prep_input(x_stored, stride):
    xp = jnp.pad(x_stored, ((0, 0), (PADW, PADW), (PADW, PADW), (0, 0)))
    if stride == 2:
        N, Hp, Wp, C = xp.shape
        assert Hp % 2 == 0 and Wp % 2 == 0
        xp = xp.reshape(N, Hp // 2, 2, Wp // 2, 2, C)
        xp = jnp.transpose(xp, (0, 1, 3, 2, 4, 5)).reshape(N, Hp // 2, Wp // 2, 4 * C)
    return xp.astype(jnp.bfloat16)


def _prep_weights(w_oihw, bias, gamma, beta, stride, store_cin):
    cout, cin, kh, kw = w_oihw.shape
    coutp = _round_up(cout, LANE)
    w = jnp.transpose(w_oihw, (2, 3, 1, 0))                      # (kh, kw, cin, cout)
    w = jnp.pad(w, ((0, 0), (0, 0), (0, store_cin - cin), (0, coutp - cout)))
    if stride == 2:
        # 4x4 stride-2 conv == 2x2 stride-1 conv on the space-to-depth input.
        w = w.reshape(2, 2, 2, 2, store_cin, coutp)              # (Dy, py, Dx, px, C, O)
        w = jnp.transpose(w, (0, 2, 1, 3, 4, 5))                 # (Dy, Dx, py, px, C, O)
        w = w.reshape(2, 2, 4 * store_cin, coutp)
        kh = kw = 2
    w = w.reshape(kh * kw, w.shape[-2], coutp).astype(jnp.bfloat16)
    b2 = jnp.pad(bias, (0, coutp - cout)).reshape(1, coutp).astype(jnp.float32)
    g2 = jnp.pad(gamma, (0, coutp - cout), constant_values=1.0).reshape(1, coutp).astype(jnp.float32)
    be2 = jnp.pad(beta, (0, coutp - cout)).reshape(1, coutp).astype(jnp.float32)
    return w, b2, g2, be2, kh, kw, coutp


def conv_layer_pallas(x_stored, w_oihw, bias, gamma, beta, *,
                      stride, use_bias, use_bn, use_act):
    N = x_stored.shape[0]
    store_cin = x_stored.shape[-1]
    xk = _prep_input(x_stored, stride)                           # (N, Hk, Wk, Ck) bf16
    wk, b2, g2, be2, kh, kw, coutp = _prep_weights(
        w_oihw, bias, gamma, beta, stride, store_cin)
    _, Hk, Wk, Ck = xk.shape
    Ho, Wo = Hk - kh + 1, Wk - kw + 1

    # BN layers write a f32 pre-norm temp; non-BN layers write the activation
    # directly (bf16 for intermediate layers, f32 for the final logits).
    out_dtype = jnp.float32 if (use_bn or not use_act) else jnp.bfloat16

    x_spec = pl.BlockSpec((None, Hk, Wk, Ck), lambda n, r: (n, 0, 0, 0))
    w_spec = pl.BlockSpec((kh * kw, Ck, coutp), lambda n, r: (0, 0, 0))
    v_spec = pl.BlockSpec((1, coutp), lambda n, r: (0, 0))
    y_spec = pl.BlockSpec((None, None, Wo, coutp), lambda n, r: (n, r, 0, 0))

    kern = functools.partial(
        _conv_kernel, kh=kh, kw=kw, wo=Wo,
        use_bias=use_bias, use_act=(use_act and not use_bn), use_bn=use_bn)

    if use_bn:
        out_shape = (jax.ShapeDtypeStruct((N, Ho, Wo, coutp), jnp.float32),
                     jax.ShapeDtypeStruct((1, coutp), jnp.float32),
                     jax.ShapeDtypeStruct((1, coutp), jnp.float32))
        out_specs = (y_spec, v_spec, v_spec)
        sem = ("arbitrary", "arbitrary")      # stats block revisited across grid
    else:
        out_shape = jax.ShapeDtypeStruct((N, Ho, Wo, coutp), out_dtype)
        out_specs = y_spec
        sem = ("parallel", "parallel")

    flops = 2 * N * Ho * Wo * (kh * kw * Ck) * coutp
    out_bytes = N * Ho * Wo * coutp * (4 if out_dtype == jnp.float32 else 2)
    cost = pl.CostEstimate(flops=flops, transcendentals=0,
                           bytes_accessed=2 * xk.size + 2 * wk.size + out_bytes)

    res = pl.pallas_call(
        kern,
        grid=(N, Ho),
        in_specs=[x_spec, w_spec, v_spec],
        out_specs=out_specs,
        out_shape=out_shape,
        compiler_params=pltpu.CompilerParams(
            dimension_semantics=sem, vmem_limit_bytes=VMEM_LIMIT),
        cost_estimate=cost,
    )(xk, wk, b2)

    if not use_bn:
        return res

    y32, sums, sqs = res
    norm_kern = functools.partial(_bn_act_kernel,
                                  count=float(N * Ho * Wo), use_act=use_act)
    return pl.pallas_call(
        norm_kern,
        grid=(N, Ho),
        in_specs=[y_spec, v_spec, v_spec, v_spec, v_spec],
        out_specs=y_spec,
        out_shape=jax.ShapeDtypeStruct((N, Ho, Wo, coutp), jnp.bfloat16),
        compiler_params=pltpu.CompilerParams(
            dimension_semantics=("parallel", "parallel"),
            vmem_limit_bytes=VMEM_LIMIT),
    )(y32, sums, sqs, g2, be2)


# ---------------------------------------------------------------------------
# Model definition / parameters (mirrors NLayerDiscriminator with BatchNorm2d,
# training-mode batch statistics, i.e. use_bias=False on the normed convs).
# ---------------------------------------------------------------------------
def make_params(key, input_nc, ndf=64, n_layers=3):
    layer_defs = [dict(cin=input_nc, cout=ndf, stride=2, bias=True, bn=False, act=True)]
    nf_mult = 1
    for n in range(1, n_layers):
        nf_prev, nf_mult = nf_mult, min(2 ** n, 8)
        layer_defs.append(dict(cin=ndf * nf_prev, cout=ndf * nf_mult, stride=2,
                               bias=False, bn=True, act=True))
    nf_prev, nf_mult = nf_mult, min(2 ** n_layers, 8)
    layer_defs.append(dict(cin=ndf * nf_prev, cout=ndf * nf_mult, stride=1,
                           bias=False, bn=True, act=True))
    layer_defs.append(dict(cin=ndf * nf_mult, cout=1, stride=1,
                           bias=True, bn=False, act=False))

    params = []
    for ld in layer_defs:
        key, k_w, k_b, k_g, k_be = jax.random.split(key, 5)
        w = 0.02 * jax.random.normal(k_w, (ld["cout"], ld["cin"], KW, KW), jnp.float32)
        b = 0.01 * jax.random.normal(k_b, (ld["cout"],), jnp.float32)
        g = 1.0 + 0.1 * jax.random.normal(k_g, (ld["cout"],), jnp.float32)
        be = 0.1 * jax.random.normal(k_be, (ld["cout"],), jnp.float32)
        params.append((ld, w, b, g, be))
    return params


def discriminator_forward_pallas(x_nchw, params):
    x = jnp.transpose(x_nchw, (0, 2, 3, 1))        # NCHW -> NHWC
    for ld, w, b, g, be in params:
        x = conv_layer_pallas(x, w, b, g, be, stride=ld["stride"],
                              use_bias=ld["bias"], use_bn=ld["bn"], use_act=ld["act"])
    out = x[..., :1]                               # drop lane padding of final Cout=1
    return jnp.transpose(out, (0, 3, 1, 2))        # NHWC -> NCHW


def discriminator_forward_ref(x_nchw, params, act_dtype=jnp.float32):
    """Pure-JAX reference.  act_dtype=bf16 mirrors the kernel's bf16 operand /
    bf16 activation-storage scheme (f32 accumulation, f32 BN/act)."""
    y = x_nchw
    for ld, w, b, g, be in params:
        y = lax.conv_general_dilated(
            y.astype(act_dtype), w.astype(act_dtype),
            window_strides=(ld["stride"], ld["stride"]),
            padding=((PADW, PADW), (PADW, PADW)),
            dimension_numbers=("NCHW", "OIHW", "NCHW"),
            preferred_element_type=jnp.float32)
        if ld["bias"]:
            y = y + b[None, :, None, None]
        if ld["bn"]:
            mean = jnp.mean(y, axis=(0, 2, 3), keepdims=True)
            var = jnp.mean(jnp.square(y - mean), axis=(0, 2, 3), keepdims=True)
            y = (y - mean) * lax.rsqrt(var + BN_EPS)
            y = y * g[None, :, None, None] + be[None, :, None, None]
        if ld["act"]:
            y = jnp.where(y > 0, y, LEAKY_SLOPE * y)
    return y


if __name__ == "__main__":
    key = jax.random.PRNGKey(0)
    k_x, k_p = jax.random.split(key)

    # Small shapes: input_nc=4, ndf=8, n_layers=3, 32x32 images
    # (the 5-layer 4x4/pad-1 stack needs >= 32 spatial to stay valid).
    N, C, H, W = 2, 4, 32, 32
    x = jax.random.normal(k_x, (N, C, H, W), jnp.float32)
    params = make_params(k_p, input_nc=C, ndf=8, n_layers=3)

    fwd = jax.jit(lambda a: discriminator_forward_pallas(a, params))
    out = jax.block_until_ready(fwd(x))
    assert out.shape == (N, 1, 2, 2), f"unexpected output shape {out.shape}"

    # Tight check vs a reference that matches the kernel's bf16 operand scheme,
    # loose check vs the pure-f32 module semantics (bf16 storage quantization).
    ref_bf16 = discriminator_forward_ref(x, params, jnp.bfloat16)
    ref_f32 = discriminator_forward_ref(x, params, jnp.float32)
    err_bf16 = float(jnp.max(jnp.abs(out - ref_bf16)))
    err_f32 = float(jnp.max(jnp.abs(out - ref_f32)))
    assert err_bf16 < 2e-3, f"mismatch vs bf16-matched reference: {err_bf16}"
    assert err_f32 < 5e-2, f"mismatch vs f32 reference: {err_f32}"
    print("KERNEL_OK")
</pallas_src>

<mosaic_0001>
module attributes {stable_mosaic.version = 11 : i64} {
  func.func @_conv_kernel(%arg0: i32, %arg1: i32, %arg2: memref<1x17x17x16xbf16, #tpu.memory_space<vmem>>, %arg3: memref<4x16x128xbf16, #tpu.memory_space<vmem>>, %arg4: memref<1x128xf32, #tpu.memory_space<vmem>>, %arg5: memref<1x1x16x128xbf16, #tpu.memory_space<vmem>>) attributes {dimension_semantics = [#tpu.dimension_semantics<parallel>, #tpu.dimension_semantics<parallel>], iteration_bounds = array<i64: 2, 16>, scalar_prefetch = 0 : i64, scratch_operands = 0 : i64, tpu.core_type = #tpu.core_type<tc>, window_params = [{transform_indices = @transform_0, window_bounds = array<i64: 1, 17, 17, 16>}, {pipeline_mode = #tpu.pipeline_mode<synchronous>, transform_indices = @transform_1, window_bounds = array<i64: 4, 16, 128>}, {pipeline_mode = #tpu.pipeline_mode<synchronous>, transform_indices = @transform_2, window_bounds = array<i64: 1, 128>}, {transform_indices = @transform_3, window_bounds = array<i64: 1, 1, 16, 128>}]} {
    %c0_i32 = arith.constant 0 : i32
    %0 = arith.addi %arg1, %c0_i32 : i32
    %c0 = arith.constant 0 : index
    %1 = arith.index_cast %0 : i32 to index
    %c0_0 = arith.constant 0 : index
    %c0_1 = arith.constant 0 : index
    %2 = vector.load %arg2[%c0, %1, %c0_0, %c0_1] : memref<1x17x17x16xbf16, #tpu.memory_space<vmem>>, vector<1x1x16x16xbf16>
    %3 = vector.shape_cast %2 : vector<1x1x16x16xbf16> to vector<16x16xbf16>
    %c0_2 = arith.constant 0 : index
    %c0_3 = arith.constant 0 : index
    %c0_4 = arith.constant 0 : index
    %4 = vector.load %arg3[%c0_2, %c0_3, %c0_4] : memref<4x16x128xbf16, #tpu.memory_space<vmem>>, vector<1x16x128xbf16>
    %5 = vector.shape_cast %4 : vector<1x16x128xbf16> to vector<16x128xbf16>
    %cst = arith.constant dense<0.000000e+00> : vector<16x128xf32>
    %6 = tpu.matmul %3, %5, %cst {dimension_numbers = #tpu.dot_dimension_numbers<[1], [0], [0], [1], [0, 0, 1, 1], [], []>} : vector<16x16xbf16>, vector<16x128xbf16>, vector<16x128xf32> -> vector<16x128xf32>
    %c0_i32_5 = arith.constant 0 : i32
    %7 = arith.addi %arg1, %c0_i32_5 : i32
    %c0_6 = arith.constant 0 : index
    %8 = arith.index_cast %7 : i32 to index
    %c1 = arith.constant 1 : index
    %c0_7 = arith.constant 0 : index
    %9 = vector.load %arg2[%c0_6, %8, %c1, %c0_7] : memref<1x17x17x16xbf16, #tpu.memory_space<vmem>>, vector<1x1x16x16xbf16>
    %10 = vector.shape_cast %9 : vector<1x1x16x16xbf16> to vector<16x16xbf16>
    %c1_8 = arith.constant 1 : index
    %c0_9 = arith.constant 0 : index
    %c0_10 = arith.constant 0 : index
    %11 = vector.load %arg3[%c1_8, %c0_9, %c0_10] : memref<4x16x128xbf16, #tpu.memory_space<vmem>>, vector<1x16x128xbf16>
    %12 = vector.shape_cast %11 : vector<1x16x128xbf16> to vector<16x128xbf16>
    %cst_11 = arith.constant dense<0.000000e+00> : vector<16x128xf32>
    %13 = tpu.matmul %10, %12, %cst_11 {dimension_numbers = #tpu.dot_dimension_numbers<[1], [0], [0], [1], [0, 0, 1, 1], [], []>} : vector<16x16xbf16>, vector<16x128xbf16>, vector<16x128xf32> -> vector<16x128xf32>
    %14 = arith.addf %6, %13 : vector<16x128xf32>
    %c1_i32 = arith.constant 1 : i32
    %15 = arith.addi %arg1, %c1_i32 : i32
    %c0_12 = arith.constant 0 : index
    %16 = arith.index_cast %15 : i32 to index
    %c0_13 = arith.constant 0 : index
    %c0_14 = arith.constant 0 : index
    %17 = vector.load %arg2[%c0_12, %16, %c0_13, %c0_14] : memref<1x17x17x16xbf16, #tpu.memory_space<vmem>>, vector<1x1x16x16xbf16>
    %18 = vector.shape_cast %17 : vector<1x1x16x16xbf16> to vector<16x16xbf16>
    %c2 = arith.constant 2 : index
    %c0_15 = arith.constant 0 : index
    %c0_16 = arith.constant 0 : index
    %19 = vector.load %arg3[%c2, %c0_15, %c0_16] : memref<4x16x128xbf16, #tpu.memory_space<vmem>>, vector<1x16x128xbf16>
    %20 = vector.shape_cast %19 : vector<1x16x128xbf16> to vector<16x128xbf16>
    %cst_17 = arith.constant dense<0.000000e+00> : vector<16x128xf32>
    %21 = tpu.matmul %18, %20, %cst_17 {dimension_numbers = #tpu.dot_dimension_numbers<[1], [0], [0], [1], [0, 0, 1, 1], [], []>} : vector<16x16xbf16>, vector<16x128xbf16>, vector<16x128xf32> -> vector<16x128xf32>
    %22 = arith.addf %14, %21 : vector<16x128xf32>
    %c1_i32_18 = arith.constant 1 : i32
    %23 = arith.addi %arg1, %c1_i32_18 : i32
    %c0_19 = arith.constant 0 : index
    %24 = arith.index_cast %23 : i32 to index
    %c1_20 = arith.constant 1 : index
    %c0_21 = arith.constant 0 : index
    %25 = vector.load %arg2[%c0_19, %24, %c1_20, %c0_21] : memref<1x17x17x16xbf16, #tpu.memory_space<vmem>>, vector<1x1x16x16xbf16>
    %26 = vector.shape_cast %25 : vector<1x1x16x16xbf16> to vector<16x16xbf16>
    %c3 = arith.constant 3 : index
    %c0_22 = arith.constant 0 : index
    %c0_23 = arith.constant 0 : index
    %27 = vector.load %arg3[%c3, %c0_22, %c0_23] : memref<4x16x128xbf16, #tpu.memory_space<vmem>>, vector<1x16x128xbf16>
    %28 = vector.shape_cast %27 : vector<1x16x128xbf16> to vector<16x128xbf16>
    %cst_24 = arith.constant dense<0.000000e+00> : vector<16x128xf32>
    %29 = tpu.matmul %26, %28, %cst_24 {dimension_numbers = #tpu.dot_dimension_numbers<[1], [0], [0], [1], [0, 0, 1, 1], [], []>} : vector<16x16xbf16>, vector<16x128xbf16>, vector<16x128xf32> -> vector<16x128xf32>
    %30 = arith.addf %22, %29 : vector<16x128xf32>
    %c0_25 = arith.constant 0 : index
    %c0_26 = arith.constant 0 : index
    %31 = vector.load %arg4[%c0_25, %c0_26] : memref<1x128xf32, #tpu.memory_space<vmem>>, vector<1x128xf32>
    %32 = vector.broadcast %31 : vector<1x128xf32> to vector<16x128xf32>
    %33 = arith.addf %30, %32 : vector<16x128xf32>
    %cst_27 = arith.constant 0.000000e+00 : f32
    %34 = vector.broadcast %cst_27 : f32 to vector<16x128xf32>
    %35 = arith.cmpf ogt, %33, %34 : vector<16x128xf32>
    %cst_28 = arith.constant 2.000000e-01 : f32
    %36 = vector.broadcast %cst_28 : f32 to vector<16x128xf32>
    %37 = arith.mulf %36, %33 : vector<16x128xf32>
    %38 = arith.select %35, %33, %37 : vector<16x128xi1>, vector<16x128xf32>
    %39 = arith.truncf %38 : vector<16x128xf32> to vector<16x128xbf16>
    %c0_29 = arith.constant 0 : index
    %c0_30 = arith.constant 0 : index
    %c0_31 = arith.constant 0 : index
    %c0_32 = arith.constant 0 : index
    %40 = vector.load %arg5[%c0_29, %c0_30, %c0_31, %c0_32] : memref<1x1x16x128xbf16, #tpu.memory_space<vmem>>, vector<1x1x16x128xbf16>
    %41 = vector.shape_cast %40 : vector<1x1x16x128xbf16> to vector<16x128xbf16>
    %42 = vector.shape_cast %39 : vector<16x128xbf16> to vector<1x1x16x128xbf16>
    tpu.vector_store %arg5[%c0_29, %c0_30, %c0_31, %c0_32], %42 {strides = array<i32>} : memref<1x1x16x128xbf16, #tpu.memory_space<vmem>>, vector<1x1x16x128xbf16>,
    return
  }
  func.func @transform_0(%arg0: i32, %arg1: i32) -> (i32, i32, i32, i32) {
    %c0_i32 = arith.constant 0 : i32
    %c0_i32_0 = arith.constant 0 : i32
    %c0_i32_1 = arith.constant 0 : i32
    %c0_i32_2 = arith.constant 0 : i32
    return %arg0, %c0_i32, %c0_i32_0, %c0_i32_1 : i32, i32, i32, i32
  }
  func.func @transform_1(%arg0: i32, %arg1: i32) -> (i32, i32, i32) {
    %c0_i32 = arith.constant 0 : i32
    %c0_i32_0 = arith.constant 0 : i32
    %c0_i32_1 = arith.constant 0 : i32
    %c0_i32_2 = arith.constant 0 : i32
    return %c0_i32, %c0_i32_0, %c0_i32_1 : i32, i32, i32
  }
  func.func @transform_2(%arg0: i32, %arg1: i32) -> (i32, i32) {
    %c0_i32 = arith.constant 0 : i32
    %c0_i32_0 = arith.constant 0 : i32
    %c0_i32_1 = arith.constant 0 : i32
    return %c0_i32, %c0_i32_0 : i32, i32
  }
  func.func @transform_3(%arg0: i32, %arg1: i32) -> (i32, i32, i32, i32) {
    %c0_i32 = arith.constant 0 : i32
    %c0_i32_0 = arith.constant 0 : i32
    %c0_i32_1 = arith.constant 0 : i32
    return %arg0, %arg1, %c0_i32, %c0_i32_0 : i32, i32, i32, i32
  }
}

module attributes {stable_mosaic.version = 11 : i64} {
  func.func @_conv_kernel(%arg0: i32, %arg1: i32, %arg2: memref<1x9x9x512xbf16, #tpu.memory_space<vmem>>, %arg3: memref<4x512x128xbf16, #tpu.memory_space<vmem>>, %arg4: memref<1x128xf32, #tpu.memory_space<vmem>>, %arg5: memref<1x1x8x128xf32, #tpu.memory_space<vmem>>, %arg6: memref<1x128xf32, #tpu.memory_space<vmem>>, %arg7: memref<1x128xf32, #tpu.memory_space<vmem>>) attributes {dimension_semantics = [#tpu.dimension_semantics<arbitrary>, #tpu.dimension_semantics<arbitrary>], iteration_bounds = array<i64: 2, 8>, scalar_prefetch = 0 : i64, scratch_operands = 0 : i64, tpu.core_type = #tpu.core_type<tc>, window_params = [{transform_indices = @transform_0, window_bounds = array<i64: 1, 9, 9, 512>}, {pipeline_mode = #tpu.pipeline_mode<synchronous>, transform_indices = @transform_1, window_bounds = array<i64: 4, 512, 128>}, {pipeline_mode = #tpu.pipeline_mode<synchronous>, transform_indices = @transform_2, window_bounds = array<i64: 1, 128>}, {transform_indices = @transform_3, window_bounds = array<i64: 1, 1, 8, 128>}, {pipeline_mode = #tpu.pipeline_mode<synchronous>, transform_indices = @transform_4, window_bounds = array<i64: 1, 128>}, {pipeline_mode = #tpu.pipeline_mode<synchronous>, transform_indices = @transform_5, window_bounds = array<i64: 1, 128>}]} {
    %c0_i32 = arith.constant 0 : i32
    %0 = arith.addi %arg1, %c0_i32 : i32
    %c0 = arith.constant 0 : index
    %1 = arith.index_cast %0 : i32 to index
    %c0_0 = arith.constant 0 : index
    %c0_1 = arith.constant 0 : index
    %2 = vector.load %arg2[%c0, %1, %c0_0, %c0_1] : memref<1x9x9x512xbf16, #tpu.memory_space<vmem>>, vector<1x1x8x512xbf16>
    %3 = vector.shape_cast %2 : vector<1x1x8x512xbf16> to vector<8x512xbf16>
    %c0_2 = arith.constant 0 : index
    %c0_3 = arith.constant 0 : index
    %c0_4 = arith.constant 0 : index
    %4 = vector.load %arg3[%c0_2, %c0_3, %c0_4] : memref<4x512x128xbf16, #tpu.memory_space<vmem>>, vector<1x512x128xbf16>
    %5 = vector.shape_cast %4 : vector<1x512x128xbf16> to vector<512x128xbf16>
    %cst = arith.constant dense<0.000000e+00> : vector<8x128xf32>
    %6 = tpu.matmul %3, %5, %cst {dimension_numbers = #tpu.dot_dimension_numbers<[1], [0], [0], [1], [0, 0, 1, 1], [], []>} : vector<8x512xbf16>, vector<512x128xbf16>, vector<8x128xf32> -> vector<8x128xf32>
    %c0_i32_5 = arith.constant 0 : i32
    %7 = arith.addi %arg1, %c0_i32_5 : i32
    %c0_6 = arith.constant 0 : index
    %8 = arith.index_cast %7 : i32 to index
    %c1 = arith.constant 1 : index
    %c0_7 = arith.constant 0 : index
    %9 = vector.load %arg2[%c0_6, %8, %c1, %c0_7] : memref<1x9x9x512xbf16, #tpu.memory_space<vmem>>, vector<1x1x8x512xbf16>
    %10 = vector.shape_cast %9 : vector<1x1x8x512xbf16> to vector<8x512xbf16>
    %c1_8 = arith.constant 1 : index
    %c0_9 = arith.constant 0 : index
    %c0_10 = arith.constant 0 : index
    %11 = vector.load %arg3[%c1_8, %c0_9, %c0_10] : memref<4x512x128xbf16, #tpu.memory_space<vmem>>, vector<1x512x128xbf16>
    %12 = vector.shape_cast %11 : vector<1x512x128xbf16> to vector<512x128xbf16>
    %cst_11 = arith.constant dense<0.000000e+00> : vector<8x128xf32>
    %13 = tpu.matmul %10, %12, %cst_11 {dimension_numbers = #tpu.dot_dimension_numbers<[1], [0], [0], [1], [0, 0, 1, 1], [], []>} : vector<8x512xbf16>, vector<512x128xbf16>, vector<8x128xf32> -> vector<8x128xf32>
    %14 = arith.addf %6, %13 : vector<8x128xf32>
    %c1_i32 = arith.constant 1 : i32
    %15 = arith.addi %arg1, %c1_i32 : i32
    %c0_12 = arith.constant 0 : index
    %16 = arith.index_cast %15 : i32 to index
    %c0_13 = arith.constant 0 : index
    %c0_14 = arith.constant 0 : index
    %17 = vector.load %arg2[%c0_12, %16, %c0_13, %c0_14] : memref<1x9x9x512xbf16, #tpu.memory_space<vmem>>, vector<1x1x8x512xbf16>
    %18 = vector.shape_cast %17 : vector<1x1x8x512xbf16> to vector<8x512xbf16>
    %c2 = arith.constant 2 : index
    %c0_15 = arith.constant 0 : index
    %c0_16 = arith.constant 0 : index
    %19 = vector.load %arg3[%c2, %c0_15, %c0_16] : memref<4x512x128xbf16, #tpu.memory_space<vmem>>, vector<1x512x128xbf16>
    %20 = vector.shape_cast %19 : vector<1x512x128xbf16> to vector<512x128xbf16>
    %cst_17 = arith.constant dense<0.000000e+00> : vector<8x128xf32>
    %21 = tpu.matmul %18, %20, %cst_17 {dimension_numbers = #tpu.dot_dimension_numbers<[1], [0], [0], [1], [0, 0, 1, 1], [], []>} : vector<8x512xbf16>, vector<512x128xbf16>, vector<8x128xf32> -> vector<8x128xf32>
    %22 = arith.addf %14, %21 : vector<8x128xf32>
    %c1_i32_18 = arith.constant 1 : i32
    %23 = arith.addi %arg1, %c1_i32_18 : i32
    %c0_19 = arith.constant 0 : index
    %24 = arith.index_cast %23 : i32 to index
    %c1_20 = arith.constant 1 : index
    %c0_21 = arith.constant 0 : index
    %25 = vector.load %arg2[%c0_19, %24, %c1_20, %c0_21] : memref<1x9x9x512xbf16, #tpu.memory_space<vmem>>, vector<1x1x8x512xbf16>
    %26 = vector.shape_cast %25 : vector<1x1x8x512xbf16> to vector<8x512xbf16>
    %c3 = arith.constant 3 : index
    %c0_22 = arith.constant 0 : index
    %c0_23 = arith.constant 0 : index
    %27 = vector.load %arg3[%c3, %c0_22, %c0_23] : memref<4x512x128xbf16, #tpu.memory_space<vmem>>, vector<1x512x128xbf16>
    %28 = vector.shape_cast %27 : vector<1x512x128xbf16> to vector<512x128xbf16>
    %cst_24 = arith.constant dense<0.000000e+00> : vector<8x128xf32>
    %29 = tpu.matmul %26, %28, %cst_24 {dimension_numbers = #tpu.dot_dimension_numbers<[1], [0], [0], [1], [0, 0, 1, 1], [], []>} : vector<8x512xbf16>, vector<512x128xbf16>, vector<8x128xf32> -> vector<8x128xf32>
    %30 = arith.addf %22, %29 : vector<8x128xf32>
    %c0_25 = arith.constant 0 : index
    %c0_26 = arith.constant 0 : index
    %c0_27 = arith.constant 0 : index
    %c0_28 = arith.constant 0 : index
    %31 = vector.load %arg5[%c0_25, %c0_26, %c0_27, %c0_28] : memref<1x1x8x128xf32, #tpu.memory_space<vmem>>, vector<1x1x8x128xf32>
    %32 = vector.shape_cast %31 : vector<1x1x8x128xf32> to vector<8x128xf32>
    %33 = vector.shape_cast %30 : vector<8x128xf32> to vector<1x1x8x128xf32>
    tpu.vector_store %arg5[%c0_25, %c0_26, %c0_27, %c0_28], %33 {strides = array<i32>} : memref<1x1x8x128xf32, #tpu.memory_space<vmem>>, vector<1x1x8x128xf32>,
    %c0_i32_29 = arith.constant 0 : i32
    %34 = arith.cmpi eq, %arg0, %c0_i32_29 : i32
    %c0_i32_30 = arith.constant 0 : i32
    %35 = arith.cmpi eq, %arg1, %c0_i32_30 : i32
    %36 = arith.andi %34, %35 : i1
    %37 = arith.extui %36 : i1 to i32
    %c0_i32_31 = arith.constant 0 : i32
    %38 = arith.cmpi ne, %37, %c0_i32_31 : i32
    scf.if %38 {
      %cst_42 = arith.constant 0.000000e+00 : f32
      %50 = vector.broadcast %cst_42 : f32 to vector<1x128xf32>
      %c0_43 = arith.constant 0 : index
      %c0_44 = arith.constant 0 : index
      %51 = vector.load %arg6[%c0_43, %c0_44] : memref<1x128xf32, #tpu.memory_space<vmem>>, vector<1x128xf32>
      tpu.vector_store %arg6[%c0_43, %c0_44], %50 {strides = array<i32>} : memref<1x128xf32, #tpu.memory_space<vmem>>, vector<1x128xf32>,
      %cst_45 = arith.constant 0.000000e+00 : f32
      %52 = vector.broadcast %cst_45 : f32 to vector<1x128xf32>
      %c0_46 = arith.constant 0 : index
      %c0_47 = arith.constant 0 : index
      %53 = vector.load %arg7[%c0_46, %c0_47] : memref<1x128xf32, #tpu.memory_space<vmem>>, vector<1x128xf32>
      tpu.vector_store %arg7[%c0_46, %c0_47], %52 {strides = array<i32>} : memref<1x128xf32, #tpu.memory_space<vmem>>, vector<1x128xf32>,
    } else {
    }
    %c0_32 = arith.constant 0 : index
    %c0_33 = arith.constant 0 : index
    %39 = vector.load %arg6[%c0_32, %c0_33] : memref<1x128xf32, #tpu.memory_space<vmem>>, vector<1x128xf32>
    %cst_34 = arith.constant dense<0.000000e+00> : vector<128xf32>
    %40 = vector.multi_reduction <add>, %30, %cst_34 [0] : vector<8x128xf32> to vector<128xf32>
    %41 = vector.shape_cast %40 : vector<128xf32> to vector<1x128xf32>
    %42 = arith.addf %39, %41 : vector<1x128xf32>
    %c0_35 = arith.constant 0 : index
    %c0_36 = arith.constant 0 : index
    %43 = vector.load %arg6[%c0_35, %c0_36] : memref<1x128xf32, #tpu.memory_space<vmem>>, vector<1x128xf32>
    tpu.vector_store %arg6[%c0_35, %c0_36], %42 {strides = array<i32>} : memref<1x128xf32, #tpu.memory_space<vmem>>, vector<1x128xf32>,
    %c0_37 = arith.constant 0 : index
    %c0_38 = arith.constant 0 : index
    %44 = vector.load %arg7[%c0_37, %c0_38] : memref<1x128xf32, #tpu.memory_space<vmem>>, vector<1x128xf32>
    %45 = arith.mulf %30, %30 : vector<8x128xf32>
    %cst_39 = arith.constant dense<0.000000e+00> : vector<128xf32>
    %46 = vector.multi_reduction <add>, %45, %cst_39 [0] : vector<8x128xf32> to vector<128xf32>
    %47 = vector.shape_cast %46 : vector<128xf32> to vector<1x128xf32>
    %48 = arith.addf %44, %47 : vector<1x128xf32>
    %c0_40 = arith.constant 0 : index
    %c0_41 = arith.constant 0 : index
    %49 = vector.load %arg7[%c0_40, %c0_41] : memref<1x128xf32, #tpu.memory_space<vmem>>, vector<1x128xf32>
    tpu.vector_store %arg7[%c0_40, %c0_41], %48 {strides = array<i32>} : memref<1x128xf32, #tpu.memory_space<vmem>>, vector<1x128xf32>,
    return
  }
  func.func @transform_0(%arg0: i32, %arg1: i32) -> (i32, i32, i32, i32) {
    %c0_i32 = arith.constant 0 : i32
    %c0_i32_0 = arith.constant 0 : i32
    %c0_i32_1 = arith.constant 0 : i32
    %c0_i32_2 = arith.constant 0 : i32
    return %arg0, %c0_i32, %c0_i32_0, %c0_i32_1 : i32, i32, i32, i32
  }
  func.func @transform_1(%arg0: i32, %arg1: i32) -> (i32, i32, i32) {
    %c0_i32 = arith.constant 0 : i32
    %c0_i32_0 = arith.constant 0 : i32
    %c0_i32_1 = arith.constant 0 : i32
    %c0_i32_2 = arith.constant 0 : i32
    return %c0_i32, %c0_i32_0, %c0_i32_1 : i32, i32, i32
  }
  func.func @transform_2(%arg0: i32, %arg1: i32) -> (i32, i32) {
    %c0_i32 = arith.constant 0 : i32
    %c0_i32_0 = arith.constant 0 : i32
    %c0_i32_1 = arith.constant 0 : i32
    return %c0_i32, %c0_i32_0 : i32, i32
  }
  func.func @transform_3(%arg0: i32, %arg1: i32) -> (i32, i32, i32, i32) {
    %c0_i32 = arith.constant 0 : i32
    %c0_i32_0 = arith.constant 0 : i32
    %c0_i32_1 = arith.constant 0 : i32
    return %arg0, %arg1, %c0_i32, %c0_i32_0 : i32, i32, i32, i32
  }
  func.func @transform_4(%arg0: i32, %arg1: i32) -> (i32, i32) {
    %c0_i32 = arith.constant 0 : i32
    %c0_i32_0 = arith.constant 0 : i32
    %c0_i32_1 = arith.constant 0 : i32
    return %c0_i32, %c0_i32_0 : i32, i32
  }
  func.func @transform_5(%arg0: i32, %arg1: i32) -> (i32, i32) {
    %c0_i32 = arith.constant 0 : i32
    %c0_i32_0 = arith.constant 0 : i32
    %c0_i32_1 = arith.constant 0 : i32
    return %c0_i32, %c0_i32_0 : i32, i32
  }
}

module attributes {stable_mosaic.version = 11 : i64} {
  func.func @_bn_act_kernel(%arg0: i32, %arg1: i32, %arg2: memref<1x1x8x128xf32, #tpu.memory_space<vmem>>, %arg3: memref<1x128xf32, #tpu.memory_space<vmem>>, %arg4: memref<1x128xf32, #tpu.memory_space<vmem>>, %arg5: memref<1x128xf32, #tpu.memory_space<vmem>>, %arg6: memref<1x128xf32, #tpu.memory_space<vmem>>, %arg7: memref<1x1x8x128xbf16, #tpu.memory_space<vmem>>) attributes {dimension_semantics = [#tpu.dimension_semantics<parallel>, #tpu.dimension_semantics<parallel>], iteration_bounds = array<i64: 2, 8>, scalar_prefetch = 0 : i64, scratch_operands = 0 : i64, tpu.core_type = #tpu.core_type<tc>, window_params = [{transform_indices = @transform_0, window_bounds = array<i64: 1, 1, 8, 128>}, {pipeline_mode = #tpu.pipeline_mode<synchronous>, transform_indices = @transform_1, window_bounds = array<i64: 1, 128>}, {pipeline_mode = #tpu.pipeline_mode<synchronous>, transform_indices = @transform_2, window_bounds = array<i64: 1, 128>}, {pipeline_mode = #tpu.pipeline_mode<synchronous>, transform_indices = @transform_3, window_bounds = array<i64: 1, 128>}, {pipeline_mode = #tpu.pipeline_mode<synchronous>, transform_indices = @transform_4, window_bounds = array<i64: 1, 128>}, {transform_indices = @transform_5, window_bounds = array<i64: 1, 1, 8, 128>}]} {
    %c0 = arith.constant 0 : index
    %c0_0 = arith.constant 0 : index
    %0 = vector.load %arg3[%c0, %c0_0] : memref<1x128xf32, #tpu.memory_space<vmem>>, vector<1x128xf32>
    %cst = arith.constant 7.812500e-03 : f32
    %1 = vector.broadcast %cst : f32 to vector<1x128xf32>
    %2 = arith.mulf %0, %1 : vector<1x128xf32>
    %c0_1 = arith.constant 0 : index
    %c0_2 = arith.constant 0 : index
    %3 = vector.load %arg4[%c0_1, %c0_2] : memref<1x128xf32, #tpu.memory_space<vmem>>, vector<1x128xf32>
    %cst_3 = arith.constant 7.812500e-03 : f32
    %4 = vector.broadcast %cst_3 : f32 to vector<1x128xf32>
    %5 = arith.mulf %3, %4 : vector<1x128xf32>
    %6 = arith.mulf %2, %2 : vector<1x128xf32>
    %7 = arith.subf %5, %6 : vector<1x128xf32>
    %c0_4 = arith.constant 0 : index
    %c0_5 = arith.constant 0 : index
    %8 = vector.load %arg5[%c0_4, %c0_5] : memref<1x128xf32, #tpu.memory_space<vmem>>, vector<1x128xf32>
    %cst_6 = arith.constant 9.99999974E-6 : f32
    %9 = vector.broadcast %cst_6 : f32 to vector<1x128xf32>
    %10 = arith.addf %7, %9 : vector<1x128xf32>
    %11 = math.rsqrt %10 : vector<1x128xf32>
    %12 = arith.mulf %8, %11 : vector<1x128xf32>
    %c0_7 = arith.constant 0 : index
    %c0_8 = arith.constant 0 : index
    %13 = vector.load %arg6[%c0_7, %c0_8] : memref<1x128xf32, #tpu.memory_space<vmem>>, vector<1x128xf32>
    %14 = arith.mulf %2, %12 : vector<1x128xf32>
    %15 = arith.subf %13, %14 : vector<1x128xf32>
    %c0_9 = arith.constant 0 : index
    %c0_10 = arith.constant 0 : index
    %c0_11 = arith.constant 0 : index
    %c0_12 = arith.constant 0 : index
    %16 = vector.load %arg2[%c0_9, %c0_10, %c0_11, %c0_12] : memref<1x1x8x128xf32, #tpu.memory_space<vmem>>, vector<1x1x8x128xf32>
    %17 = vector.shape_cast %16 : vector<1x1x8x128xf32> to vector<8x128xf32>
    %18 = vector.broadcast %12 : vector<1x128xf32> to vector<8x128xf32>
    %19 = arith.mulf %17, %18 : vector<8x128xf32>
    %20 = vector.broadcast %15 : vector<1x128xf32> to vector<8x128xf32>
    %21 = arith.addf %19, %20 : vector<8x128xf32>
    %cst_13 = arith.constant 0.000000e+00 : f32
    %22 = vector.broadcast %cst_13 : f32 to vector<8x128xf32>
    %23 = arith.cmpf ogt, %21, %22 : vector<8x128xf32>
    %cst_14 = arith.constant 2.000000e-01 : f32
    %24 = vector.broadcast %cst_14 : f32 to vector<8x128xf32>
    %25 = arith.mulf %24, %21 : vector<8x128xf32>
    %26 = arith.select %23, %21, %25 : vector<8x128xi1>, vector<8x128xf32>
    %27 = arith.truncf %26 : vector<8x128xf32> to vector<8x128xbf16>
    %c0_15 = arith.constant 0 : index
    %c0_16 = arith.constant 0 : index
    %c0_17 = arith.constant 0 : index
    %c0_18 = arith.constant 0 : index
    %28 = vector.load %arg7[%c0_15, %c0_16, %c0_17, %c0_18] : memref<1x1x8x128xbf16, #tpu.memory_space<vmem>>, vector<1x1x8x128xbf16>
    %29 = vector.shape_cast %28 : vector<1x1x8x128xbf16> to vector<8x128xbf16>
    %30 = vector.shape_cast %27 : vector<8x128xbf16> to vector<1x1x8x128xbf16>
    tpu.vector_store %arg7[%c0_15, %c0_16, %c0_17, %c0_18], %30 {strides = array<i32>} : memref<1x1x8x128xbf16, #tpu.memory_space<vmem>>, vector<1x1x8x128xbf16>,
    return
  }
  func.func @transform_0(%arg0: i32, %arg1: i32) -> (i32, i32, i32, i32) {
    %c0_i32 = arith.constant 0 : i32
    %c0_i32_0 = arith.constant 0 : i32
    %c0_i32_1 = arith.constant 0 : i32
    return %arg0, %arg1, %c0_i32, %c0_i32_0 : i32, i32, i32, i32
  }
  func.func @transform_1(%arg0: i32, %arg1: i32) -> (i32, i32) {
    %c0_i32 = arith.constant 0 : i32
    %c0_i32_0 = arith.constant 0 : i32
    %c0_i32_1 = arith.constant 0 : i32
    return %c0_i32, %c0_i32_0 : i32, i32
  }
  func.func @transform_2(%arg0: i32, %arg1: i32) -> (i32, i32) {
    %c0_i32 = arith.constant 0 : i32
    %c0_i32_0 = arith.constant 0 : i32
    %c0_i32_1 = arith.constant 0 : i32
    return %c0_i32, %c0_i32_0 : i32, i32
  }
  func.func @transform_3(%arg0: i32, %arg1: i32) -> (i32, i32) {
    %c0_i32 = arith.constant 0 : i32
    %c0_i32_0 = arith.constant 0 : i32
    %c0_i32_1 = arith.constant 0 : i32
    return %c0_i32, %c0_i32_0 : i32, i32
  }
  func.func @transform_4(%arg0: i32, %arg1: i32) -> (i32, i32) {
    %c0_i32 = arith.constant 0 : i32
    %c0_i32_0 = arith.constant 0 : i32
    %c0_i32_1 = arith.constant 0 : i32
    return %c0_i32, %c0_i32_0 : i32, i32
  }
  func.func @transform_5(%arg0: i32, %arg1: i32) -> (i32, i32, i32, i32) {
    %c0_i32 = arith.constant 0 : i32
    %c0_i32_0 = arith.constant 0 : i32
    %c0_i32_1 = arith.constant 0 : i32
    return %arg0, %arg1, %c0_i32, %c0_i32_0 : i32, i32, i32, i32
  }
}

module attributes {stable_mosaic.version = 11 : i64} {
  func.func @_conv_kernel(%arg0: i32, %arg1: i32, %arg2: memref<1x5x5x512xbf16, #tpu.memory_space<vmem>>, %arg3: memref<4x512x128xbf16, #tpu.memory_space<vmem>>, %arg4: memref<1x128xf32, #tpu.memory_space<vmem>>, %arg5: memref<1x1x4x128xf32, #tpu.memory_space<vmem>>, %arg6: memref<1x128xf32, #tpu.memory_space<vmem>>, %arg7: memref<1x128xf32, #tpu.memory_space<vmem>>) attributes {dimension_semantics = [#tpu.dimension_semantics<arbitrary>, #tpu.dimension_semantics<arbitrary>], iteration_bounds = array<i64: 2, 4>, scalar_prefetch = 0 : i64, scratch_operands = 0 : i64, tpu.core_type = #tpu.core_type<tc>, window_params = [{transform_indices = @transform_0, window_bounds = array<i64: 1, 5, 5, 512>}, {pipeline_mode = #tpu.pipeline_mode<synchronous>, transform_indices = @transform_1, window_bounds = array<i64: 4, 512, 128>}, {pipeline_mode = #tpu.pipeline_mode<synchronous>, transform_indices = @transform_2, window_bounds = array<i64: 1, 128>}, {transform_indices = @transform_3, window_bounds = array<i64: 1, 1, 4, 128>}, {pipeline_mode = #tpu.pipeline_mode<synchronous>, transform_indices = @transform_4, window_bounds = array<i64: 1, 128>}, {pipeline_mode = #tpu.pipeline_mode<synchronous>, transform_indices = @transform_5, window_bounds = array<i64: 1, 128>}]} {
    %c0_i32 = arith.constant 0 : i32
    %0 = arith.addi %arg1, %c0_i32 : i32
    %c0 = arith.constant 0 : index
    %1 = arith.index_cast %0 : i32 to index
    %c0_0 = arith.constant 0 : index
    %c0_1 = arith.constant 0 : index
    %2 = vector.load %arg2[%c0, %1, %c0_0, %c0_1] : memref<1x5x5x512xbf16, #tpu.memory_space<vmem>>, vector<1x1x4x512xbf16>
    %3 = vector.shape_cast %2 : vector<1x1x4x512xbf16> to vector<4x512xbf16>
    %c0_2 = arith.constant 0 : index
    %c0_3 = arith.constant 0 : index
    %c0_4 = arith.constant 0 : index
    %4 = vector.load %arg3[%c0_2, %c0_3, %c0_4] : memref<4x512x128xbf16, #tpu.memory_space<vmem>>, vector<1x512x128xbf16>
    %5 = vector.shape_cast %4 : vector<1x512x128xbf16> to vector<512x128xbf16>
    %cst = arith.constant dense<0.000000e+00> : vector<4x128xf32>
    %6 = tpu.matmul %3, %5, %cst {dimension_numbers = #tpu.dot_dimension_numbers<[1], [0], [0], [1], [0, 0, 1, 1], [], []>} : vector<4x512xbf16>, vector<512x128xbf16>, vector<4x128xf32> -> vector<4x128xf32>
    %c0_i32_5 = arith.constant 0 : i32
    %7 = arith.addi %arg1, %c0_i32_5 : i32
    %c0_6 = arith.constant 0 : index
    %8 = arith.index_cast %7 : i32 to index
    %c1 = arith.constant 1 : index
    %c0_7 = arith.constant 0 : index
    %9 = vector.load %arg2[%c0_6, %8, %c1, %c0_7] : memref<1x5x5x512xbf16, #tpu.memory_space<vmem>>, vector<1x1x4x512xbf16>
    %10 = vector.shape_cast %9 : vector<1x1x4x512xbf16> to vector<4x512xbf16>
    %c1_8 = arith.constant 1 : index
    %c0_9 = arith.constant 0 : index
    %c0_10 = arith.constant 0 : index
    %11 = vector.load %arg3[%c1_8, %c0_9, %c0_10] : memref<4x512x128xbf16, #tpu.memory_space<vmem>>, vector<1x512x128xbf16>
    %12 = vector.shape_cast %11 : vector<1x512x128xbf16> to vector<512x128xbf16>
    %cst_11 = arith.constant dense<0.000000e+00> : vector<4x128xf32>
    %13 = tpu.matmul %10, %12, %cst_11 {dimension_numbers = #tpu.dot_dimension_numbers<[1], [0], [0], [1], [0, 0, 1, 1], [], []>} : vector<4x512xbf16>, vector<512x128xbf16>, vector<4x128xf32> -> vector<4x128xf32>
    %14 = arith.addf %6, %13 : vector<4x128xf32>
    %c1_i32 = arith.constant 1 : i32
    %15 = arith.addi %arg1, %c1_i32 : i32
    %c0_12 = arith.constant 0 : index
    %16 = arith.index_cast %15 : i32 to index
    %c0_13 = arith.constant 0 : index
    %c0_14 = arith.constant 0 : index
    %17 = vector.load %arg2[%c0_12, %16, %c0_13, %c0_14] : memref<1x5x5x512xbf16, #tpu.memory_space<vmem>>, vector<1x1x4x512xbf16>
    %18 = vector.shape_cast %17 : vector<1x1x4x512xbf16> to vector<4x512xbf16>
    %c2 = arith.constant 2 : index
    %c0_15 = arith.constant 0 : index
    %c0_16 = arith.constant 0 : index
    %19 = vector.load %arg3[%c2, %c0_15, %c0_16] : memref<4x512x128xbf16, #tpu.memory_space<vmem>>, vector<1x512x128xbf16>
    %20 = vector.shape_cast %19 : vector<1x512x128xbf16> to vector<512x128xbf16>
    %cst_17 = arith.constant dense<0.000000e+00> : vector<4x128xf32>
    %21 = tpu.matmul %18, %20, %cst_17 {dimension_numbers = #tpu.dot_dimension_numbers<[1], [0], [0], [1], [0, 0, 1, 1], [], []>} : vector<4x512xbf16>, vector<512x128xbf16>, vector<4x128xf32> -> vector<4x128xf32>
    %22 = arith.addf %14, %21 : vector<4x128xf32>
    %c1_i32_18 = arith.constant 1 : i32
    %23 = arith.addi %arg1, %c1_i32_18 : i32
    %c0_19 = arith.constant 0 : index
    %24 = arith.index_cast %23 : i32 to index
    %c1_20 = arith.constant 1 : index
    %c0_21 = arith.constant 0 : index
    %25 = vector.load %arg2[%c0_19, %24, %c1_20, %c0_21] : memref<1x5x5x512xbf16, #tpu.memory_space<vmem>>, vector<1x1x4x512xbf16>
    %26 = vector.shape_cast %25 : vector<1x1x4x512xbf16> to vector<4x512xbf16>
    %c3 = arith.constant 3 : index
    %c0_22 = arith.constant 0 : index
    %c0_23 = arith.constant 0 : index
    %27 = vector.load %arg3[%c3, %c0_22, %c0_23] : memref<4x512x128xbf16, #tpu.memory_space<vmem>>, vector<1x512x128xbf16>
    %28 = vector.shape_cast %27 : vector<1x512x128xbf16> to vector<512x128xbf16>
    %cst_24 = arith.constant dense<0.000000e+00> : vector<4x128xf32>
    %29 = tpu.matmul %26, %28, %cst_24 {dimension_numbers = #tpu.dot_dimension_numbers<[1], [0], [0], [1], [0, 0, 1, 1], [], []>} : vector<4x512xbf16>, vector<512x128xbf16>, vector<4x128xf32> -> vector<4x128xf32>
    %30 = arith.addf %22, %29 : vector<4x128xf32>
    %c0_25 = arith.constant 0 : index
    %c0_26 = arith.constant 0 : index
    %c0_27 = arith.constant 0 : index
    %c0_28 = arith.constant 0 : index
    %31 = vector.load %arg5[%c0_25, %c0_26, %c0_27, %c0_28] : memref<1x1x4x128xf32, #tpu.memory_space<vmem>>, vector<1x1x4x128xf32>
    %32 = vector.shape_cast %31 : vector<1x1x4x128xf32> to vector<4x128xf32>
    %33 = vector.shape_cast %30 : vector<4x128xf32> to vector<1x1x4x128xf32>
    tpu.vector_store %arg5[%c0_25, %c0_26, %c0_27, %c0_28], %33 {strides = array<i32>} : memref<1x1x4x128xf32, #tpu.memory_space<vmem>>, vector<1x1x4x128xf32>,
    %c0_i32_29 = arith.constant 0 : i32
    %34 = arith.cmpi eq, %arg0, %c0_i32_29 : i32
    %c0_i32_30 = arith.constant 0 : i32
    %35 = arith.cmpi eq, %arg1, %c0_i32_30 : i32
    %36 = arith.andi %34, %35 : i1
    %37 = arith.extui %36 : i1 to i32
    %c0_i32_31 = arith.constant 0 : i32
    %38 = arith.cmpi ne, %37, %c0_i32_31 : i32
    scf.if %38 {
      %cst_42 = arith.constant 0.000000e+00 : f32
      %50 = vector.broadcast %cst_42 : f32 to vector<1x128xf32>
      %c0_43 = arith.constant 0 : index
      %c0_44 = arith.constant 0 : index
      %51 = vector.load %arg6[%c0_43, %c0_44] : memref<1x128xf32, #tpu.memory_space<vmem>>, vector<1x128xf32>
      tpu.vector_store %arg6[%c0_43, %c0_44], %50 {strides = array<i32>} : memref<1x128xf32, #tpu.memory_space<vmem>>, vector<1x128xf32>,
      %cst_45 = arith.constant 0.000000e+00 : f32
      %52 = vector.broadcast %cst_45 : f32 to vector<1x128xf32>
      %c0_46 = arith.constant 0 : index
      %c0_47 = arith.constant 0 : index
      %53 = vector.load %arg7[%c0_46, %c0_47] : memref<1x128xf32, #tpu.memory_space<vmem>>, vector<1x128xf32>
      tpu.vector_store %arg7[%c0_46, %c0_47], %52 {strides = array<i32>} : memref<1x128xf32, #tpu.memory_space<vmem>>, vector<1x128xf32>,
    } else {
    }
    %c0_32 = arith.constant 0 : index
    %c0_33 = arith.constant 0 : index
    %39 = vector.load %arg6[%c0_32, %c0_33] : memref<1x128xf32, #tpu.memory_space<vmem>>, vector<1x128xf32>
    %cst_34 = arith.constant dense<0.000000e+00> : vector<128xf32>
    %40 = vector.multi_reduction <add>, %30, %cst_34 [0] : vector<4x128xf32> to vector<128xf32>
    %41 = vector.shape_cast %40 : vector<128xf32> to vector<1x128xf32>
    %42 = arith.addf %39, %41 : vector<1x128xf32>
    %c0_35 = arith.constant 0 : index
    %c0_36 = arith.constant 0 : index
    %43 = vector.load %arg6[%c0_35, %c0_36] : memref<1x128xf32, #tpu.memory_space<vmem>>, vector<1x128xf32>
    tpu.vector_store %arg6[%c0_35, %c0_36], %42 {strides = array<i32>} : memref<1x128xf32, #tpu.memory_space<vmem>>, vector<1x128xf32>,
    %c0_37 = arith.constant 0 : index
    %c0_38 = arith.constant 0 : index
    %44 = vector.load %arg7[%c0_37, %c0_38] : memref<1x128xf32, #tpu.memory_space<vmem>>, vector<1x128xf32>
    %45 = arith.mulf %30, %30 : vector<4x128xf32>
    %cst_39 = arith.constant dense<0.000000e+00> : vector<128xf32>
    %46 = vector.multi_reduction <add>, %45, %cst_39 [0] : vector<4x128xf32> to vector<128xf32>
    %47 = vector.shape_cast %46 : vector<128xf32> to vector<1x128xf32>
    %48 = arith.addf %44, %47 : vector<1x128xf32>
    %c0_40 = arith.constant 0 : index
    %c0_41 = arith.constant 0 : index
    %49 = vector.load %arg7[%c0_40, %c0_41] : memref<1x128xf32, #tpu.memory_space<vmem>>, vector<1x128xf32>
    tpu.vector_store %arg7[%c0_40, %c0_41], %48 {strides = array<i32>} : memref<1x128xf32, #tpu.memory_space<vmem>>, vector<1x128xf32>,
    return
  }
  func.func @transform_0(%arg0: i32, %arg1: i32) -> (i32, i32, i32, i32) {
    %c0_i32 = arith.constant 0 : i32
    %c0_i32_0 = arith.constant 0 : i32
    %c0_i32_1 = arith.constant 0 : i32
    %c0_i32_2 = arith.constant 0 : i32
    return %arg0, %c0_i32, %c0_i32_0, %c0_i32_1 : i32, i32, i32, i32
  }
  func.func @transform_1(%arg0: i32, %arg1: i32) -> (i32, i32, i32) {
    %c0_i32 = arith.constant 0 : i32
    %c0_i32_0 = arith.constant 0 : i32
    %c0_i32_1 = arith.constant 0 : i32
    %c0_i32_2 = arith.constant 0 : i32
    return %c0_i32, %c0_i32_0, %c0_i32_1 : i32, i32, i32
  }
  func.func @transform_2(%arg0: i32, %arg1: i32) -> (i32, i32) {
    %c0_i32 = arith.constant 0 : i32
    %c0_i32_0 = arith.constant 0 : i32
    %c0_i32_1 = arith.constant 0 : i32
    return %c0_i32, %c0_i32_0 : i32, i32
  }
  func.func @transform_3(%arg0: i32, %arg1: i32) -> (i32, i32, i32, i32) {
    %c0_i32 = arith.constant 0 : i32
    %c0_i32_0 = arith.constant 0 : i32
    %c0_i32_1 = arith.constant 0 : i32
    return %arg0, %arg1, %c0_i32, %c0_i32_0 : i32, i32, i32, i32
  }
  func.func @transform_4(%arg0: i32, %arg1: i32) -> (i32, i32) {
    %c0_i32 = arith.constant 0 : i32
    %c0_i32_0 = arith.constant 0 : i32
    %c0_i32_1 = arith.constant 0 : i32
    return %c0_i32, %c0_i32_0 : i32, i32
  }
  func.func @transform_5(%arg0: i32, %arg1: i32) -> (i32, i32) {
    %c0_i32 = arith.constant 0 : i32
    %c0_i32_0 = arith.constant 0 : i32
    %c0_i32_1 = arith.constant 0 : i32
    return %c0_i32, %c0_i32_0 : i32, i32
  }
}

module attributes {stable_mosaic.version = 11 : i64} {
  func.func @_conv_kernel(%arg0: i32, %arg1: i32, %arg2: memref<1x6x6x128xbf16, #tpu.memory_space<vmem>>, %arg3: memref<16x128x128xbf16, #tpu.memory_space<vmem>>, %arg4: memref<1x128xf32, #tpu.memory_space<vmem>>, %arg5: memref<1x1x3x128xf32, #tpu.memory_space<vmem>>, %arg6: memref<1x128xf32, #tpu.memory_space<vmem>>, %arg7: memref<1x128xf32, #tpu.memory_space<vmem>>) attributes {dimension_semantics = [#tpu.dimension_semantics<arbitrary>, #tpu.dimension_semantics<arbitrary>], iteration_bounds = array<i64: 2, 3>, scalar_prefetch = 0 : i64, scratch_operands = 0 : i64, tpu.core_type = #tpu.core_type<tc>, window_params = [{transform_indices = @transform_0, window_bounds = array<i64: 1, 6, 6, 128>}, {pipeline_mode = #tpu.pipeline_mode<synchronous>, transform_indices = @transform_1, window_bounds = array<i64: 16, 128, 128>}, {pipeline_mode = #tpu.pipeline_mode<synchronous>, transform_indices = @transform_2, window_bounds = array<i64: 1, 128>}, {transform_indices = @transform_3, window_bounds = array<i64: 1, 1, 3, 128>}, {pipeline_mode = #tpu.pipeline_mode<synchronous>, transform_indices = @transform_4, window_bounds = array<i64: 1, 128>}, {pipeline_mode = #tpu.pipeline_mode<synchronous>, transform_indices = @transform_5, window_bounds = array<i64: 1, 128>}]} {
    %c0_i32 = arith.constant 0 : i32
    %0 = arith.addi %arg1, %c0_i32 : i32
    %c0 = arith.constant 0 : index
    %1 = arith.index_cast %0 : i32 to index
    %c0_0 = arith.constant 0 : index
    %c0_1 = arith.constant 0 : index
    %2 = vector.load %arg2[%c0, %1, %c0_0, %c0_1] : memref<1x6x6x128xbf16, #tpu.memory_space<vmem>>, vector<1x1x3x128xbf16>
    %3 = vector.shape_cast %2 : vector<1x1x3x128xbf16> to vector<3x128xbf16>
    %c0_2 = arith.constant 0 : index
    %c0_3 = arith.constant 0 : index
    %c0_4 = arith.constant 0 : index
    %4 = vector.load %arg3[%c0_2, %c0_3, %c0_4] : memref<16x128x128xbf16, #tpu.memory_space<vmem>>, vector<1x128x128xbf16>
    %5 = vector.shape_cast %4 : vector<1x128x128xbf16> to vector<128x128xbf16>
    %cst = arith.constant dense<0.000000e+00> : vector<3x128xf32>
    %6 = tpu.matmul %3, %5, %cst {dimension_numbers = #tpu.dot_dimension_numbers<[1], [0], [0], [1], [0, 0, 1, 1], [], []>} : vector<3x128xbf16>, vector<128x128xbf16>, vector<3x128xf32> -> vector<3x128xf32>
    %c0_i32_5 = arith.constant 0 : i32
    %7 = arith.addi %arg1, %c0_i32_5 : i32
    %c0_6 = arith.constant 0 : index
    %8 = arith.index_cast %7 : i32 to index
    %c1 = arith.constant 1 : index
    %c0_7 = arith.constant 0 : index
    %9 = vector.load %arg2[%c0_6, %8, %c1, %c0_7] : memref<1x6x6x128xbf16, #tpu.memory_space<vmem>>, vector<1x1x3x128xbf16>
    %10 = vector.shape_cast %9 : vector<1x1x3x128xbf16> to vector<3x128xbf16>
    %c1_8 = arith.constant 1 : index
    %c0_9 = arith.constant 0 : index
    %c0_10 = arith.constant 0 : index
    %11 = vector.load %arg3[%c1_8, %c0_9, %c0_10] : memref<16x128x128xbf16, #tpu.memory_space<vmem>>, vector<1x128x128xbf16>
    %12 = vector.shape_cast %11 : vector<1x128x128xbf16> to vector<128x128xbf16>
    %cst_11 = arith.constant dense<0.000000e+00> : vector<3x128xf32>
    %13 = tpu.matmul %10, %12, %cst_11 {dimension_numbers = #tpu.dot_dimension_numbers<[1], [0], [0], [1], [0, 0, 1, 1], [], []>} : vector<3x128xbf16>, vector<128x128xbf16>, vector<3x128xf32> -> vector<3x128xf32>
    %14 = arith.addf %6, %13 : vector<3x128xf32>
    %c0_i32_12 = arith.constant 0 : i32
    %15 = arith.addi %arg1, %c0_i32_12 : i32
    %c0_13 = arith.constant 0 : index
    %16 = arith.index_cast %15 : i32 to index
    %c2 = arith.constant 2 : index
    %c0_14 = arith.constant 0 : index
    %17 = vector.load %arg2[%c0_13, %16, %c2, %c0_14] : memref<1x6x6x128xbf16, #tpu.memory_space<vmem>>, vector<1x1x3x128xbf16>
    %18 = vector.shape_cast %17 : vector<1x1x3x128xbf16> to vector<3x128xbf16>
    %c2_15 = arith.constant 2 : index
    %c0_16 = arith.constant 0 : index
    %c0_17 = arith.constant 0 : index
    %19 = vector.load %arg3[%c2_15, %c0_16, %c0_17] : memref<16x128x128xbf16, #tpu.memory_space<vmem>>, vector<1x128x128xbf16>
    %20 = vector.shape_cast %19 : vector<1x128x128xbf16> to vector<128x128xbf16>
    %cst_18 = arith.constant dense<0.000000e+00> : vector<3x128xf32>
    %21 = tpu.matmul %18, %20, %cst_18 {dimension_numbers = #tpu.dot_dimension_numbers<[1], [0], [0], [1], [0, 0, 1, 1], [], []>} : vector<3x128xbf16>, vector<128x128xbf16>, vector<3x128xf32> -> vector<3x128xf32>
    %22 = arith.addf %14, %21 : vector<3x128xf32>
    %c0_i32_19 = arith.constant 0 : i32
    %23 = arith.addi %arg1, %c0_i32_19 : i32
    %c0_20 = arith.constant 0 : index
    %24 = arith.index_cast %23 : i32 to index
    %c3 = arith.constant 3 : index
    %c0_21 = arith.constant 0 : index
    %25 = vector.load %arg2[%c0_20, %24, %c3, %c0_21] : memref<1x6x6x128xbf16, #tpu.memory_space<vmem>>, vector<1x1x3x128xbf16>
    %26 = vector.shape_cast %25 : vector<1x1x3x128xbf16> to vector<3x128xbf16>
    %c3_22 = arith.constant 3 : index
    %c0_23 = arith.constant 0 : index
    %c0_24 = arith.constant 0 : index
    %27 = vector.load %arg3[%c3_22, %c0_23, %c0_24] : memref<16x128x128xbf16, #tpu.memory_space<vmem>>, vector<1x128x128xbf16>
    %28 = vector.shape_cast %27 : vector<1x128x128xbf16> to vector<128x128xbf16>
    %cst_25 = arith.constant dense<0.000000e+00> : vector<3x128xf32>
    %29 = tpu.matmul %26, %28, %cst_25 {dimension_numbers = #tpu.dot_dimension_numbers<[1], [0], [0], [1], [0, 0, 1, 1], [], []>} : vector<3x128xbf16>, vector<128x128xbf16>, vector<3x128xf32> -> vector<3x128xf32>
    %30 = arith.addf %22, %29 : vector<3x128xf32>
    %c1_i32 = arith.constant 1 : i32
    %31 = arith.addi %arg1, %c1_i32 : i32
    %c0_26 = arith.constant 0 : index
    %32 = arith.index_cast %31 : i32 to index
    %c0_27 = arith.constant 0 : index
    %c0_28 = arith.constant 0 : index
    %33 = vector.load %arg2[%c0_26, %32, %c0_27, %c0_28] : memref<1x6x6x128xbf16, #tpu.memory_space<vmem>>, vector<1x1x3x128xbf16>
    %34 = vector.shape_cast %33 : vector<1x1x3x128xbf16> to vector<3x128xbf16>
    %c4 = arith.constant 4 : index
    %c0_29 = arith.constant 0 : index
    %c0_30 = arith.constant 0 : index
    %35 = vector.load %arg3[%c4, %c0_29, %c0_30] : memref<16x128x128xbf16, #tpu.memory_space<vmem>>, vector<1x128x128xbf16>
    %36 = vector.shape_cast %35 : vector<1x128x128xbf16> to vector<128x128xbf16>
    %cst_31 = arith.constant dense<0.000000e+00> : vector<3x128xf32>
    %37 = tpu.matmul %34, %36, %cst_31 {dimension_numbers = #tpu.dot_dimension_numbers<[1], [0], [0], [1], [0, 0, 1, 1], [], []>} : vector<3x128xbf16>, vector<128x128xbf16>, vector<3x128xf32> -> vector<3x128xf32>
    %38 = arith.addf %30, %37 : vector<3x128xf32>
    %c1_i32_32 = arith.constant 1 : i32
    %39 = arith.addi %arg1, %c1_i32_32 : i32
    %c0_33 = arith.constant 0 : index
    %40 = arith.index_cast %39 : i32 to index
    %c1_34 = arith.constant 1 : index
    %c0_35 = arith.constant 0 : index
    %41 = vector.load %arg2[%c0_33, %40, %c1_34, %c0_35] : memref<1x6x6x128xbf16, #tpu.memory_space<vmem>>, vector<1x1x3x128xbf16>
    %42 = vector.shape_cast %41 : vector<1x1x3x128xbf16> to vector<3x128xbf16>
    %c5 = arith.constant 5 : index
    %c0_36 = arith.constant 0 : index
    %c0_37 = arith.constant 0 : index
    %43 = vector.load %arg3[%c5, %c0_36, %c0_37] : memref<16x128x128xbf16, #tpu.memory_space<vmem>>, vector<1x128x128xbf16>
    %44 = vector.shape_cast %43 : vector<1x128x128xbf16> to vector<128x128xbf16>
    %cst_38 = arith.constant dense<0.000000e+00> : vector<3x128xf32>
    %45 = tpu.matmul %42, %44, %cst_38 {dimension_numbers = #tpu.dot_dimension_numbers<[1], [0], [0], [1], [0, 0, 1, 1], [], []>} : vector<3x128xbf16>, vector<128x128xbf16>, vector<3x128xf32> -> vector<3x128xf32>
    %46 = arith.addf %38, %45 : vector<3x128xf32>
    %c1_i32_39 = arith.constant 1 : i32
    %47 = arith.addi %arg1, %c1_i32_39 : i32
    %c0_40 = arith.constant 0 : index
    %48 = arith.index_cast %47 : i32 to index
    %c2_41 = arith.constant 2 : index
    %c0_42 = arith.constant 0 : index
    %49 = vector.load %arg2[%c0_40, %48, %c2_41, %c0_42] : memref<1x6x6x128xbf16, #tpu.memory_space<vmem>>, vector<1x1x3x128xbf16>
    %50 = vector.shape_cast %49 : vector<1x1x3x128xbf16> to vector<3x128xbf16>
    %c6 = arith.constant 6 : index
    %c0_43 = arith.constant 0 : index
    %c0_44 = arith.constant 0 : index
    %51 = vector.load %arg3[%c6, %c0_43, %c0_44] : memref<16x128x128xbf16, #tpu.memory_space<vmem>>, vector<1x128x128xbf16>
    %52 = vector.shape_cast %51 : vector<1x128x128xbf16> to vector<128x128xbf16>
    %cst_45 = arith.constant dense<0.000000e+00> : vector<3x128xf32>
    %53 = tpu.matmul %50, %52, %cst_45 {dimension_numbers = #tpu.dot_dimension_numbers<[1], [0], [0], [1], [0, 0, 1, 1], [], []>} : vector<3x128xbf16>, vector<128x128xbf16>, vector<3x128xf32> -> vector<3x128xf32>
    %54 = arith.addf %46, %53 : vector<3x128xf32>
    %c1_i32_46 = arith.constant 1 : i32
    %55 = arith.addi %arg1, %c1_i32_46 : i32
    %c0_47 = arith.constant 0 : index
    %56 = arith.index_cast %55 : i32 to index
    %c3_48 = arith.constant 3 : index
    %c0_49 = arith.constant 0 : index
    %57 = vector.load %arg2[%c0_47, %56, %c3_48, %c0_49] : memref<1x6x6x128xbf16, #tpu.memory_space<vmem>>, vector<1x1x3x128xbf16>
    %58 = vector.shape_cast %57 : vector<1x1x3x128xbf16> to vector<3x128xbf16>
    %c7 = arith.constant 7 : index
    %c0_50 = arith.constant 0 : index
    %c0_51 = arith.constant 0 : index
    %59 = vector.load %arg3[%c7, %c0_50, %c0_51] : memref<16x128x128xbf16, #tpu.memory_space<vmem>>, vector<1x128x128xbf16>
    %60 = vector.shape_cast %59 : vector<1x128x128xbf16> to vector<128x128xbf16>
    %cst_52 = arith.constant dense<0.000000e+00> : vector<3x128xf32>
    %61 = tpu.matmul %58, %60, %cst_52 {dimension_numbers = #tpu.dot_dimension_numbers<[1], [0], [0], [1], [0, 0, 1, 1], [], []>} : vector<3x128xbf16>, vector<128x128xbf16>, vector<3x128xf32> -> vector<3x128xf32>
    %62 = arith.addf %54, %61 : vector<3x128xf32>
    %c2_i32 = arith.constant 2 : i32
    %63 = arith.addi %arg1, %c2_i32 : i32
    %c0_53 = arith.constant 0 : index
    %64 = arith.index_cast %63 : i32 to index
    %c0_54 = arith.constant 0 : index
    %c0_55 = arith.constant 0 : index
    %65 = vector.load %arg2[%c0_53, %64, %c0_54, %c0_55] : memref<1x6x6x128xbf16, #tpu.memory_space<vmem>>, vector<1x1x3x128xbf16>
    %66 = vector.shape_cast %65 : vector<1x1x3x128xbf16> to vector<3x128xbf16>
    %c8 = arith.constant 8 : index
    %c0_56 = arith.constant 0 : index
    %c0_57 = arith.constant 0 : index
    %67 = vector.load %arg3[%c8, %c0_56, %c0_57] : memref<16x128x128xbf16, #tpu.memory_space<vmem>>, vector<1x128x128xbf16>
    %68 = vector.shape_cast %67 : vector<1x128x128xbf16> to vector<128x128xbf16>
    %cst_58 = arith.constant dense<0.000000e+00> : vector<3x128xf32>
    %69 = tpu.matmul %66, %68, %cst_58 {dimension_numbers = #tpu.dot_dimension_numbers<[1], [0], [0], [1], [0, 0, 1, 1], [], []>} : vector<3x128xbf16>, vector<128x128xbf16>, vector<3x128xf32> -> vector<3x128xf32>
    %70 = arith.addf %62, %69 : vector<3x128xf32>
    %c2_i32_59 = arith.constant 2 : i32
    %71 = arith.addi %arg1, %c2_i32_59 : i32
    %c0_60 = arith.constant 0 : index
    %72 = arith.index_cast %71 : i32 to index
    %c1_61 = arith.constant 1 : index
    %c0_62 = arith.constant 0 : index
    %73 = vector.load %arg2[%c0_60, %72, %c1_61, %c0_62] : memref<1x6x6x128xbf16, #tpu.memory_space<vmem>>, vector<1x1x3x128xbf16>
    %74 = vector.shape_cast %73 : vector<1x1x3x128xbf16> to vector<3x128xbf16>
    %c9 = arith.constant 9 : index
    %c0_63 = arith.constant 0 : index
    %c0_64 = arith.constant 0 : index
    %75 = vector.load %arg3[%c9, %c0_63, %c0_64] : memref<16x128x128xbf16, #tpu.memory_space<vmem>>, vector<1x128x128xbf16>
    %76 = vector.shape_cast %75 : vector<1x128x128xbf16> to vector<128x128xbf16>
    %cst_65 = arith.constant dense<0.000000e+00> : vector<3x128xf32>
    %77 = tpu.matmul %74, %76, %cst_65 {dimension_numbers = #tpu.dot_dimension_numbers<[1], [0], [0], [1], [0, 0, 1, 1], [], []>} : vector<3x128xbf16>, vector<128x128xbf16>, vector<3x128xf32> -> vector<3x128xf32>
    %78 = arith.addf %70, %77 : vector<3x128xf32>
    %c2_i32_66 = arith.constant 2 : i32
    %79 = arith.addi %arg1, %c2_i32_66 : i32
    %c0_67 = arith.constant 0 : index
    %80 = arith.index_cast %79 : i32 to index
    %c2_68 = arith.constant 2 : index
    %c0_69 = arith.constant 0 : index
    %81 = vector.load %arg2[%c0_67, %80, %c2_68, %c0_69] : memref<1x6x6x128xbf16, #tpu.memory_space<vmem>>, vector<1x1x3x128xbf16>
    %82 = vector.shape_cast %81 : vector<1x1x3x128xbf16> to vector<3x128xbf16>
    %c10 = arith.constant 10 : index
    %c0_70 = arith.constant 0 : index
    %c0_71 = arith.constant 0 : index
    %83 = vector.load %arg3[%c10, %c0_70, %c0_71] : memref<16x128x128xbf16, #tpu.memory_space<vmem>>, vector<1x128x128xbf16>
    %84 = vector.shape_cast %83 : vector<1x128x128xbf16> to vector<128x128xbf16>
    %cst_72 = arith.constant dense<0.000000e+00> : vector<3x128xf32>
    %85 = tpu.matmul %82, %84, %cst_72 {dimension_numbers = #tpu.dot_dimension_numbers<[1], [0], [0], [1], [0, 0, 1, 1], [], []>} : vector<3x128xbf16>, vector<128x128xbf16>, vector<3x128xf32> -> vector<3x128xf32>
    %86 = arith.addf %78, %85 : vector<3x128xf32>
    %c2_i32_73 = arith.constant 2 : i32
    %87 = arith.addi %arg1, %c2_i32_73 : i32
    %c0_74 = arith.constant 0 : index
    %88 = arith.index_cast %87 : i32 to index
    %c3_75 = arith.constant 3 : index
    %c0_76 = arith.constant 0 : index
    %89 = vector.load %arg2[%c0_74, %88, %c3_75, %c0_76] : memref<1x6x6x128xbf16, #tpu.memory_space<vmem>>, vector<1x1x3x128xbf16>
    %90 = vector.shape_cast %89 : vector<1x1x3x128xbf16> to vector<3x128xbf16>
    %c11 = arith.constant 11 : index
    %c0_77 = arith.constant 0 : index
    %c0_78 = arith.constant 0 : index
    %91 = vector.load %arg3[%c11, %c0_77, %c0_78] : memref<16x128x128xbf16, #tpu.memory_space<vmem>>, vector<1x128x128xbf16>
    %92 = vector.shape_cast %91 : vector<1x128x128xbf16> to vector<128x128xbf16>
    %cst_79 = arith.constant dense<0.000000e+00> : vector<3x128xf32>
    %93 = tpu.matmul %90, %92, %cst_79 {dimension_numbers = #tpu.dot_dimension_numbers<[1], [0], [0], [1], [0, 0, 1, 1], [], []>} : vector<3x128xbf16>, vector<128x128xbf16>, vector<3x128xf32> -> vector<3x128xf32>
    %94 = arith.addf %86, %93 : vector<3x128xf32>
    %c3_i32 = arith.constant 3 : i32
    %95 = arith.addi %arg1, %c3_i32 : i32
    %c0_80 = arith.constant 0 : index
    %96 = arith.index_cast %95 : i32 to index
    %c0_81 = arith.constant 0 : index
    %c0_82 = arith.constant 0 : index
    %97 = vector.load %arg2[%c0_80, %96, %c0_81, %c0_82] : memref<1x6x6x128xbf16, #tpu.memory_space<vmem>>, vector<1x1x3x128xbf16>
    %98 = vector.shape_cast %97 : vector<1x1x3x128xbf16> to vector<3x128xbf16>
    %c12 = arith.constant 12 : index
    %c0_83 = arith.constant 0 : index
    %c0_84 = arith.constant 0 : index
    %99 = vector.load %arg3[%c12, %c0_83, %c0_84] : memref<16x128x128xbf16, #tpu.memory_space<vmem>>, vector<1x128x128xbf16>
    %100 = vector.shape_cast %99 : vector<1x128x128xbf16> to vector<128x128xbf16>
    %cst_85 = arith.constant dense<0.000000e+00> : vector<3x128xf32>
    %101 = tpu.matmul %98, %100, %cst_85 {dimension_numbers = #tpu.dot_dimension_numbers<[1], [0], [0], [1], [0, 0, 1, 1], [], []>} : vector<3x128xbf16>, vector<128x128xbf16>, vector<3x128xf32> -> vector<3x128xf32>
    %102 = arith.addf %94, %101 : vector<3x128xf32>
    %c3_i32_86 = arith.constant 3 : i32
    %103 = arith.addi %arg1, %c3_i32_86 : i32
    %c0_87 = arith.constant 0 : index
    %104 = arith.index_cast %103 : i32 to index
    %c1_88 = arith.constant 1 : index
    %c0_89 = arith.constant 0 : index
    %105 = vector.load %arg2[%c0_87, %104, %c1_88, %c0_89] : memref<1x6x6x128xbf16, #tpu.memory_space<vmem>>, vector<1x1x3x128xbf16>
    %106 = vector.shape_cast %105 : vector<1x1x3x128xbf16> to vector<3x128xbf16>
    %c13 = arith.constant 13 : index
    %c0_90 = arith.constant 0 : index
    %c0_91 = arith.constant 0 : index
    %107 = vector.load %arg3[%c13, %c0_90, %c0_91] : memref<16x128x128xbf16, #tpu.memory_space<vmem>>, vector<1x128x128xbf16>
    %108 = vector.shape_cast %107 : vector<1x128x128xbf16> to vector<128x128xbf16>
    %cst_92 = arith.constant dense<0.000000e+00> : vector<3x128xf32>
    %109 = tpu.matmul %106, %108, %cst_92 {dimension_numbers = #tpu.dot_dimension_numbers<[1], [0], [0], [1], [0, 0, 1, 1], [], []>} : vector<3x128xbf16>, vector<128x128xbf16>, vector<3x128xf32> -> vector<3x128xf32>
    %110 = arith.addf %102, %109 : vector<3x128xf32>
    %c3_i32_93 = arith.constant 3 : i32
    %111 = arith.addi %arg1, %c3_i32_93 : i32
    %c0_94 = arith.constant 0 : index
    %112 = arith.index_cast %111 : i32 to index
    %c2_95 = arith.constant 2 : index
    %c0_96 = arith.constant 0 : index
    %113 = vector.load %arg2[%c0_94, %112, %c2_95, %c0_96] : memref<1x6x6x128xbf16, #tpu.memory_space<vmem>>, vector<1x1x3x128xbf16>
    %114 = vector.shape_cast %113 : vector<1x1x3x128xbf16> to vector<3x128xbf16>
    %c14 = arith.constant 14 : index
    %c0_97 = arith.constant 0 : index
    %c0_98 = arith.constant 0 : index
    %115 = vector.load %arg3[%c14, %c0_97, %c0_98] : memref<16x128x128xbf16, #tpu.memory_space<vmem>>, vector<1x128x128xbf16>
    %116 = vector.shape_cast %115 : vector<1x128x128xbf16> to vector<128x128xbf16>
    %cst_99 = arith.constant dense<0.000000e+00> : vector<3x128xf32>
    %117 = tpu.matmul %114, %116, %cst_99 {dimension_numbers = #tpu.dot_dimension_numbers<[1], [0], [0], [1], [0, 0, 1, 1], [], []>} : vector<3x128xbf16>, vector<128x128xbf16>, vector<3x128xf32> -> vector<3x128xf32>
    %118 = arith.addf %110, %117 : vector<3x128xf32>
    %c3_i32_100 = arith.constant 3 : i32
    %119 = arith.addi %arg1, %c3_i32_100 : i32
    %c0_101 = arith.constant 0 : index
    %120 = arith.index_cast %119 : i32 to index
    %c3_102 = arith.constant 3 : index
    %c0_103 = arith.constant 0 : index
    %121 = vector.load %arg2[%c0_101, %120, %c3_102, %c0_103] : memref<1x6x6x128xbf16, #tpu.memory_space<vmem>>, vector<1x1x3x128xbf16>
    %122 = vector.shape_cast %121 : vector<1x1x3x128xbf16> to vector<3x128xbf16>
    %c15 = arith.constant 15 : index
    %c0_104 = arith.constant 0 : index
    %c0_105 = arith.constant 0 : index
    %123 = vector.load %arg3[%c15, %c0_104, %c0_105] : memref<16x128x128xbf16, #tpu.memory_space<vmem>>, vector<1x128x128xbf16>
    %124 = vector.shape_cast %123 : vector<1x128x128xbf16> to vector<128x128xbf16>
    %cst_106 = arith.constant dense<0.000000e+00> : vector<3x128xf32>
    %125 = tpu.matmul %122, %124, %cst_106 {dimension_numbers = #tpu.dot_dimension_numbers<[1], [0], [0], [1], [0, 0, 1, 1], [], []>} : vector<3x128xbf16>, vector<128x128xbf16>, vector<3x128xf32> -> vector<3x128xf32>
    %126 = arith.addf %118, %125 : vector<3x128xf32>
    %c0_107 = arith.constant 0 : index
    %c0_108 = arith.constant 0 : index
    %c0_109 = arith.constant 0 : index
    %c0_110 = arith.constant 0 : index
    %127 = vector.load %arg5[%c0_107, %c0_108, %c0_109, %c0_110] : memref<1x1x3x128xf32, #tpu.memory_space<vmem>>, vector<1x1x3x128xf32>
    %128 = vector.shape_cast %127 : vector<1x1x3x128xf32> to vector<3x128xf32>
    %129 = vector.shape_cast %126 : vector<3x128xf32> to vector<1x1x3x128xf32>
    tpu.vector_store %arg5[%c0_107, %c0_108, %c0_109, %c0_110], %129 {strides = array<i32>} : memref<1x1x3x128xf32, #tpu.memory_space<vmem>>, vector<1x1x3x128xf32>,
    %c0_i32_111 = arith.constant 0 : i32
    %130 = arith.cmpi eq, %arg0, %c0_i32_111 : i32
    %c0_i32_112 = arith.constant 0 : i32
    %131 = arith.cmpi eq, %arg1, %c0_i32_112 : i32
    %132 = arith.andi %130, %131 : i1
    %133 = arith.extui %132 : i1 to i32
    %c0_i32_113 = arith.constant 0 : i32
    %134 = arith.cmpi ne, %133, %c0_i32_113 : i32
    scf.if %134 {
      %cst_124 = arith.constant 0.000000e+00 : f32
      %146 = vector.broadcast %cst_124 : f32 to vector<1x128xf32>
      %c0_125 = arith.constant 0 : index
      %c0_126 = arith.constant 0 : index
      %147 = vector.load %arg6[%c0_125, %c0_126] : memref<1x128xf32, #tpu.memory_space<vmem>>, vector<1x128xf32>
      tpu.vector_store %arg6[%c0_125, %c0_126], %146 {strides = array<i32>} : memref<1x128xf32, #tpu.memory_space<vmem>>, vector<1x128xf32>,
      %cst_127 = arith.constant 0.000000e+00 : f32
      %148 = vector.broadcast %cst_127 : f32 to vector<1x128xf32>
      %c0_128 = arith.constant 0 : index
      %c0_129 = arith.constant 0 : index
      %149 = vector.load %arg7[%c0_128, %c0_129] : memref<1x128xf32, #tpu.memory_space<vmem>>, vector<1x128xf32>
      tpu.vector_store %arg7[%c0_128, %c0_129], %148 {strides = array<i32>} : memref<1x128xf32, #tpu.memory_space<vmem>>, vector<1x128xf32>,
    } else {
    }
    %c0_114 = arith.constant 0 : index
    %c0_115 = arith.constant 0 : index
    %135 = vector.load %arg6[%c0_114, %c0_115] : memref<1x128xf32, #tpu.memory_space<vmem>>, vector<1x128xf32>
    %cst_116 = arith.constant dense<0.000000e+00> : vector<128xf32>
    %136 = vector.multi_reduction <add>, %126, %cst_116 [0] : vector<3x128xf32> to vector<128xf32>
    %137 = vector.shape_cast %136 : vector<128xf32> to vector<1x128xf32>
    %138 = arith.addf %135, %137 : vector<1x128xf32>
    %c0_117 = arith.constant 0 : index
    %c0_118 = arith.constant 0 : index
    %139 = vector.load %arg6[%c0_117, %c0_118] : memref<1x128xf32, #tpu.memory_space<vmem>>, vector<1x128xf32>
    tpu.vector_store %arg6[%c0_117, %c0_118], %138 {strides = array<i32>} : memref<1x128xf32, #tpu.memory_space<vmem>>, vector<1x128xf32>,
    %c0_119 = arith.constant 0 : index
    %c0_120 = arith.constant 0 : index
    %140 = vector.load %arg7[%c0_119, %c0_120] : memref<1x128xf32, #tpu.memory_space<vmem>>, vector<1x128xf32>
    %141 = arith.mulf %126, %126 : vector<3x128xf32>
    %cst_121 = arith.constant dense<0.000000e+00> : vector<128xf32>
    %142 = vector.multi_reduction <add>, %141, %cst_121 [0] : vector<3x128xf32> to vector<128xf32>
    %143 = vector.shape_cast %142 : vector<128xf32> to vector<1x128xf32>
    %144 = arith.addf %140, %143 : vector<1x128xf32>
    %c0_122 = arith.constant 0 : index
    %c0_123 = arith.constant 0 : index
    %145 = vector.load %arg7[%c0_122, %c0_123] : memref<1x128xf32, #tpu.memory_space<vmem>>, vector<1x128xf32>
    tpu.vector_store %arg7[%c0_122, %c0_123], %144 {strides = array<i32>} : memref<1x128xf32, #tpu.memory_space<vmem>>, vector<1x128xf32>,
    return
  }
  func.func @transform_0(%arg0: i32, %arg1: i32) -> (i32, i32, i32, i32) {
    %c0_i32 = arith.constant 0 : i32
    %c0_i32_0 = arith.constant 0 : i32
    %c0_i32_1 = arith.constant 0 : i32
    %c0_i32_2 = arith.constant 0 : i32
    return %arg0, %c0_i32, %c0_i32_0, %c0_i32_1 : i32, i32, i32, i32
  }
  func.func @transform_1(%arg0: i32, %arg1: i32) -> (i32, i32, i32) {
    %c0_i32 = arith.constant 0 : i32
    %c0_i32_0 = arith.constant 0 : i32
    %c0_i32_1 = arith.constant 0 : i32
    %c0_i32_2 = arith.constant 0 : i32
    return %c0_i32, %c0_i32_0, %c0_i32_1 : i32, i32, i32
  }
  func.func @transform_2(%arg0: i32, %arg1: i32) -> (i32, i32) {
    %c0_i32 = arith.constant 0 : i32
    %c0_i32_0 = arith.constant 0 : i32
    %c0_i32_1 = arith.constant 0 : i32
    return %c0_i32, %c0_i32_0 : i32, i32
  }
  func.func @transform_3(%arg0: i32, %arg1: i32) -> (i32, i32, i32, i32) {
    %c0_i32 = arith.constant 0 : i32
    %c0_i32_0 = arith.constant 0 : i32
    %c0_i32_1 = arith.constant 0 : i32
    return %arg0, %arg1, %c0_i32, %c0_i32_0 : i32, i32, i32, i32
  }
  func.func @transform_4(%arg0: i32, %arg1: i32) -> (i32, i32) {
    %c0_i32 = arith.constant 0 : i32
    %c0_i32_0 = arith.constant 0 : i32
    %c0_i32_1 = arith.constant 0 : i32
    return %c0_i32, %c0_i32_0 : i32, i32
  }
  func.func @transform_5(%arg0: i32, %arg1: i32) -> (i32, i32) {
    %c0_i32 = arith.constant 0 : i32
    %c0_i32_0 = arith.constant 0 : i32
    %c0_i32_1 = arith.constant 0 : i32
    return %c0_i32, %c0_i32_0 : i32, i32
  }
}

module attributes {stable_mosaic.version = 11 : i64} {
  func.func @_bn_act_kernel(%arg0: i32, %arg1: i32, %arg2: memref<1x1x4x128xf32, #tpu.memory_space<vmem>>, %arg3: memref<1x128xf32, #tpu.memory_space<vmem>>, %arg4: memref<1x128xf32, #tpu.memory_space<vmem>>, %arg5: memref<1x128xf32, #tpu.memory_space<vmem>>, %arg6: memref<1x128xf32, #tpu.memory_space<vmem>>, %arg7: memref<1x1x4x128xbf16, #tpu.memory_space<vmem>>) attributes {dimension_semantics = [#tpu.dimension_semantics<parallel>, #tpu.dimension_semantics<parallel>], iteration_bounds = array<i64: 2, 4>, scalar_prefetch = 0 : i64, scratch_operands = 0 : i64, tpu.core_type = #tpu.core_type<tc>, window_params = [{transform_indices = @transform_0, window_bounds = array<i64: 1, 1, 4, 128>}, {pipeline_mode = #tpu.pipeline_mode<synchronous>, transform_indices = @transform_1, window_bounds = array<i64: 1, 128>}, {pipeline_mode = #tpu.pipeline_mode<synchronous>, transform_indices = @transform_2, window_bounds = array<i64: 1, 128>}, {pipeline_mode = #tpu.pipeline_mode<synchronous>, transform_indices = @transform_3, window_bounds = array<i64: 1, 128>}, {pipeline_mode = #tpu.pipeline_mode<synchronous>, transform_indices = @transform_4, window_bounds = array<i64: 1, 128>}, {transform_indices = @transform_5, window_bounds = array<i64: 1, 1, 4, 128>}]} {
    %c0 = arith.constant 0 : index
    %c0_0 = arith.constant 0 : index
    %0 = vector.load %arg3[%c0, %c0_0] : memref<1x128xf32, #tpu.memory_space<vmem>>, vector<1x128xf32>
    %cst = arith.constant 3.125000e-02 : f32
    %1 = vector.broadcast %cst : f32 to vector<1x128xf32>
    %2 = arith.mulf %0, %1 : vector<1x128xf32>
    %c0_1 = arith.constant 0 : index
    %c0_2 = arith.constant 0 : index
    %3 = vector.load %arg4[%c0_1, %c0_2] : memref<1x128xf32, #tpu.memory_space<vmem>>, vector<1x128xf32>
    %cst_3 = arith.constant 3.125000e-02 : f32
    %4 = vector.broadcast %cst_3 : f32 to vector<1x128xf32>
    %5 = arith.mulf %3, %4 : vector<1x128xf32>
    %6 = arith.mulf %2, %2 : vector<1x128xf32>
    %7 = arith.subf %5, %6 : vector<1x128xf32>
    %c0_4 = arith.constant 0 : index
    %c0_5 = arith.constant 0 : index
    %8 = vector.load %arg5[%c0_4, %c0_5] : memref<1x128xf32, #tpu.memory_space<vmem>>, vector<1x128xf32>
    %cst_6 = arith.constant 9.99999974E-6 : f32
    %9 = vector.broadcast %cst_6 : f32 to vector<1x128xf32>
    %10 = arith.addf %7, %9 : vector<1x128xf32>
    %11 = math.rsqrt %10 : vector<1x128xf32>
    %12 = arith.mulf %8, %11 : vector<1x128xf32>
    %c0_7 = arith.constant 0 : index
    %c0_8 = arith.constant 0 : index
    %13 = vector.load %arg6[%c0_7, %c0_8] : memref<1x128xf32, #tpu.memory_space<vmem>>, vector<1x128xf32>
    %14 = arith.mulf %2, %12 : vector<1x128xf32>
    %15 = arith.subf %13, %14 : vector<1x128xf32>
    %c0_9 = arith.constant 0 : index
    %c0_10 = arith.constant 0 : index
    %c0_11 = arith.constant 0 : index
    %c0_12 = arith.constant 0 : index
    %16 = vector.load %arg2[%c0_9, %c0_10, %c0_11, %c0_12] : memref<1x1x4x128xf32, #tpu.memory_space<vmem>>, vector<1x1x4x128xf32>
    %17 = vector.shape_cast %16 : vector<1x1x4x128xf32> to vector<4x128xf32>
    %18 = vector.broadcast %12 : vector<1x128xf32> to vector<4x128xf32>
    %19 = arith.mulf %17, %18 : vector<4x128xf32>
    %20 = vector.broadcast %15 : vector<1x128xf32> to vector<4x128xf32>
    %21 = arith.addf %19, %20 : vector<4x128xf32>
    %cst_13 = arith.constant 0.000000e+00 : f32
    %22 = vector.broadcast %cst_13 : f32 to vector<4x128xf32>
    %23 = arith.cmpf ogt, %21, %22 : vector<4x128xf32>
    %cst_14 = arith.constant 2.000000e-01 : f32
    %24 = vector.broadcast %cst_14 : f32 to vector<4x128xf32>
    %25 = arith.mulf %24, %21 : vector<4x128xf32>
    %26 = arith.select %23, %21, %25 : vector<4x128xi1>, vector<4x128xf32>
    %27 = arith.truncf %26 : vector<4x128xf32> to vector<4x128xbf16>
    %c0_15 = arith.constant 0 : index
    %c0_16 = arith.constant 0 : index
    %c0_17 = arith.constant 0 : index
    %c0_18 = arith.constant 0 : index
    %28 = vector.load %arg7[%c0_15, %c0_16, %c0_17, %c0_18] : memref<1x1x4x128xbf16, #tpu.memory_space<vmem>>, vector<1x1x4x128xbf16>
    %29 = vector.shape_cast %28 : vector<1x1x4x128xbf16> to vector<4x128xbf16>
    %30 = vector.shape_cast %27 : vector<4x128xbf16> to vector<1x1x4x128xbf16>
    tpu.vector_store %arg7[%c0_15, %c0_16, %c0_17, %c0_18], %30 {strides = array<i32>} : memref<1x1x4x128xbf16, #tpu.memory_space<vmem>>, vector<1x1x4x128xbf16>,
    return
  }
  func.func @transform_0(%arg0: i32, %arg1: i32) -> (i32, i32, i32, i32) {
    %c0_i32 = arith.constant 0 : i32
    %c0_i32_0 = arith.constant 0 : i32
    %c0_i32_1 = arith.constant 0 : i32
    return %arg0, %arg1, %c0_i32, %c0_i32_0 : i32, i32, i32, i32
  }
  func.func @transform_1(%arg0: i32, %arg1: i32) -> (i32, i32) {
    %c0_i32 = arith.constant 0 : i32
    %c0_i32_0 = arith.constant 0 : i32
    %c0_i32_1 = arith.constant 0 : i32
    return %c0_i32, %c0_i32_0 : i32, i32
  }
  func.func @transform_2(%arg0: i32, %arg1: i32) -> (i32, i32) {
    %c0_i32 = arith.constant 0 : i32
    %c0_i32_0 = arith.constant 0 : i32
    %c0_i32_1 = arith.constant 0 : i32
    return %c0_i32, %c0_i32_0 : i32, i32
  }
  func.func @transform_3(%arg0: i32, %arg1: i32) -> (i32, i32) {
    %c0_i32 = arith.constant 0 : i32
    %c0_i32_0 = arith.constant 0 : i32
    %c0_i32_1 = arith.constant 0 : i32
    return %c0_i32, %c0_i32_0 : i32, i32
  }
  func.func @transform_4(%arg0: i32, %arg1: i32) -> (i32, i32) {
    %c0_i32 = arith.constant 0 : i32
    %c0_i32_0 = arith.constant 0 : i32
    %c0_i32_1 = arith.constant 0 : i32
    return %c0_i32, %c0_i32_0 : i32, i32
  }
  func.func @transform_5(%arg0: i32, %arg1: i32) -> (i32, i32, i32, i32) {
    %c0_i32 = arith.constant 0 : i32
    %c0_i32_0 = arith.constant 0 : i32
    %c0_i32_1 = arith.constant 0 : i32
    return %arg0, %arg1, %c0_i32, %c0_i32_0 : i32, i32, i32, i32
  }
}

module attributes {stable_mosaic.version = 11 : i64} {
  func.func @_bn_act_kernel(%arg0: i32, %arg1: i32, %arg2: memref<1x1x3x128xf32, #tpu.memory_space<vmem>>, %arg3: memref<1x128xf32, #tpu.memory_space<vmem>>, %arg4: memref<1x128xf32, #tpu.memory_space<vmem>>, %arg5: memref<1x128xf32, #tpu.memory_space<vmem>>, %arg6: memref<1x128xf32, #tpu.memory_space<vmem>>, %arg7: memref<1x1x3x128xbf16, #tpu.memory_space<vmem>>) attributes {dimension_semantics = [#tpu.dimension_semantics<parallel>, #tpu.dimension_semantics<parallel>], iteration_bounds = array<i64: 2, 3>, scalar_prefetch = 0 : i64, scratch_operands = 0 : i64, tpu.core_type = #tpu.core_type<tc>, window_params = [{transform_indices = @transform_0, window_bounds = array<i64: 1, 1, 3, 128>}, {pipeline_mode = #tpu.pipeline_mode<synchronous>, transform_indices = @transform_1, window_bounds = array<i64: 1, 128>}, {pipeline_mode = #tpu.pipeline_mode<synchronous>, transform_indices = @transform_2, window_bounds = array<i64: 1, 128>}, {pipeline_mode = #tpu.pipeline_mode<synchronous>, transform_indices = @transform_3, window_bounds = array<i64: 1, 128>}, {pipeline_mode = #tpu.pipeline_mode<synchronous>, transform_indices = @transform_4, window_bounds = array<i64: 1, 128>}, {transform_indices = @transform_5, window_bounds = array<i64: 1, 1, 3, 128>}]} {
    %c0 = arith.constant 0 : index
    %c0_0 = arith.constant 0 : index
    %0 = vector.load %arg3[%c0, %c0_0] : memref<1x128xf32, #tpu.memory_space<vmem>>, vector<1x128xf32>
    %cst = arith.constant 0.055555556 : f32
    %1 = vector.broadcast %cst : f32 to vector<1x128xf32>
    %2 = arith.mulf %0, %1 : vector<1x128xf32>
    %c0_1 = arith.constant 0 : index
    %c0_2 = arith.constant 0 : index
    %3 = vector.load %arg4[%c0_1, %c0_2] : memref<1x128xf32, #tpu.memory_space<vmem>>, vector<1x128xf32>
    %cst_3 = arith.constant 0.055555556 : f32
    %4 = vector.broadcast %cst_3 : f32 to vector<1x128xf32>
    %5 = arith.mulf %3, %4 : vector<1x128xf32>
    %6 = arith.mulf %2, %2 : vector<1x128xf32>
    %7 = arith.subf %5, %6 : vector<1x128xf32>
    %c0_4 = arith.constant 0 : index
    %c0_5 = arith.constant 0 : index
    %8 = vector.load %arg5[%c0_4, %c0_5] : memref<1x128xf32, #tpu.memory_space<vmem>>, vector<1x128xf32>
    %cst_6 = arith.constant 9.99999974E-6 : f32
    %9 = vector.broadcast %cst_6 : f32 to vector<1x128xf32>
    %10 = arith.addf %7, %9 : vector<1x128xf32>
    %11 = math.rsqrt %10 : vector<1x128xf32>
    %12 = arith.mulf %8, %11 : vector<1x128xf32>
    %c0_7 = arith.constant 0 : index
    %c0_8 = arith.constant 0 : index
    %13 = vector.load %arg6[%c0_7, %c0_8] : memref<1x128xf32, #tpu.memory_space<vmem>>, vector<1x128xf32>
    %14 = arith.mulf %2, %12 : vector<1x128xf32>
    %15 = arith.subf %13, %14 : vector<1x128xf32>
    %c0_9 = arith.constant 0 : index
    %c0_10 = arith.constant 0 : index
    %c0_11 = arith.constant 0 : index
    %c0_12 = arith.constant 0 : index
    %16 = vector.load %arg2[%c0_9, %c0_10, %c0_11, %c0_12] : memref<1x1x3x128xf32, #tpu.memory_space<vmem>>, vector<1x1x3x128xf32>
    %17 = vector.shape_cast %16 : vector<1x1x3x128xf32> to vector<3x128xf32>
    %18 = vector.broadcast %12 : vector<1x128xf32> to vector<3x128xf32>
    %19 = arith.mulf %17, %18 : vector<3x128xf32>
    %20 = vector.broadcast %15 : vector<1x128xf32> to vector<3x128xf32>
    %21 = arith.addf %19, %20 : vector<3x128xf32>
    %cst_13 = arith.constant 0.000000e+00 : f32
    %22 = vector.broadcast %cst_13 : f32 to vector<3x128xf32>
    %23 = arith.cmpf ogt, %21, %22 : vector<3x128xf32>
    %cst_14 = arith.constant 2.000000e-01 : f32
    %24 = vector.broadcast %cst_14 : f32 to vector<3x128xf32>
    %25 = arith.mulf %24, %21 : vector<3x128xf32>
    %26 = arith.select %23, %21, %25 : vector<3x128xi1>, vector<3x128xf32>
    %27 = arith.truncf %26 : vector<3x128xf32> to vector<3x128xbf16>
    %c0_15 = arith.constant 0 : index
    %c0_16 = arith.constant 0 : index
    %c0_17 = arith.constant 0 : index
    %c0_18 = arith.constant 0 : index
    %28 = vector.load %arg7[%c0_15, %c0_16, %c0_17, %c0_18] : memref<1x1x3x128xbf16, #tpu.memory_space<vmem>>, vector<1x1x3x128xbf16>
    %29 = vector.shape_cast %28 : vector<1x1x3x128xbf16> to vector<3x128xbf16>
    %30 = vector.shape_cast %27 : vector<3x128xbf16> to vector<1x1x3x128xbf16>
    tpu.vector_store %arg7[%c0_15, %c0_16, %c0_17, %c0_18], %30 {strides = array<i32>} : memref<1x1x3x128xbf16, #tpu.memory_space<vmem>>, vector<1x1x3x128xbf16>,
    return
  }
  func.func @transform_0(%arg0: i32, %arg1: i32) -> (i32, i32, i32, i32) {
    %c0_i32 = arith.constant 0 : i32
    %c0_i32_0 = arith.constant 0 : i32
    %c0_i32_1 = arith.constant 0 : i32
    return %arg0, %arg1, %c0_i32, %c0_i32_0 : i32, i32, i32, i32
  }
  func.func @transform_1(%arg0: i32, %arg1: i32) -> (i32, i32) {
    %c0_i32 = arith.constant 0 : i32
    %c0_i32_0 = arith.constant 0 : i32
    %c0_i32_1 = arith.constant 0 : i32
    return %c0_i32, %c0_i32_0 : i32, i32
  }
  func.func @transform_2(%arg0: i32, %arg1: i32) -> (i32, i32) {
    %c0_i32 = arith.constant 0 : i32
    %c0_i32_0 = arith.constant 0 : i32
    %c0_i32_1 = arith.constant 0 : i32
    return %c0_i32, %c0_i32_0 : i32, i32
  }
  func.func @transform_3(%arg0: i32, %arg1: i32) -> (i32, i32) {
    %c0_i32 = arith.constant 0 : i32
    %c0_i32_0 = arith.constant 0 : i32
    %c0_i32_1 = arith.constant 0 : i32
    return %c0_i32, %c0_i32_0 : i32, i32
  }
  func.func @transform_4(%arg0: i32, %arg1: i32) -> (i32, i32) {
    %c0_i32 = arith.constant 0 : i32
    %c0_i32_0 = arith.constant 0 : i32
    %c0_i32_1 = arith.constant 0 : i32
    return %c0_i32, %c0_i32_0 : i32, i32
  }
  func.func @transform_5(%arg0: i32, %arg1: i32) -> (i32, i32, i32, i32) {
    %c0_i32 = arith.constant 0 : i32
    %c0_i32_0 = arith.constant 0 : i32
    %c0_i32_1 = arith.constant 0 : i32
    return %arg0, %arg1, %c0_i32, %c0_i32_0 : i32, i32, i32, i32
  }
}

module attributes {stable_mosaic.version = 11 : i64} {
  func.func @_conv_kernel(%arg0: i32, %arg1: i32, %arg2: memref<1x5x5x128xbf16, #tpu.memory_space<vmem>>, %arg3: memref<16x128x128xbf16, #tpu.memory_space<vmem>>, %arg4: memref<1x128xf32, #tpu.memory_space<vmem>>, %arg5: memref<1x1x2x128xf32, #tpu.memory_space<vmem>>) attributes {dimension_semantics = [#tpu.dimension_semantics<parallel>, #tpu.dimension_semantics<parallel>], iteration_bounds = array<i64: 2, 2>, scalar_prefetch = 0 : i64, scratch_operands = 0 : i64, tpu.core_type = #tpu.core_type<tc>, window_params = [{transform_indices = @transform_0, window_bounds = array<i64: 1, 5, 5, 128>}, {pipeline_mode = #tpu.pipeline_mode<synchronous>, transform_indices = @transform_1, window_bounds = array<i64: 16, 128, 128>}, {pipeline_mode = #tpu.pipeline_mode<synchronous>, transform_indices = @transform_2, window_bounds = array<i64: 1, 128>}, {transform_indices = @transform_3, window_bounds = array<i64: 1, 1, 2, 128>}]} {
    %c0_i32 = arith.constant 0 : i32
    %0 = arith.addi %arg1, %c0_i32 : i32
    %c0 = arith.constant 0 : index
    %1 = arith.index_cast %0 : i32 to index
    %c0_0 = arith.constant 0 : index
    %c0_1 = arith.constant 0 : index
    %2 = vector.load %arg2[%c0, %1, %c0_0, %c0_1] : memref<1x5x5x128xbf16, #tpu.memory_space<vmem>>, vector<1x1x2x128xbf16>
    %3 = vector.shape_cast %2 : vector<1x1x2x128xbf16> to vector<2x128xbf16>
    %c0_2 = arith.constant 0 : index
    %c0_3 = arith.constant 0 : index
    %c0_4 = arith.constant 0 : index
    %4 = vector.load %arg3[%c0_2, %c0_3, %c0_4] : memref<16x128x128xbf16, #tpu.memory_space<vmem>>, vector<1x128x128xbf16>
    %5 = vector.shape_cast %4 : vector<1x128x128xbf16> to vector<128x128xbf16>
    %cst = arith.constant dense<0.000000e+00> : vector<2x128xf32>
    %6 = tpu.matmul %3, %5, %cst {dimension_numbers = #tpu.dot_dimension_numbers<[1], [0], [0], [1], [0, 0, 1, 1], [], []>} : vector<2x128xbf16>, vector<128x128xbf16>, vector<2x128xf32> -> vector<2x128xf32>
    %c0_i32_5 = arith.constant 0 : i32
    %7 = arith.addi %arg1, %c0_i32_5 : i32
    %c0_6 = arith.constant 0 : index
    %8 = arith.index_cast %7 : i32 to index
    %c1 = arith.constant 1 : index
    %c0_7 = arith.constant 0 : index
    %9 = vector.load %arg2[%c0_6, %8, %c1, %c0_7] : memref<1x5x5x128xbf16, #tpu.memory_space<vmem>>, vector<1x1x2x128xbf16>
    %10 = vector.shape_cast %9 : vector<1x1x2x128xbf16> to vector<2x128xbf16>
    %c1_8 = arith.constant 1 : index
    %c0_9 = arith.constant 0 : index
    %c0_10 = arith.constant 0 : index
    %11 = vector.load %arg3[%c1_8, %c0_9, %c0_10] : memref<16x128x128xbf16, #tpu.memory_space<vmem>>, vector<1x128x128xbf16>
    %12 = vector.shape_cast %11 : vector<1x128x128xbf16> to vector<128x128xbf16>
    %cst_11 = arith.constant dense<0.000000e+00> : vector<2x128xf32>
    %13 = tpu.matmul %10, %12, %cst_11 {dimension_numbers = #tpu.dot_dimension_numbers<[1], [0], [0], [1], [0, 0, 1, 1], [], []>} : vector<2x128xbf16>, vector<128x128xbf16>, vector<2x128xf32> -> vector<2x128xf32>
    %14 = arith.addf %6, %13 : vector<2x128xf32>
    %c0_i32_12 = arith.constant 0 : i32
    %15 = arith.addi %arg1, %c0_i32_12 : i32
    %c0_13 = arith.constant 0 : index
    %16 = arith.index_cast %15 : i32 to index
    %c2 = arith.constant 2 : index
    %c0_14 = arith.constant 0 : index
    %17 = vector.load %arg2[%c0_13, %16, %c2, %c0_14] : memref<1x5x5x128xbf16, #tpu.memory_space<vmem>>, vector<1x1x2x128xbf16>
    %18 = vector.shape_cast %17 : vector<1x1x2x128xbf16> to vector<2x128xbf16>
    %c2_15 = arith.constant 2 : index
    %c0_16 = arith.constant 0 : index
    %c0_17 = arith.constant 0 : index
    %19 = vector.load %arg3[%c2_15, %c0_16, %c0_17] : memref<16x128x128xbf16, #tpu.memory_space<vmem>>, vector<1x128x128xbf16>
    %20 = vector.shape_cast %19 : vector<1x128x128xbf16> to vector<128x128xbf16>
    %cst_18 = arith.constant dense<0.000000e+00> : vector<2x128xf32>
    %21 = tpu.matmul %18, %20, %cst_18 {dimension_numbers = #tpu.dot_dimension_numbers<[1], [0], [0], [1], [0, 0, 1, 1], [], []>} : vector<2x128xbf16>, vector<128x128xbf16>, vector<2x128xf32> -> vector<2x128xf32>
    %22 = arith.addf %14, %21 : vector<2x128xf32>
    %c0_i32_19 = arith.constant 0 : i32
    %23 = arith.addi %arg1, %c0_i32_19 : i32
    %c0_20 = arith.constant 0 : index
    %24 = arith.index_cast %23 : i32 to index
    %c3 = arith.constant 3 : index
    %c0_21 = arith.constant 0 : index
    %25 = vector.load %arg2[%c0_20, %24, %c3, %c0_21] : memref<1x5x5x128xbf16, #tpu.memory_space<vmem>>, vector<1x1x2x128xbf16>
    %26 = vector.shape_cast %25 : vector<1x1x2x128xbf16> to vector<2x128xbf16>
    %c3_22 = arith.constant 3 : index
    %c0_23 = arith.constant 0 : index
    %c0_24 = arith.constant 0 : index
    %27 = vector.load %arg3[%c3_22, %c0_23, %c0_24] : memref<16x128x128xbf16, #tpu.memory_space<vmem>>, vector<1x128x128xbf16>
    %28 = vector.shape_cast %27 : vector<1x128x128xbf16> to vector<128x128xbf16>
    %cst_25 = arith.constant dense<0.000000e+00> : vector<2x128xf32>
    %29 = tpu.matmul %26, %28, %cst_25 {dimension_numbers = #tpu.dot_dimension_numbers<[1], [0], [0], [1], [0, 0, 1, 1], [], []>} : vector<2x128xbf16>, vector<128x128xbf16>, vector<2x128xf32> -> vector<2x128xf32>
    %30 = arith.addf %22, %29 : vector<2x128xf32>
    %c1_i32 = arith.constant 1 : i32
    %31 = arith.addi %arg1, %c1_i32 : i32
    %c0_26 = arith.constant 0 : index
    %32 = arith.index_cast %31 : i32 to index
    %c0_27 = arith.constant 0 : index
    %c0_28 = arith.constant 0 : index
    %33 = vector.load %arg2[%c0_26, %32, %c0_27, %c0_28] : memref<1x5x5x128xbf16, #tpu.memory_space<vmem>>, vector<1x1x2x128xbf16>
    %34 = vector.shape_cast %33 : vector<1x1x2x128xbf16> to vector<2x128xbf16>
    %c4 = arith.constant 4 : index
    %c0_29 = arith.constant 0 : index
    %c0_30 = arith.constant 0 : index
    %35 = vector.load %arg3[%c4, %c0_29, %c0_30] : memref<16x128x128xbf16, #tpu.memory_space<vmem>>, vector<1x128x128xbf16>
    %36 = vector.shape_cast %35 : vector<1x128x128xbf16> to vector<128x128xbf16>
    %cst_31 = arith.constant dense<0.000000e+00> : vector<2x128xf32>
    %37 = tpu.matmul %34, %36, %cst_31 {dimension_numbers = #tpu.dot_dimension_numbers<[1], [0], [0], [1], [0, 0, 1, 1], [], []>} : vector<2x128xbf16>, vector<128x128xbf16>, vector<2x128xf32> -> vector<2x128xf32>
    %38 = arith.addf %30, %37 : vector<2x128xf32>
    %c1_i32_32 = arith.constant 1 : i32
    %39 = arith.addi %arg1, %c1_i32_32 : i32
    %c0_33 = arith.constant 0 : index
    %40 = arith.index_cast %39 : i32 to index
    %c1_34 = arith.constant 1 : index
    %c0_35 = arith.constant 0 : index
    %41 = vector.load %arg2[%c0_33, %40, %c1_34, %c0_35] : memref<1x5x5x128xbf16, #tpu.memory_space<vmem>>, vector<1x1x2x128xbf16>
    %42 = vector.shape_cast %41 : vector<1x1x2x128xbf16> to vector<2x128xbf16>
    %c5 = arith.constant 5 : index
    %c0_36 = arith.constant 0 : index
    %c0_37 = arith.constant 0 : index
    %43 = vector.load %arg3[%c5, %c0_36, %c0_37] : memref<16x128x128xbf16, #tpu.memory_space<vmem>>, vector<1x128x128xbf16>
    %44 = vector.shape_cast %43 : vector<1x128x128xbf16> to vector<128x128xbf16>
    %cst_38 = arith.constant dense<0.000000e+00> : vector<2x128xf32>
    %45 = tpu.matmul %42, %44, %cst_38 {dimension_numbers = #tpu.dot_dimension_numbers<[1], [0], [0], [1], [0, 0, 1, 1], [], []>} : vector<2x128xbf16>, vector<128x128xbf16>, vector<2x128xf32> -> vector<2x128xf32>
    %46 = arith.addf %38, %45 : vector<2x128xf32>
    %c1_i32_39 = arith.constant 1 : i32
    %47 = arith.addi %arg1, %c1_i32_39 : i32
    %c0_40 = arith.constant 0 : index
    %48 = arith.index_cast %47 : i32 to index
    %c2_41 = arith.constant 2 : index
    %c0_42 = arith.constant 0 : index
    %49 = vector.load %arg2[%c0_40, %48, %c2_41, %c0_42] : memref<1x5x5x128xbf16, #tpu.memory_space<vmem>>, vector<1x1x2x128xbf16>
    %50 = vector.shape_cast %49 : vector<1x1x2x128xbf16> to vector<2x128xbf16>
    %c6 = arith.constant 6 : index
    %c0_43 = arith.constant 0 : index
    %c0_44 = arith.constant 0 : index
    %51 = vector.load %arg3[%c6, %c0_43, %c0_44] : memref<16x128x128xbf16, #tpu.memory_space<vmem>>, vector<1x128x128xbf16>
    %52 = vector.shape_cast %51 : vector<1x128x128xbf16> to vector<128x128xbf16>
    %cst_45 = arith.constant dense<0.000000e+00> : vector<2x128xf32>
    %53 = tpu.matmul %50, %52, %cst_45 {dimension_numbers = #tpu.dot_dimension_numbers<[1], [0], [0], [1], [0, 0, 1, 1], [], []>} : vector<2x128xbf16>, vector<128x128xbf16>, vector<2x128xf32> -> vector<2x128xf32>
    %54 = arith.addf %46, %53 : vector<2x128xf32>
    %c1_i32_46 = arith.constant 1 : i32
    %55 = arith.addi %arg1, %c1_i32_46 : i32
    %c0_47 = arith.constant 0 : index
    %56 = arith.index_cast %55 : i32 to index
    %c3_48 = arith.constant 3 : index
    %c0_49 = arith.constant 0 : index
    %57 = vector.load %arg2[%c0_47, %56, %c3_48, %c0_49] : memref<1x5x5x128xbf16, #tpu.memory_space<vmem>>, vector<1x1x2x128xbf16>
    %58 = vector.shape_cast %57 : vector<1x1x2x128xbf16> to vector<2x128xbf16>
    %c7 = arith.constant 7 : index
    %c0_50 = arith.constant 0 : index
    %c0_51 = arith.constant 0 : index
    %59 = vector.load %arg3[%c7, %c0_50, %c0_51] : memref<16x128x128xbf16, #tpu.memory_space<vmem>>, vector<1x128x128xbf16>
    %60 = vector.shape_cast %59 : vector<1x128x128xbf16> to vector<128x128xbf16>
    %cst_52 = arith.constant dense<0.000000e+00> : vector<2x128xf32>
    %61 = tpu.matmul %58, %60, %cst_52 {dimension_numbers = #tpu.dot_dimension_numbers<[1], [0], [0], [1], [0, 0, 1, 1], [], []>} : vector<2x128xbf16>, vector<128x128xbf16>, vector<2x128xf32> -> vector<2x128xf32>
    %62 = arith.addf %54, %61 : vector<2x128xf32>
    %c2_i32 = arith.constant 2 : i32
    %63 = arith.addi %arg1, %c2_i32 : i32
    %c0_53 = arith.constant 0 : index
    %64 = arith.index_cast %63 : i32 to index
    %c0_54 = arith.constant 0 : index
    %c0_55 = arith.constant 0 : index
    %65 = vector.load %arg2[%c0_53, %64, %c0_54, %c0_55] : memref<1x5x5x128xbf16, #tpu.memory_space<vmem>>, vector<1x1x2x128xbf16>
    %66 = vector.shape_cast %65 : vector<1x1x2x128xbf16> to vector<2x128xbf16>
    %c8 = arith.constant 8 : index
    %c0_56 = arith.constant 0 : index
    %c0_57 = arith.constant 0 : index
    %67 = vector.load %arg3[%c8, %c0_56, %c0_57] : memref<16x128x128xbf16, #tpu.memory_space<vmem>>, vector<1x128x128xbf16>
    %68 = vector.shape_cast %67 : vector<1x128x128xbf16> to vector<128x128xbf16>
    %cst_58 = arith.constant dense<0.000000e+00> : vector<2x128xf32>
    %69 = tpu.matmul %66, %68, %cst_58 {dimension_numbers = #tpu.dot_dimension_numbers<[1], [0], [0], [1], [0, 0, 1, 1], [], []>} : vector<2x128xbf16>, vector<128x128xbf16>, vector<2x128xf32> -> vector<2x128xf32>
    %70 = arith.addf %62, %69 : vector<2x128xf32>
    %c2_i32_59 = arith.constant 2 : i32
    %71 = arith.addi %arg1, %c2_i32_59 : i32
    %c0_60 = arith.constant 0 : index
    %72 = arith.index_cast %71 : i32 to index
    %c1_61 = arith.constant 1 : index
    %c0_62 = arith.constant 0 : index
    %73 = vector.load %arg2[%c0_60, %72, %c1_61, %c0_62] : memref<1x5x5x128xbf16, #tpu.memory_space<vmem>>, vector<1x1x2x128xbf16>
    %74 = vector.shape_cast %73 : vector<1x1x2x128xbf16> to vector<2x128xbf16>
    %c9 = arith.constant 9 : index
    %c0_63 = arith.constant 0 : index
    %c0_64 = arith.constant 0 : index
    %75 = vector.load %arg3[%c9, %c0_63, %c0_64] : memref<16x128x128xbf16, #tpu.memory_space<vmem>>, vector<1x128x128xbf16>
    %76 = vector.shape_cast %75 : vector<1x128x128xbf16> to vector<128x128xbf16>
    %cst_65 = arith.constant dense<0.000000e+00> : vector<2x128xf32>
    %77 = tpu.matmul %74, %76, %cst_65 {dimension_numbers = #tpu.dot_dimension_numbers<[1], [0], [0], [1], [0, 0, 1, 1], [], []>} : vector<2x128xbf16>, vector<128x128xbf16>, vector<2x128xf32> -> vector<2x128xf32>
    %78 = arith.addf %70, %77 : vector<2x128xf32>
    %c2_i32_66 = arith.constant 2 : i32
    %79 = arith.addi %arg1, %c2_i32_66 : i32
    %c0_67 = arith.constant 0 : index
    %80 = arith.index_cast %79 : i32 to index
    %c2_68 = arith.constant 2 : index
    %c0_69 = arith.constant 0 : index
    %81 = vector.load %arg2[%c0_67, %80, %c2_68, %c0_69] : memref<1x5x5x128xbf16, #tpu.memory_space<vmem>>, vector<1x1x2x128xbf16>
    %82 = vector.shape_cast %81 : vector<1x1x2x128xbf16> to vector<2x128xbf16>
    %c10 = arith.constant 10 : index
    %c0_70 = arith.constant 0 : index
    %c0_71 = arith.constant 0 : index
    %83 = vector.load %arg3[%c10, %c0_70, %c0_71] : memref<16x128x128xbf16, #tpu.memory_space<vmem>>, vector<1x128x128xbf16>
    %84 = vector.shape_cast %83 : vector<1x128x128xbf16> to vector<128x128xbf16>
    %cst_72 = arith.constant dense<0.000000e+00> : vector<2x128xf32>
    %85 = tpu.matmul %82, %84, %cst_72 {dimension_numbers = #tpu.dot_dimension_numbers<[1], [0], [0], [1], [0, 0, 1, 1], [], []>} : vector<2x128xbf16>, vector<128x128xbf16>, vector<2x128xf32> -> vector<2x128xf32>
    %86 = arith.addf %78, %85 : vector<2x128xf32>
    %c2_i32_73 = arith.constant 2 : i32
    %87 = arith.addi %arg1, %c2_i32_73 : i32
    %c0_74 = arith.constant 0 : index
    %88 = arith.index_cast %87 : i32 to index
    %c3_75 = arith.constant 3 : index
    %c0_76 = arith.constant 0 : index
    %89 = vector.load %arg2[%c0_74, %88, %c3_75, %c0_76] : memref<1x5x5x128xbf16, #tpu.memory_space<vmem>>, vector<1x1x2x128xbf16>
    %90 = vector.shape_cast %89 : vector<1x1x2x128xbf16> to vector<2x128xbf16>
    %c11 = arith.constant 11 : index
    %c0_77 = arith.constant 0 : index
    %c0_78 = arith.constant 0 : index
    %91 = vector.load %arg3[%c11, %c0_77, %c0_78] : memref<16x128x128xbf16, #tpu.memory_space<vmem>>, vector<1x128x128xbf16>
    %92 = vector.shape_cast %91 : vector<1x128x128xbf16> to vector<128x128xbf16>
    %cst_79 = arith.constant dense<0.000000e+00> : vector<2x128xf32>
    %93 = tpu.matmul %90, %92, %cst_79 {dimension_numbers = #tpu.dot_dimension_numbers<[1], [0], [0], [1], [0, 0, 1, 1], [], []>} : vector<2x128xbf16>, vector<128x128xbf16>, vector<2x128xf32> -> vector<2x128xf32>
    %94 = arith.addf %86, %93 : vector<2x128xf32>
    %c3_i32 = arith.constant 3 : i32
    %95 = arith.addi %arg1, %c3_i32 : i32
    %c0_80 = arith.constant 0 : index
    %96 = arith.index_cast %95 : i32 to index
    %c0_81 = arith.constant 0 : index
    %c0_82 = arith.constant 0 : index
    %97 = vector.load %arg2[%c0_80, %96, %c0_81, %c0_82] : memref<1x5x5x128xbf16, #tpu.memory_space<vmem>>, vector<1x1x2x128xbf16>
    %98 = vector.shape_cast %97 : vector<1x1x2x128xbf16> to vector<2x128xbf16>
    %c12 = arith.constant 12 : index
    %c0_83 = arith.constant 0 : index
    %c0_84 = arith.constant 0 : index
    %99 = vector.load %arg3[%c12, %c0_83, %c0_84] : memref<16x128x128xbf16, #tpu.memory_space<vmem>>, vector<1x128x128xbf16>
    %100 = vector.shape_cast %99 : vector<1x128x128xbf16> to vector<128x128xbf16>
    %cst_85 = arith.constant dense<0.000000e+00> : vector<2x128xf32>
    %101 = tpu.matmul %98, %100, %cst_85 {dimension_numbers = #tpu.dot_dimension_numbers<[1], [0], [0], [1], [0, 0, 1, 1], [], []>} : vector<2x128xbf16>, vector<128x128xbf16>, vector<2x128xf32> -> vector<2x128xf32>
    %102 = arith.addf %94, %101 : vector<2x128xf32>
    %c3_i32_86 = arith.constant 3 : i32
    %103 = arith.addi %arg1, %c3_i32_86 : i32
    %c0_87 = arith.constant 0 : index
    %104 = arith.index_cast %103 : i32 to index
    %c1_88 = arith.constant 1 : index
    %c0_89 = arith.constant 0 : index
    %105 = vector.load %arg2[%c0_87, %104, %c1_88, %c0_89] : memref<1x5x5x128xbf16, #tpu.memory_space<vmem>>, vector<1x1x2x128xbf16>
    %106 = vector.shape_cast %105 : vector<1x1x2x128xbf16> to vector<2x128xbf16>
    %c13 = arith.constant 13 : index
    %c0_90 = arith.constant 0 : index
    %c0_91 = arith.constant 0 : index
    %107 = vector.load %arg3[%c13, %c0_90, %c0_91] : memref<16x128x128xbf16, #tpu.memory_space<vmem>>, vector<1x128x128xbf16>
    %108 = vector.shape_cast %107 : vector<1x128x128xbf16> to vector<128x128xbf16>
    %cst_92 = arith.constant dense<0.000000e+00> : vector<2x128xf32>
    %109 = tpu.matmul %106, %108, %cst_92 {dimension_numbers = #tpu.dot_dimension_numbers<[1], [0], [0], [1], [0, 0, 1, 1], [], []>} : vector<2x128xbf16>, vector<128x128xbf16>, vector<2x128xf32> -> vector<2x128xf32>
    %110 = arith.addf %102, %109 : vector<2x128xf32>
    %c3_i32_93 = arith.constant 3 : i32
    %111 = arith.addi %arg1, %c3_i32_93 : i32
    %c0_94 = arith.constant 0 : index
    %112 = arith.index_cast %111 : i32 to index
    %c2_95 = arith.constant 2 : index
    %c0_96 = arith.constant 0 : index
    %113 = vector.load %arg2[%c0_94, %112, %c2_95, %c0_96] : memref<1x5x5x128xbf16, #tpu.memory_space<vmem>>, vector<1x1x2x128xbf16>
    %114 = vector.shape_cast %113 : vector<1x1x2x128xbf16> to vector<2x128xbf16>
    %c14 = arith.constant 14 : index
    %c0_97 = arith.constant 0 : index
    %c0_98 = arith.constant 0 : index
    %115 = vector.load %arg3[%c14, %c0_97, %c0_98] : memref<16x128x128xbf16, #tpu.memory_space<vmem>>, vector<1x128x128xbf16>
    %116 = vector.shape_cast %115 : vector<1x128x128xbf16> to vector<128x128xbf16>
    %cst_99 = arith.constant dense<0.000000e+00> : vector<2x128xf32>
    %117 = tpu.matmul %114, %116, %cst_99 {dimension_numbers = #tpu.dot_dimension_numbers<[1], [0], [0], [1], [0, 0, 1, 1], [], []>} : vector<2x128xbf16>, vector<128x128xbf16>, vector<2x128xf32> -> vector<2x128xf32>
    %118 = arith.addf %110, %117 : vector<2x128xf32>
    %c3_i32_100 = arith.constant 3 : i32
    %119 = arith.addi %arg1, %c3_i32_100 : i32
    %c0_101 = arith.constant 0 : index
    %120 = arith.index_cast %119 : i32 to index
    %c3_102 = arith.constant 3 : index
    %c0_103 = arith.constant 0 : index
    %121 = vector.load %arg2[%c0_101, %120, %c3_102, %c0_103] : memref<1x5x5x128xbf16, #tpu.memory_space<vmem>>, vector<1x1x2x128xbf16>
    %122 = vector.shape_cast %121 : vector<1x1x2x128xbf16> to vector<2x128xbf16>
    %c15 = arith.constant 15 : index
    %c0_104 = arith.constant 0 : index
    %c0_105 = arith.constant 0 : index
    %123 = vector.load %arg3[%c15, %c0_104, %c0_105] : memref<16x128x128xbf16, #tpu.memory_space<vmem>>, vector<1x128x128xbf16>
    %124 = vector.shape_cast %123 : vector<1x128x128xbf16> to vector<128x128xbf16>
    %cst_106 = arith.constant dense<0.000000e+00> : vector<2x128xf32>
    %125 = tpu.matmul %122, %124, %cst_106 {dimension_numbers = #tpu.dot_dimension_numbers<[1], [0], [0], [1], [0, 0, 1, 1], [], []>} : vector<2x128xbf16>, vector<128x128xbf16>, vector<2x128xf32> -> vector<2x128xf32>
    %126 = arith.addf %118, %125 : vector<2x128xf32>
    %c0_107 = arith.constant 0 : index
    %c0_108 = arith.constant 0 : index
    %127 = vector.load %arg4[%c0_107, %c0_108] : memref<1x128xf32, #tpu.memory_space<vmem>>, vector<1x128xf32>
    %128 = vector.broadcast %127 : vector<1x128xf32> to vector<2x128xf32>
    %129 = arith.addf %126, %128 : vector<2x128xf32>
    %c0_109 = arith.constant 0 : index
    %c0_110 = arith.constant 0 : index
    %c0_111 = arith.constant 0 : index
    %c0_112 = arith.constant 0 : index
    %130 = vector.load %arg5[%c0_109, %c0_110, %c0_111, %c0_112] : memref<1x1x2x128xf32, #tpu.memory_space<vmem>>, vector<1x1x2x128xf32>
    %131 = vector.shape_cast %130 : vector<1x1x2x128xf32> to vector<2x128xf32>
    %132 = vector.shape_cast %129 : vector<2x128xf32> to vector<1x1x2x128xf32>
    tpu.vector_store %arg5[%c0_109, %c0_110, %c0_111, %c0_112], %132 {strides = array<i32>} : memref<1x1x2x128xf32, #tpu.memory_space<vmem>>, vector<1x1x2x128xf32>,
    return
  }
  func.func @transform_0(%arg0: i32, %arg1: i32) -> (i32, i32, i32, i32) {
    %c0_i32 = arith.constant 0 : i32
    %c0_i32_0 = arith.constant 0 : i32
    %c0_i32_1 = arith.constant 0 : i32
    %c0_i32_2 = arith.constant 0 : i32
    return %arg0, %c0_i32, %c0_i32_0, %c0_i32_1 : i32, i32, i32, i32
  }
  func.func @transform_1(%arg0: i32, %arg1: i32) -> (i32, i32, i32) {
    %c0_i32 = arith.constant 0 : i32
    %c0_i32_0 = arith.constant 0 : i32
    %c0_i32_1 = arith.constant 0 : i32
    %c0_i32_2 = arith.constant 0 : i32
    return %c0_i32, %c0_i32_0, %c0_i32_1 : i32, i32, i32
  }
  func.func @transform_2(%arg0: i32, %arg1: i32) -> (i32, i32) {
    %c0_i32 = arith.constant 0 : i32
    %c0_i32_0 = arith.constant 0 : i32
    %c0_i32_1 = arith.constant 0 : i32
    return %c0_i32, %c0_i32_0 : i32, i32
  }
  func.func @transform_3(%arg0: i32, %arg1: i32) -> (i32, i32, i32, i32) {
    %c0_i32 = arith.constant 0 : i32
    %c0_i32_0 = arith.constant 0 : i32
    %c0_i32_1 = arith.constant 0 : i32
    return %arg0, %arg1, %c0_i32, %c0_i32_0 : i32, i32, i32, i32
  }
}

</mosaic_0001>

<llo_original>
// kernel: _lambda_.8
$region0: #{_lambda_.8}
  #allocation0 [shape = 'u32[]', space=smem, size = 0x4, offset = 0x4, fixed_abs, tag = 'smem constant byte address 0x4 - core index']
  #allocation1 [shape = 'u32[144,128]{1,0:T(1,128)}', space=vmem, size = 0x12000, scoped, tag = 'internal scratch']
  %s0 = inlined_call_operand.vmem [shape: bf16[2,17,17,16], index: 0, kind: input, shape index: {}]
  %s1 = inlined_call_operand.vmem [shape: bf16[4,16,128], index: 1, kind: input, shape index: {}]
  %s2 = inlined_call_operand.vmem [shape: f32[1,128], index: 2, kind: input, shape index: {}]
  %s3 = inlined_call_operand.vmem [shape: bf16[2,16,16,128], index: 3, kind: output, shape index: {}]
  %s4 = sld [smem:[#allocation0]]
  $region45: #{_lambda_.8} parent=0
    _
  %s6 = ssub.s32 1, %s4
  %s7 = scalar_select 0, %s6, %s4
  loop: start=0, step=1, limit=34
  $region2: #{_lambda_.8} parent=0 // loop_pre_header
    _
  $region3: #{_lambda_.8} parent=0 // loop_header
    %s9 = sphi 0, %s13
    %p10 = scmp.ge.s32.totalorder %s9, 34
    %s16 = sphi 0, %s28
    %s17 = sphi 0, %s24
    %s18 = sphi 0, %s16
    %s19 = sphi 0, %s17
    %s20 = sphi 0, %s18
    %s21 = sphi 0, %s19
    %s31 = sphi 0, %s33
    %s34 = sphi 0, %s31
    %s35 = sphi 0, %s34
    %s51 = sphi 0, %s35
    %s55 = sphi 0, %s55
    %s57 = sphi 0, %s55
    %s58 = sphi 0, %s57
    %s72 = sphi 0, %s58
    %s76 = sphi 0, %s76
    %s78 = sphi 0, %s76
    %s79 = sphi 0, %s78
    %s93 = sphi 0, %s79
    %s101 = sphi 0, %s103
    %s104 = sphi 0, %s101
    %s105 = sphi 0, %s104
    %s121 = sphi 0, %s105
  $region4: #{_lambda_.8} parent=0 // loop_header_branch
    %12 = sbr.rel (%p10) target = $region8
  $region5: #{_lambda_.8} parent=0 // loop_body
    %s14 = ssub.s32 %s9, 1
    %s15 = ssub.s32 %s9, 2
    %s22 = sadd.s32 1, %s17
    %p23 = scmp.ge.s32.totalorder %s22, 16
    %s24 = scalar_select %p23, 0, %s22
    %s25 = sadd.s32 1, %s16
    %s26 = scalar_select %p23, %s25, %s16
    %p27 = scmp.ge.s32.totalorder %s26, 2
    %s28 = scalar_select %p27, 0, %s26
    %s29 = ssub.s32 %s16, %s28
    %p30 = scmp.eq.s32.totalorder %s29, 0
    %s32 = sadd.s32 %s31, 1
    %s33 = scalar_select %p30, %s31, %s32
    %p36 = pneg %p30
    %p37 = scmp.eq.s32.totalorder %s9, 31
    %p38 = por %p36, %p37
    %p39 = scmp.ne.s32.totalorder %s31, %s34
    %p40 = scmp.eq.s32.totalorder %s9, 0
    %p41 = por %p39, %p40
    %p42 = scmp.ne.s32.totalorder %s31, %s34
    %p43 = scmp.eq.s32.totalorder %s14, 31
    %p44 = por %p42, %p43
    %p45 = scmp.ne.s32.totalorder %s34, %s35
    %p46 = scmp.eq.s32.totalorder %s14, 0
    %p47 = por %p45, %p46
    %p48 = scmp.ne.s32.totalorder %s34, %s35
    %p49 = scmp.eq.s32.totalorder %s15, 31
    %p50 = por %p48, %p49
    %p52 = scmp.ne.s32.totalorder %s35, %s51
    %p53 = scmp.eq.s32.totalorder %s15, 0
    %p54 = por %p52, %p53
    %s56 = sadd.s32 %s55, 1
    %p59 = scmp.eq.s32.totalorder %s9, 31
    %p60 = scmp.ne.s32.totalorder %s55, %s57
    %p61 = scmp.eq.s32.totalorder %s9, 0
    %p62 = por %p60, %p61
    %p63 = scmp.ne.s32.totalorder %s55, %s57
    %p64 = scmp.eq.s32.totalorder %s14, 31
    %p65 = por %p63, %p64
    %p66 = scmp.ne.s32.totalorder %s57, %s58
    %p67 = scmp.eq.s32.totalorder %s14, 0
    %p68 = por %p66, %p67
    %p69 = scmp.ne.s32.totalorder %s57, %s58
    %p70 = scmp.eq.s32.totalorder %s15, 31
    %p71 = por %p69, %p70
    %p73 = scmp.ne.s32.totalorder %s58, %s72
    %p74 = scmp.eq.s32.totalorder %s15, 0
    %p75 = por %p73, %p74
    %s77 = sadd.s32 %s76, 1
    %p80 = scmp.eq.s32.totalorder %s9, 31
    %p81 = scmp.ne.s32.totalorder %s76, %s78
    %p82 = scmp.eq.s32.totalorder %s9, 0
    %p83 = por %p81, %p82
    %p84 = scmp.ne.s32.totalorder %s76, %s78
    %p85 = scmp.eq.s32.totalorder %s14, 31
    %p86 = por %p84, %p85
    %p87 = scmp.ne.s32.totalorder %s78, %s79
    %p88 = scmp.eq.s32.totalorder %s14, 0
    %p89 = por %p87, %p88
    %p90 = scmp.ne.s32.totalorder %s78, %s79
    %p91 = scmp.eq.s32.totalorder %s15, 31
    %p92 = por %p90, %p91
    %p94 = scmp.ne.s32.totalorder %s79, %s93
    %p95 = scmp.eq.s32.totalorder %s15, 0
    %p96 = por %p94, %p95
    %s97 = ssub.s32 %s16, %s28
    %s98 = ssub.s32 %s17, %s24
    %s99 = sor.u32 %s97, %s98
    %p100 = scmp.eq.s32.totalorder %s99, 0
    %s102 = sadd.s32 %s101, 1
    %s103 = scalar_select %p100, %s101, %s102
    %p106 = pneg %p100
    %p107 = scmp.eq.s32.totalorder %s9, 31
    %p108 = por %p106, %p107
    %p109 = scmp.ne.s32.totalorder %s101, %s104
    %p110 = scmp.eq.s32.totalorder %s9, 0
    %p111 = por %p109, %p110
    %p112 = scmp.ne.s32.totalorder %s101, %s104
    %p113 = scmp.eq.s32.totalorder %s14, 31
    %p114 = por %p112, %p113
    %p115 = scmp.ne.s32.totalorder %s104, %s105
    %p116 = scmp.eq.s32.totalorder %s14, 0
    %p117 = por %p115, %p116
    %p118 = scmp.ne.s32.totalorder %s104, %s105
    %p119 = scmp.eq.s32.totalorder %s15, 31
    %p120 = por %p118, %p119
    %p122 = scmp.ne.s32.totalorder %s105, %s121
    %p123 = scmp.eq.s32.totalorder %s15, 0
    %p124 = por %p122, %p123
    %p125 = scmp.le.s32.totalorder 1, %s9
    %p126 = scmp.lt.s32.totalorder %s9, 33
    %p127 = pnand %p125, %p126
    %p128 = pneg %p127
    // Predicated region
    $region9: #{_lambda_.8} parent=5 // pred_check
      _
    $region10: #{_lambda_.8} parent=5 // pred_check_branch
      %130 = sbr.rel (%p127) target = $region12
    $region11: #{_lambda_.8} parent=5 // pred_region
      %s131 = ssub.s32 %s9, 1
      // Predicated region
      $region13: #{_lambda_.8} parent=11 // pred_check
        %p132 = pneg %p68
      $region14: #{_lambda_.8} parent=11 // pred_check_branch
        %134 = sbr.rel (%p132) target = $region16
      $region15: #{_lambda_.8} parent=11 // pred_region
        _
      $region16: #{_lambda_.8} parent=11 // pred_fallthru
        _
      // Predicated region
      $region17: #{_lambda_.8} parent=11 // pred_check
        %p135 = pneg %p89
      $region18: #{_lambda_.8} parent=11 // pred_check_branch
        %137 = sbr.rel (%p135) target = $region20
      $region19: #{_lambda_.8} parent=11 // pred_region
        _
      $region20: #{_lambda_.8} parent=11 // pred_fallthru
        _
    $region12: #{_lambda_.8} parent=5 // pred_fallthru
      _
    %p138 = scmp.lt.s32.totalorder %s9, 32
    // Predicated region
    $region21: #{_lambda_.8} parent=5 // pred_check
      %p139 = pneg %p138
    $region22: #{_lambda_.8} parent=5 // pred_check_branch
      %141 = sbr.rel (%p139) target = $region24
    $region23: #{_lambda_.8} parent=5 // pred_region
      // Predicated region
      $region25: #{_lambda_.8} parent=23 // pred_check
        %p142 = pneg %p41
      $region26: #{_lambda_.8} parent=23 // pred_check_branch
        %144 = sbr.rel (%p142) target = $region28
      $region27: #{_lambda_.8} parent=23 // pred_region
        %p145 = scmp.lt.s32.totalorder %s16, 1
        %s146 = scalar_select %p145, %s16, 1
        %s147 = smul.addr %s146, 51
        %s148 = smul.addr %s147, 4
        %s149 = scalar_lea.vmem %s0, %s148
      $region28: #{_lambda_.8} parent=23 // pred_fallthru
        _
    $region24: #{_lambda_.8} parent=5 // pred_fallthru
      _
    %p150 = scmp.le.s32.totalorder 1, %s9
    %p151 = scmp.lt.s32.totalorder %s9, 33
    %p152 = pnand %p150, %p151
    %p153 = pneg %p152
    // Predicated region
    $region29: #{_lambda_.8} parent=5 // pred_check
      _
    $region30: #{_lambda_.8} parent=5 // pred_check_branch
      %155 = sbr.rel (%p152) target = $region32
    $region31: #{_lambda_.8} parent=5 // pred_region
      %s156 = ssub.s32 %s9, 1
      %p157 = scmp.lt.s32.totalorder %s18, 1
      %s158 = scalar_select %p157, %s18, 1
      %s159 = smul.addr %s158, 51
      %s160 = smul.addr %s159, 4
      %s161 = scalar_lea.vmem %s0, %s160
      %p162 = pneg %p47
      %p163 = pneg %p44
      %p164 = pneg %p68
      %p165 = pneg %p65
      %p166 = pneg %p89
      %p167 = pneg %p86
      %p168 = pneg %p117
      %p169 = pneg %p114
      %p170 = scmp.lt.s32.totalorder %s18, 1
      %s171 = scalar_select %p170, %s18, 1
      %p172 = scmp.lt.s32.totalorder %s19, 15
      %s173 = scalar_select %p172, %s19, 15
      %s174 = smul.addr %s173, 2
      %s175 = smul.addr %s171, 32
      %s176 = sadd.s32 %s174, %s175
      %s177 = smul.addr %s176, 4
      %s178 = scalar_lea.vmem %s3, %s177
      %p179 = scmp.lt.s32.totalorder %s18, 1
      %s180 = scalar_select %p179, %s18, 1
      %s181 = smul.addr %s180, 51
      %s182 = smul.addr %s181, 4
      %s183 = scalar_lea.vmem %s0, %s182
      %p184 = scmp.lt.s32.totalorder %s18, 1
      %s185 = scalar_select %p184, %s18, 1
      %p186 = scmp.lt.s32.totalorder %s19, 15
      %s187 = scalar_select %p186, %s19, 15
      %s188 = smul.addr %s187, 2
      %s189 = smul.addr %s185, 32
      %s190 = sadd.s32 %s188, %s189
      %s191 = smul.addr %s190, 4
      %s192 = scalar_lea.vmem %s3, %s191
      %s194 = smul.u32 %s19, 3
      %s195 = smul.addr %s194, 4
      %s196 = scalar_lea.vmem %s183, %s195
      %v197 = vld [vmem:[%s196] sm:$0xf]
      %v198 = vld [vmem:[%s196 + $0x4] sm:$0xf]
      %v199 = vld [vmem:[%s1] sm:$0xf]
      %v200 = vld [vmem:[%s1 + $0x4] sm:$0xf]
      %v201 = vld [vmem:[%s196 + $0x8] sm:$0x1]
      %s202 = scalar_lea.vmem %s1, 8
      %v203 = vld [vmem:[%s202] sm:$0xf]
      %v204 = vld [vmem:[%s202 + $0x4] sm:$0xf]
      %v208 = vunpack.c.l.b16 %v197
      %v209 = vunpack.c.l.b16 %v198
      %v210 = vunpack.c.l.b16 %v201
      %v211 = vpack.c.b16 %v209, %v208
      %v212 = vpack.c.b16 %v210, %v210
      %vm213 = vsmask.f32 7424
      %v215 = vshrl.u32 %v211, 16
      %v217 = vshll.u32 %v211, 16
      %v219 = vrot.slane %v217, 1
      %v220 = vor.u32 %v215, %v219
      %v222 = vshll.u32 %v212, 16
      %v224 = vrot.slane %v222, 1
      %v225 = vsel %vm213, %v220, %v224
      %v228 = vunpack.c.l.b16 %v203
      %v229 = vunpack.c.l.b16 %v204
      %v230 = vpack.c.b16 %v229, %v228
      %vm232 = vcmask 130048
      %v234 = vsel %vm232, %v225, 0
      %236 = vmatprep.subr.bf16.mxu0 0
      %237 = vmatpush1.bf16.msra.mxu0 0
      %238 = vmatprep.subr.bf16.mxu0 0
      %239 = vmatpush1.bf16.msra.mxu0 0
      %240 = vmatprep.subr.bf16.mxu0 0
      %241 = vmatpush1.bf16.msra.mxu0 0
      %242 = vmatprep.subr.bf16.mxu0 0
      %243 = vmatpush1.bf16.msra.mxu0 0
      %244 = vmatprep.subr.bf16.mxu0 0
      %245 = vmatpush1.bf16.msra.mxu0 0
      %246 = vmatprep.subr.bf16.mxu0 0
      %247 = vmatpush1.bf16.msra.mxu0 0
      %248 = vmatprep.subr.bf16.mxu0 0
      %249 = vmatpush1.bf16.msra.mxu0 0
      %250 = vmatprep.subr.bf16.mxu0 0
      %251 = vmatpush1.bf16.msra.mxu0 %v230
      %252 = vmatprep.subr.bf16.mxu0 0
      %253 = vmatpush2.bf16.msra.mxu0 0
      %254 = vmatprep.subr.bf16.mxu0 0
      %255 = vmatpush2.bf16.msra.mxu0 0
      %256 = vmatprep.subr.bf16.mxu0 0
      %257 = vmatpush2.bf16.msra.mxu0 0
      %258 = vmatprep.subr.bf16.mxu0 0
      %259 = vmatpush2.bf16.msra.mxu0 0
      %260 = vmatprep.subr.bf16.mxu0 0
      %261 = vmatpush2.bf16.msra.mxu0 0
      %262 = vmatprep.subr.bf16.mxu0 0
      %263 = vmatpush2.bf16.msra.mxu0 0
      %264 = vmatprep.subr.bf16.mxu0 0
      %265 = vmatpush2.bf16.msra.mxu0 0
      %266 = vmatprep.subr.bf16.mxu0 0
      %267 = vmatpush2.bf16.msra.mxu0 0
      %268 = vmatprep.mubr.bf16.mxu0 0
      %269 = vmatmul.mubr.bf16.gmra.mxu0 %v234
      %v270 = vpop.f32.mrf.mxu0
      %v271 = vadd.f32 0.0, %v270
      %v272 = vpop.f32.mrf.mxu0
      %v273 = vpop.f32.mrf.mxu0
      %v274 = vadd.f32 0.0, %v273
      %v275 = vpop.f32.mrf.mxu0
      %276 = vdwg.mxu0
      %v279 = vunpack.c.l.b16 %v199
      %v280 = vunpack.c.l.b16 %v200
      %v281 = vpack.c.b16 %v280, %v279
      %v283 = vsel %vm232, %v211, 0
      %285 = vmatprep.subr.bf16.mxu0 0
      %286 = vmatpush1.bf16.msra.mxu0 0
      %287 = vmatprep.subr.bf16.mxu0 0
      %288 = vmatpush1.bf16.msra.mxu0 0
      %289 = vmatprep.subr.bf16.mxu0 0
      %290 = vmatpush1.bf16.msra.mxu0 0
      %291 = vmatprep.subr.bf16.mxu0 0
      %292 = vmatpush1.bf16.msra.mxu0 0
      %293 = vmatprep.subr.bf16.mxu0 0
      %294 = vmatpush1.bf16.msra.mxu0 0
      %295 = vmatprep.subr.bf16.mxu0 0
      %296 = vmatpush1.bf16.msra.mxu0 0
      %297 = vmatprep.subr.bf16.mxu0 0
      %298 = vmatpush1.bf16.msra.mxu0 0
      %299 = vmatprep.subr.bf16.mxu0 0
      %300 = vmatpush1.bf16.msra.mxu0 %v281
      %301 = vmatprep.subr.bf16.mxu0 0
      %302 = vmatpush2.bf16.msra.mxu0 0
      %303 = vmatprep.subr.bf16.mxu0 0
      %304 = vmatpush2.bf16.msra.mxu0 0
      %305 = vmatprep.subr.bf16.mxu0 0
      %306 = vmatpush2.bf16.msra.mxu0 0
      %307 = vmatprep.subr.bf16.mxu0 0
      %308 = vmatpush2.bf16.msra.mxu0 0
      %309 = vmatprep.subr.bf16.mxu0 0
      %310 = vmatpush2.bf16.msra.mxu0 0
      %311 = vmatprep.subr.bf16.mxu0 0
      %312 = vmatpush2.bf16.msra.mxu0 0
      %313 = vmatprep.subr.bf16.mxu0 0
      %314 = vmatpush2.bf16.msra.mxu0 0
      %315 = vmatprep.subr.bf16.mxu0 0
      %316 = vmatpush2.bf16.msra.mxu0 0
      %317 = vmatprep.mubr.bf16.mxu0 0
      %318 = vmatmul.mubr.bf16.gmra.mxu0 %v283
      %v319 = vpop.f32.mrf.mxu0
      %v320 = vadd.f32 %v271, %v319
      %v321 = vpop.f32.mrf.mxu0
      %v322 = vpop.f32.mrf.mxu0
      %v323 = vadd.f32 %v274, %v322
      %v324 = vpop.f32.mrf.mxu0
      %325 = vdwg.mxu0
      %s326 = sadd.s32 %s19, 1
      %s327 = smul.u32 %s326, 3
      %s328 = smul.addr %s327, 4
      %s329 = scalar_lea.vmem %s183, %s328
      %v330 = vld [vmem:[%s329] sm:$0xf]
      %v331 = vld [vmem:[%s329 + $0x4] sm:$0xf]
      %s332 = scalar_lea.vmem %s1, 16
      %v333 = vld [vmem:[%s332] sm:$0xf]
      %v334 = vld [vmem:[%s332 + $0x4] sm:$0xf]
      %v337 = vunpack.c.l.b16 %v330
      %v338 = vunpack.c.l.b16 %v331
      %v339 = vpack.c.b16 %v338, %v337
      %v342 = vunpack.c.l.b16 %v333
      %v343 = vunpack.c.l.b16 %v334
      %v344 = vpack.c.b16 %v343, %v342
      %v347 = vsel %vm232, %v339, 0
      %349 = vmatprep.subr.bf16.mxu0 0
      %350 = vmatpush1.bf16.msra.mxu0 0
      %351 = vmatprep.subr.bf16.mxu0 0
      %352 = vmatpush1.bf16.msra.mxu0 0
      %353 = vmatprep.subr.bf16.mxu0 0
      %354 = vmatpush1.bf16.msra.mxu0 0
      %355 = vmatprep.subr.bf16.mxu0 0
      %356 = vmatpush1.bf16.msra.mxu0 0
      %357 = vmatprep.subr.bf16.mxu0 0
      %358 = vmatpush1.bf16.msra.mxu0 0
      %359 = vmatprep.subr.bf16.mxu0 0
      %360 = vmatpush1.bf16.msra.mxu0 0
      %361 = vmatprep.subr.bf16.mxu0 0
      %362 = vmatpush1.bf16.msra.mxu0 0
      %363 = vmatprep.subr.bf16.mxu0 0
      %364 = vmatpush1.bf16.msra.mxu0 %v344
      %365 = vmatprep.subr.bf16.mxu0 0
      %366 = vmatpush2.bf16.msra.mxu0 0
      %367 = vmatprep.subr.bf16.mxu0 0
      %368 = vmatpush2.bf16.msra.mxu0 0
      %369 = vmatprep.subr.bf16.mxu0 0
      %370 = vmatpush2.bf16.msra.mxu0 0
      %371 = vmatprep.subr.bf16.mxu0 0
      %372 = vmatpush2.bf16.msra.mxu0 0
      %373 = vmatprep.subr.bf16.mxu0 0
      %374 = vmatpush2.bf16.msra.mxu0 0
      %375 = vmatprep.subr.bf16.mxu0 0
      %376 = vmatpush2.bf16.msra.mxu0 0
      %377 = vmatprep.subr.bf16.mxu0 0
      %378 = vmatpush2.bf16.msra.mxu0 0
      %379 = vmatprep.subr.bf16.mxu0 0
      %380 = vmatpush2.bf16.msra.mxu0 0
      %381 = vmatprep.mubr.bf16.mxu0 0
      %382 = vmatmul.mubr.bf16.gmra.mxu0 %v347
      %v383 = vpop.f32.mrf.mxu0
      %v384 = vadd.f32 0.0, %v383
      %v385 = vpop.f32.mrf.mxu0
      %v386 = vpop.f32.mrf.mxu0
      %v387 = vadd.f32 0.0, %v386
      %v388 = vpop.f32.mrf.mxu0
      %389 = vdwg.mxu0
      %v390 = vadd.f32 %v320, %v384
      %v391 = vadd.f32 %v323, %v387
      %v392 = vld [vmem:[%s329] sm:$0xf]
      %v393 = vld [vmem:[%s329 + $0x4] sm:$0xf]
      %v394 = vld [vmem:[%s329 + $0x8] sm:$0x1]
      %s395 = scalar_lea.vmem %s1, 24
      %v396 = vld [vmem:[%s395] sm:$0xf]
      %v397 = vld [vmem:[%s395 + $0x4] sm:$0xf]
      %v401 = vunpack.c.l.b16 %v392
      %v402 = vunpack.c.l.b16 %v393
      %v403 = vunpack.c.l.b16 %v394
      %v404 = vpack.c.b16 %v402, %v401
      %v405 = vpack.c.b16 %v403, %v403
      %v407 = vshrl.u32 %v404, 16
      %v409 = vshll.u32 %v404, 16
      %v411 = vrot.slane %v409, 1
      %v412 = vor.u32 %v407, %v411
      %v414 = vshll.u32 %v405, 16
      %v416 = vrot.slane %v414, 1
      %v417 = vsel %vm213, %v412, %v416
      %v420 = vunpack.c.l.b16 %v396
      %v421 = vunpack.c.l.b16 %v397
      %v422 = vpack.c.b16 %v421, %v420
      %v425 = vsel %vm232, %v417, 0
      %427 = vmatprep.subr.bf16.mxu0 0
      %428 = vmatpush1.bf16.msra.mxu0 0
      %429 = vmatprep.subr.bf16.mxu0 0
      %430 = vmatpush1.bf16.msra.mxu0 0
      %431 = vmatprep.subr.bf16.mxu0 0
      %432 = vmatpush1.bf16.msra.mxu0 0
      %433 = vmatprep.subr.bf16.mxu0 0
      %434 = vmatpush1.bf16.msra.mxu0 0
      %435 = vmatprep.subr.bf16.mxu0 0
      %436 = vmatpush1.bf16.msra.mxu0 0
      %437 = vmatprep.subr.bf16.mxu0 0
      %438 = vmatpush1.bf16.msra.mxu0 0
      %439 = vmatprep.subr.bf16.mxu0 0
      %440 = vmatpush1.bf16.msra.mxu0 0
      %441 = vmatprep.subr.bf16.mxu0 0
      %442 = vmatpush1.bf16.msra.mxu0 %v422
      %443 = vmatprep.subr.bf16.mxu0 0
      %444 = vmatpush2.bf16.msra.mxu0 0
      %445 = vmatprep.subr.bf16.mxu0 0
      %446 = vmatpush2.bf16.msra.mxu0 0
      %447 = vmatprep.subr.bf16.mxu0 0
      %448 = vmatpush2.bf16.msra.mxu0 0
      %449 = vmatprep.subr.bf16.mxu0 0
      %450 = vmatpush2.bf16.msra.mxu0 0
      %451 = vmatprep.subr.bf16.mxu0 0
      %452 = vmatpush2.bf16.msra.mxu0 0
      %453 = vmatprep.subr.bf16.mxu0 0
      %454 = vmatpush2.bf16.msra.mxu0 0
      %455 = vmatprep.subr.bf16.mxu0 0
      %456 = vmatpush2.bf16.msra.mxu0 0
      %457 = vmatprep.subr.bf16.mxu0 0
      %458 = vmatpush2.bf16.msra.mxu0 0
      %459 = vmatprep.mubr.bf16.mxu0 0
      %460 = vmatmul.mubr.bf16.gmra.mxu0 %v425
      %v461 = vpop.f32.mrf.mxu0
      %v462 = vadd.f32 0.0, %v461
      %v463 = vpop.f32.mrf.mxu0
      %v464 = vpop.f32.mrf.mxu0
      %v465 = vadd.f32 0.0, %v464
      %v466 = vpop.f32.mrf.mxu0
      %467 = vdwg.mxu0
      %v468 = vadd.f32 %v390, %v462
      %v469 = vadd.f32 %v391, %v465
      %v470 = vld [vmem:[%s2] sm:$0x1]
      %v472 = vlaneseq
      %v473 = vshrl.u32 %v472, 7
      %v474 = vsub.s32 0, %v473
      %v475 = vrot.slane %v470, %v474
      %v477 = vadd.f32 %v468, %v475
      %v478 = vadd.f32 %v469, %v475
      %vm479 = vcmp.gt.f32.partialorder %v477, 0.0
      %vm480 = vcmp.gt.f32.partialorder %v478, 0.0
      %v481 = vmul.f32 %v477, 0.2
      %v482 = vmul.f32 %v478, 0.2
      %v483 = vsel %vm479, %v477, %v481
      %v484 = vsel %vm480, %v478, %v482
      %v485 = vpack.c.bf16 %v484, %v483
      %v487 = vunpack.c.l.b16 %v485
      %v488 = vunpack.c.h.b16 %v485
      %v489 = vpack.c.b16 %v487, %v487
      %v490 = vpack.c.b16 %v488, %v488
      %493 = vst [vmem:[%s192] sm:$0xf] %v489
      %494 = vst [vmem:[%s192 + $0x4] sm:$0xf] %v490
      %p495 = scmp.lt.s32.totalorder %s18, 1
      %s496 = scalar_select %p495, %s18, 1
      %p497 = scmp.lt.s32.totalorder %s19, 15
      %s498 = scalar_select %p497, %s19, 15
      %s499 = smul.addr %s498, 2
      %s500 = smul.addr %s496, 32
      %s501 = sadd.s32 %s499, %s500
      %s502 = smul.addr %s501, 4
      %s503 = scalar_lea.vmem %s3, %s502
      // Predicated region
      $region33: #{_lambda_.8} parent=31 // pred_check
        %p504 = pneg %p114
      $region34: #{_lambda_.8} parent=31 // pred_check_branch
        %506 = sbr.rel (%p504) target = $region36
      $region35: #{_lambda_.8} parent=31 // pred_region
        _
      $region36: #{_lambda_.8} parent=31 // pred_fallthru
        _
    $region32: #{_lambda_.8} parent=5 // pred_fallthru
      _
    %p507 = scmp.le.s32.totalorder 2, %s9
    // Predicated region
    $region37: #{_lambda_.8} parent=5 // pred_check
      %p508 = pneg %p507
    $region38: #{_lambda_.8} parent=5 // pred_check_branch
      %510 = sbr.rel (%p508) target = $region40
    $region39: #{_lambda_.8} parent=5 // pred_region
      %s511 = ssub.s32 %s9, 2
      // Predicated region
      $region41: #{_lambda_.8} parent=39 // pred_check
        %p512 = pneg %p120
      $region42: #{_lambda_.8} parent=39 // pred_check_branch
        %514 = sbr.rel (%p512) target = $region44
      $region43: #{_lambda_.8} parent=39 // pred_region
        %p515 = scmp.lt.s32.totalorder %s20, 1
        %s516 = scalar_select %p515, %s20, 1
        %p517 = scmp.lt.s32.totalorder %s21, 15
        %s518 = scalar_select %p517, %s21, 15
        %s519 = smul.addr %s518, 2
        %s520 = smul.addr %s516, 32
        %s521 = sadd.s32 %s519, %s520
        %s522 = smul.addr %s521, 4
        %s523 = scalar_lea.vmem %s3, %s522
      $region44: #{_lambda_.8} parent=39 // pred_fallthru
        _
    $region40: #{_lambda_.8} parent=5 // pred_fallthru
      _
  $region6: #{_lambda_.8} parent=0 // loop_footer
    %s13 = sadd.s32 1, %s9
  $region7: #{_lambda_.8} parent=0 // loop_footer_branch
    %8 = sbr.rel target = $region3
  $region8: #{_lambda_.8} parent=0 // loop_exit
    _

// kernel: _lambda_.10
$region0: #{_lambda_.10}
  #allocation0 [shape = 'u32[]', space=smem, size = 0x4, offset = 0x4, fixed_abs, tag = 'smem constant byte address 0x4 - core index']
  #allocation1 [shape = 'u32[144,128]{1,0:T(1,128)}', space=vmem, size = 0x12000, scoped, tag = 'internal scratch']
  %s0 = inlined_call_operand.vmem [shape: f32[2,8,8,128], index: 0, kind: input, shape index: {}]
  %s1 = inlined_call_operand.vmem [shape: f32[1,128], index: 1, kind: input, shape index: {}]
  %s2 = inlined_call_operand.vmem [shape: f32[1,128], index: 2, kind: input, shape index: {}]
  %s3 = inlined_call_operand.vmem [shape: f32[1,128], index: 3, kind: input, shape index: {}]
  %s4 = inlined_call_operand.vmem [shape: f32[1,128], index: 4, kind: input, shape index: {}]
  %s5 = inlined_call_operand.vmem [shape: bf16[2,8,8,128], index: 5, kind: output, shape index: {}]
  %s6 = sld [smem:[#allocation0]]
  $region53: #{_lambda_.10} parent=0
    _
  %s8 = ssub.s32 1, %s6
  %s9 = scalar_select 0, %s8, %s6
  loop: start=0, step=1, limit=18
  $region2: #{_lambda_.10} parent=0 // loop_pre_header
    _
  $region3: #{_lambda_.10} parent=0 // loop_header
    %s11 = sphi 0, %s15
    %p12 = scmp.ge.s32.totalorder %s11, 18
    %s18 = sphi 0, %s30
    %s19 = sphi 0, %s26
    %s20 = sphi 0, %s18
    %s21 = sphi 0, %s19
    %s22 = sphi 0, %s20
    %s23 = sphi 0, %s21
    %s35 = sphi 0, %s37
    %s38 = sphi 0, %s35
    %s39 = sphi 0, %s38
    %s55 = sphi 0, %s39
    %s59 = sphi 0, %s59
    %s61 = sphi 0, %s59
    %s62 = sphi 0, %s61
    %s76 = sphi 0, %s62
    %s80 = sphi 0, %s80
    %s82 = sphi 0, %s80
    %s83 = sphi 0, %s82
    %s97 = sphi 0, %s83
    %s101 = sphi 0, %s101
    %s103 = sphi 0, %s101
    %s104 = sphi 0, %s103
    %s118 = sphi 0, %s104
    %s122 = sphi 0, %s122
    %s124 = sphi 0, %s122
    %s125 = sphi 0, %s124
    %s139 = sphi 0, %s125
    %s147 = sphi 0, %s149
    %s150 = sphi 0, %s147
    %s151 = sphi 0, %s150
    %s167 = sphi 0, %s151
  $region4: #{_lambda_.10} parent=0 // loop_header_branch
    %14 = sbr.rel (%p12) target = $region8
  $region5: #{_lambda_.10} parent=0 // loop_body
    %s16 = ssub.s32 %s11, 1
    %s17 = ssub.s32 %s11, 2
    %s24 = sadd.s32 1, %s19
    %p25 = scmp.ge.s32.totalorder %s24, 8
    %s26 = scalar_select %p25, 0, %s24
    %s27 = sadd.s32 1, %s18
    %s28 = scalar_select %p25, %s27, %s18
    %p29 = scmp.ge.s32.totalorder %s28, 2
    %s30 = scalar_select %p29, 0, %s28
    %s31 = ssub.s32 %s18, %s30
    %s32 = ssub.s32 %s19, %s26
    %s33 = sor.u32 %s31, %s32
    %p34 = scmp.eq.s32.totalorder %s33, 0
    %s36 = sadd.s32 %s35, 1
    %s37 = scalar_select %p34, %s35, %s36
    %p40 = pneg %p34
    %p41 = scmp.eq.s32.totalorder %s11, 15
    %p42 = por %p40, %p41
    %p43 = scmp.ne.s32.totalorder %s35, %s38
    %p44 = scmp.eq.s32.totalorder %s11, 0
    %p45 = por %p43, %p44
    %p46 = scmp.ne.s32.totalorder %s35, %s38
    %p47 = scmp.eq.s32.totalorder %s16, 15
    %p48 = por %p46, %p47
    %p49 = scmp.ne.s32.totalorder %s38, %s39
    %p50 = scmp.eq.s32.totalorder %s16, 0
    %p51 = por %p49, %p50
    %p52 = scmp.ne.s32.totalorder %s38, %s39
    %p53 = scmp.eq.s32.totalorder %s17, 15
    %p54 = por %p52, %p53
    %p56 = scmp.ne.s32.totalorder %s39, %s55
    %p57 = scmp.eq.s32.totalorder %s17, 0
    %p58 = por %p56, %p57
    %s60 = sadd.s32 %s59, 1
    %p63 = scmp.eq.s32.totalorder %s11, 15
    %p64 = scmp.ne.s32.totalorder %s59, %s61
    %p65 = scmp.eq.s32.totalorder %s11, 0
    %p66 = por %p64, %p65
    %p67 = scmp.ne.s32.totalorder %s59, %s61
    %p68 = scmp.eq.s32.totalorder %s16, 15
    %p69 = por %p67, %p68
    %p70 = scmp.ne.s32.totalorder %s61, %s62
    %p71 = scmp.eq.s32.totalorder %s16, 0
    %p72 = por %p70, %p71
    %p73 = scmp.ne.s32.totalorder %s61, %s62
    %p74 = scmp.eq.s32.totalorder %s17, 15
    %p75 = por %p73, %p74
    %p77 = scmp.ne.s32.totalorder %s62, %s76
    %p78 = scmp.eq.s32.totalorder %s17, 0
    %p79 = por %p77, %p78
    %s81 = sadd.s32 %s80, 1
    %p84 = scmp.eq.s32.totalorder %s11, 15
    %p85 = scmp.ne.s32.totalorder %s80, %s82
    %p86 = scmp.eq.s32.totalorder %s11, 0
    %p87 = por %p85, %p86
    %p88 = scmp.ne.s32.totalorder %s80, %s82
    %p89 = scmp.eq.s32.totalorder %s16, 15
    %p90 = por %p88, %p89
    %p91 = scmp.ne.s32.totalorder %s82, %s83
    %p92 = scmp.eq.s32.totalorder %s16, 0
    %p93 = por %p91, %p92
    %p94 = scmp.ne.s32.totalorder %s82, %s83
    %p95 = scmp.eq.s32.totalorder %s17, 15
    %p96 = por %p94, %p95
    %p98 = scmp.ne.s32.totalorder %s83, %s97
    %p99 = scmp.eq.s32.totalorder %s17, 0
    %p100 = por %p98, %p99
    %s102 = sadd.s32 %s101, 1
    %p105 = scmp.eq.s32.totalorder %s11, 15
    %p106 = scmp.ne.s32.totalorder %s101, %s103
    %p107 = scmp.eq.s32.totalorder %s11, 0
    %p108 = por %p106, %p107
    %p109 = scmp.ne.s32.totalorder %s101, %s103
    %p110 = scmp.eq.s32.totalorder %s16, 15
    %p111 = por %p109, %p110
    %p112 = scmp.ne.s32.totalorder %s103, %s104
    %p113 = scmp.eq.s32.totalorder %s16, 0
    %p114 = por %p112, %p113
    %p115 = scmp.ne.s32.totalorder %s103, %s104
    %p116 = scmp.eq.s32.totalorder %s17, 15
    %p117 = por %p115, %p116
    %p119 = scmp.ne.s32.totalorder %s104, %s118
    %p120 = scmp.eq.s32.totalorder %s17, 0
    %p121 = por %p119, %p120
    %s123 = sadd.s32 %s122, 1
    %p126 = scmp.eq.s32.totalorder %s11, 15
    %p127 = scmp.ne.s32.totalorder %s122, %s124
    %p128 = scmp.eq.s32.totalorder %s11, 0
    %p129 = por %p127, %p128
    %p130 = scmp.ne.s32.totalorder %s122, %s124
    %p131 = scmp.eq.s32.totalorder %s16, 15
    %p132 = por %p130, %p131
    %p133 = scmp.ne.s32.totalorder %s124, %s125
    %p134 = scmp.eq.s32.totalorder %s16, 0
    %p135 = por %p133, %p134
    %p136 = scmp.ne.s32.totalorder %s124, %s125
    %p137 = scmp.eq.s32.totalorder %s17, 15
    %p138 = por %p136, %p137
    %p140 = scmp.ne.s32.totalorder %s125, %s139
    %p141 = scmp.eq.s32.totalorder %s17, 0
    %p142 = por %p140, %p141
    %s143 = ssub.s32 %s18, %s30
    %s144 = ssub.s32 %s19, %s26
    %s145 = sor.u32 %s143, %s144
    %p146 = scmp.eq.s32.totalorder %s145, 0
    %s148 = sadd.s32 %s147, 1
    %s149 = scalar_select %p146, %s147, %s148
    %p152 = pneg %p146
    %p153 = scmp.eq.s32.totalorder %s11, 15
    %p154 = por %p152, %p153
    %p155 = scmp.ne.s32.totalorder %s147, %s150
    %p156 = scmp.eq.s32.totalorder %s11, 0
    %p157 = por %p155, %p156
    %p158 = scmp.ne.s32.totalorder %s147, %s150
    %p159 = scmp.eq.s32.totalorder %s16, 15
    %p160 = por %p158, %p159
    %p161 = scmp.ne.s32.totalorder %s150, %s151
    %p162 = scmp.eq.s32.totalorder %s16, 0
    %p163 = por %p161, %p162
    %p164 = scmp.ne.s32.totalorder %s150, %s151
    %p165 = scmp.eq.s32.totalorder %s17, 15
    %p166 = por %p164, %p165
    %p168 = scmp.ne.s32.totalorder %s151, %s167
    %p169 = scmp.eq.s32.totalorder %s17, 0
    %p170 = por %p168, %p169
    %p171 = scmp.le.s32.totalorder 1, %s11
    %p172 = scmp.lt.s32.totalorder %s11, 17
    %p173 = pnand %p171, %p172
    %p174 = pneg %p173
    // Predicated region
    $region9: #{_lambda_.10} parent=5 // pred_check
      _
    $region10: #{_lambda_.10} parent=5 // pred_check_branch
      %176 = sbr.rel (%p173) target = $region12
    $region11: #{_lambda_.10} parent=5 // pred_region
      %s177 = ssub.s32 %s11, 1
      // Predicated region
      $region13: #{_lambda_.10} parent=11 // pred_check
        %p178 = pneg %p72
      $region14: #{_lambda_.10} parent=11 // pred_check_branch
        %180 = sbr.rel (%p178) target = $region16
      $region15: #{_lambda_.10} parent=11 // pred_region
        _
      $region16: #{_lambda_.10} parent=11 // pred_fallthru
        _
      // Predicated region
      $region17: #{_lambda_.10} parent=11 // pred_check
        %p181 = pneg %p93
      $region18: #{_lambda_.10} parent=11 // pred_check_branch
        %183 = sbr.rel (%p181) target = $region20
      $region19: #{_lambda_.10} parent=11 // pred_region
        _
      $region20: #{_lambda_.10} parent=11 // pred_fallthru
        _
      // Predicated region
      $region21: #{_lambda_.10} parent=11 // pred_check
        %p184 = pneg %p114
      $region22: #{_lambda_.10} parent=11 // pred_check_branch
        %186 = sbr.rel (%p184) target = $region24
      $region23: #{_lambda_.10} parent=11 // pred_region
        _
      $region24: #{_lambda_.10} parent=11 // pred_fallthru
        _
      // Predicated region
      $region25: #{_lambda_.10} parent=11 // pred_check
        %p187 = pneg %p135
      $region26: #{_lambda_.10} parent=11 // pred_check_branch
        %189 = sbr.rel (%p187) target = $region28
      $region27: #{_lambda_.10} parent=11 // pred_region
        _
      $region28: #{_lambda_.10} parent=11 // pred_fallthru
        _
    $region12: #{_lambda_.10} parent=5 // pred_fallthru
      _
    %p190 = scmp.lt.s32.totalorder %s11, 16
    // Predicated region
    $region29: #{_lambda_.10} parent=5 // pred_check
      %p191 = pneg %p190
    $region30: #{_lambda_.10} parent=5 // pred_check_branch
      %193 = sbr.rel (%p191) target = $region32
    $region31: #{_lambda_.10} parent=5 // pred_region
      // Predicated region
      $region33: #{_lambda_.10} parent=31 // pred_check
        %p194 = pneg %p45
      $region34: #{_lambda_.10} parent=31 // pred_check_branch
        %196 = sbr.rel (%p194) target = $region36
      $region35: #{_lambda_.10} parent=31 // pred_region
        %p197 = scmp.lt.s32.totalorder %s18, 1
        %s198 = scalar_select %p197, %s18, 1
        %p199 = scmp.lt.s32.totalorder %s19, 7
        %s200 = scalar_select %p199, %s19, 7
        %s201 = smul.addr %s198, 8
        %s202 = sadd.s32 %s200, %s201
        %s203 = smul.addr %s202, 8
        %s204 = scalar_lea.vmem %s0, %s203
      $region36: #{_lambda_.10} parent=31 // pred_fallthru
        _
    $region32: #{_lambda_.10} parent=5 // pred_fallthru
      _
    %p205 = scmp.le.s32.totalorder 1, %s11
    %p206 = scmp.lt.s32.totalorder %s11, 17
    %p207 = pnand %p205, %p206
    %p208 = pneg %p207
    // Predicated region
    $region37: #{_lambda_.10} parent=5 // pred_check
      _
    $region38: #{_lambda_.10} parent=5 // pred_check_branch
      %210 = sbr.rel (%p207) target = $region40
    $region39: #{_lambda_.10} parent=5 // pred_region
      %s211 = ssub.s32 %s11, 1
      %p212 = scmp.lt.s32.totalorder %s20, 1
      %s213 = scalar_select %p212, %s20, 1
      %p214 = scmp.lt.s32.totalorder %s21, 7
      %s215 = scalar_select %p214, %s21, 7
      %s216 = smul.addr %s213, 8
      %s217 = sadd.s32 %s215, %s216
      %s218 = smul.addr %s217, 8
      %s219 = scalar_lea.vmem %s0, %s218
      %p220 = pneg %p51
      %p221 = pneg %p48
      %p222 = pneg %p72
      %p223 = pneg %p69
      %p224 = pneg %p93
      %p225 = pneg %p90
      %p226 = pneg %p114
      %p227 = pneg %p111
      %p228 = pneg %p135
      %p229 = pneg %p132
      %p230 = pneg %p163
      %p231 = pneg %p160
      %p232 = scmp.lt.s32.totalorder %s20, 1
      %s233 = scalar_select %p232, %s20, 1
      %p234 = scmp.lt.s32.totalorder %s21, 7
      %s235 = scalar_select %p234, %s21, 7
      %s236 = smul.addr %s233, 8
      %s237 = sadd.s32 %s235, %s236
      %s238 = smul.addr %s237, 4
      %s239 = scalar_lea.vmem %s5, %s238
      %p240 = scmp.lt.s32.totalorder %s20, 1
      %s241 = scalar_select %p240, %s20, 1
      %p242 = scmp.lt.s32.totalorder %s21, 7
      %s243 = scalar_select %p242, %s21, 7
      %s244 = smul.addr %s241, 8
      %s245 = sadd.s32 %s243, %s244
      %s246 = smul.addr %s245, 8
      %s247 = scalar_lea.vmem %s0, %s246
      %p248 = scmp.lt.s32.totalorder %s20, 1
      %s249 = scalar_select %p248, %s20, 1
      %p250 = scmp.lt.s32.totalorder %s21, 7
      %s251 = scalar_select %p250, %s21, 7
      %s252 = smul.addr %s249, 8
      %s253 = sadd.s32 %s251, %s252
      %s254 = smul.addr %s253, 4
      %s255 = scalar_lea.vmem %s5, %s254
      %v256 = vld [vmem:[%s1] sm:$0x1]
      %v257 = vmul.f32 %v256, 0.0078125
      %v258 = vld [vmem:[%s2] sm:$0x1]
      %v259 = vmul.f32 %v258, 0.0078125
      %v260 = vmul.f32 %v257, %v257
      %v261 = vsub.f32 %v259, %v260
      %v262 = vld [vmem:[%s3] sm:$0x1]
      %v263 = vadd.f32 %v261, 1e-05
      %v264 = vrsqrt.pop %v263
      %v265 = vmul.f32 %v262, %v264
      %v266 = vld [vmem:[%s4] sm:$0x1]
      %v267 = vmul.f32 %v257, %v265
      %v268 = vsub.f32 %v266, %v267
      %v269 = vld [vmem:[%s247] sm:$0xff]
      %v271 = vlaneseq
      %v272 = vshrl.u32 %v271, 7
      %v273 = vsub.s32 0, %v272
      %v274 = vrot.slane %v265, %v273
      %v276 = vmul.f32 %v269, %v274
      %v278 = vlaneseq
      %v279 = vshrl.u32 %v278, 7
      %v280 = vsub.s32 0, %v279
      %v281 = vrot.slane %v268, %v280
      %v283 = vadd.f32 %v276, %v281
      %vm284 = vcmp.gt.f32.partialorder %v283, 0.0
      %v285 = vmul.f32 %v283, 0.2
      %v286 = vsel %vm284, %v283, %v285
      %v287 = vpack.c.bf16 %v286, %v286
      %288 = vst [vmem:[%s255] sm:$0xf] %v287
      %p289 = scmp.lt.s32.totalorder %s20, 1
      %s290 = scalar_select %p289, %s20, 1
      %p291 = scmp.lt.s32.totalorder %s21, 7
      %s292 = scalar_select %p291, %s21, 7
      %s293 = smul.addr %s290, 8
      %s294 = sadd.s32 %s292, %s293
      %s295 = smul.addr %s294, 4
      %s296 = scalar_lea.vmem %s5, %s295
      // Predicated region
      $region41: #{_lambda_.10} parent=39 // pred_check
        %p297 = pneg %p160
      $region42: #{_lambda_.10} parent=39 // pred_check_branch
        %299 = sbr.rel (%p297) target = $region44
      $region43: #{_lambda_.10} parent=39 // pred_region
        _
      $region44: #{_lambda_.10} parent=39 // pred_fallthru
        _
    $region40: #{_lambda_.10} parent=5 // pred_fallthru
      _
    %p300 = scmp.le.s32.totalorder 2, %s11
    // Predicated region
    $region45: #{_lambda_.10} parent=5 // pred_check
      %p301 = pneg %p300
    $region46: #{_lambda_.10} parent=5 // pred_check_branch
      %303 = sbr.rel (%p301) target = $region48
    $region47: #{_lambda_.10} parent=5 // pred_region
      %s304 = ssub.s32 %s11, 2
      // Predicated region
      $region49: #{_lambda_.10} parent=47 // pred_check
        %p305 = pneg %p166
      $region50: #{_lambda_.10} parent=47 // pred_check_branch
        %307 = sbr.rel (%p305) target = $region52
      $region51: #{_lambda_.10} parent=47 // pred_region
        %p308 = scmp.lt.s32.totalorder %s22, 1
        %s309 = scalar_select %p308, %s22, 1
        %p310 = scmp.lt.s32.totalorder %s23, 7
        %s311 = scalar_select %p310, %s23, 7
        %s312 = smul.addr %s309, 8
        %s313 = sadd.s32 %s311, %s312
        %s314 = smul.addr %s313, 4
        %s315 = scalar_lea.vmem %s5, %s314
      $region52: #{_lambda_.10} parent=47 // pred_fallthru
        _
    $region48: #{_lambda_.10} parent=5 // pred_fallthru
      _
  $region6: #{_lambda_.10} parent=0 // loop_footer
    %s15 = sadd.s32 1, %s11
  $region7: #{_lambda_.10} parent=0 // loop_footer_branch
    %10 = sbr.rel target = $region3
  $region8: #{_lambda_.10} parent=0 // loop_exit
    _

// kernel: _lambda_.9
$region0: #{_lambda_.9}
  #allocation0 [shape = 'u32[]', space=smem, size = 0x4, offset = 0x4, fixed_abs, tag = 'smem constant byte address 0x4 - core index']
  #allocation1 [shape = 'u32[144,128]{1,0:T(1,128)}', space=vmem, size = 0x12000, scoped, tag = 'internal scratch']
  %s0 = inlined_call_operand.vmem [shape: bf16[2,9,9,512], index: 0, kind: input, shape index: {}]
  %s1 = inlined_call_operand.vmem [shape: bf16[4,512,128], index: 1, kind: input, shape index: {}]
  %s2 = inlined_call_operand.vmem [shape: f32[1,128], index: 2, kind: input, shape index: {}]
  %s3 = inlined_call_operand.vmem [shape: f32[2,8,8,128], index: 3, kind: output, shape index: {0}]
  %s4 = inlined_call_operand.vmem [shape: f32[1,128], index: 4, kind: output, shape index: {1}]
  %s5 = inlined_call_operand.vmem [shape: f32[1,128], index: 5, kind: output, shape index: {2}]
  %6 = xla_tuple %s3, %s4, %s5
  %s7 = sld [smem:[#allocation0]]
  $region65: #{_lambda_.9} parent=0
    _
  %s9 = ssub.s32 1, %s7
  %s10 = scalar_select 0, %s9, %s7
  loop: start=0, step=1, limit=18
  $region2: #{_lambda_.9} parent=0 // loop_pre_header
    _
  $region3: #{_lambda_.9} parent=0 // loop_header
    %s12 = sphi 0, %s16
    %p13 = scmp.ge.s32.totalorder %s12, 18
    %s19 = sphi 0, %s31
    %s20 = sphi 0, %s27
    %s21 = sphi 0, %s19
    %s22 = sphi 0, %s20
    %s23 = sphi 0, %s21
    %s24 = sphi 0, %s22
    %s34 = sphi 0, %s36
    %s37 = sphi 0, %s34
    %s38 = sphi 0, %s37
    %s54 = sphi 0, %s38
    %s58 = sphi 0, %s58
    %s60 = sphi 0, %s58
    %s61 = sphi 0, %s60
    %s75 = sphi 0, %s61
    %s79 = sphi 0, %s79
    %s81 = sphi 0, %s79
    %s82 = sphi 0, %s81
    %s96 = sphi 0, %s82
    %s104 = sphi 0, %s106
    %s107 = sphi 0, %s104
    %s108 = sphi 0, %s107
    %s124 = sphi 0, %s108
    %s128 = sphi 0, %s128
    %s130 = sphi 0, %s128
    %s131 = sphi 0, %s130
    %s145 = sphi 0, %s131
    %s149 = sphi 0, %s149
    %s151 = sphi 0, %s149
    %s152 = sphi 0, %s151
    %s166 = sphi 0, %s152
  $region4: #{_lambda_.9} parent=0 // loop_header_branch
    %15 = sbr.rel (%p13) target = $region8
  $region5: #{_lambda_.9} parent=0 // loop_body
    %s17 = ssub.s32 %s12, 1
    %s18 = ssub.s32 %s12, 2
    %s25 = sadd.s32 1, %s20
    %p26 = scmp.ge.s32.totalorder %s25, 8
    %s27 = scalar_select %p26, 0, %s25
    %s28 = sadd.s32 1, %s19
    %s29 = scalar_select %p26, %s28, %s19
    %p30 = scmp.ge.s32.totalorder %s29, 2
    %s31 = scalar_select %p30, 0, %s29
    %s32 = ssub.s32 %s19, %s31
    %p33 = scmp.eq.s32.totalorder %s32, 0
    %s35 = sadd.s32 %s34, 1
    %s36 = scalar_select %p33, %s34, %s35
    %p39 = pneg %p33
    %p40 = scmp.eq.s32.totalorder %s12, 15
    %p41 = por %p39, %p40
    %p42 = scmp.ne.s32.totalorder %s34, %s37
    %p43 = scmp.eq.s32.totalorder %s12, 0
    %p44 = por %p42, %p43
    %p45 = scmp.ne.s32.totalorder %s34, %s37
    %p46 = scmp.eq.s32.totalorder %s17, 15
    %p47 = por %p45, %p46
    %p48 = scmp.ne.s32.totalorder %s37, %s38
    %p49 = scmp.eq.s32.totalorder %s17, 0
    %p50 = por %p48, %p49
    %p51 = scmp.ne.s32.totalorder %s37, %s38
    %p52 = scmp.eq.s32.totalorder %s18, 15
    %p53 = por %p51, %p52
    %p55 = scmp.ne.s32.totalorder %s38, %s54
    %p56 = scmp.eq.s32.totalorder %s18, 0
    %p57 = por %p55, %p56
    %s59 = sadd.s32 %s58, 1
    %p62 = scmp.eq.s32.totalorder %s12, 15
    %p63 = scmp.ne.s32.totalorder %s58, %s60
    %p64 = scmp.eq.s32.totalorder %s12, 0
    %p65 = por %p63, %p64
    %p66 = scmp.ne.s32.totalorder %s58, %s60
    %p67 = scmp.eq.s32.totalorder %s17, 15
    %p68 = por %p66, %p67
    %p69 = scmp.ne.s32.totalorder %s60, %s61
    %p70 = scmp.eq.s32.totalorder %s17, 0
    %p71 = por %p69, %p70
    %p72 = scmp.ne.s32.totalorder %s60, %s61
    %p73 = scmp.eq.s32.totalorder %s18, 15
    %p74 = por %p72, %p73
    %p76 = scmp.ne.s32.totalorder %s61, %s75
    %p77 = scmp.eq.s32.totalorder %s18, 0
    %p78 = por %p76, %p77
    %s80 = sadd.s32 %s79, 1
    %p83 = scmp.eq.s32.totalorder %s12, 15
    %p84 = scmp.ne.s32.totalorder %s79, %s81
    %p85 = scmp.eq.s32.totalorder %s12, 0
    %p86 = por %p84, %p85
    %p87 = scmp.ne.s32.totalorder %s79, %s81
    %p88 = scmp.eq.s32.totalorder %s17, 15
    %p89 = por %p87, %p88
    %p90 = scmp.ne.s32.totalorder %s81, %s82
    %p91 = scmp.eq.s32.totalorder %s17, 0
    %p92 = por %p90, %p91
    %p93 = scmp.ne.s32.totalorder %s81, %s82
    %p94 = scmp.eq.s32.totalorder %s18, 15
    %p95 = por %p93, %p94
    %p97 = scmp.ne.s32.totalorder %s82, %s96
    %p98 = scmp.eq.s32.totalorder %s18, 0
    %p99 = por %p97, %p98
    %s100 = ssub.s32 %s19, %s31
    %s101 = ssub.s32 %s20, %s27
    %s102 = sor.u32 %s100, %s101
    %p103 = scmp.eq.s32.totalorder %s102, 0
    %s105 = sadd.s32 %s104, 1
    %s106 = scalar_select %p103, %s104, %s105
    %p109 = pneg %p103
    %p110 = scmp.eq.s32.totalorder %s12, 15
    %p111 = por %p109, %p110
    %p112 = scmp.ne.s32.totalorder %s104, %s107
    %p113 = scmp.eq.s32.totalorder %s12, 0
    %p114 = por %p112, %p113
    %p115 = scmp.ne.s32.totalorder %s104, %s107
    %p116 = scmp.eq.s32.totalorder %s17, 15
    %p117 = por %p115, %p116
    %p118 = scmp.ne.s32.totalorder %s107, %s108
    %p119 = scmp.eq.s32.totalorder %s17, 0
    %p120 = por %p118, %p119
    %p121 = scmp.ne.s32.totalorder %s107, %s108
    %p122 = scmp.eq.s32.totalorder %s18, 15
    %p123 = por %p121, %p122
    %p125 = scmp.ne.s32.totalorder %s108, %s124
    %p126 = scmp.eq.s32.totalorder %s18, 0
    %p127 = por %p125, %p126
    %s129 = sadd.s32 %s128, 1
    %p132 = scmp.eq.s32.totalorder %s12, 15
    %p133 = scmp.ne.s32.totalorder %s128, %s130
    %p134 = scmp.eq.s32.totalorder %s12, 0
    %p135 = por %p133, %p134
    %p136 = scmp.ne.s32.totalorder %s128, %s130
    %p137 = scmp.eq.s32.totalorder %s17, 15
    %p138 = por %p136, %p137
    %p139 = scmp.ne.s32.totalorder %s130, %s131
    %p140 = scmp.eq.s32.totalorder %s17, 0
    %p141 = por %p139, %p140
    %p142 = scmp.ne.s32.totalorder %s130, %s131
    %p143 = scmp.eq.s32.totalorder %s18, 15
    %p144 = por %p142, %p143
    %p146 = scmp.ne.s32.totalorder %s131, %s145
    %p147 = scmp.eq.s32.totalorder %s18, 0
    %p148 = por %p146, %p147
    %s150 = sadd.s32 %s149, 1
    %p153 = scmp.eq.s32.totalorder %s12, 15
    %p154 = scmp.ne.s32.totalorder %s149, %s151
    %p155 = scmp.eq.s32.totalorder %s12, 0
    %p156 = por %p154, %p155
    %p157 = scmp.ne.s32.totalorder %s149, %s151
    %p158 = scmp.eq.s32.totalorder %s17, 15
    %p159 = por %p157, %p158
    %p160 = scmp.ne.s32.totalorder %s151, %s152
    %p161 = scmp.eq.s32.totalorder %s17, 0
    %p162 = por %p160, %p161
    %p163 = scmp.ne.s32.totalorder %s151, %s152
    %p164 = scmp.eq.s32.totalorder %s18, 15
    %p165 = por %p163, %p164
    %p167 = scmp.ne.s32.totalorder %s152, %s166
    %p168 = scmp.eq.s32.totalorder %s18, 0
    %p169 = por %p167, %p168
    %p170 = scmp.le.s32.totalorder 1, %s12
    %p171 = scmp.lt.s32.totalorder %s12, 17
    %p172 = pnand %p170, %p171
    %p173 = pneg %p172
    // Predicated region
    $region9: #{_lambda_.9} parent=5 // pred_check
      _
    $region10: #{_lambda_.9} parent=5 // pred_check_branch
      %175 = sbr.rel (%p172) target = $region12
    $region11: #{_lambda_.9} parent=5 // pred_region
      %s176 = ssub.s32 %s12, 1
      // Predicated region
      $region13: #{_lambda_.9} parent=11 // pred_check
        %p177 = pneg %p71
      $region14: #{_lambda_.9} parent=11 // pred_check_branch
        %179 = sbr.rel (%p177) target = $region16
      $region15: #{_lambda_.9} parent=11 // pred_region
        _
      $region16: #{_lambda_.9} parent=11 // pred_fallthru
        _
      // Predicated region
      $region17: #{_lambda_.9} parent=11 // pred_check
        %p180 = pneg %p92
      $region18: #{_lambda_.9} parent=11 // pred_check_branch
        %182 = sbr.rel (%p180) target = $region20
      $region19: #{_lambda_.9} parent=11 // pred_region
        _
      $region20: #{_lambda_.9} parent=11 // pred_fallthru
        _
    $region12: #{_lambda_.9} parent=5 // pred_fallthru
      _
    %p183 = scmp.lt.s32.totalorder %s12, 16
    // Predicated region
    $region21: #{_lambda_.9} parent=5 // pred_check
      %p184 = pneg %p183
    $region22: #{_lambda_.9} parent=5 // pred_check_branch
      %186 = sbr.rel (%p184) target = $region24
    $region23: #{_lambda_.9} parent=5 // pred_region
      // Predicated region
      $region25: #{_lambda_.9} parent=23 // pred_check
        %p187 = pneg %p44
      $region26: #{_lambda_.9} parent=23 // pred_check_branch
        %189 = sbr.rel (%p187) target = $region28
      $region27: #{_lambda_.9} parent=23 // pred_region
        %p190 = scmp.lt.s32.totalorder %s19, 1
        %s191 = scalar_select %p190, %s19, 1
        %s192 = smul.addr %s191, 72
        %s193 = smul.addr %s192, 4
        %s194 = scalar_lea.vmem %s0, %s193
      $region28: #{_lambda_.9} parent=23 // pred_fallthru
        _
    $region24: #{_lambda_.9} parent=5 // pred_fallthru
      _
    %p195 = scmp.le.s32.totalorder 1, %s12
    %p196 = scmp.lt.s32.totalorder %s12, 17
    %p197 = pnand %p195, %p196
    %p198 = pneg %p197
    // Predicated region
    $region29: #{_lambda_.9} parent=5 // pred_check
      _
    $region30: #{_lambda_.9} parent=5 // pred_check_branch
      %200 = sbr.rel (%p197) target = $region32
    $region31: #{_lambda_.9} parent=5 // pred_region
      %s201 = ssub.s32 %s12, 1
      %p202 = scmp.lt.s32.totalorder %s21, 1
      %s203 = scalar_select %p202, %s21, 1
      %s204 = smul.addr %s203, 72
      %s205 = smul.addr %s204, 4
      %s206 = scalar_lea.vmem %s0, %s205
      %p207 = pneg %p50
      %p208 = pneg %p47
      %p209 = pneg %p71
      %p210 = pneg %p68
      %p211 = pneg %p92
      %p212 = pneg %p89
      %p213 = pneg %p120
      %p214 = pneg %p117
      %p215 = scmp.lt.s32.totalorder %s21, 1
      %s216 = scalar_select %p215, %s21, 1
      %p217 = scmp.lt.s32.totalorder %s22, 7
      %s218 = scalar_select %p217, %s22, 7
      %s219 = smul.addr %s216, 8
      %s220 = sadd.s32 %s218, %s219
      %s221 = smul.addr %s220, 8
      %s222 = scalar_lea.vmem %s3, %s221
      %p223 = pneg %p141
      %p224 = pneg %p138
      %p225 = pneg %p162
      %p226 = pneg %p159
      %p227 = scmp.lt.s32.totalorder %s21, 1
      %s228 = scalar_select %p227, %s21, 1
      %s229 = smul.addr %s228, 72
      %s230 = smul.addr %s229, 4
      %s231 = scalar_lea.vmem %s0, %s230
      %p232 = scmp.lt.s32.totalorder %s21, 1
      %s233 = scalar_select %p232, %s21, 1
      %p234 = scmp.lt.s32.totalorder %s22, 7
      %s235 = scalar_select %p234, %s22, 7
      %s236 = smul.addr %s233, 8
      %s237 = sadd.s32 %s235, %s236
      %s238 = smul.addr %s237, 8
      %s239 = scalar_lea.vmem %s3, %s238
      %s241 = smul.u32 %s22, 8
      %s242 = smul.addr %s241, 4
      %s243 = scalar_lea.vmem %s231, %s242
      %v244 = vld [vmem:[%s243] sm:$0xff]
      %v245 = vld [vmem:[%s243 + $0x8] sm:$0xff]
      %v246 = vld [vmem:[%s1] sm:$0xf]
      %v247 = vld [vmem:[%s1 + $0x4] sm:$0xf]
      %v248 = vld [vmem:[%s1 + $0x8] sm:$0xf]
      %v249 = vld [vmem:[%s1 + $0xc] sm:$0xf]
      %v250 = vld [vmem:[%s1 + $0x10] sm:$0xf]
      %v251 = vld [vmem:[%s1 + $0x14] sm:$0xf]
      %v252 = vld [vmem:[%s1 + $0x18] sm:$0xf]
      %v253 = vld [vmem:[%s1 + $0x1c] sm:$0xf]
      %v254 = vld [vmem:[%s1 + $0x20] sm:$0xf]
      %v255 = vld [vmem:[%s1 + $0x24] sm:$0xf]
      %v256 = vld [vmem:[%s1 + $0x28] sm:$0xf]
      %v257 = vld [vmem:[%s1 + $0x2c] sm:$0xf]
      %v258 = vld [vmem:[%s1 + $0x30] sm:$0xf]
      %v259 = vld [vmem:[%s1 + $0x34] sm:$0xf]
      %v260 = vld [vmem:[%s1 + $0x38] sm:$0xf]
      %v261 = vld [vmem:[%s1 + $0x3c] sm:$0xf]
      %v262 = vld [vmem:[%s1 + $0x40] sm:$0xf]
      %v263 = vld [vmem:[%s1 + $0x44] sm:$0xf]
      %v264 = vld [vmem:[%s1 + $0x48] sm:$0xf]
      %v265 = vld [vmem:[%s1 + $0x4c] sm:$0xf]
      %v266 = vld [vmem:[%s1 + $0x50] sm:$0xf]
      %v267 = vld [vmem:[%s1 + $0x54] sm:$0xf]
      %v268 = vld [vmem:[%s1 + $0x58] sm:$0xf]
      %v269 = vld [vmem:[%s1 + $0x5c] sm:$0xf]
      %v270 = vld [vmem:[%s1 + $0x60] sm:$0xf]
      %v271 = vld [vmem:[%s1 + $0x64] sm:$0xf]
      %v272 = vld [vmem:[%s1 + $0x68] sm:$0xf]
      %v273 = vld [vmem:[%s1 + $0x6c] sm:$0xf]
      %v274 = vld [vmem:[%s1 + $0x70] sm:$0xf]
      %v275 = vld [vmem:[%s1 + $0x74] sm:$0xf]
      %v276 = vld [vmem:[%s1 + $0x78] sm:$0xf]
      %v277 = vld [vmem:[%s1 + $0x7c] sm:$0xf]
      %v278 = vld [vmem:[%s1 + $0x80] sm:$0xf]
      %v279 = vld [vmem:[%s1 + $0x84] sm:$0xf]
      %v280 = vld [vmem:[%s1 + $0x88] sm:$0xf]
      %v281 = vld [vmem:[%s1 + $0x8c] sm:$0xf]
      %v282 = vld [vmem:[%s1 + $0x90] sm:$0xf]
      %v283 = vld [vmem:[%s1 + $0x94] sm:$0xf]
      %v284 = vld [vmem:[%s1 + $0x98] sm:$0xf]
      %v285 = vld [vmem:[%s1 + $0x9c] sm:$0xf]
      %v286 = vld [vmem:[%s1 + $0xa0] sm:$0xf]
      %v287 = vld [vmem:[%s1 + $0xa4] sm:$0xf]
      %v288 = vld [vmem:[%s1 + $0xa8] sm:$0xf]
      %v289 = vld [vmem:[%s1 + $0xac] sm:$0xf]
      %v290 = vld [vmem:[%s1 + $0xb0] sm:$0xf]
      %v291 = vld [vmem:[%s1 + $0xb4] sm:$0xf]
      %v292 = vld [vmem:[%s1 + $0xb8] sm:$0xf]
      %v293 = vld [vmem:[%s1 + $0xbc] sm:$0xf]
      %v294 = vld [vmem:[%s1 + $0xc0] sm:$0xf]
      %v295 = vld [vmem:[%s1 + $0xc4] sm:$0xf]
      %v296 = vld [vmem:[%s1 + $0xc8] sm:$0xf]
      %v297 = vld [vmem:[%s1 + $0xcc] sm:$0xf]
      %v298 = vld [vmem:[%s1 + $0xd0] sm:$0xf]
      %v299 = vld [vmem:[%s1 + $0xd4] sm:$0xf]
      %v300 = vld [vmem:[%s1 + $0xd8] sm:$0xf]
      %v301 = vld [vmem:[%s1 + $0xdc] sm:$0xf]
      %v302 = vld [vmem:[%s1 + $0xe0] sm:$0xf]
      %v303 = vld [vmem:[%s1 + $0xe4] sm:$0xf]
      %v304 = vld [vmem:[%s1 + $0xe8] sm:$0xf]
      %v305 = vld [vmem:[%s1 + $0xec] sm:$0xf]
      %v306 = vld [vmem:[%s1 + $0xf0] sm:$0xf]
      %v307 = vld [vmem:[%s1 + $0xf4] sm:$0xf]
      %v308 = vld [vmem:[%s1 + $0xf8] sm:$0xf]
      %v309 = vld [vmem:[%s1 + $0xfc] sm:$0xf]
      %v310 = vld [vmem:[%s243 + $0x10] sm:$0x11]
      %v311 = vld [vmem:[%s243 + $0x18] sm:$0x11]
      %s312 = scalar_lea.vmem %s1, 256
      %v313 = vld [vmem:[%s312] sm:$0xf]
      %v314 = vld [vmem:[%s312 + $0x4] sm:$0xf]
      %v315 = vld [vmem:[%s312 + $0x8] sm:$0xf]
      %v316 = vld [vmem:[%s312 + $0xc] sm:$0xf]
      %v317 = vld [vmem:[%s312 + $0x10] sm:$0xf]
      %v318 = vld [vmem:[%s312 + $0x14] sm:$0xf]
      %v319 = vld [vmem:[%s312 + $0x18] sm:$0xf]
      %v320 = vld [vmem:[%s312 + $0x1c] sm:$0xf]
      %v321 = vld [vmem:[%s312 + $0x20] sm:$0xf]
      %v322 = vld [vmem:[%s312 + $0x24] sm:$0xf]
      %v323 = vld [vmem:[%s312 + $0x28] sm:$0xf]
      %v324 = vld [vmem:[%s312 + $0x2c] sm:$0xf]
      %v325 = vld [vmem:[%s312 + $0x30] sm:$0xf]
      %v326 = vld [vmem:[%s312 + $0x34] sm:$0xf]
      %v327 = vld [vmem:[%s312 + $0x38] sm:$0xf]
      %v328 = vld [vmem:[%s312 + $0x3c] sm:$0xf]
      %v329 = vld [vmem:[%s312 + $0x40] sm:$0xf]
      %v330 = vld [vmem:[%s312 + $0x44] sm:$0xf]
      %v331 = vld [vmem:[%s312 + $0x48] sm:$0xf]
      %v332 = vld [vmem:[%s312 + $0x4c] sm:$0xf]
      %v333 = vld [vmem:[%s312 + $0x50] sm:$0xf]
      %v334 = vld [vmem:[%s312 + $0x54] sm:$0xf]
      %v335 = vld [vmem:[%s312 + $0x58] sm:$0xf]
      %v336 = vld [vmem:[%s312 + $0x5c] sm:$0xf]
      %v337 = vld [vmem:[%s312 + $0x60] sm:$0xf]
      %v338 = vld [vmem:[%s312 + $0x64] sm:$0xf]
      %v339 = vld [vmem:[%s312 + $0x68] sm:$0xf]
      %v340 = vld [vmem:[%s312 + $0x6c] sm:$0xf]
      %v341 = vld [vmem:[%s312 + $0x70] sm:$0xf]
      %v342 = vld [vmem:[%s312 + $0x74] sm:$0xf]
      %v343 = vld [vmem:[%s312 + $0x78] sm:$0xf]
      %v344 = vld [vmem:[%s312 + $0x7c] sm:$0xf]
      %v345 = vld [vmem:[%s312 + $0x80] sm:$0xf]
      %v346 = vld [vmem:[%s312 + $0x84] sm:$0xf]
      %v347 = vld [vmem:[%s312 + $0x88] sm:$0xf]
      %v348 = vld [vmem:[%s312 + $0x8c] sm:$0xf]
      %v349 = vld [vmem:[%s312 + $0x90] sm:$0xf]
      %v350 = vld [vmem:[%s312 + $0x94] sm:$0xf]
      %v351 = vld [vmem:[%s312 + $0x98] sm:$0xf]
      %v352 = vld [vmem:[%s312 + $0x9c] sm:$0xf]
      %v353 = vld [vmem:[%s312 + $0xa0] sm:$0xf]
      %v354 = vld [vmem:[%s312 + $0xa4] sm:$0xf]
      %v355 = vld [vmem:[%s312 + $0xa8] sm:$0xf]
      %v356 = vld [vmem:[%s312 + $0xac] sm:$0xf]
      %v357 = vld [vmem:[%s312 + $0xb0] sm:$0xf]
      %v358 = vld [vmem:[%s312 + $0xb4] sm:$0xf]
      %v359 = vld [vmem:[%s312 + $0xb8] sm:$0xf]
      %v360 = vld [vmem:[%s312 + $0xbc] sm:$0xf]
      %v361 = vld [vmem:[%s312 + $0xc0] sm:$0xf]
      %v362 = vld [vmem:[%s312 + $0xc4] sm:$0xf]
      %v363 = vld [vmem:[%s312 + $0xc8] sm:$0xf]
      %v364 = vld [vmem:[%s312 + $0xcc] sm:$0xf]
      %v365 = vld [vmem:[%s312 + $0xd0] sm:$0xf]
      %v366 = vld [vmem:[%s312 + $0xd4] sm:$0xf]
      %v367 = vld [vmem:[%s312 + $0xd8] sm:$0xf]
      %v368 = vld [vmem:[%s312 + $0xdc] sm:$0xf]
      %v369 = vld [vmem:[%s312 + $0xe0] sm:$0xf]
      %v370 = vld [vmem:[%s312 + $0xe4] sm:$0xf]
      %v371 = vld [vmem:[%s312 + $0xe8] sm:$0xf]
      %v372 = vld [vmem:[%s312 + $0xec] sm:$0xf]
      %v373 = vld [vmem:[%s312 + $0xf0] sm:$0xf]
      %v374 = vld [vmem:[%s312 + $0xf4] sm:$0xf]
      %v375 = vld [vmem:[%s312 + $0xf8] sm:$0xf]
      %v376 = vld [vmem:[%s312 + $0xfc] sm:$0xf]
      %v381 = vunpack.c.l.b16 %v244
      %v382 = vunpack.c.h.b16 %v244
      %v383 = vunpack.c.l.b16 %v245
      %v384 = vunpack.c.h.b16 %v245
      %v385 = vunpack.c.l.b16 %v310
      %v386 = vunpack.c.h.b16 %v310
      %v387 = vunpack.c.l.b16 %v311
      %v388 = vunpack.c.h.b16 %v311
      %v389 = vpack.c.b16 %v385, %v381
      %v390 = vpack.c.b16 %v386, %v382
      %v391 = vpack.c.b16 %v387, %v383
      %v392 = vpack.c.b16 %v388, %v384
      %v394 = vshrl.u32 %v389, 16
      %v396 = vshll.u32 %v389, 16
      %v398 = vrot.slane %v396, 1
      %v399 = vor.u32 %v394, %v398
      %v401 = vshrl.u32 %v390, 16
      %v403 = vshll.u32 %v390, 16
      %v405 = vrot.slane %v403, 1
      %v406 = vor.u32 %v401, %v405
      %v408 = vshrl.u32 %v391, 16
      %v410 = vshll.u32 %v391, 16
      %v412 = vrot.slane %v410, 1
      %v413 = vor.u32 %v408, %v412
      %v415 = vshrl.u32 %v392, 16
      %v417 = vshll.u32 %v392, 16
      %v419 = vrot.slane %v417, 1
      %v420 = vor.u32 %v415, %v419
      %v489 = vunpack.c.l.b16 %v313
      %v490 = vunpack.c.l.b16 %v314
      %v491 = vunpack.c.l.b16 %v315
      %v492 = vunpack.c.l.b16 %v316
      %v493 = vunpack.c.l.b16 %v317
      %v494 = vunpack.c.l.b16 %v318
      %v495 = vunpack.c.l.b16 %v319
      %v496 = vunpack.c.l.b16 %v320
      %v497 = vunpack.c.l.b16 %v321
      %v498 = vunpack.c.l.b16 %v322
      %v499 = vunpack.c.l.b16 %v323
      %v500 = vunpack.c.l.b16 %v324
      %v501 = vunpack.c.l.b16 %v325
      %v502 = vunpack.c.l.b16 %v326
      %v503 = vunpack.c.l.b16 %v327
      %v504 = vunpack.c.l.b16 %v328
      %v505 = vunpack.c.l.b16 %v329
      %v506 = vunpack.c.l.b16 %v330
      %v507 = vunpack.c.l.b16 %v331
      %v508 = vunpack.c.l.b16 %v332
      %v509 = vunpack.c.l.b16 %v333
      %v510 = vunpack.c.l.b16 %v334
      %v511 = vunpack.c.l.b16 %v335
      %v512 = vunpack.c.l.b16 %v336
      %v513 = vunpack.c.l.b16 %v337
      %v514 = vunpack.c.l.b16 %v338
      %v515 = vunpack.c.l.b16 %v339
      %v516 = vunpack.c.l.b16 %v340
      %v517 = vunpack.c.l.b16 %v341
      %v518 = vunpack.c.l.b16 %v342
      %v519 = vunpack.c.l.b16 %v343
      %v520 = vunpack.c.l.b16 %v344
      %v521 = vunpack.c.l.b16 %v345
      %v522 = vunpack.c.l.b16 %v346
      %v523 = vunpack.c.l.b16 %v347
      %v524 = vunpack.c.l.b16 %v348
      %v525 = vunpack.c.l.b16 %v349
      %v526 = vunpack.c.l.b16 %v350
      %v527 = vunpack.c.l.b16 %v351
      %v528 = vunpack.c.l.b16 %v352
      %v529 = vunpack.c.l.b16 %v353
      %v530 = vunpack.c.l.b16 %v354
      %v531 = vunpack.c.l.b16 %v355
      %v532 = vunpack.c.l.b16 %v356
      %v533 = vunpack.c.l.b16 %v357
      %v534 = vunpack.c.l.b16 %v358
      %v535 = vunpack.c.l.b16 %v359
      %v536 = vunpack.c.l.b16 %v360
      %v537 = vunpack.c.l.b16 %v361
      %v538 = vunpack.c.l.b16 %v362
      %v539 = vunpack.c.l.b16 %v363
      %v540 = vunpack.c.l.b16 %v364
      %v541 = vunpack.c.l.b16 %v365
      %v542 = vunpack.c.l.b16 %v366
      %v543 = vunpack.c.l.b16 %v367
      %v544 = vunpack.c.l.b16 %v368
      %v545 = vunpack.c.l.b16 %v369
      %v546 = vunpack.c.l.b16 %v370
      %v547 = vunpack.c.l.b16 %v371
      %v548 = vunpack.c.l.b16 %v372
      %v549 = vunpack.c.l.b16 %v373
      %v550 = vunpack.c.l.b16 %v374
      %v551 = vunpack.c.l.b16 %v375
      %v552 = vunpack.c.l.b16 %v376
      %v553 = vpack.c.b16 %v490, %v489
      %v554 = vpack.c.b16 %v492, %v491
      %v555 = vpack.c.b16 %v494, %v493
      %v556 = vpack.c.b16 %v496, %v495
      %v557 = vpack.c.b16 %v498, %v497
      %v558 = vpack.c.b16 %v500, %v499
      %v559 = vpack.c.b16 %v502, %v501
      %v560 = vpack.c.b16 %v504, %v503
      %v561 = vpack.c.b16 %v506, %v505
      %v562 = vpack.c.b16 %v508, %v507
      %v563 = vpack.c.b16 %v510, %v509
      %v564 = vpack.c.b16 %v512, %v511
      %v565 = vpack.c.b16 %v514, %v513
      %v566 = vpack.c.b16 %v516, %v515
      %v567 = vpack.c.b16 %v518, %v517
      %v568 = vpack.c.b16 %v520, %v519
      %v569 = vpack.c.b16 %v522, %v521
      %v570 = vpack.c.b16 %v524, %v523
      %v571 = vpack.c.b16 %v526, %v525
      %v572 = vpack.c.b16 %v528, %v527
      %v573 = vpack.c.b16 %v530, %v529
      %v574 = vpack.c.b16 %v532, %v531
      %v575 = vpack.c.b16 %v534, %v533
      %v576 = vpack.c.b16 %v536, %v535
      %v577 = vpack.c.b16 %v538, %v537
      %v578 = vpack.c.b16 %v540, %v539
      %v579 = vpack.c.b16 %v542, %v541
      %v580 = vpack.c.b16 %v544, %v543
      %v581 = vpack.c.b16 %v546, %v545
      %v582 = vpack.c.b16 %v548, %v547
      %v583 = vpack.c.b16 %v550, %v549
      %v584 = vpack.c.b16 %v552, %v551
      %617 = vmatprep.subr.bf16.mxu0 0
      %618 = vmatpush1.bf16.msra.mxu0 %v560
      %619 = vmatprep.subr.bf16.mxu0 0
      %620 = vmatpush1.bf16.msra.mxu0 %v559
      %621 = vmatprep.subr.bf16.mxu0 0
      %622 = vmatpush1.bf16.msra.mxu0 %v558
      %623 = vmatprep.subr.bf16.mxu0 0
      %624 = vmatpush1.bf16.msra.mxu0 %v557
      %625 = vmatprep.subr.bf16.mxu0 0
      %626 = vmatpush1.bf16.msra.mxu0 %v556
      %627 = vmatprep.subr.bf16.mxu0 0
      %628 = vmatpush1.bf16.msra.mxu0 %v555
      %629 = vmatprep.subr.bf16.mxu0 0
      %630 = vmatpush1.bf16.msra.mxu0 %v554
      %631 = vmatprep.subr.bf16.mxu0 0
      %632 = vmatpush1.bf16.msra.mxu0 %v553
      %633 = vmatprep.subr.bf16.mxu0 0
      %634 = vmatpush2.bf16.msra.mxu0 %v568
      %635 = vmatprep.subr.bf16.mxu0 0
      %636 = vmatpush2.bf16.msra.mxu0 %v567
      %637 = vmatprep.subr.bf16.mxu0 0
      %638 = vmatpush2.bf16.msra.mxu0 %v566
      %639 = vmatprep.subr.bf16.mxu0 0
      %640 = vmatpush2.bf16.msra.mxu0 %v565
      %641 = vmatprep.subr.bf16.mxu0 0
      %642 = vmatpush2.bf16.msra.mxu0 %v564
      %643 = vmatprep.subr.bf16.mxu0 0
      %644 = vmatpush2.bf16.msra.mxu0 %v563
      %645 = vmatprep.subr.bf16.mxu0 0
      %646 = vmatpush2.bf16.msra.mxu0 %v562
      %647 = vmatprep.subr.bf16.mxu0 0
      %648 = vmatpush2.bf16.msra.mxu0 %v561
      %649 = vmatprep.mubr.bf16.mxu0 %v406
      %650 = vmatmul.mubr.bf16.gmra.mxu0 %v399
      %v651 = vpop.f32.mrf.mxu0
      %v652 = vadd.f32 0.0, %v651
      %v653 = vpop.f32.mrf.mxu0
      %v654 = vpop.f32.mrf.mxu0
      %v655 = vpop.f32.mrf.mxu0
      %656 = vdwg.mxu0
      %657 = vmatprep.subr.bf16.mxu0 0
      %658 = vmatpush1.bf16.msra.mxu0 %v576
      %659 = vmatprep.subr.bf16.mxu0 0
      %660 = vmatpush1.bf16.msra.mxu0 %v575
      %661 = vmatprep.subr.bf16.mxu0 0
      %662 = vmatpush1.bf16.msra.mxu0 %v574
      %663 = vmatprep.subr.bf16.mxu0 0
      %664 = vmatpush1.bf16.msra.mxu0 %v573
      %665 = vmatprep.subr.bf16.mxu0 0
      %666 = vmatpush1.bf16.msra.mxu0 %v572
      %667 = vmatprep.subr.bf16.mxu0 0
      %668 = vmatpush1.bf16.msra.mxu0 %v571
      %669 = vmatprep.subr.bf16.mxu0 0
      %670 = vmatpush1.bf16.msra.mxu0 %v570
      %671 = vmatprep.subr.bf16.mxu0 0
      %672 = vmatpush1.bf16.msra.mxu0 %v569
      %673 = vmatprep.subr.bf16.mxu0 0
      %674 = vmatpush2.bf16.msra.mxu0 %v584
      %675 = vmatprep.subr.bf16.mxu0 0
      %676 = vmatpush2.bf16.msra.mxu0 %v583
      %677 = vmatprep.subr.bf16.mxu0 0
      %678 = vmatpush2.bf16.msra.mxu0 %v582
      %679 = vmatprep.subr.bf16.mxu0 0
      %680 = vmatpush2.bf16.msra.mxu0 %v581
      %681 = vmatprep.subr.bf16.mxu0 0
      %682 = vmatpush2.bf16.msra.mxu0 %v580
      %683 = vmatprep.subr.bf16.mxu0 0
      %684 = vmatpush2.bf16.msra.mxu0 %v579
      %685 = vmatprep.subr.bf16.mxu0 0
      %686 = vmatpush2.bf16.msra.mxu0 %v578
      %687 = vmatprep.subr.bf16.mxu0 0
      %688 = vmatpush2.bf16.msra.mxu0 %v577
      %689 = vmatprep.mubr.bf16.mxu0 %v420
      %690 = vmatmul.mubr.bf16.gmra.mxu0 %v413
      %v691 = vpop.f32.mrf.mxu0
      %v692 = vadd.f32 %v652, %v691
      %v693 = vpop.f32.mrf.mxu0
      %v694 = vpop.f32.mrf.mxu0
      %v695 = vpop.f32.mrf.mxu0
      %696 = vdwg.mxu0
      %v697 = vpack.c.b16 %v381, %v381
      %v698 = vpack.c.b16 %v382, %v382
      %v699 = vpack.c.b16 %v383, %v383
      %v700 = vpack.c.b16 %v384, %v384
      %v769 = vunpack.c.l.b16 %v246
      %v770 = vunpack.c.l.b16 %v247
      %v771 = vunpack.c.l.b16 %v248
      %v772 = vunpack.c.l.b16 %v249
      %v773 = vunpack.c.l.b16 %v250
      %v774 = vunpack.c.l.b16 %v251
      %v775 = vunpack.c.l.b16 %v252
      %v776 = vunpack.c.l.b16 %v253
      %v777 = vunpack.c.l.b16 %v254
      %v778 = vunpack.c.l.b16 %v255
      %v779 = vunpack.c.l.b16 %v256
      %v780 = vunpack.c.l.b16 %v257
      %v781 = vunpack.c.l.b16 %v258
      %v782 = vunpack.c.l.b16 %v259
      %v783 = vunpack.c.l.b16 %v260
      %v784 = vunpack.c.l.b16 %v261
      %v785 = vunpack.c.l.b16 %v262
      %v786 = vunpack.c.l.b16 %v263
      %v787 = vunpack.c.l.b16 %v264
      %v788 = vunpack.c.l.b16 %v265
      %v789 = vunpack.c.l.b16 %v266
      %v790 = vunpack.c.l.b16 %v267
      %v791 = vunpack.c.l.b16 %v268
      %v792 = vunpack.c.l.b16 %v269
      %v793 = vunpack.c.l.b16 %v270
      %v794 = vunpack.c.l.b16 %v271
      %v795 = vunpack.c.l.b16 %v272
      %v796 = vunpack.c.l.b16 %v273
      %v797 = vunpack.c.l.b16 %v274
      %v798 = vunpack.c.l.b16 %v275
      %v799 = vunpack.c.l.b16 %v276
      %v800 = vunpack.c.l.b16 %v277
      %v801 = vunpack.c.l.b16 %v278
      %v802 = vunpack.c.l.b16 %v279
      %v803 = vunpack.c.l.b16 %v280
      %v804 = vunpack.c.l.b16 %v281
      %v805 = vunpack.c.l.b16 %v282
      %v806 = vunpack.c.l.b16 %v283
      %v807 = vunpack.c.l.b16 %v284
      %v808 = vunpack.c.l.b16 %v285
      %v809 = vunpack.c.l.b16 %v286
      %v810 = vunpack.c.l.b16 %v287
      %v811 = vunpack.c.l.b16 %v288
      %v812 = vunpack.c.l.b16 %v289
      %v813 = vunpack.c.l.b16 %v290
      %v814 = vunpack.c.l.b16 %v291
      %v815 = vunpack.c.l.b16 %v292
      %v816 = vunpack.c.l.b16 %v293
      %v817 = vunpack.c.l.b16 %v294
      %v818 = vunpack.c.l.b16 %v295
      %v819 = vunpack.c.l.b16 %v296
      %v820 = vunpack.c.l.b16 %v297
      %v821 = vunpack.c.l.b16 %v298
      %v822 = vunpack.c.l.b16 %v299
      %v823 = vunpack.c.l.b16 %v300
      %v824 = vunpack.c.l.b16 %v301
      %v825 = vunpack.c.l.b16 %v302
      %v826 = vunpack.c.l.b16 %v303
      %v827 = vunpack.c.l.b16 %v304
      %v828 = vunpack.c.l.b16 %v305
      %v829 = vunpack.c.l.b16 %v306
      %v830 = vunpack.c.l.b16 %v307
      %v831 = vunpack.c.l.b16 %v308
      %v832 = vunpack.c.l.b16 %v309
      %v833 = vpack.c.b16 %v770, %v769
      %v834 = vpack.c.b16 %v772, %v771
      %v835 = vpack.c.b16 %v774, %v773
      %v836 = vpack.c.b16 %v776, %v775
      %v837 = vpack.c.b16 %v778, %v777
      %v838 = vpack.c.b16 %v780, %v779
      %v839 = vpack.c.b16 %v782, %v781
      %v840 = vpack.c.b16 %v784, %v783
      %v841 = vpack.c.b16 %v786, %v785
      %v842 = vpack.c.b16 %v788, %v787
      %v843 = vpack.c.b16 %v790, %v789
      %v844 = vpack.c.b16 %v792, %v791
      %v845 = vpack.c.b16 %v794, %v793
      %v846 = vpack.c.b16 %v796, %v795
      %v847 = vpack.c.b16 %v798, %v797
      %v848 = vpack.c.b16 %v800, %v799
      %v849 = vpack.c.b16 %v802, %v801
      %v850 = vpack.c.b16 %v804, %v803
      %v851 = vpack.c.b16 %v806, %v805
      %v852 = vpack.c.b16 %v808, %v807
      %v853 = vpack.c.b16 %v810, %v809
      %v854 = vpack.c.b16 %v812, %v811
      %v855 = vpack.c.b16 %v814, %v813
      %v856 = vpack.c.b16 %v816, %v815
      %v857 = vpack.c.b16 %v818, %v817
      %v858 = vpack.c.b16 %v820, %v819
      %v859 = vpack.c.b16 %v822, %v821
      %v860 = vpack.c.b16 %v824, %v823
      %v861 = vpack.c.b16 %v826, %v825
      %v862 = vpack.c.b16 %v828, %v827
      %v863 = vpack.c.b16 %v830, %v829
      %v864 = vpack.c.b16 %v832, %v831
      %897 = vmatprep.subr.bf16.mxu0 0
      %898 = vmatpush1.bf16.msra.mxu0 %v840
      %899 = vmatprep.subr.bf16.mxu0 0
      %900 = vmatpush1.bf16.msra.mxu0 %v839
      %901 = vmatprep.subr.bf16.mxu0 0
      %902 = vmatpush1.bf16.msra.mxu0 %v838
      %903 = vmatprep.subr.bf16.mxu0 0
      %904 = vmatpush1.bf16.msra.mxu0 %v837
      %905 = vmatprep.subr.bf16.mxu0 0
      %906 = vmatpush1.bf16.msra.mxu0 %v836
      %907 = vmatprep.subr.bf16.mxu0 0
      %908 = vmatpush1.bf16.msra.mxu0 %v835
      %909 = vmatprep.subr.bf16.mxu0 0
      %910 = vmatpush1.bf16.msra.mxu0 %v834
      %911 = vmatprep.subr.bf16.mxu0 0
      %912 = vmatpush1.bf16.msra.mxu0 %v833
      %913 = vmatprep.subr.bf16.mxu0 0
      %914 = vmatpush2.bf16.msra.mxu0 %v848
      %915 = vmatprep.subr.bf16.mxu0 0
      %916 = vmatpush2.bf16.msra.mxu0 %v847
      %917 = vmatprep.subr.bf16.mxu0 0
      %918 = vmatpush2.bf16.msra.mxu0 %v846
      %919 = vmatprep.subr.bf16.mxu0 0
      %920 = vmatpush2.bf16.msra.mxu0 %v845
      %921 = vmatprep.subr.bf16.mxu0 0
      %922 = vmatpush2.bf16.msra.mxu0 %v844
      %923 = vmatprep.subr.bf16.mxu0 0
      %924 = vmatpush2.bf16.msra.mxu0 %v843
      %925 = vmatprep.subr.bf16.mxu0 0
      %926 = vmatpush2.bf16.msra.mxu0 %v842
      %927 = vmatprep.subr.bf16.mxu0 0
      %928 = vmatpush2.bf16.msra.mxu0 %v841
      %929 = vmatprep.mubr.bf16.mxu0 %v698
      %930 = vmatmul.mubr.bf16.gmra.mxu0 %v697
      %v931 = vpop.f32.mrf.mxu0
      %v932 = vadd.f32 %v692, %v931
      %v933 = vpop.f32.mrf.mxu0
      %v934 = vpop.f32.mrf.mxu0
      %v935 = vpop.f32.mrf.mxu0
      %936 = vdwg.mxu0
      %937 = vmatprep.subr.bf16.mxu0 0
      %938 = vmatpush1.bf16.msra.mxu0 %v856
      %939 = vmatprep.subr.bf16.mxu0 0
      %940 = vmatpush1.bf16.msra.mxu0 %v855
      %941 = vmatprep.subr.bf16.mxu0 0
      %942 = vmatpush1.bf16.msra.mxu0 %v854
      %943 = vmatprep.subr.bf16.mxu0 0
      %944 = vmatpush1.bf16.msra.mxu0 %v853
      %945 = vmatprep.subr.bf16.mxu0 0
      %946 = vmatpush1.bf16.msra.mxu0 %v852
      %947 = vmatprep.subr.bf16.mxu0 0
      %948 = vmatpush1.bf16.msra.mxu0 %v851
      %949 = vmatprep.subr.bf16.mxu0 0
      %950 = vmatpush1.bf16.msra.mxu0 %v850
      %951 = vmatprep.subr.bf16.mxu0 0
      %952 = vmatpush1.bf16.msra.mxu0 %v849
      %953 = vmatprep.subr.bf16.mxu0 0
      %954 = vmatpush2.bf16.msra.mxu0 %v864
      %955 = vmatprep.subr.bf16.mxu0 0
      %956 = vmatpush2.bf16.msra.mxu0 %v863
      %957 = vmatprep.subr.bf16.mxu0 0
      %958 = vmatpush2.bf16.msra.mxu0 %v862
      %959 = vmatprep.subr.bf16.mxu0 0
      %960 = vmatpush2.bf16.msra.mxu0 %v861
      %961 = vmatprep.subr.bf16.mxu0 0
      %962 = vmatpush2.bf16.msra.mxu0 %v860
      %963 = vmatprep.subr.bf16.mxu0 0
      %964 = vmatpush2.bf16.msra.mxu0 %v859
      %965 = vmatprep.subr.bf16.mxu0 0
      %966 = vmatpush2.bf16.msra.mxu0 %v858
      %967 = vmatprep.subr.bf16.mxu0 0
      %968 = vmatpush2.bf16.msra.mxu0 %v857
      %969 = vmatprep.mubr.bf16.mxu0 %v700
      %970 = vmatmul.mubr.bf16.gmra.mxu0 %v699
      %v971 = vpop.f32.mrf.mxu0
      %v972 = vadd.f32 %v932, %v971
      %v973 = vpop.f32.mrf.mxu0
      %v974 = vpop.f32.mrf.mxu0
      %v975 = vpop.f32.mrf.mxu0
      %976 = vdwg.mxu0
      %s977 = sadd.s32 %s22, 1
      %s978 = smul.u32 %s977, 8
      %s979 = smul.addr %s978, 4
      %s980 = scalar_lea.vmem %s231, %s979
      %v981 = vld [vmem:[%s980] sm:$0xff]
      %v982 = vld [vmem:[%s980 + $0x8] sm:$0xff]
      %s983 = scalar_lea.vmem %s1, 512
      %v984 = vld [vmem:[%s983] sm:$0xf]
      %v985 = vld [vmem:[%s983 + $0x4] sm:$0xf]
      %v986 = vld [vmem:[%s983 + $0x8] sm:$0xf]
      %v987 = vld [vmem:[%s983 + $0xc] sm:$0xf]
      %v988 = vld [vmem:[%s983 + $0x10] sm:$0xf]
      %v989 = vld [vmem:[%s983 + $0x14] sm:$0xf]
      %v990 = vld [vmem:[%s983 + $0x18] sm:$0xf]
      %v991 = vld [vmem:[%s983 + $0x1c] sm:$0xf]
      %v992 = vld [vmem:[%s983 + $0x20] sm:$0xf]
      %v993 = vld [vmem:[%s983 + $0x24] sm:$0xf]
      %v994 = vld [vmem:[%s983 + $0x28] sm:$0xf]
      %v995 = vld [vmem:[%s983 + $0x2c] sm:$0xf]
      %v996 = vld [vmem:[%s983 + $0x30] sm:$0xf]
      %v997 = vld [vmem:[%s983 + $0x34] sm:$0xf]
      %v998 = vld [vmem:[%s983 + $0x38] sm:$0xf]
      %v999 = vld [vmem:[%s983 + $0x3c] sm:$0xf]
      %v1000 = vld [vmem:[%s983 + $0x40] sm:$0xf]
      %v1001 = vld [vmem:[%s983 + $0x44] sm:$0xf]
      %v1002 = vld [vmem:[%s983 + $0x48] sm:$0xf]
      %v1003 = vld [vmem:[%s983 + $0x4c] sm:$0xf]
      %v1004 = vld [vmem:[%s983 + $0x50] sm:$0xf]
      %v1005 = vld [vmem:[%s983 + $0x54] sm:$0xf]
      %v1006 = vld [vmem:[%s983 + $0x58] sm:$0xf]
      %v1007 = vld [vmem:[%s983 + $0x5c] sm:$0xf]
      %v1008 = vld [vmem:[%s983 + $0x60] sm:$0xf]
      %v1009 = vld [vmem:[%s983 + $0x64] sm:$0xf]
      %v1010 = vld [vmem:[%s983 + $0x68] sm:$0xf]
      %v1011 = vld [vmem:[%s983 + $0x6c] sm:$0xf]
      %v1012 = vld [vmem:[%s983 + $0x70] sm:$0xf]
      %v1013 = vld [vmem:[%s983 + $0x74] sm:$0xf]
      %v1014 = vld [vmem:[%s983 + $0x78] sm:$0xf]
      %v1015 = vld [vmem:[%s983 + $0x7c] sm:$0xf]
      %v1016 = vld [vmem:[%s983 + $0x80] sm:$0xf]
      %v1017 = vld [vmem:[%s983 + $0x84] sm:$0xf]
      %v1018 = vld [vmem:[%s983 + $0x88] sm:$0xf]
      %v1019 = vld [vmem:[%s983 + $0x8c] sm:$0xf]
      %v1020 = vld [vmem:[%s983 + $0x90] sm:$0xf]
      %v1021 = vld [vmem:[%s983 + $0x94] sm:$0xf]
      %v1022 = vld [vmem:[%s983 + $0x98] sm:$0xf]
      %v1023 = vld [vmem:[%s983 + $0x9c] sm:$0xf]
      %v1024 = vld [vmem:[%s983 + $0xa0] sm:$0xf]
      %v1025 = vld [vmem:[%s983 + $0xa4] sm:$0xf]
      %v1026 = vld [vmem:[%s983 + $0xa8] sm:$0xf]
      %v1027 = vld [vmem:[%s983 + $0xac] sm:$0xf]
      %v1028 = vld [vmem:[%s983 + $0xb0] sm:$0xf]
      %v1029 = vld [vmem:[%s983 + $0xb4] sm:$0xf]
      %v1030 = vld [vmem:[%s983 + $0xb8] sm:$0xf]
      %v1031 = vld [vmem:[%s983 + $0xbc] sm:$0xf]
      %v1032 = vld [vmem:[%s983 + $0xc0] sm:$0xf]
      %v1033 = vld [vmem:[%s983 + $0xc4] sm:$0xf]
      %v1034 = vld [vmem:[%s983 + $0xc8] sm:$0xf]
      %v1035 = vld [vmem:[%s983 + $0xcc] sm:$0xf]
      %v1036 = vld [vmem:[%s983 + $0xd0] sm:$0xf]
      %v1037 = vld [vmem:[%s983 + $0xd4] sm:$0xf]
      %v1038 = vld [vmem:[%s983 + $0xd8] sm:$0xf]
      %v1039 = vld [vmem:[%s983 + $0xdc] sm:$0xf]
      %v1040 = vld [vmem:[%s983 + $0xe0] sm:$0xf]
      %v1041 = vld [vmem:[%s983 + $0xe4] sm:$0xf]
      %v1042 = vld [vmem:[%s983 + $0xe8] sm:$0xf]
      %v1043 = vld [vmem:[%s983 + $0xec] sm:$0xf]
      %v1044 = vld [vmem:[%s983 + $0xf0] sm:$0xf]
      %v1045 = vld [vmem:[%s983 + $0xf4] sm:$0xf]
      %v1046 = vld [vmem:[%s983 + $0xf8] sm:$0xf]
      %v1047 = vld [vmem:[%s983 + $0xfc] sm:$0xf]
      %v1050 = vunpack.c.l.b16 %v981
      %v1051 = vunpack.c.h.b16 %v981
      %v1052 = vunpack.c.l.b16 %v982
      %v1053 = vunpack.c.h.b16 %v982
      %v1054 = vpack.c.b16 %v1050, %v1050
      %v1055 = vpack.c.b16 %v1051, %v1051
      %v1056 = vpack.c.b16 %v1052, %v1052
      %v1057 = vpack.c.b16 %v1053, %v1053
      %v1126 = vunpack.c.l.b16 %v984
      %v1127 = vunpack.c.l.b16 %v985
      %v1128 = vunpack.c.l.b16 %v986
      %v1129 = vunpack.c.l.b16 %v987
      %v1130 = vunpack.c.l.b16 %v988
      %v1131 = vunpack.c.l.b16 %v989
      %v1132 = vunpack.c.l.b16 %v990
      %v1133 = vunpack.c.l.b16 %v991
      %v1134 = vunpack.c.l.b16 %v992
      %v1135 = vunpack.c.l.b16 %v993
      %v1136 = vunpack.c.l.b16 %v994
      %v1137 = vunpack.c.l.b16 %v995
      %v1138 = vunpack.c.l.b16 %v996
      %v1139 = vunpack.c.l.b16 %v997
      %v1140 = vunpack.c.l.b16 %v998
      %v1141 = vunpack.c.l.b16 %v999
      %v1142 = vunpack.c.l.b16 %v1000
      %v1143 = vunpack.c.l.b16 %v1001
      %v1144 = vunpack.c.l.b16 %v1002
      %v1145 = vunpack.c.l.b16 %v1003
      %v1146 = vunpack.c.l.b16 %v1004
      %v1147 = vunpack.c.l.b16 %v1005
      %v1148 = vunpack.c.l.b16 %v1006
      %v1149 = vunpack.c.l.b16 %v1007
      %v1150 = vunpack.c.l.b16 %v1008
      %v1151 = vunpack.c.l.b16 %v1009
      %v1152 = vunpack.c.l.b16 %v1010
      %v1153 = vunpack.c.l.b16 %v1011
      %v1154 = vunpack.c.l.b16 %v1012
      %v1155 = vunpack.c.l.b16 %v1013
      %v1156 = vunpack.c.l.b16 %v1014
      %v1157 = vunpack.c.l.b16 %v1015
      %v1158 = vunpack.c.l.b16 %v1016
      %v1159 = vunpack.c.l.b16 %v1017
      %v1160 = vunpack.c.l.b16 %v1018
      %v1161 = vunpack.c.l.b16 %v1019
      %v1162 = vunpack.c.l.b16 %v1020
      %v1163 = vunpack.c.l.b16 %v1021
      %v1164 = vunpack.c.l.b16 %v1022
      %v1165 = vunpack.c.l.b16 %v1023
      %v1166 = vunpack.c.l.b16 %v1024
      %v1167 = vunpack.c.l.b16 %v1025
      %v1168 = vunpack.c.l.b16 %v1026
      %v1169 = vunpack.c.l.b16 %v1027
      %v1170 = vunpack.c.l.b16 %v1028
      %v1171 = vunpack.c.l.b16 %v1029
      %v1172 = vunpack.c.l.b16 %v1030
      %v1173 = vunpack.c.l.b16 %v1031
      %v1174 = vunpack.c.l.b16 %v1032
      %v1175 = vunpack.c.l.b16 %v1033
      %v1176 = vunpack.c.l.b16 %v1034
      %v1177 = vunpack.c.l.b16 %v1035
      %v1178 = vunpack.c.l.b16 %v1036
      %v1179 = vunpack.c.l.b16 %v1037
      %v1180 = vunpack.c.l.b16 %v1038
      %v1181 = vunpack.c.l.b16 %v1039
      %v1182 = vunpack.c.l.b16 %v1040
      %v1183 = vunpack.c.l.b16 %v1041
      %v1184 = vunpack.c.l.b16 %v1042
      %v1185 = vunpack.c.l.b16 %v1043
      %v1186 = vunpack.c.l.b16 %v1044
      %v1187 = vunpack.c.l.b16 %v1045
      %v1188 = vunpack.c.l.b16 %v1046
      %v1189 = vunpack.c.l.b16 %v1047
      %v1190 = vpack.c.b16 %v1127, %v1126
      %v1191 = vpack.c.b16 %v1129, %v1128
      %v1192 = vpack.c.b16 %v1131, %v1130
      %v1193 = vpack.c.b16 %v1133, %v1132
      %v1194 = vpack.c.b16 %v1135, %v1134
      %v1195 = vpack.c.b16 %v1137, %v1136
      %v1196 = vpack.c.b16 %v1139, %v1138
      %v1197 = vpack.c.b16 %v1141, %v1140
      %v1198 = vpack.c.b16 %v1143, %v1142
      %v1199 = vpack.c.b16 %v1145, %v1144
      %v1200 = vpack.c.b16 %v1147, %v1146
      %v1201 = vpack.c.b16 %v1149, %v1148
      %v1202 = vpack.c.b16 %v1151, %v1150
      %v1203 = vpack.c.b16 %v1153, %v1152
      %v1204 = vpack.c.b16 %v1155, %v1154
      %v1205 = vpack.c.b16 %v1157, %v1156
      %v1206 = vpack.c.b16 %v1159, %v1158
      %v1207 = vpack.c.b16 %v1161, %v1160
      %v1208 = vpack.c.b16 %v1163, %v1162
      %v1209 = vpack.c.b16 %v1165, %v1164
      %v1210 = vpack.c.b16 %v1167, %v1166
      %v1211 = vpack.c.b16 %v1169, %v1168
      %v1212 = vpack.c.b16 %v1171, %v1170
      %v1213 = vpack.c.b16 %v1173, %v1172
      %v1214 = vpack.c.b16 %v1175, %v1174
      %v1215 = vpack.c.b16 %v1177, %v1176
      %v1216 = vpack.c.b16 %v1179, %v1178
      %v1217 = vpack.c.b16 %v1181, %v1180
      %v1218 = vpack.c.b16 %v1183, %v1182
      %v1219 = vpack.c.b16 %v1185, %v1184
      %v1220 = vpack.c.b16 %v1187, %v1186
      %v1221 = vpack.c.b16 %v1189, %v1188
      %1254 = vmatprep.subr.bf16.mxu0 0
      %1255 = vmatpush1.bf16.msra.mxu0 %v1197
      %1256 = vmatprep.subr.bf16.mxu0 0
      %1257 = vmatpush1.bf16.msra.mxu0 %v1196
      %1258 = vmatprep.subr.bf16.mxu0 0
      %1259 = vmatpush1.bf16.msra.mxu0 %v1195
      %1260 = vmatprep.subr.bf16.mxu0 0
      %1261 = vmatpush1.bf16.msra.mxu0 %v1194
      %1262 = vmatprep.subr.bf16.mxu0 0
      %1263 = vmatpush1.bf16.msra.mxu0 %v1193
      %1264 = vmatprep.subr.bf16.mxu0 0
      %1265 = vmatpush1.bf16.msra.mxu0 %v1192
      %1266 = vmatprep.subr.bf16.mxu0 0
      %1267 = vmatpush1.bf16.msra.mxu0 %v1191
      %1268 = vmatprep.subr.bf16.mxu0 0
      %1269 = vmatpush1.bf16.msra.mxu0 %v1190
      %1270 = vmatprep.subr.bf16.mxu0 0
      %1271 = vmatpush2.bf16.msra.mxu0 %v1205
      %1272 = vmatprep.subr.bf16.mxu0 0
      %1273 = vmatpush2.bf16.msra.mxu0 %v1204
      %1274 = vmatprep.subr.bf16.mxu0 0
      %1275 = vmatpush2.bf16.msra.mxu0 %v1203
      %1276 = vmatprep.subr.bf16.mxu0 0
      %1277 = vmatpush2.bf16.msra.mxu0 %v1202
      %1278 = vmatprep.subr.bf16.mxu0 0
      %1279 = vmatpush2.bf16.msra.mxu0 %v1201
      %1280 = vmatprep.subr.bf16.mxu0 0
      %1281 = vmatpush2.bf16.msra.mxu0 %v1200
      %1282 = vmatprep.subr.bf16.mxu0 0
      %1283 = vmatpush2.bf16.msra.mxu0 %v1199
      %1284 = vmatprep.subr.bf16.mxu0 0
      %1285 = vmatpush2.bf16.msra.mxu0 %v1198
      %1286 = vmatprep.mubr.bf16.mxu0 %v1055
      %1287 = vmatmul.mubr.bf16.gmra.mxu0 %v1054
      %v1288 = vpop.f32.mrf.mxu0
      %v1289 = vadd.f32 0.0, %v1288
      %v1290 = vpop.f32.mrf.mxu0
      %v1291 = vpop.f32.mrf.mxu0
      %v1292 = vpop.f32.mrf.mxu0
      %1293 = vdwg.mxu0
      %1294 = vmatprep.subr.bf16.mxu0 0
      %1295 = vmatpush1.bf16.msra.mxu0 %v1213
      %1296 = vmatprep.subr.bf16.mxu0 0
      %1297 = vmatpush1.bf16.msra.mxu0 %v1212
      %1298 = vmatprep.subr.bf16.mxu0 0
      %1299 = vmatpush1.bf16.msra.mxu0 %v1211
      %1300 = vmatprep.subr.bf16.mxu0 0
      %1301 = vmatpush1.bf16.msra.mxu0 %v1210
      %1302 = vmatprep.subr.bf16.mxu0 0
      %1303 = vmatpush1.bf16.msra.mxu0 %v1209
      %1304 = vmatprep.subr.bf16.mxu0 0
      %1305 = vmatpush1.bf16.msra.mxu0 %v1208
      %1306 = vmatprep.subr.bf16.mxu0 0
      %1307 = vmatpush1.bf16.msra.mxu0 %v1207
      %1308 = vmatprep.subr.bf16.mxu0 0
      %1309 = vmatpush1.bf16.msra.mxu0 %v1206
      %1310 = vmatprep.subr.bf16.mxu0 0
      %1311 = vmatpush2.bf16.msra.mxu0 %v1221
      %1312 = vmatprep.subr.bf16.mxu0 0
      %1313 = vmatpush2.bf16.msra.mxu0 %v1220
      %1314 = vmatprep.subr.bf16.mxu0 0
      %1315 = vmatpush2.bf16.msra.mxu0 %v1219
      %1316 = vmatprep.subr.bf16.mxu0 0
      %1317 = vmatpush2.bf16.msra.mxu0 %v1218
      %1318 = vmatprep.subr.bf16.mxu0 0
      %1319 = vmatpush2.bf16.msra.mxu0 %v1217
      %1320 = vmatprep.subr.bf16.mxu0 0
      %1321 = vmatpush2.bf16.msra.mxu0 %v1216
      %1322 = vmatprep.subr.bf16.mxu0 0
      %1323 = vmatpush2.bf16.msra.mxu0 %v1215
      %1324 = vmatprep.subr.bf16.mxu0 0
      %1325 = vmatpush2.bf16.msra.mxu0 %v1214
      %1326 = vmatprep.mubr.bf16.mxu0 %v1057
      %1327 = vmatmul.mubr.bf16.gmra.mxu0 %v1056
      %v1328 = vpop.f32.mrf.mxu0
      %v1329 = vadd.f32 %v1289, %v1328
      %v1330 = vpop.f32.mrf.mxu0
      %v1331 = vpop.f32.mrf.mxu0
      %v1332 = vpop.f32.mrf.mxu0
      %1333 = vdwg.mxu0
      %v1334 = vadd.f32 %v972, %v1329
      %v1335 = vld [vmem:[%s980] sm:$0xff]
      %v1336 = vld [vmem:[%s980 + $0x8] sm:$0xff]
      %v1337 = vld [vmem:[%s980 + $0x10] sm:$0x11]
      %v1338 = vld [vmem:[%s980 + $0x18] sm:$0x11]
      %s1339 = scalar_lea.vmem %s1, 768
      %v1340 = vld [vmem:[%s1339] sm:$0xf]
      %v1341 = vld [vmem:[%s1339 + $0x4] sm:$0xf]
      %v1342 = vld [vmem:[%s1339 + $0x8] sm:$0xf]
      %v1343 = vld [vmem:[%s1339 + $0xc] sm:$0xf]
      %v1344 = vld [vmem:[%s1339 + $0x10] sm:$0xf]
      %v1345 = vld [vmem:[%s1339 + $0x14] sm:$0xf]
      %v1346 = vld [vmem:[%s1339 + $0x18] sm:$0xf]
      %v1347 = vld [vmem:[%s1339 + $0x1c] sm:$0xf]
      %v1348 = vld [vmem:[%s1339 + $0x20] sm:$0xf]
      %v1349 = vld [vmem:[%s1339 + $0x24] sm:$0xf]
      %v1350 = vld [vmem:[%s1339 + $0x28] sm:$0xf]
      %v1351 = vld [vmem:[%s1339 + $0x2c] sm:$0xf]
      %v1352 = vld [vmem:[%s1339 + $0x30] sm:$0xf]
      %v1353 = vld [vmem:[%s1339 + $0x34] sm:$0xf]
      %v1354 = vld [vmem:[%s1339 + $0x38] sm:$0xf]
      %v1355 = vld [vmem:[%s1339 + $0x3c] sm:$0xf]
      %v1356 = vld [vmem:[%s1339 + $0x40] sm:$0xf]
      %v1357 = vld [vmem:[%s1339 + $0x44] sm:$0xf]
      %v1358 = vld [vmem:[%s1339 + $0x48] sm:$0xf]
      %v1359 = vld [vmem:[%s1339 + $0x4c] sm:$0xf]
      %v1360 = vld [vmem:[%s1339 + $0x50] sm:$0xf]
      %v1361 = vld [vmem:[%s1339 + $0x54] sm:$0xf]
      %v1362 = vld [vmem:[%s1339 + $0x58] sm:$0xf]
      %v1363 = vld [vmem:[%s1339 + $0x5c] sm:$0xf]
      %v1364 = vld [vmem:[%s1339 + $0x60] sm:$0xf]
      %v1365 = vld [vmem:[%s1339 + $0x64] sm:$0xf]
      %v1366 = vld [vmem:[%s1339 + $0x68] sm:$0xf]
      %v1367 = vld [vmem:[%s1339 + $0x6c] sm:$0xf]
      %v1368 = vld [vmem:[%s1339 + $0x70] sm:$0xf]
      %v1369 = vld [vmem:[%s1339 + $0x74] sm:$0xf]
      %v1370 = vld [vmem:[%s1339 + $0x78] sm:$0xf]
      %v1371 = vld [vmem:[%s1339 + $0x7c] sm:$0xf]
      %v1372 = vld [vmem:[%s1339 + $0x80] sm:$0xf]
      %v1373 = vld [vmem:[%s1339 + $0x84] sm:$0xf]
      %v1374 = vld [vmem:[%s1339 + $0x88] sm:$0xf]
      %v1375 = vld [vmem:[%s1339 + $0x8c] sm:$0xf]
      %v1376 = vld [vmem:[%s1339 + $0x90] sm:$0xf]
      %v1377 = vld [vmem:[%s1339 + $0x94] sm:$0xf]
      %v1378 = vld [vmem:[%s1339 + $0x98] sm:$0xf]
      %v1379 = vld [vmem:[%s1339 + $0x9c] sm:$0xf]
      %v1380 = vld [vmem:[%s1339 + $0xa0] sm:$0xf]
      %v1381 = vld [vmem:[%s1339 + $0xa4] sm:$0xf]
      %v1382 = vld [vmem:[%s1339 + $0xa8] sm:$0xf]
      %v1383 = vld [vmem:[%s1339 + $0xac] sm:$0xf]
      %v1384 = vld [vmem:[%s1339 + $0xb0] sm:$0xf]
      %v1385 = vld [vmem:[%s1339 + $0xb4] sm:$0xf]
      %v1386 = vld [vmem:[%s1339 + $0xb8] sm:$0xf]
      %v1387 = vld [vmem:[%s1339 + $0xbc] sm:$0xf]
      %v1388 = vld [vmem:[%s1339 + $0xc0] sm:$0xf]
      %v1389 = vld [vmem:[%s1339 + $0xc4] sm:$0xf]
      %v1390 = vld [vmem:[%s1339 + $0xc8] sm:$0xf]
      %v1391 = vld [vmem:[%s1339 + $0xcc] sm:$0xf]
      %v1392 = vld [vmem:[%s1339 + $0xd0] sm:$0xf]
      %v1393 = vld [vmem:[%s1339 + $0xd4] sm:$0xf]
      %v1394 = vld [vmem:[%s1339 + $0xd8] sm:$0xf]
      %v1395 = vld [vmem:[%s1339 + $0xdc] sm:$0xf]
      %v1396 = vld [vmem:[%s1339 + $0xe0] sm:$0xf]
      %v1397 = vld [vmem:[%s1339 + $0xe4] sm:$0xf]
      %v1398 = vld [vmem:[%s1339 + $0xe8] sm:$0xf]
      %v1399 = vld [vmem:[%s1339 + $0xec] sm:$0xf]
      %v1400 = vld [vmem:[%s1339 + $0xf0] sm:$0xf]
      %v1401 = vld [vmem:[%s1339 + $0xf4] sm:$0xf]
      %v1402 = vld [vmem:[%s1339 + $0xf8] sm:$0xf]
      %v1403 = vld [vmem:[%s1339 + $0xfc] sm:$0xf]
      %v1408 = vunpack.c.l.b16 %v1335
      %v1409 = vunpack.c.h.b16 %v1335
      %v1410 = vunpack.c.l.b16 %v1336
      %v1411 = vunpack.c.h.b16 %v1336
      %v1412 = vunpack.c.l.b16 %v1337
      %v1413 = vunpack.c.h.b16 %v1337
      %v1414 = vunpack.c.l.b16 %v1338
      %v1415 = vunpack.c.h.b16 %v1338
      %v1416 = vpack.c.b16 %v1412, %v1408
      %v1417 = vpack.c.b16 %v1413, %v1409
      %v1418 = vpack.c.b16 %v1414, %v1410
      %v1419 = vpack.c.b16 %v1415, %v1411
      %v1421 = vshrl.u32 %v1416, 16
      %v1423 = vshll.u32 %v1416, 16
      %v1425 = vrot.slane %v1423, 1
      %v1426 = vor.u32 %v1421, %v1425
      %v1428 = vshrl.u32 %v1417, 16
      %v1430 = vshll.u32 %v1417, 16
      %v1432 = vrot.slane %v1430, 1
      %v1433 = vor.u32 %v1428, %v1432
      %v1435 = vshrl.u32 %v1418, 16
      %v1437 = vshll.u32 %v1418, 16
      %v1439 = vrot.slane %v1437, 1
      %v1440 = vor.u32 %v1435, %v1439
      %v1442 = vshrl.u32 %v1419, 16
      %v1444 = vshll.u32 %v1419, 16
      %v1446 = vrot.slane %v1444, 1
      %v1447 = vor.u32 %v1442, %v1446
      %v1516 = vunpack.c.l.b16 %v1340
      %v1517 = vunpack.c.l.b16 %v1341
      %v1518 = vunpack.c.l.b16 %v1342
      %v1519 = vunpack.c.l.b16 %v1343
      %v1520 = vunpack.c.l.b16 %v1344
      %v1521 = vunpack.c.l.b16 %v1345
      %v1522 = vunpack.c.l.b16 %v1346
      %v1523 = vunpack.c.l.b16 %v1347
      %v1524 = vunpack.c.l.b16 %v1348
      %v1525 = vunpack.c.l.b16 %v1349
      %v1526 = vunpack.c.l.b16 %v1350
      %v1527 = vunpack.c.l.b16 %v1351
      %v1528 = vunpack.c.l.b16 %v1352
      %v1529 = vunpack.c.l.b16 %v1353
      %v1530 = vunpack.c.l.b16 %v1354
      %v1531 = vunpack.c.l.b16 %v1355
      %v1532 = vunpack.c.l.b16 %v1356
      %v1533 = vunpack.c.l.b16 %v1357
      %v1534 = vunpack.c.l.b16 %v1358
      %v1535 = vunpack.c.l.b16 %v1359
      %v1536 = vunpack.c.l.b16 %v1360
      %v1537 = vunpack.c.l.b16 %v1361
      %v1538 = vunpack.c.l.b16 %v1362
      %v1539 = vunpack.c.l.b16 %v1363
      %v1540 = vunpack.c.l.b16 %v1364
      %v1541 = vunpack.c.l.b16 %v1365
      %v1542 = vunpack.c.l.b16 %v1366
      %v1543 = vunpack.c.l.b16 %v1367
      %v1544 = vunpack.c.l.b16 %v1368
      %v1545 = vunpack.c.l.b16 %v1369
      %v1546 = vunpack.c.l.b16 %v1370
      %v1547 = vunpack.c.l.b16 %v1371
      %v1548 = vunpack.c.l.b16 %v1372
      %v1549 = vunpack.c.l.b16 %v1373
      %v1550 = vunpack.c.l.b16 %v1374
      %v1551 = vunpack.c.l.b16 %v1375
      %v1552 = vunpack.c.l.b16 %v1376
      %v1553 = vunpack.c.l.b16 %v1377
      %v1554 = vunpack.c.l.b16 %v1378
      %v1555 = vunpack.c.l.b16 %v1379
      %v1556 = vunpack.c.l.b16 %v1380
      %v1557 = vunpack.c.l.b16 %v1381
      %v1558 = vunpack.c.l.b16 %v1382
      %v1559 = vunpack.c.l.b16 %v1383
      %v1560 = vunpack.c.l.b16 %v1384
      %v1561 = vunpack.c.l.b16 %v1385
      %v1562 = vunpack.c.l.b16 %v1386
      %v1563 = vunpack.c.l.b16 %v1387
      %v1564 = vunpack.c.l.b16 %v1388
      %v1565 = vunpack.c.l.b16 %v1389
      %v1566 = vunpack.c.l.b16 %v1390
      %v1567 = vunpack.c.l.b16 %v1391
      %v1568 = vunpack.c.l.b16 %v1392
      %v1569 = vunpack.c.l.b16 %v1393
      %v1570 = vunpack.c.l.b16 %v1394
      %v1571 = vunpack.c.l.b16 %v1395
      %v1572 = vunpack.c.l.b16 %v1396
      %v1573 = vunpack.c.l.b16 %v1397
      %v1574 = vunpack.c.l.b16 %v1398
      %v1575 = vunpack.c.l.b16 %v1399
      %v1576 = vunpack.c.l.b16 %v1400
      %v1577 = vunpack.c.l.b16 %v1401
      %v1578 = vunpack.c.l.b16 %v1402
      %v1579 = vunpack.c.l.b16 %v1403
      %v1580 = vpack.c.b16 %v1517, %v1516
      %v1581 = vpack.c.b16 %v1519, %v1518
      %v1582 = vpack.c.b16 %v1521, %v1520
      %v1583 = vpack.c.b16 %v1523, %v1522
      %v1584 = vpack.c.b16 %v1525, %v1524
      %v1585 = vpack.c.b16 %v1527, %v1526
      %v1586 = vpack.c.b16 %v1529, %v1528
      %v1587 = vpack.c.b16 %v1531, %v1530
      %v1588 = vpack.c.b16 %v1533, %v1532
      %v1589 = vpack.c.b16 %v1535, %v1534
      %v1590 = vpack.c.b16 %v1537, %v1536
      %v1591 = vpack.c.b16 %v1539, %v1538
      %v1592 = vpack.c.b16 %v1541, %v1540
      %v1593 = vpack.c.b16 %v1543, %v1542
      %v1594 = vpack.c.b16 %v1545, %v1544
      %v1595 = vpack.c.b16 %v1547, %v1546
      %v1596 = vpack.c.b16 %v1549, %v1548
      %v1597 = vpack.c.b16 %v1551, %v1550
      %v1598 = vpack.c.b16 %v1553, %v1552
      %v1599 = vpack.c.b16 %v1555, %v1554
      %v1600 = vpack.c.b16 %v1557, %v1556
      %v1601 = vpack.c.b16 %v1559, %v1558
      %v1602 = vpack.c.b16 %v1561, %v1560
      %v1603 = vpack.c.b16 %v1563, %v1562
      %v1604 = vpack.c.b16 %v1565, %v1564
      %v1605 = vpack.c.b16 %v1567, %v1566
      %v1606 = vpack.c.b16 %v1569, %v1568
      %v1607 = vpack.c.b16 %v1571, %v1570
      %v1608 = vpack.c.b16 %v1573, %v1572
      %v1609 = vpack.c.b16 %v1575, %v1574
      %v1610 = vpack.c.b16 %v1577, %v1576
      %v1611 = vpack.c.b16 %v1579, %v1578
      %1644 = vmatprep.subr.bf16.mxu0 0
      %1645 = vmatpush1.bf16.msra.mxu0 %v1587
      %1646 = vmatprep.subr.bf16.mxu0 0
      %1647 = vmatpush1.bf16.msra.mxu0 %v1586
      %1648 = vmatprep.subr.bf16.mxu0 0
      %1649 = vmatpush1.bf16.msra.mxu0 %v1585
      %1650 = vmatprep.subr.bf16.mxu0 0
      %1651 = vmatpush1.bf16.msra.mxu0 %v1584
      %1652 = vmatprep.subr.bf16.mxu0 0
      %1653 = vmatpush1.bf16.msra.mxu0 %v1583
      %1654 = vmatprep.subr.bf16.mxu0 0
      %1655 = vmatpush1.bf16.msra.mxu0 %v1582
      %1656 = vmatprep.subr.bf16.mxu0 0
      %1657 = vmatpush1.bf16.msra.mxu0 %v1581
      %1658 = vmatprep.subr.bf16.mxu0 0
      %1659 = vmatpush1.bf16.msra.mxu0 %v1580
      %1660 = vmatprep.subr.bf16.mxu0 0
      %1661 = vmatpush2.bf16.msra.mxu0 %v1595
      %1662 = vmatprep.subr.bf16.mxu0 0
      %1663 = vmatpush2.bf16.msra.mxu0 %v1594
      %1664 = vmatprep.subr.bf16.mxu0 0
      %1665 = vmatpush2.bf16.msra.mxu0 %v1593
      %1666 = vmatprep.subr.bf16.mxu0 0
      %1667 = vmatpush2.bf16.msra.mxu0 %v1592
      %1668 = vmatprep.subr.bf16.mxu0 0
      %1669 = vmatpush2.bf16.msra.mxu0 %v1591
      %1670 = vmatprep.subr.bf16.mxu0 0
      %1671 = vmatpush2.bf16.msra.mxu0 %v1590
      %1672 = vmatprep.subr.bf16.mxu0 0
      %1673 = vmatpush2.bf16.msra.mxu0 %v1589
      %1674 = vmatprep.subr.bf16.mxu0 0
      %1675 = vmatpush2.bf16.msra.mxu0 %v1588
      %1676 = vmatprep.mubr.bf16.mxu0 %v1433
      %1677 = vmatmul.mubr.bf16.gmra.mxu0 %v1426
      %v1678 = vpop.f32.mrf.mxu0
      %v1679 = vadd.f32 0.0, %v1678
      %v1680 = vpop.f32.mrf.mxu0
      %v1681 = vpop.f32.mrf.mxu0
      %v1682 = vpop.f32.mrf.mxu0
      %1683 = vdwg.mxu0
      %1684 = vmatprep.subr.bf16.mxu0 0
      %1685 = vmatpush1.bf16.msra.mxu0 %v1603
      %1686 = vmatprep.subr.bf16.mxu0 0
      %1687 = vmatpush1.bf16.msra.mxu0 %v1602
      %1688 = vmatprep.subr.bf16.mxu0 0
      %1689 = vmatpush1.bf16.msra.mxu0 %v1601
      %1690 = vmatprep.subr.bf16.mxu0 0
      %1691 = vmatpush1.bf16.msra.mxu0 %v1600
      %1692 = vmatprep.subr.bf16.mxu0 0
      %1693 = vmatpush1.bf16.msra.mxu0 %v1599
      %1694 = vmatprep.subr.bf16.mxu0 0
      %1695 = vmatpush1.bf16.msra.mxu0 %v1598
      %1696 = vmatprep.subr.bf16.mxu0 0
      %1697 = vmatpush1.bf16.msra.mxu0 %v1597
      %1698 = vmatprep.subr.bf16.mxu0 0
      %1699 = vmatpush1.bf16.msra.mxu0 %v1596
      %1700 = vmatprep.subr.bf16.mxu0 0
      %1701 = vmatpush2.bf16.msra.mxu0 %v1611
      %1702 = vmatprep.subr.bf16.mxu0 0
      %1703 = vmatpush2.bf16.msra.mxu0 %v1610
      %1704 = vmatprep.subr.bf16.mxu0 0
      %1705 = vmatpush2.bf16.msra.mxu0 %v1609
      %1706 = vmatprep.subr.bf16.mxu0 0
      %1707 = vmatpush2.bf16.msra.mxu0 %v1608
      %1708 = vmatprep.subr.bf16.mxu0 0
      %1709 = vmatpush2.bf16.msra.mxu0 %v1607
      %1710 = vmatprep.subr.bf16.mxu0 0
      %1711 = vmatpush2.bf16.msra.mxu0 %v1606
      %1712 = vmatprep.subr.bf16.mxu0 0
      %1713 = vmatpush2.bf16.msra.mxu0 %v1605
      %1714 = vmatprep.subr.bf16.mxu0 0
      %1715 = vmatpush2.bf16.msra.mxu0 %v1604
      %1716 = vmatprep.mubr.bf16.mxu0 %v1447
      %1717 = vmatmul.mubr.bf16.gmra.mxu0 %v1440
      %v1718 = vpop.f32.mrf.mxu0
      %v1719 = vadd.f32 %v1679, %v1718
      %v1720 = vpop.f32.mrf.mxu0
      %v1721 = vpop.f32.mrf.mxu0
      %v1722 = vpop.f32.mrf.mxu0
      %1723 = vdwg.mxu0
      %v1724 = vadd.f32 %v1334, %v1719
      %1725 = vst [vmem:[%s239] sm:$0xff] %v1724
      %p1726 = scmp.eq.s32.totalorder %s21, 0
      %p1727 = scmp.eq.s32.totalorder %s22, 0
      %p1728 = pnand %p1726, %p1727
      %p1729 = pneg %p1728
      // Predicated region
      $region33: #{_lambda_.9} parent=31 // pred_check
        _
      $region34: #{_lambda_.9} parent=31 // pred_check_branch
        %1731 = sbr.rel (%p1728) target = $region36
      $region35: #{_lambda_.9} parent=31 // pred_region
        %1732 = vst [vmem:[%s4] sm:$0x1] 0.0
        %1733 = vst [vmem:[%s5] sm:$0x1] 0.0
      $region36: #{_lambda_.9} parent=31 // pred_fallthru
        _
      %v1734 = vld [vmem:[%s4] sm:$0x1]
      %v1735 = vrot.slane %v1724, 4
      %v1736 = vadd.f32 %v1724, %v1735
      %v1737 = vrot.slane %v1736, 2
      %v1738 = vadd.f32 %v1736, %v1737
      %v1739 = vrot.slane %v1738, 1
      %v1740 = vadd.f32 %v1738, %v1739
      %v1741 = vadd.f32 %v1734, %v1740
      %1742 = vst [vmem:[%s4] sm:$0x1] %v1741
      %v1743 = vld [vmem:[%s5] sm:$0x1]
      %v1744 = vmul.f32 %v1724, %v1724
      %v1745 = vrot.slane %v1744, 4
      %v1746 = vadd.f32 %v1744, %v1745
      %v1747 = vrot.slane %v1746, 2
      %v1748 = vadd.f32 %v1746, %v1747
      %v1749 = vrot.slane %v1748, 1
      %v1750 = vadd.f32 %v1748, %v1749
      %v1751 = vadd.f32 %v1743, %v1750
      %1752 = vst [vmem:[%s5] sm:$0x1] %v1751
      %p1753 = scmp.lt.s32.totalorder %s21, 1
      %s1754 = scalar_select %p1753, %s21, 1
      %p1755 = scmp.lt.s32.totalorder %s22, 7
      %s1756 = scalar_select %p1755, %s22, 7
      %s1757 = smul.addr %s1754, 8
      %s1758 = sadd.s32 %s1756, %s1757
      %s1759 = smul.addr %s1758, 8
      %s1760 = scalar_lea.vmem %s3, %s1759
      // Predicated region
      $region37: #{_lambda_.9} parent=31 // pred_check
        %p1761 = pneg %p117
      $region38: #{_lambda_.9} parent=31 // pred_check_branch
        %1763 = sbr.rel (%p1761) target = $region40
      $region39: #{_lambda_.9} parent=31 // pred_region
        _
      $region40: #{_lambda_.9} parent=31 // pred_fallthru
        _
      // Predicated region
      $region41: #{_lambda_.9} parent=31 // pred_check
        %p1764 = pneg %p138
      $region42: #{_lambda_.9} parent=31 // pred_check_branch
        %1766 = sbr.rel (%p1764) target = $region44
      $region43: #{_lambda_.9} parent=31 // pred_region
        _
      $region44: #{_lambda_.9} parent=31 // pred_fallthru
        _
      // Predicated region
      $region45: #{_lambda_.9} parent=31 // pred_check
        %p1767 = pneg %p159
      $region46: #{_lambda_.9} parent=31 // pred_check_branch
        %1769 = sbr.rel (%p1767) target = $region48
      $region47: #{_lambda_.9} parent=31 // pred_region
        _
      $region48: #{_lambda_.9} parent=31 // pred_fallthru
        _
      // Predicated region
      $region49: #{_lambda_.9} parent=31 // pred_check
        %p1770 = pneg %p138
      $region50: #{_lambda_.9} parent=31 // pred_check_branch
        %1772 = sbr.rel (%p1770) target = $region52
      $region51: #{_lambda_.9} parent=31 // pred_region
        _
      $region52: #{_lambda_.9} parent=31 // pred_fallthru
        _
      // Predicated region
      $region53: #{_lambda_.9} parent=31 // pred_check
        %p1773 = pneg %p159
      $region54: #{_lambda_.9} parent=31 // pred_check_branch
        %1775 = sbr.rel (%p1773) target = $region56
      $region55: #{_lambda_.9} parent=31 // pred_region
        _
      $region56: #{_lambda_.9} parent=31 // pred_fallthru
        _
    $region32: #{_lambda_.9} parent=5 // pred_fallthru
      _
    %p1776 = scmp.le.s32.totalorder 2, %s12
    // Predicated region
    $region57: #{_lambda_.9} parent=5 // pred_check
      %p1777 = pneg %p1776
    $region58: #{_lambda_.9} parent=5 // pred_check_branch
      %1779 = sbr.rel (%p1777) target = $region60
    $region59: #{_lambda_.9} parent=5 // pred_region
      %s1780 = ssub.s32 %s12, 2
      // Predicated region
      $region61: #{_lambda_.9} parent=59 // pred_check
        %p1781 = pneg %p123
      $region62: #{_lambda_.9} parent=59 // pred_check_branch
        %1783 = sbr.rel (%p1781) target = $region64
      $region63: #{_lambda_.9} parent=59 // pred_region
        %p1784 = scmp.lt.s32.totalorder %s23, 1
        %s1785 = scalar_select %p1784, %s23, 1
        %p1786 = scmp.lt.s32.totalorder %s24, 7
        %s1787 = scalar_select %p1786, %s24, 7
        %s1788 = smul.addr %s1785, 8
        %s1789 = sadd.s32 %s1787, %s1788
        %s1790 = smul.addr %s1789, 8
        %s1791 = scalar_lea.vmem %s3, %s1790
      $region64: #{_lambda_.9} parent=59 // pred_fallthru
        _
    $region60: #{_lambda_.9} parent=5 // pred_fallthru
      _
  $region6: #{_lambda_.9} parent=0 // loop_footer
    %s16 = sadd.s32 1, %s12
  $region7: #{_lambda_.9} parent=0 // loop_footer_branch
    %11 = sbr.rel target = $region3
  $region8: #{_lambda_.9} parent=0 // loop_exit
    _

// kernel: _lambda_.12
$region0: #{_lambda_.12}
  #allocation0 [shape = 'u32[]', space=smem, size = 0x4, offset = 0x4, fixed_abs, tag = 'smem constant byte address 0x4 - core index']
  #allocation1 [shape = 'u32[144,128]{1,0:T(1,128)}', space=vmem, size = 0x12000, scoped, tag = 'internal scratch']
  %s0 = inlined_call_operand.vmem [shape: f32[2,4,4,128], index: 0, kind: input, shape index: {}]
  %s1 = inlined_call_operand.vmem [shape: f32[1,128], index: 1, kind: input, shape index: {}]
  %s2 = inlined_call_operand.vmem [shape: f32[1,128], index: 2, kind: input, shape index: {}]
  %s3 = inlined_call_operand.vmem [shape: f32[1,128], index: 3, kind: input, shape index: {}]
  %s4 = inlined_call_operand.vmem [shape: f32[1,128], index: 4, kind: input, shape index: {}]
  %s5 = inlined_call_operand.vmem [shape: bf16[2,4,4,128], index: 5, kind: output, shape index: {}]
  %s6 = sld [smem:[#allocation0]]
  $region53: #{_lambda_.12} parent=0
    _
  %s8 = ssub.s32 1, %s6
  %s9 = scalar_select 0, %s8, %s6
  loop: start=0, step=1, limit=10
  $region2: #{_lambda_.12} parent=0 // loop_pre_header
    _
  $region3: #{_lambda_.12} parent=0 // loop_header
    %s11 = sphi 0, %s15
    %p12 = scmp.ge.s32.totalorder %s11, 10
    %s18 = sphi 0, %s30
    %s19 = sphi 0, %s26
    %s20 = sphi 0, %s18
    %s21 = sphi 0, %s19
    %s22 = sphi 0, %s20
    %s23 = sphi 0, %s21
    %s35 = sphi 0, %s37
    %s38 = sphi 0, %s35
    %s39 = sphi 0, %s38
    %s55 = sphi 0, %s39
    %s59 = sphi 0, %s59
    %s61 = sphi 0, %s59
    %s62 = sphi 0, %s61
    %s76 = sphi 0, %s62
    %s80 = sphi 0, %s80
    %s82 = sphi 0, %s80
    %s83 = sphi 0, %s82
    %s97 = sphi 0, %s83
    %s101 = sphi 0, %s101
    %s103 = sphi 0, %s101
    %s104 = sphi 0, %s103
    %s118 = sphi 0, %s104
    %s122 = sphi 0, %s122
    %s124 = sphi 0, %s122
    %s125 = sphi 0, %s124
    %s139 = sphi 0, %s125
    %s147 = sphi 0, %s149
    %s150 = sphi 0, %s147
    %s151 = sphi 0, %s150
    %s167 = sphi 0, %s151
  $region4: #{_lambda_.12} parent=0 // loop_header_branch
    %14 = sbr.rel (%p12) target = $region8
  $region5: #{_lambda_.12} parent=0 // loop_body
    %s16 = ssub.s32 %s11, 1
    %s17 = ssub.s32 %s11, 2
    %s24 = sadd.s32 1, %s19
    %p25 = scmp.ge.s32.totalorder %s24, 4
    %s26 = scalar_select %p25, 0, %s24
    %s27 = sadd.s32 1, %s18
    %s28 = scalar_select %p25, %s27, %s18
    %p29 = scmp.ge.s32.totalorder %s28, 2
    %s30 = scalar_select %p29, 0, %s28
    %s31 = ssub.s32 %s18, %s30
    %s32 = ssub.s32 %s19, %s26
    %s33 = sor.u32 %s31, %s32
    %p34 = scmp.eq.s32.totalorder %s33, 0
    %s36 = sadd.s32 %s35, 1
    %s37 = scalar_select %p34, %s35, %s36
    %p40 = pneg %p34
    %p41 = scmp.eq.s32.totalorder %s11, 7
    %p42 = por %p40, %p41
    %p43 = scmp.ne.s32.totalorder %s35, %s38
    %p44 = scmp.eq.s32.totalorder %s11, 0
    %p45 = por %p43, %p44
    %p46 = scmp.ne.s32.totalorder %s35, %s38
    %p47 = scmp.eq.s32.totalorder %s16, 7
    %p48 = por %p46, %p47
    %p49 = scmp.ne.s32.totalorder %s38, %s39
    %p50 = scmp.eq.s32.totalorder %s16, 0
    %p51 = por %p49, %p50
    %p52 = scmp.ne.s32.totalorder %s38, %s39
    %p53 = scmp.eq.s32.totalorder %s17, 7
    %p54 = por %p52, %p53
    %p56 = scmp.ne.s32.totalorder %s39, %s55
    %p57 = scmp.eq.s32.totalorder %s17, 0
    %p58 = por %p56, %p57
    %s60 = sadd.s32 %s59, 1
    %p63 = scmp.eq.s32.totalorder %s11, 7
    %p64 = scmp.ne.s32.totalorder %s59, %s61
    %p65 = scmp.eq.s32.totalorder %s11, 0
    %p66 = por %p64, %p65
    %p67 = scmp.ne.s32.totalorder %s59, %s61
    %p68 = scmp.eq.s32.totalorder %s16, 7
    %p69 = por %p67, %p68
    %p70 = scmp.ne.s32.totalorder %s61, %s62
    %p71 = scmp.eq.s32.totalorder %s16, 0
    %p72 = por %p70, %p71
    %p73 = scmp.ne.s32.totalorder %s61, %s62
    %p74 = scmp.eq.s32.totalorder %s17, 7
    %p75 = por %p73, %p74
    %p77 = scmp.ne.s32.totalorder %s62, %s76
    %p78 = scmp.eq.s32.totalorder %s17, 0
    %p79 = por %p77, %p78
    %s81 = sadd.s32 %s80, 1
    %p84 = scmp.eq.s32.totalorder %s11, 7
    %p85 = scmp.ne.s32.totalorder %s80, %s82
    %p86 = scmp.eq.s32.totalorder %s11, 0
    %p87 = por %p85, %p86
    %p88 = scmp.ne.s32.totalorder %s80, %s82
    %p89 = scmp.eq.s32.totalorder %s16, 7
    %p90 = por %p88, %p89
    %p91 = scmp.ne.s32.totalorder %s82, %s83
    %p92 = scmp.eq.s32.totalorder %s16, 0
    %p93 = por %p91, %p92
    %p94 = scmp.ne.s32.totalorder %s82, %s83
    %p95 = scmp.eq.s32.totalorder %s17, 7
    %p96 = por %p94, %p95
    %p98 = scmp.ne.s32.totalorder %s83, %s97
    %p99 = scmp.eq.s32.totalorder %s17, 0
    %p100 = por %p98, %p99
    %s102 = sadd.s32 %s101, 1
    %p105 = scmp.eq.s32.totalorder %s11, 7
    %p106 = scmp.ne.s32.totalorder %s101, %s103
    %p107 = scmp.eq.s32.totalorder %s11, 0
    %p108 = por %p106, %p107
    %p109 = scmp.ne.s32.totalorder %s101, %s103
    %p110 = scmp.eq.s32.totalorder %s16, 7
    %p111 = por %p109, %p110
    %p112 = scmp.ne.s32.totalorder %s103, %s104
    %p113 = scmp.eq.s32.totalorder %s16, 0
    %p114 = por %p112, %p113
    %p115 = scmp.ne.s32.totalorder %s103, %s104
    %p116 = scmp.eq.s32.totalorder %s17, 7
    %p117 = por %p115, %p116
    %p119 = scmp.ne.s32.totalorder %s104, %s118
    %p120 = scmp.eq.s32.totalorder %s17, 0
    %p121 = por %p119, %p120
    %s123 = sadd.s32 %s122, 1
    %p126 = scmp.eq.s32.totalorder %s11, 7
    %p127 = scmp.ne.s32.totalorder %s122, %s124
    %p128 = scmp.eq.s32.totalorder %s11, 0
    %p129 = por %p127, %p128
    %p130 = scmp.ne.s32.totalorder %s122, %s124
    %p131 = scmp.eq.s32.totalorder %s16, 7
    %p132 = por %p130, %p131
    %p133 = scmp.ne.s32.totalorder %s124, %s125
    %p134 = scmp.eq.s32.totalorder %s16, 0
    %p135 = por %p133, %p134
    %p136 = scmp.ne.s32.totalorder %s124, %s125
    %p137 = scmp.eq.s32.totalorder %s17, 7
    %p138 = por %p136, %p137
    %p140 = scmp.ne.s32.totalorder %s125, %s139
    %p141 = scmp.eq.s32.totalorder %s17, 0
    %p142 = por %p140, %p141
    %s143 = ssub.s32 %s18, %s30
    %s144 = ssub.s32 %s19, %s26
    %s145 = sor.u32 %s143, %s144
    %p146 = scmp.eq.s32.totalorder %s145, 0
    %s148 = sadd.s32 %s147, 1
    %s149 = scalar_select %p146, %s147, %s148
    %p152 = pneg %p146
    %p153 = scmp.eq.s32.totalorder %s11, 7
    %p154 = por %p152, %p153
    %p155 = scmp.ne.s32.totalorder %s147, %s150
    %p156 = scmp.eq.s32.totalorder %s11, 0
    %p157 = por %p155, %p156
    %p158 = scmp.ne.s32.totalorder %s147, %s150
    %p159 = scmp.eq.s32.totalorder %s16, 7
    %p160 = por %p158, %p159
    %p161 = scmp.ne.s32.totalorder %s150, %s151
    %p162 = scmp.eq.s32.totalorder %s16, 0
    %p163 = por %p161, %p162
    %p164 = scmp.ne.s32.totalorder %s150, %s151
    %p165 = scmp.eq.s32.totalorder %s17, 7
    %p166 = por %p164, %p165
    %p168 = scmp.ne.s32.totalorder %s151, %s167
    %p169 = scmp.eq.s32.totalorder %s17, 0
    %p170 = por %p168, %p169
    %p171 = scmp.le.s32.totalorder 1, %s11
    %p172 = scmp.lt.s32.totalorder %s11, 9
    %p173 = pnand %p171, %p172
    %p174 = pneg %p173
    // Predicated region
    $region9: #{_lambda_.12} parent=5 // pred_check
      _
    $region10: #{_lambda_.12} parent=5 // pred_check_branch
      %176 = sbr.rel (%p173) target = $region12
    $region11: #{_lambda_.12} parent=5 // pred_region
      %s177 = ssub.s32 %s11, 1
      // Predicated region
      $region13: #{_lambda_.12} parent=11 // pred_check
        %p178 = pneg %p72
      $region14: #{_lambda_.12} parent=11 // pred_check_branch
        %180 = sbr.rel (%p178) target = $region16
      $region15: #{_lambda_.12} parent=11 // pred_region
        _
      $region16: #{_lambda_.12} parent=11 // pred_fallthru
        _
      // Predicated region
      $region17: #{_lambda_.12} parent=11 // pred_check
        %p181 = pneg %p93
      $region18: #{_lambda_.12} parent=11 // pred_check_branch
        %183 = sbr.rel (%p181) target = $region20
      $region19: #{_lambda_.12} parent=11 // pred_region
        _
      $region20: #{_lambda_.12} parent=11 // pred_fallthru
        _
      // Predicated region
      $region21: #{_lambda_.12} parent=11 // pred_check
        %p184 = pneg %p114
      $region22: #{_lambda_.12} parent=11 // pred_check_branch
        %186 = sbr.rel (%p184) target = $region24
      $region23: #{_lambda_.12} parent=11 // pred_region
        _
      $region24: #{_lambda_.12} parent=11 // pred_fallthru
        _
      // Predicated region
      $region25: #{_lambda_.12} parent=11 // pred_check
        %p187 = pneg %p135
      $region26: #{_lambda_.12} parent=11 // pred_check_branch
        %189 = sbr.rel (%p187) target = $region28
      $region27: #{_lambda_.12} parent=11 // pred_region
        _
      $region28: #{_lambda_.12} parent=11 // pred_fallthru
        _
    $region12: #{_lambda_.12} parent=5 // pred_fallthru
      _
    %p190 = scmp.lt.s32.totalorder %s11, 8
    // Predicated region
    $region29: #{_lambda_.12} parent=5 // pred_check
      %p191 = pneg %p190
    $region30: #{_lambda_.12} parent=5 // pred_check_branch
      %193 = sbr.rel (%p191) target = $region32
    $region31: #{_lambda_.12} parent=5 // pred_region
      // Predicated region
      $region33: #{_lambda_.12} parent=31 // pred_check
        %p194 = pneg %p45
      $region34: #{_lambda_.12} parent=31 // pred_check_branch
        %196 = sbr.rel (%p194) target = $region36
      $region35: #{_lambda_.12} parent=31 // pred_region
        %p197 = scmp.lt.s32.totalorder %s18, 1
        %s198 = scalar_select %p197, %s18, 1
        %p199 = scmp.lt.s32.totalorder %s19, 3
        %s200 = scalar_select %p199, %s19, 3
        %s201 = smul.addr %s198, 4
        %s202 = sadd.s32 %s200, %s201
        %s203 = smul.addr %s202, 4
        %s204 = scalar_lea.vmem %s0, %s203
      $region36: #{_lambda_.12} parent=31 // pred_fallthru
        _
    $region32: #{_lambda_.12} parent=5 // pred_fallthru
      _
    %p205 = scmp.le.s32.totalorder 1, %s11
    %p206 = scmp.lt.s32.totalorder %s11, 9
    %p207 = pnand %p205, %p206
    %p208 = pneg %p207
    // Predicated region
    $region37: #{_lambda_.12} parent=5 // pred_check
      _
    $region38: #{_lambda_.12} parent=5 // pred_check_branch
      %210 = sbr.rel (%p207) target = $region40
    $region39: #{_lambda_.12} parent=5 // pred_region
      %s211 = ssub.s32 %s11, 1
      %p212 = scmp.lt.s32.totalorder %s20, 1
      %s213 = scalar_select %p212, %s20, 1
      %p214 = scmp.lt.s32.totalorder %s21, 3
      %s215 = scalar_select %p214, %s21, 3
      %s216 = smul.addr %s213, 4
      %s217 = sadd.s32 %s215, %s216
      %s218 = smul.addr %s217, 4
      %s219 = scalar_lea.vmem %s0, %s218
      %p220 = pneg %p51
      %p221 = pneg %p48
      %p222 = pneg %p72
      %p223 = pneg %p69
      %p224 = pneg %p93
      %p225 = pneg %p90
      %p226 = pneg %p114
      %p227 = pneg %p111
      %p228 = pneg %p135
      %p229 = pneg %p132
      %p230 = pneg %p163
      %p231 = pneg %p160
      %p232 = scmp.lt.s32.totalorder %s20, 1
      %s233 = scalar_select %p232, %s20, 1
      %p234 = scmp.lt.s32.totalorder %s21, 3
      %s235 = scalar_select %p234, %s21, 3
      %s236 = smul.addr %s233, 4
      %s237 = sadd.s32 %s235, %s236
      %s238 = smul.addr %s237, 2
      %s239 = scalar_lea.vmem %s5, %s238
      %p240 = scmp.lt.s32.totalorder %s20, 1
      %s241 = scalar_select %p240, %s20, 1
      %p242 = scmp.lt.s32.totalorder %s21, 3
      %s243 = scalar_select %p242, %s21, 3
      %s244 = smul.addr %s241, 4
      %s245 = sadd.s32 %s243, %s244
      %s246 = smul.addr %s245, 4
      %s247 = scalar_lea.vmem %s0, %s246
      %p248 = scmp.lt.s32.totalorder %s20, 1
      %s249 = scalar_select %p248, %s20, 1
      %p250 = scmp.lt.s32.totalorder %s21, 3
      %s251 = scalar_select %p250, %s21, 3
      %s252 = smul.addr %s249, 4
      %s253 = sadd.s32 %s251, %s252
      %s254 = smul.addr %s253, 2
      %s255 = scalar_lea.vmem %s5, %s254
      %v256 = vld [vmem:[%s1] sm:$0x1]
      %v257 = vmul.f32 %v256, 0.03125
      %v258 = vld [vmem:[%s2] sm:$0x1]
      %v259 = vmul.f32 %v258, 0.03125
      %v260 = vmul.f32 %v257, %v257
      %v261 = vsub.f32 %v259, %v260
      %v262 = vld [vmem:[%s3] sm:$0x1]
      %v263 = vadd.f32 %v261, 1e-05
      %v264 = vrsqrt.pop %v263
      %v265 = vmul.f32 %v262, %v264
      %v266 = vld [vmem:[%s4] sm:$0x1]
      %v267 = vmul.f32 %v257, %v265
      %v268 = vsub.f32 %v266, %v267
      %v269 = vld [vmem:[%s247] sm:$0xf]
      %v271 = vlaneseq
      %v272 = vshrl.u32 %v271, 7
      %v273 = vsub.s32 0, %v272
      %v274 = vrot.slane %v265, %v273
      %v276 = vmul.f32 %v269, %v274
      %v278 = vlaneseq
      %v279 = vshrl.u32 %v278, 7
      %v280 = vsub.s32 0, %v279
      %v281 = vrot.slane %v268, %v280
      %v283 = vadd.f32 %v276, %v281
      %vm284 = vcmp.gt.f32.partialorder %v283, 0.0
      %v285 = vmul.f32 %v283, 0.2
      %v286 = vsel %vm284, %v283, %v285
      %v287 = vpack.c.bf16 %v286, %v286
      %288 = vst [vmem:[%s255] sm:$0x3] %v287
      %p289 = scmp.lt.s32.totalorder %s20, 1
      %s290 = scalar_select %p289, %s20, 1
      %p291 = scmp.lt.s32.totalorder %s21, 3
      %s292 = scalar_select %p291, %s21, 3
      %s293 = smul.addr %s290, 4
      %s294 = sadd.s32 %s292, %s293
      %s295 = smul.addr %s294, 2
      %s296 = scalar_lea.vmem %s5, %s295
      // Predicated region
      $region41: #{_lambda_.12} parent=39 // pred_check
        %p297 = pneg %p160
      $region42: #{_lambda_.12} parent=39 // pred_check_branch
        %299 = sbr.rel (%p297) target = $region44
      $region43: #{_lambda_.12} parent=39 // pred_region
        _
      $region44: #{_lambda_.12} parent=39 // pred_fallthru
        _
    $region40: #{_lambda_.12} parent=5 // pred_fallthru
      _
    %p300 = scmp.le.s32.totalorder 2, %s11
    // Predicated region
    $region45: #{_lambda_.12} parent=5 // pred_check
      %p301 = pneg %p300
    $region46: #{_lambda_.12} parent=5 // pred_check_branch
      %303 = sbr.rel (%p301) target = $region48
    $region47: #{_lambda_.12} parent=5 // pred_region
      %s304 = ssub.s32 %s11, 2
      // Predicated region
      $region49: #{_lambda_.12} parent=47 // pred_check
        %p305 = pneg %p166
      $region50: #{_lambda_.12} parent=47 // pred_check_branch
        %307 = sbr.rel (%p305) target = $region52
      $region51: #{_lambda_.12} parent=47 // pred_region
        %p308 = scmp.lt.s32.totalorder %s22, 1
        %s309 = scalar_select %p308, %s22, 1
        %p310 = scmp.lt.s32.totalorder %s23, 3
        %s311 = scalar_select %p310, %s23, 3
        %s312 = smul.addr %s309, 4
        %s313 = sadd.s32 %s311, %s312
        %s314 = smul.addr %s313, 2
        %s315 = scalar_lea.vmem %s5, %s314
      $region52: #{_lambda_.12} parent=47 // pred_fallthru
        _
    $region48: #{_lambda_.12} parent=5 // pred_fallthru
      _
  $region6: #{_lambda_.12} parent=0 // loop_footer
    %s15 = sadd.s32 1, %s11
  $region7: #{_lambda_.12} parent=0 // loop_footer_branch
    %10 = sbr.rel target = $region3
  $region8: #{_lambda_.12} parent=0 // loop_exit
    _

// kernel: _lambda_.11
$region0: #{_lambda_.11}
  #allocation0 [shape = 'u32[]', space=smem, size = 0x4, offset = 0x4, fixed_abs, tag = 'smem constant byte address 0x4 - core index']
  #allocation1 [shape = 'u32[144,128]{1,0:T(1,128)}', space=vmem, size = 0x12000, scoped, tag = 'internal scratch']
  %s0 = inlined_call_operand.vmem [shape: bf16[2,5,5,512], index: 0, kind: input, shape index: {}]
  %s1 = inlined_call_operand.vmem [shape: bf16[4,512,128], index: 1, kind: input, shape index: {}]
  %s2 = inlined_call_operand.vmem [shape: f32[1,128], index: 2, kind: input, shape index: {}]
  %s3 = inlined_call_operand.vmem [shape: f32[2,4,4,128], index: 3, kind: output, shape index: {0}]
  %s4 = inlined_call_operand.vmem [shape: f32[1,128], index: 4, kind: output, shape index: {1}]
  %s5 = inlined_call_operand.vmem [shape: f32[1,128], index: 5, kind: output, shape index: {2}]
  %6 = xla_tuple %s3, %s4, %s5
  %s7 = sld [smem:[#allocation0]]
  $region65: #{_lambda_.11} parent=0
    _
  %s9 = ssub.s32 1, %s7
  %s10 = scalar_select 0, %s9, %s7
  loop: start=0, step=1, limit=10
  $region2: #{_lambda_.11} parent=0 // loop_pre_header
    _
  $region3: #{_lambda_.11} parent=0 // loop_header
    %s12 = sphi 0, %s16
    %p13 = scmp.ge.s32.totalorder %s12, 10
    %s19 = sphi 0, %s31
    %s20 = sphi 0, %s27
    %s21 = sphi 0, %s19
    %s22 = sphi 0, %s20
    %s23 = sphi 0, %s21
    %s24 = sphi 0, %s22
    %s34 = sphi 0, %s36
    %s37 = sphi 0, %s34
    %s38 = sphi 0, %s37
    %s54 = sphi 0, %s38
    %s58 = sphi 0, %s58
    %s60 = sphi 0, %s58
    %s61 = sphi 0, %s60
    %s75 = sphi 0, %s61
    %s79 = sphi 0, %s79
    %s81 = sphi 0, %s79
    %s82 = sphi 0, %s81
    %s96 = sphi 0, %s82
    %s104 = sphi 0, %s106
    %s107 = sphi 0, %s104
    %s108 = sphi 0, %s107
    %s124 = sphi 0, %s108
    %s128 = sphi 0, %s128
    %s130 = sphi 0, %s128
    %s131 = sphi 0, %s130
    %s145 = sphi 0, %s131
    %s149 = sphi 0, %s149
    %s151 = sphi 0, %s149
    %s152 = sphi 0, %s151
    %s166 = sphi 0, %s152
  $region4: #{_lambda_.11} parent=0 // loop_header_branch
    %15 = sbr.rel (%p13) target = $region8
  $region5: #{_lambda_.11} parent=0 // loop_body
    %s17 = ssub.s32 %s12, 1
    %s18 = ssub.s32 %s12, 2
    %s25 = sadd.s32 1, %s20
    %p26 = scmp.ge.s32.totalorder %s25, 4
    %s27 = scalar_select %p26, 0, %s25
    %s28 = sadd.s32 1, %s19
    %s29 = scalar_select %p26, %s28, %s19
    %p30 = scmp.ge.s32.totalorder %s29, 2
    %s31 = scalar_select %p30, 0, %s29
    %s32 = ssub.s32 %s19, %s31
    %p33 = scmp.eq.s32.totalorder %s32, 0
    %s35 = sadd.s32 %s34, 1
    %s36 = scalar_select %p33, %s34, %s35
    %p39 = pneg %p33
    %p40 = scmp.eq.s32.totalorder %s12, 7
    %p41 = por %p39, %p40
    %p42 = scmp.ne.s32.totalorder %s34, %s37
    %p43 = scmp.eq.s32.totalorder %s12, 0
    %p44 = por %p42, %p43
    %p45 = scmp.ne.s32.totalorder %s34, %s37
    %p46 = scmp.eq.s32.totalorder %s17, 7
    %p47 = por %p45, %p46
    %p48 = scmp.ne.s32.totalorder %s37, %s38
    %p49 = scmp.eq.s32.totalorder %s17, 0
    %p50 = por %p48, %p49
    %p51 = scmp.ne.s32.totalorder %s37, %s38
    %p52 = scmp.eq.s32.totalorder %s18, 7
    %p53 = por %p51, %p52
    %p55 = scmp.ne.s32.totalorder %s38, %s54
    %p56 = scmp.eq.s32.totalorder %s18, 0
    %p57 = por %p55, %p56
    %s59 = sadd.s32 %s58, 1
    %p62 = scmp.eq.s32.totalorder %s12, 7
    %p63 = scmp.ne.s32.totalorder %s58, %s60
    %p64 = scmp.eq.s32.totalorder %s12, 0
    %p65 = por %p63, %p64
    %p66 = scmp.ne.s32.totalorder %s58, %s60
    %p67 = scmp.eq.s32.totalorder %s17, 7
    %p68 = por %p66, %p67
    %p69 = scmp.ne.s32.totalorder %s60, %s61
    %p70 = scmp.eq.s32.totalorder %s17, 0
    %p71 = por %p69, %p70
    %p72 = scmp.ne.s32.totalorder %s60, %s61
    %p73 = scmp.eq.s32.totalorder %s18, 7
    %p74 = por %p72, %p73
    %p76 = scmp.ne.s32.totalorder %s61, %s75
    %p77 = scmp.eq.s32.totalorder %s18, 0
    %p78 = por %p76, %p77
    %s80 = sadd.s32 %s79, 1
    %p83 = scmp.eq.s32.totalorder %s12, 7
    %p84 = scmp.ne.s32.totalorder %s79, %s81
    %p85 = scmp.eq.s32.totalorder %s12, 0
    %p86 = por %p84, %p85
    %p87 = scmp.ne.s32.totalorder %s79, %s81
    %p88 = scmp.eq.s32.totalorder %s17, 7
    %p89 = por %p87, %p88
    %p90 = scmp.ne.s32.totalorder %s81, %s82
    %p91 = scmp.eq.s32.totalorder %s17, 0
    %p92 = por %p90, %p91
    %p93 = scmp.ne.s32.totalorder %s81, %s82
    %p94 = scmp.eq.s32.totalorder %s18, 7
    %p95 = por %p93, %p94
    %p97 = scmp.ne.s32.totalorder %s82, %s96
    %p98 = scmp.eq.s32.totalorder %s18, 0
    %p99 = por %p97, %p98
    %s100 = ssub.s32 %s19, %s31
    %s101 = ssub.s32 %s20, %s27
    %s102 = sor.u32 %s100, %s101
    %p103 = scmp.eq.s32.totalorder %s102, 0
    %s105 = sadd.s32 %s104, 1
    %s106 = scalar_select %p103, %s104, %s105
    %p109 = pneg %p103
    %p110 = scmp.eq.s32.totalorder %s12, 7
    %p111 = por %p109, %p110
    %p112 = scmp.ne.s32.totalorder %s104, %s107
    %p113 = scmp.eq.s32.totalorder %s12, 0
    %p114 = por %p112, %p113
    %p115 = scmp.ne.s32.totalorder %s104, %s107
    %p116 = scmp.eq.s32.totalorder %s17, 7
    %p117 = por %p115, %p116
    %p118 = scmp.ne.s32.totalorder %s107, %s108
    %p119 = scmp.eq.s32.totalorder %s17, 0
    %p120 = por %p118, %p119
    %p121 = scmp.ne.s32.totalorder %s107, %s108
    %p122 = scmp.eq.s32.totalorder %s18, 7
    %p123 = por %p121, %p122
    %p125 = scmp.ne.s32.totalorder %s108, %s124
    %p126 = scmp.eq.s32.totalorder %s18, 0
    %p127 = por %p125, %p126
    %s129 = sadd.s32 %s128, 1
    %p132 = scmp.eq.s32.totalorder %s12, 7
    %p133 = scmp.ne.s32.totalorder %s128, %s130
    %p134 = scmp.eq.s32.totalorder %s12, 0
    %p135 = por %p133, %p134
    %p136 = scmp.ne.s32.totalorder %s128, %s130
    %p137 = scmp.eq.s32.totalorder %s17, 7
    %p138 = por %p136, %p137
    %p139 = scmp.ne.s32.totalorder %s130, %s131
    %p140 = scmp.eq.s32.totalorder %s17, 0
    %p141 = por %p139, %p140
    %p142 = scmp.ne.s32.totalorder %s130, %s131
    %p143 = scmp.eq.s32.totalorder %s18, 7
    %p144 = por %p142, %p143
    %p146 = scmp.ne.s32.totalorder %s131, %s145
    %p147 = scmp.eq.s32.totalorder %s18, 0
    %p148 = por %p146, %p147
    %s150 = sadd.s32 %s149, 1
    %p153 = scmp.eq.s32.totalorder %s12, 7
    %p154 = scmp.ne.s32.totalorder %s149, %s151
    %p155 = scmp.eq.s32.totalorder %s12, 0
    %p156 = por %p154, %p155
    %p157 = scmp.ne.s32.totalorder %s149, %s151
    %p158 = scmp.eq.s32.totalorder %s17, 7
    %p159 = por %p157, %p158
    %p160 = scmp.ne.s32.totalorder %s151, %s152
    %p161 = scmp.eq.s32.totalorder %s17, 0
    %p162 = por %p160, %p161
    %p163 = scmp.ne.s32.totalorder %s151, %s152
    %p164 = scmp.eq.s32.totalorder %s18, 7
    %p165 = por %p163, %p164
    %p167 = scmp.ne.s32.totalorder %s152, %s166
    %p168 = scmp.eq.s32.totalorder %s18, 0
    %p169 = por %p167, %p168
    %p170 = scmp.le.s32.totalorder 1, %s12
    %p171 = scmp.lt.s32.totalorder %s12, 9
    %p172 = pnand %p170, %p171
    %p173 = pneg %p172
    // Predicated region
    $region9: #{_lambda_.11} parent=5 // pred_check
      _
    $region10: #{_lambda_.11} parent=5 // pred_check_branch
      %175 = sbr.rel (%p172) target = $region12
    $region11: #{_lambda_.11} parent=5 // pred_region
      %s176 = ssub.s32 %s12, 1
      // Predicated region
      $region13: #{_lambda_.11} parent=11 // pred_check
        %p177 = pneg %p71
      $region14: #{_lambda_.11} parent=11 // pred_check_branch
        %179 = sbr.rel (%p177) target = $region16
      $region15: #{_lambda_.11} parent=11 // pred_region
        _
      $region16: #{_lambda_.11} parent=11 // pred_fallthru
        _
      // Predicated region
      $region17: #{_lambda_.11} parent=11 // pred_check
        %p180 = pneg %p92
      $region18: #{_lambda_.11} parent=11 // pred_check_branch
        %182 = sbr.rel (%p180) target = $region20
      $region19: #{_lambda_.11} parent=11 // pred_region
        _
      $region20: #{_lambda_.11} parent=11 // pred_fallthru
        _
    $region12: #{_lambda_.11} parent=5 // pred_fallthru
      _
    %p183 = scmp.lt.s32.totalorder %s12, 8
    // Predicated region
    $region21: #{_lambda_.11} parent=5 // pred_check
      %p184 = pneg %p183
    $region22: #{_lambda_.11} parent=5 // pred_check_branch
      %186 = sbr.rel (%p184) target = $region24
    $region23: #{_lambda_.11} parent=5 // pred_region
      // Predicated region
      $region25: #{_lambda_.11} parent=23 // pred_check
        %p187 = pneg %p44
      $region26: #{_lambda_.11} parent=23 // pred_check_branch
        %189 = sbr.rel (%p187) target = $region28
      $region27: #{_lambda_.11} parent=23 // pred_region
        %p190 = scmp.lt.s32.totalorder %s19, 1
        %s191 = scalar_select %p190, %s19, 1
        %s192 = smul.addr %s191, 20
        %s193 = smul.addr %s192, 4
        %s194 = scalar_lea.vmem %s0, %s193
      $region28: #{_lambda_.11} parent=23 // pred_fallthru
        _
    $region24: #{_lambda_.11} parent=5 // pred_fallthru
      _
    %p195 = scmp.le.s32.totalorder 1, %s12
    %p196 = scmp.lt.s32.totalorder %s12, 9
    %p197 = pnand %p195, %p196
    %p198 = pneg %p197
    // Predicated region
    $region29: #{_lambda_.11} parent=5 // pred_check
      _
    $region30: #{_lambda_.11} parent=5 // pred_check_branch
      %200 = sbr.rel (%p197) target = $region32
    $region31: #{_lambda_.11} parent=5 // pred_region
      %s201 = ssub.s32 %s12, 1
      %p202 = scmp.lt.s32.totalorder %s21, 1
      %s203 = scalar_select %p202, %s21, 1
      %s204 = smul.addr %s203, 20
      %s205 = smul.addr %s204, 4
      %s206 = scalar_lea.vmem %s0, %s205
      %p207 = pneg %p50
      %p208 = pneg %p47
      %p209 = pneg %p71
      %p210 = pneg %p68
      %p211 = pneg %p92
      %p212 = pneg %p89
      %p213 = pneg %p120
      %p214 = pneg %p117
      %p215 = scmp.lt.s32.totalorder %s21, 1
      %s216 = scalar_select %p215, %s21, 1
      %p217 = scmp.lt.s32.totalorder %s22, 3
      %s218 = scalar_select %p217, %s22, 3
      %s219 = smul.addr %s216, 4
      %s220 = sadd.s32 %s218, %s219
      %s221 = smul.addr %s220, 4
      %s222 = scalar_lea.vmem %s3, %s221
      %p223 = pneg %p141
      %p224 = pneg %p138
      %p225 = pneg %p162
      %p226 = pneg %p159
      %p227 = scmp.lt.s32.totalorder %s21, 1
      %s228 = scalar_select %p227, %s21, 1
      %s229 = smul.addr %s228, 20
      %s230 = smul.addr %s229, 4
      %s231 = scalar_lea.vmem %s0, %s230
      %p232 = scmp.lt.s32.totalorder %s21, 1
      %s233 = scalar_select %p232, %s21, 1
      %p234 = scmp.lt.s32.totalorder %s22, 3
      %s235 = scalar_select %p234, %s22, 3
      %s236 = smul.addr %s233, 4
      %s237 = sadd.s32 %s235, %s236
      %s238 = smul.addr %s237, 4
      %s239 = scalar_lea.vmem %s3, %s238
      %s241 = smul.u32 %s22, 4
      %s242 = smul.addr %s241, 4
      %s243 = scalar_lea.vmem %s231, %s242
      %v244 = vld [vmem:[%s243] sm:$0x33]
      %v245 = vld [vmem:[%s243 + $0x8] sm:$0x33]
      %v246 = vld [vmem:[%s1] sm:$0xf]
      %v247 = vld [vmem:[%s1 + $0x4] sm:$0xf]
      %v248 = vld [vmem:[%s1 + $0x8] sm:$0xf]
      %v249 = vld [vmem:[%s1 + $0xc] sm:$0xf]
      %v250 = vld [vmem:[%s1 + $0x10] sm:$0xf]
      %v251 = vld [vmem:[%s1 + $0x14] sm:$0xf]
      %v252 = vld [vmem:[%s1 + $0x18] sm:$0xf]
      %v253 = vld [vmem:[%s1 + $0x1c] sm:$0xf]
      %v254 = vld [vmem:[%s1 + $0x20] sm:$0xf]
      %v255 = vld [vmem:[%s1 + $0x24] sm:$0xf]
      %v256 = vld [vmem:[%s1 + $0x28] sm:$0xf]
      %v257 = vld [vmem:[%s1 + $0x2c] sm:$0xf]
      %v258 = vld [vmem:[%s1 + $0x30] sm:$0xf]
      %v259 = vld [vmem:[%s1 + $0x34] sm:$0xf]
      %v260 = vld [vmem:[%s1 + $0x38] sm:$0xf]
      %v261 = vld [vmem:[%s1 + $0x3c] sm:$0xf]
      %v262 = vld [vmem:[%s1 + $0x40] sm:$0xf]
      %v263 = vld [vmem:[%s1 + $0x44] sm:$0xf]
      %v264 = vld [vmem:[%s1 + $0x48] sm:$0xf]
      %v265 = vld [vmem:[%s1 + $0x4c] sm:$0xf]
      %v266 = vld [vmem:[%s1 + $0x50] sm:$0xf]
      %v267 = vld [vmem:[%s1 + $0x54] sm:$0xf]
      %v268 = vld [vmem:[%s1 + $0x58] sm:$0xf]
      %v269 = vld [vmem:[%s1 + $0x5c] sm:$0xf]
      %v270 = vld [vmem:[%s1 + $0x60] sm:$0xf]
      %v271 = vld [vmem:[%s1 + $0x64] sm:$0xf]
      %v272 = vld [vmem:[%s1 + $0x68] sm:$0xf]
      %v273 = vld [vmem:[%s1 + $0x6c] sm:$0xf]
      %v274 = vld [vmem:[%s1 + $0x70] sm:$0xf]
      %v275 = vld [vmem:[%s1 + $0x74] sm:$0xf]
      %v276 = vld [vmem:[%s1 + $0x78] sm:$0xf]
      %v277 = vld [vmem:[%s1 + $0x7c] sm:$0xf]
      %v278 = vld [vmem:[%s1 + $0x80] sm:$0xf]
      %v279 = vld [vmem:[%s1 + $0x84] sm:$0xf]
      %v280 = vld [vmem:[%s1 + $0x88] sm:$0xf]
      %v281 = vld [vmem:[%s1 + $0x8c] sm:$0xf]
      %v282 = vld [vmem:[%s1 + $0x90] sm:$0xf]
      %v283 = vld [vmem:[%s1 + $0x94] sm:$0xf]
      %v284 = vld [vmem:[%s1 + $0x98] sm:$0xf]
      %v285 = vld [vmem:[%s1 + $0x9c] sm:$0xf]
      %v286 = vld [vmem:[%s1 + $0xa0] sm:$0xf]
      %v287 = vld [vmem:[%s1 + $0xa4] sm:$0xf]
      %v288 = vld [vmem:[%s1 + $0xa8] sm:$0xf]
      %v289 = vld [vmem:[%s1 + $0xac] sm:$0xf]
      %v290 = vld [vmem:[%s1 + $0xb0] sm:$0xf]
      %v291 = vld [vmem:[%s1 + $0xb4] sm:$0xf]
      %v292 = vld [vmem:[%s1 + $0xb8] sm:$0xf]
      %v293 = vld [vmem:[%s1 + $0xbc] sm:$0xf]
      %v294 = vld [vmem:[%s1 + $0xc0] sm:$0xf]
      %v295 = vld [vmem:[%s1 + $0xc4] sm:$0xf]
      %v296 = vld [vmem:[%s1 + $0xc8] sm:$0xf]
      %v297 = vld [vmem:[%s1 + $0xcc] sm:$0xf]
      %v298 = vld [vmem:[%s1 + $0xd0] sm:$0xf]
      %v299 = vld [vmem:[%s1 + $0xd4] sm:$0xf]
      %v300 = vld [vmem:[%s1 + $0xd8] sm:$0xf]
      %v301 = vld [vmem:[%s1 + $0xdc] sm:$0xf]
      %v302 = vld [vmem:[%s1 + $0xe0] sm:$0xf]
      %v303 = vld [vmem:[%s1 + $0xe4] sm:$0xf]
      %v304 = vld [vmem:[%s1 + $0xe8] sm:$0xf]
      %v305 = vld [vmem:[%s1 + $0xec] sm:$0xf]
      %v306 = vld [vmem:[%s1 + $0xf0] sm:$0xf]
      %v307 = vld [vmem:[%s1 + $0xf4] sm:$0xf]
      %v308 = vld [vmem:[%s1 + $0xf8] sm:$0xf]
      %v309 = vld [vmem:[%s1 + $0xfc] sm:$0xf]
      %v310 = vld [vmem:[%s243] sm:$0x77]
      %v311 = vld [vmem:[%s243 + $0x8] sm:$0x77]
      %s312 = scalar_lea.vmem %s1, 256
      %v313 = vld [vmem:[%s312] sm:$0xf]
      %v314 = vld [vmem:[%s312 + $0x4] sm:$0xf]
      %v315 = vld [vmem:[%s312 + $0x8] sm:$0xf]
      %v316 = vld [vmem:[%s312 + $0xc] sm:$0xf]
      %v317 = vld [vmem:[%s312 + $0x10] sm:$0xf]
      %v318 = vld [vmem:[%s312 + $0x14] sm:$0xf]
      %v319 = vld [vmem:[%s312 + $0x18] sm:$0xf]
      %v320 = vld [vmem:[%s312 + $0x1c] sm:$0xf]
      %v321 = vld [vmem:[%s312 + $0x20] sm:$0xf]
      %v322 = vld [vmem:[%s312 + $0x24] sm:$0xf]
      %v323 = vld [vmem:[%s312 + $0x28] sm:$0xf]
      %v324 = vld [vmem:[%s312 + $0x2c] sm:$0xf]
      %v325 = vld [vmem:[%s312 + $0x30] sm:$0xf]
      %v326 = vld [vmem:[%s312 + $0x34] sm:$0xf]
      %v327 = vld [vmem:[%s312 + $0x38] sm:$0xf]
      %v328 = vld [vmem:[%s312 + $0x3c] sm:$0xf]
      %v329 = vld [vmem:[%s312 + $0x40] sm:$0xf]
      %v330 = vld [vmem:[%s312 + $0x44] sm:$0xf]
      %v331 = vld [vmem:[%s312 + $0x48] sm:$0xf]
      %v332 = vld [vmem:[%s312 + $0x4c] sm:$0xf]
      %v333 = vld [vmem:[%s312 + $0x50] sm:$0xf]
      %v334 = vld [vmem:[%s312 + $0x54] sm:$0xf]
      %v335 = vld [vmem:[%s312 + $0x58] sm:$0xf]
      %v336 = vld [vmem:[%s312 + $0x5c] sm:$0xf]
      %v337 = vld [vmem:[%s312 + $0x60] sm:$0xf]
      %v338 = vld [vmem:[%s312 + $0x64] sm:$0xf]
      %v339 = vld [vmem:[%s312 + $0x68] sm:$0xf]
      %v340 = vld [vmem:[%s312 + $0x6c] sm:$0xf]
      %v341 = vld [vmem:[%s312 + $0x70] sm:$0xf]
      %v342 = vld [vmem:[%s312 + $0x74] sm:$0xf]
      %v343 = vld [vmem:[%s312 + $0x78] sm:$0xf]
      %v344 = vld [vmem:[%s312 + $0x7c] sm:$0xf]
      %v345 = vld [vmem:[%s312 + $0x80] sm:$0xf]
      %v346 = vld [vmem:[%s312 + $0x84] sm:$0xf]
      %v347 = vld [vmem:[%s312 + $0x88] sm:$0xf]
      %v348 = vld [vmem:[%s312 + $0x8c] sm:$0xf]
      %v349 = vld [vmem:[%s312 + $0x90] sm:$0xf]
      %v350 = vld [vmem:[%s312 + $0x94] sm:$0xf]
      %v351 = vld [vmem:[%s312 + $0x98] sm:$0xf]
      %v352 = vld [vmem:[%s312 + $0x9c] sm:$0xf]
      %v353 = vld [vmem:[%s312 + $0xa0] sm:$0xf]
      %v354 = vld [vmem:[%s312 + $0xa4] sm:$0xf]
      %v355 = vld [vmem:[%s312 + $0xa8] sm:$0xf]
      %v356 = vld [vmem:[%s312 + $0xac] sm:$0xf]
      %v357 = vld [vmem:[%s312 + $0xb0] sm:$0xf]
      %v358 = vld [vmem:[%s312 + $0xb4] sm:$0xf]
      %v359 = vld [vmem:[%s312 + $0xb8] sm:$0xf]
      %v360 = vld [vmem:[%s312 + $0xbc] sm:$0xf]
      %v361 = vld [vmem:[%s312 + $0xc0] sm:$0xf]
      %v362 = vld [vmem:[%s312 + $0xc4] sm:$0xf]
      %v363 = vld [vmem:[%s312 + $0xc8] sm:$0xf]
      %v364 = vld [vmem:[%s312 + $0xcc] sm:$0xf]
      %v365 = vld [vmem:[%s312 + $0xd0] sm:$0xf]
      %v366 = vld [vmem:[%s312 + $0xd4] sm:$0xf]
      %v367 = vld [vmem:[%s312 + $0xd8] sm:$0xf]
      %v368 = vld [vmem:[%s312 + $0xdc] sm:$0xf]
      %v369 = vld [vmem:[%s312 + $0xe0] sm:$0xf]
      %v370 = vld [vmem:[%s312 + $0xe4] sm:$0xf]
      %v371 = vld [vmem:[%s312 + $0xe8] sm:$0xf]
      %v372 = vld [vmem:[%s312 + $0xec] sm:$0xf]
      %v373 = vld [vmem:[%s312 + $0xf0] sm:$0xf]
      %v374 = vld [vmem:[%s312 + $0xf4] sm:$0xf]
      %v375 = vld [vmem:[%s312 + $0xf8] sm:$0xf]
      %v376 = vld [vmem:[%s312 + $0xfc] sm:$0xf]
      %v379 = vunpack.c.l.b16 %v310
      %v380 = vunpack.c.h.b16 %v310
      %v381 = vunpack.c.l.b16 %v311
      %v382 = vunpack.c.h.b16 %v311
      %v383 = vpack.c.b16 %v379, %v379
      %v384 = vpack.c.b16 %v380, %v380
      %v385 = vpack.c.b16 %v381, %v381
      %v386 = vpack.c.b16 %v382, %v382
      %v388 = vshrl.u32 %v383, 16
      %v390 = vshll.u32 %v383, 16
      %v392 = vrot.slane %v390, 1
      %v393 = vor.u32 %v388, %v392
      %v395 = vshrl.u32 %v384, 16
      %v397 = vshll.u32 %v384, 16
      %v399 = vrot.slane %v397, 1
      %v400 = vor.u32 %v395, %v399
      %v402 = vshrl.u32 %v385, 16
      %v404 = vshll.u32 %v385, 16
      %v406 = vrot.slane %v404, 1
      %v407 = vor.u32 %v402, %v406
      %v409 = vshrl.u32 %v386, 16
      %v411 = vshll.u32 %v386, 16
      %v413 = vrot.slane %v411, 1
      %v414 = vor.u32 %v409, %v413
      %v483 = vunpack.c.l.b16 %v313
      %v484 = vunpack.c.l.b16 %v314
      %v485 = vunpack.c.l.b16 %v315
      %v486 = vunpack.c.l.b16 %v316
      %v487 = vunpack.c.l.b16 %v317
      %v488 = vunpack.c.l.b16 %v318
      %v489 = vunpack.c.l.b16 %v319
      %v490 = vunpack.c.l.b16 %v320
      %v491 = vunpack.c.l.b16 %v321
      %v492 = vunpack.c.l.b16 %v322
      %v493 = vunpack.c.l.b16 %v323
      %v494 = vunpack.c.l.b16 %v324
      %v495 = vunpack.c.l.b16 %v325
      %v496 = vunpack.c.l.b16 %v326
      %v497 = vunpack.c.l.b16 %v327
      %v498 = vunpack.c.l.b16 %v328
      %v499 = vunpack.c.l.b16 %v329
      %v500 = vunpack.c.l.b16 %v330
      %v501 = vunpack.c.l.b16 %v331
      %v502 = vunpack.c.l.b16 %v332
      %v503 = vunpack.c.l.b16 %v333
      %v504 = vunpack.c.l.b16 %v334
      %v505 = vunpack.c.l.b16 %v335
      %v506 = vunpack.c.l.b16 %v336
      %v507 = vunpack.c.l.b16 %v337
      %v508 = vunpack.c.l.b16 %v338
      %v509 = vunpack.c.l.b16 %v339
      %v510 = vunpack.c.l.b16 %v340
      %v511 = vunpack.c.l.b16 %v341
      %v512 = vunpack.c.l.b16 %v342
      %v513 = vunpack.c.l.b16 %v343
      %v514 = vunpack.c.l.b16 %v344
      %v515 = vunpack.c.l.b16 %v345
      %v516 = vunpack.c.l.b16 %v346
      %v517 = vunpack.c.l.b16 %v347
      %v518 = vunpack.c.l.b16 %v348
      %v519 = vunpack.c.l.b16 %v349
      %v520 = vunpack.c.l.b16 %v350
      %v521 = vunpack.c.l.b16 %v351
      %v522 = vunpack.c.l.b16 %v352
      %v523 = vunpack.c.l.b16 %v353
      %v524 = vunpack.c.l.b16 %v354
      %v525 = vunpack.c.l.b16 %v355
      %v526 = vunpack.c.l.b16 %v356
      %v527 = vunpack.c.l.b16 %v357
      %v528 = vunpack.c.l.b16 %v358
      %v529 = vunpack.c.l.b16 %v359
      %v530 = vunpack.c.l.b16 %v360
      %v531 = vunpack.c.l.b16 %v361
      %v532 = vunpack.c.l.b16 %v362
      %v533 = vunpack.c.l.b16 %v363
      %v534 = vunpack.c.l.b16 %v364
      %v535 = vunpack.c.l.b16 %v365
      %v536 = vunpack.c.l.b16 %v366
      %v537 = vunpack.c.l.b16 %v367
      %v538 = vunpack.c.l.b16 %v368
      %v539 = vunpack.c.l.b16 %v369
      %v540 = vunpack.c.l.b16 %v370
      %v541 = vunpack.c.l.b16 %v371
      %v542 = vunpack.c.l.b16 %v372
      %v543 = vunpack.c.l.b16 %v373
      %v544 = vunpack.c.l.b16 %v374
      %v545 = vunpack.c.l.b16 %v375
      %v546 = vunpack.c.l.b16 %v376
      %v547 = vpack.c.b16 %v484, %v483
      %v548 = vpack.c.b16 %v486, %v485
      %v549 = vpack.c.b16 %v488, %v487
      %v550 = vpack.c.b16 %v490, %v489
      %v551 = vpack.c.b16 %v492, %v491
      %v552 = vpack.c.b16 %v494, %v493
      %v553 = vpack.c.b16 %v496, %v495
      %v554 = vpack.c.b16 %v498, %v497
      %v555 = vpack.c.b16 %v500, %v499
      %v556 = vpack.c.b16 %v502, %v501
      %v557 = vpack.c.b16 %v504, %v503
      %v558 = vpack.c.b16 %v506, %v505
      %v559 = vpack.c.b16 %v508, %v507
      %v560 = vpack.c.b16 %v510, %v509
      %v561 = vpack.c.b16 %v512, %v511
      %v562 = vpack.c.b16 %v514, %v513
      %v563 = vpack.c.b16 %v516, %v515
      %v564 = vpack.c.b16 %v518, %v517
      %v565 = vpack.c.b16 %v520, %v519
      %v566 = vpack.c.b16 %v522, %v521
      %v567 = vpack.c.b16 %v524, %v523
      %v568 = vpack.c.b16 %v526, %v525
      %v569 = vpack.c.b16 %v528, %v527
      %v570 = vpack.c.b16 %v530, %v529
      %v571 = vpack.c.b16 %v532, %v531
      %v572 = vpack.c.b16 %v534, %v533
      %v573 = vpack.c.b16 %v536, %v535
      %v574 = vpack.c.b16 %v538, %v537
      %v575 = vpack.c.b16 %v540, %v539
      %v576 = vpack.c.b16 %v542, %v541
      %v577 = vpack.c.b16 %v544, %v543
      %v578 = vpack.c.b16 %v546, %v545
      %611 = vmatprep.subr.bf16.mxu0 0
      %612 = vmatpush1.bf16.msra.mxu0 %v554
      %613 = vmatprep.subr.bf16.mxu0 0
      %614 = vmatpush1.bf16.msra.mxu0 %v553
      %615 = vmatprep.subr.bf16.mxu0 0
      %616 = vmatpush1.bf16.msra.mxu0 %v552
      %617 = vmatprep.subr.bf16.mxu0 0
      %618 = vmatpush1.bf16.msra.mxu0 %v551
      %619 = vmatprep.subr.bf16.mxu0 0
      %620 = vmatpush1.bf16.msra.mxu0 %v550
      %621 = vmatprep.subr.bf16.mxu0 0
      %622 = vmatpush1.bf16.msra.mxu0 %v549
      %623 = vmatprep.subr.bf16.mxu0 0
      %624 = vmatpush1.bf16.msra.mxu0 %v548
      %625 = vmatprep.subr.bf16.mxu0 0
      %626 = vmatpush1.bf16.msra.mxu0 %v547
      %627 = vmatprep.subr.bf16.mxu0 0
      %628 = vmatpush2.bf16.msra.mxu0 %v562
      %629 = vmatprep.subr.bf16.mxu0 0
      %630 = vmatpush2.bf16.msra.mxu0 %v561
      %631 = vmatprep.subr.bf16.mxu0 0
      %632 = vmatpush2.bf16.msra.mxu0 %v560
      %633 = vmatprep.subr.bf16.mxu0 0
      %634 = vmatpush2.bf16.msra.mxu0 %v559
      %635 = vmatprep.subr.bf16.mxu0 0
      %636 = vmatpush2.bf16.msra.mxu0 %v558
      %637 = vmatprep.subr.bf16.mxu0 0
      %638 = vmatpush2.bf16.msra.mxu0 %v557
      %639 = vmatprep.subr.bf16.mxu0 0
      %640 = vmatpush2.bf16.msra.mxu0 %v556
      %641 = vmatprep.subr.bf16.mxu0 0
      %642 = vmatpush2.bf16.msra.mxu0 %v555
      %643 = vmatprep.mubr.bf16.mxu0 %v400
      %644 = vmatmul.mubr.bf16.gmra.mxu0 %v393
      %v645 = vpop.f32.mrf.mxu0
      %v646 = vadd.f32 0.0, %v645
      %v647 = vpop.f32.mrf.mxu0
      %v648 = vpop.f32.mrf.mxu0
      %v649 = vpop.f32.mrf.mxu0
      %650 = vdwg.mxu0
      %651 = vmatprep.subr.bf16.mxu0 0
      %652 = vmatpush1.bf16.msra.mxu0 %v570
      %653 = vmatprep.subr.bf16.mxu0 0
      %654 = vmatpush1.bf16.msra.mxu0 %v569
      %655 = vmatprep.subr.bf16.mxu0 0
      %656 = vmatpush1.bf16.msra.mxu0 %v568
      %657 = vmatprep.subr.bf16.mxu0 0
      %658 = vmatpush1.bf16.msra.mxu0 %v567
      %659 = vmatprep.subr.bf16.mxu0 0
      %660 = vmatpush1.bf16.msra.mxu0 %v566
      %661 = vmatprep.subr.bf16.mxu0 0
      %662 = vmatpush1.bf16.msra.mxu0 %v565
      %663 = vmatprep.subr.bf16.mxu0 0
      %664 = vmatpush1.bf16.msra.mxu0 %v564
      %665 = vmatprep.subr.bf16.mxu0 0
      %666 = vmatpush1.bf16.msra.mxu0 %v563
      %667 = vmatprep.subr.bf16.mxu0 0
      %668 = vmatpush2.bf16.msra.mxu0 %v578
      %669 = vmatprep.subr.bf16.mxu0 0
      %670 = vmatpush2.bf16.msra.mxu0 %v577
      %671 = vmatprep.subr.bf16.mxu0 0
      %672 = vmatpush2.bf16.msra.mxu0 %v576
      %673 = vmatprep.subr.bf16.mxu0 0
      %674 = vmatpush2.bf16.msra.mxu0 %v575
      %675 = vmatprep.subr.bf16.mxu0 0
      %676 = vmatpush2.bf16.msra.mxu0 %v574
      %677 = vmatprep.subr.bf16.mxu0 0
      %678 = vmatpush2.bf16.msra.mxu0 %v573
      %679 = vmatprep.subr.bf16.mxu0 0
      %680 = vmatpush2.bf16.msra.mxu0 %v572
      %681 = vmatprep.subr.bf16.mxu0 0
      %682 = vmatpush2.bf16.msra.mxu0 %v571
      %683 = vmatprep.mubr.bf16.mxu0 %v414
      %684 = vmatmul.mubr.bf16.gmra.mxu0 %v407
      %v685 = vpop.f32.mrf.mxu0
      %v686 = vadd.f32 %v646, %v685
      %v687 = vpop.f32.mrf.mxu0
      %v688 = vpop.f32.mrf.mxu0
      %v689 = vpop.f32.mrf.mxu0
      %690 = vdwg.mxu0
      %v693 = vunpack.c.l.b16 %v244
      %v694 = vunpack.c.h.b16 %v244
      %v695 = vunpack.c.l.b16 %v245
      %v696 = vunpack.c.h.b16 %v245
      %v697 = vpack.c.b16 %v693, %v693
      %v698 = vpack.c.b16 %v694, %v694
      %v699 = vpack.c.b16 %v695, %v695
      %v700 = vpack.c.b16 %v696, %v696
      %v769 = vunpack.c.l.b16 %v246
      %v770 = vunpack.c.l.b16 %v247
      %v771 = vunpack.c.l.b16 %v248
      %v772 = vunpack.c.l.b16 %v249
      %v773 = vunpack.c.l.b16 %v250
      %v774 = vunpack.c.l.b16 %v251
      %v775 = vunpack.c.l.b16 %v252
      %v776 = vunpack.c.l.b16 %v253
      %v777 = vunpack.c.l.b16 %v254
      %v778 = vunpack.c.l.b16 %v255
      %v779 = vunpack.c.l.b16 %v256
      %v780 = vunpack.c.l.b16 %v257
      %v781 = vunpack.c.l.b16 %v258
      %v782 = vunpack.c.l.b16 %v259
      %v783 = vunpack.c.l.b16 %v260
      %v784 = vunpack.c.l.b16 %v261
      %v785 = vunpack.c.l.b16 %v262
      %v786 = vunpack.c.l.b16 %v263
      %v787 = vunpack.c.l.b16 %v264
      %v788 = vunpack.c.l.b16 %v265
      %v789 = vunpack.c.l.b16 %v266
      %v790 = vunpack.c.l.b16 %v267
      %v791 = vunpack.c.l.b16 %v268
      %v792 = vunpack.c.l.b16 %v269
      %v793 = vunpack.c.l.b16 %v270
      %v794 = vunpack.c.l.b16 %v271
      %v795 = vunpack.c.l.b16 %v272
      %v796 = vunpack.c.l.b16 %v273
      %v797 = vunpack.c.l.b16 %v274
      %v798 = vunpack.c.l.b16 %v275
      %v799 = vunpack.c.l.b16 %v276
      %v800 = vunpack.c.l.b16 %v277
      %v801 = vunpack.c.l.b16 %v278
      %v802 = vunpack.c.l.b16 %v279
      %v803 = vunpack.c.l.b16 %v280
      %v804 = vunpack.c.l.b16 %v281
      %v805 = vunpack.c.l.b16 %v282
      %v806 = vunpack.c.l.b16 %v283
      %v807 = vunpack.c.l.b16 %v284
      %v808 = vunpack.c.l.b16 %v285
      %v809 = vunpack.c.l.b16 %v286
      %v810 = vunpack.c.l.b16 %v287
      %v811 = vunpack.c.l.b16 %v288
      %v812 = vunpack.c.l.b16 %v289
      %v813 = vunpack.c.l.b16 %v290
      %v814 = vunpack.c.l.b16 %v291
      %v815 = vunpack.c.l.b16 %v292
      %v816 = vunpack.c.l.b16 %v293
      %v817 = vunpack.c.l.b16 %v294
      %v818 = vunpack.c.l.b16 %v295
      %v819 = vunpack.c.l.b16 %v296
      %v820 = vunpack.c.l.b16 %v297
      %v821 = vunpack.c.l.b16 %v298
      %v822 = vunpack.c.l.b16 %v299
      %v823 = vunpack.c.l.b16 %v300
      %v824 = vunpack.c.l.b16 %v301
      %v825 = vunpack.c.l.b16 %v302
      %v826 = vunpack.c.l.b16 %v303
      %v827 = vunpack.c.l.b16 %v304
      %v828 = vunpack.c.l.b16 %v305
      %v829 = vunpack.c.l.b16 %v306
      %v830 = vunpack.c.l.b16 %v307
      %v831 = vunpack.c.l.b16 %v308
      %v832 = vunpack.c.l.b16 %v309
      %v833 = vpack.c.b16 %v770, %v769
      %v834 = vpack.c.b16 %v772, %v771
      %v835 = vpack.c.b16 %v774, %v773
      %v836 = vpack.c.b16 %v776, %v775
      %v837 = vpack.c.b16 %v778, %v777
      %v838 = vpack.c.b16 %v780, %v779
      %v839 = vpack.c.b16 %v782, %v781
      %v840 = vpack.c.b16 %v784, %v783
      %v841 = vpack.c.b16 %v786, %v785
      %v842 = vpack.c.b16 %v788, %v787
      %v843 = vpack.c.b16 %v790, %v789
      %v844 = vpack.c.b16 %v792, %v791
      %v845 = vpack.c.b16 %v794, %v793
      %v846 = vpack.c.b16 %v796, %v795
      %v847 = vpack.c.b16 %v798, %v797
      %v848 = vpack.c.b16 %v800, %v799
      %v849 = vpack.c.b16 %v802, %v801
      %v850 = vpack.c.b16 %v804, %v803
      %v851 = vpack.c.b16 %v806, %v805
      %v852 = vpack.c.b16 %v808, %v807
      %v853 = vpack.c.b16 %v810, %v809
      %v854 = vpack.c.b16 %v812, %v811
      %v855 = vpack.c.b16 %v814, %v813
      %v856 = vpack.c.b16 %v816, %v815
      %v857 = vpack.c.b16 %v818, %v817
      %v858 = vpack.c.b16 %v820, %v819
      %v859 = vpack.c.b16 %v822, %v821
      %v860 = vpack.c.b16 %v824, %v823
      %v861 = vpack.c.b16 %v826, %v825
      %v862 = vpack.c.b16 %v828, %v827
      %v863 = vpack.c.b16 %v830, %v829
      %v864 = vpack.c.b16 %v832, %v831
      %897 = vmatprep.subr.bf16.mxu0 0
      %898 = vmatpush1.bf16.msra.mxu0 %v840
      %899 = vmatprep.subr.bf16.mxu0 0
      %900 = vmatpush1.bf16.msra.mxu0 %v839
      %901 = vmatprep.subr.bf16.mxu0 0
      %902 = vmatpush1.bf16.msra.mxu0 %v838
      %903 = vmatprep.subr.bf16.mxu0 0
      %904 = vmatpush1.bf16.msra.mxu0 %v837
      %905 = vmatprep.subr.bf16.mxu0 0
      %906 = vmatpush1.bf16.msra.mxu0 %v836
      %907 = vmatprep.subr.bf16.mxu0 0
      %908 = vmatpush1.bf16.msra.mxu0 %v835
      %909 = vmatprep.subr.bf16.mxu0 0
      %910 = vmatpush1.bf16.msra.mxu0 %v834
      %911 = vmatprep.subr.bf16.mxu0 0
      %912 = vmatpush1.bf16.msra.mxu0 %v833
      %913 = vmatprep.subr.bf16.mxu0 0
      %914 = vmatpush2.bf16.msra.mxu0 %v848
      %915 = vmatprep.subr.bf16.mxu0 0
      %916 = vmatpush2.bf16.msra.mxu0 %v847
      %917 = vmatprep.subr.bf16.mxu0 0
      %918 = vmatpush2.bf16.msra.mxu0 %v846
      %919 = vmatprep.subr.bf16.mxu0 0
      %920 = vmatpush2.bf16.msra.mxu0 %v845
      %921 = vmatprep.subr.bf16.mxu0 0
      %922 = vmatpush2.bf16.msra.mxu0 %v844
      %923 = vmatprep.subr.bf16.mxu0 0
      %924 = vmatpush2.bf16.msra.mxu0 %v843
      %925 = vmatprep.subr.bf16.mxu0 0
      %926 = vmatpush2.bf16.msra.mxu0 %v842
      %927 = vmatprep.subr.bf16.mxu0 0
      %928 = vmatpush2.bf16.msra.mxu0 %v841
      %929 = vmatprep.mubr.bf16.mxu0 %v698
      %930 = vmatmul.mubr.bf16.gmra.mxu0 %v697
      %v931 = vpop.f32.mrf.mxu0
      %v932 = vadd.f32 %v686, %v931
      %v933 = vpop.f32.mrf.mxu0
      %v934 = vpop.f32.mrf.mxu0
      %v935 = vpop.f32.mrf.mxu0
      %936 = vdwg.mxu0
      %937 = vmatprep.subr.bf16.mxu0 0
      %938 = vmatpush1.bf16.msra.mxu0 %v856
      %939 = vmatprep.subr.bf16.mxu0 0
      %940 = vmatpush1.bf16.msra.mxu0 %v855
      %941 = vmatprep.subr.bf16.mxu0 0
      %942 = vmatpush1.bf16.msra.mxu0 %v854
      %943 = vmatprep.subr.bf16.mxu0 0
      %944 = vmatpush1.bf16.msra.mxu0 %v853
      %945 = vmatprep.subr.bf16.mxu0 0
      %946 = vmatpush1.bf16.msra.mxu0 %v852
      %947 = vmatprep.subr.bf16.mxu0 0
      %948 = vmatpush1.bf16.msra.mxu0 %v851
      %949 = vmatprep.subr.bf16.mxu0 0
      %950 = vmatpush1.bf16.msra.mxu0 %v850
      %951 = vmatprep.subr.bf16.mxu0 0
      %952 = vmatpush1.bf16.msra.mxu0 %v849
      %953 = vmatprep.subr.bf16.mxu0 0
      %954 = vmatpush2.bf16.msra.mxu0 %v864
      %955 = vmatprep.subr.bf16.mxu0 0
      %956 = vmatpush2.bf16.msra.mxu0 %v863
      %957 = vmatprep.subr.bf16.mxu0 0
      %958 = vmatpush2.bf16.msra.mxu0 %v862
      %959 = vmatprep.subr.bf16.mxu0 0
      %960 = vmatpush2.bf16.msra.mxu0 %v861
      %961 = vmatprep.subr.bf16.mxu0 0
      %962 = vmatpush2.bf16.msra.mxu0 %v860
      %963 = vmatprep.subr.bf16.mxu0 0
      %964 = vmatpush2.bf16.msra.mxu0 %v859
      %965 = vmatprep.subr.bf16.mxu0 0
      %966 = vmatpush2.bf16.msra.mxu0 %v858
      %967 = vmatprep.subr.bf16.mxu0 0
      %968 = vmatpush2.bf16.msra.mxu0 %v857
      %969 = vmatprep.mubr.bf16.mxu0 %v700
      %970 = vmatmul.mubr.bf16.gmra.mxu0 %v699
      %v971 = vpop.f32.mrf.mxu0
      %v972 = vadd.f32 %v932, %v971
      %v973 = vpop.f32.mrf.mxu0
      %v974 = vpop.f32.mrf.mxu0
      %v975 = vpop.f32.mrf.mxu0
      %976 = vdwg.mxu0
      %s977 = sadd.s32 %s22, 1
      %s978 = smul.u32 %s977, 4
      %s979 = smul.addr %s978, 4
      %s980 = scalar_lea.vmem %s231, %s979
      %v981 = vld [vmem:[%s980] sm:$0x33]
      %v982 = vld [vmem:[%s980 + $0x8] sm:$0x33]
      %s983 = scalar_lea.vmem %s1, 512
      %v984 = vld [vmem:[%s983] sm:$0xf]
      %v985 = vld [vmem:[%s983 + $0x4] sm:$0xf]
      %v986 = vld [vmem:[%s983 + $0x8] sm:$0xf]
      %v987 = vld [vmem:[%s983 + $0xc] sm:$0xf]
      %v988 = vld [vmem:[%s983 + $0x10] sm:$0xf]
      %v989 = vld [vmem:[%s983 + $0x14] sm:$0xf]
      %v990 = vld [vmem:[%s983 + $0x18] sm:$0xf]
      %v991 = vld [vmem:[%s983 + $0x1c] sm:$0xf]
      %v992 = vld [vmem:[%s983 + $0x20] sm:$0xf]
      %v993 = vld [vmem:[%s983 + $0x24] sm:$0xf]
      %v994 = vld [vmem:[%s983 + $0x28] sm:$0xf]
      %v995 = vld [vmem:[%s983 + $0x2c] sm:$0xf]
      %v996 = vld [vmem:[%s983 + $0x30] sm:$0xf]
      %v997 = vld [vmem:[%s983 + $0x34] sm:$0xf]
      %v998 = vld [vmem:[%s983 + $0x38] sm:$0xf]
      %v999 = vld [vmem:[%s983 + $0x3c] sm:$0xf]
      %v1000 = vld [vmem:[%s983 + $0x40] sm:$0xf]
      %v1001 = vld [vmem:[%s983 + $0x44] sm:$0xf]
      %v1002 = vld [vmem:[%s983 + $0x48] sm:$0xf]
      %v1003 = vld [vmem:[%s983 + $0x4c] sm:$0xf]
      %v1004 = vld [vmem:[%s983 + $0x50] sm:$0xf]
      %v1005 = vld [vmem:[%s983 + $0x54] sm:$0xf]
      %v1006 = vld [vmem:[%s983 + $0x58] sm:$0xf]
      %v1007 = vld [vmem:[%s983 + $0x5c] sm:$0xf]
      %v1008 = vld [vmem:[%s983 + $0x60] sm:$0xf]
      %v1009 = vld [vmem:[%s983 + $0x64] sm:$0xf]
      %v1010 = vld [vmem:[%s983 + $0x68] sm:$0xf]
      %v1011 = vld [vmem:[%s983 + $0x6c] sm:$0xf]
      %v1012 = vld [vmem:[%s983 + $0x70] sm:$0xf]
      %v1013 = vld [vmem:[%s983 + $0x74] sm:$0xf]
      %v1014 = vld [vmem:[%s983 + $0x78] sm:$0xf]
      %v1015 = vld [vmem:[%s983 + $0x7c] sm:$0xf]
      %v1016 = vld [vmem:[%s983 + $0x80] sm:$0xf]
      %v1017 = vld [vmem:[%s983 + $0x84] sm:$0xf]
      %v1018 = vld [vmem:[%s983 + $0x88] sm:$0xf]
      %v1019 = vld [vmem:[%s983 + $0x8c] sm:$0xf]
      %v1020 = vld [vmem:[%s983 + $0x90] sm:$0xf]
      %v1021 = vld [vmem:[%s983 + $0x94] sm:$0xf]
      %v1022 = vld [vmem:[%s983 + $0x98] sm:$0xf]
      %v1023 = vld [vmem:[%s983 + $0x9c] sm:$0xf]
      %v1024 = vld [vmem:[%s983 + $0xa0] sm:$0xf]
      %v1025 = vld [vmem:[%s983 + $0xa4] sm:$0xf]
      %v1026 = vld [vmem:[%s983 + $0xa8] sm:$0xf]
      %v1027 = vld [vmem:[%s983 + $0xac] sm:$0xf]
      %v1028 = vld [vmem:[%s983 + $0xb0] sm:$0xf]
      %v1029 = vld [vmem:[%s983 + $0xb4] sm:$0xf]
      %v1030 = vld [vmem:[%s983 + $0xb8] sm:$0xf]
      %v1031 = vld [vmem:[%s983 + $0xbc] sm:$0xf]
      %v1032 = vld [vmem:[%s983 + $0xc0] sm:$0xf]
      %v1033 = vld [vmem:[%s983 + $0xc4] sm:$0xf]
      %v1034 = vld [vmem:[%s983 + $0xc8] sm:$0xf]
      %v1035 = vld [vmem:[%s983 + $0xcc] sm:$0xf]
      %v1036 = vld [vmem:[%s983 + $0xd0] sm:$0xf]
      %v1037 = vld [vmem:[%s983 + $0xd4] sm:$0xf]
      %v1038 = vld [vmem:[%s983 + $0xd8] sm:$0xf]
      %v1039 = vld [vmem:[%s983 + $0xdc] sm:$0xf]
      %v1040 = vld [vmem:[%s983 + $0xe0] sm:$0xf]
      %v1041 = vld [vmem:[%s983 + $0xe4] sm:$0xf]
      %v1042 = vld [vmem:[%s983 + $0xe8] sm:$0xf]
      %v1043 = vld [vmem:[%s983 + $0xec] sm:$0xf]
      %v1044 = vld [vmem:[%s983 + $0xf0] sm:$0xf]
      %v1045 = vld [vmem:[%s983 + $0xf4] sm:$0xf]
      %v1046 = vld [vmem:[%s983 + $0xf8] sm:$0xf]
      %v1047 = vld [vmem:[%s983 + $0xfc] sm:$0xf]
      %v1050 = vunpack.c.l.b16 %v981
      %v1051 = vunpack.c.h.b16 %v981
      %v1052 = vunpack.c.l.b16 %v982
      %v1053 = vunpack.c.h.b16 %v982
      %v1054 = vpack.c.b16 %v1050, %v1050
      %v1055 = vpack.c.b16 %v1051, %v1051
      %v1056 = vpack.c.b16 %v1052, %v1052
      %v1057 = vpack.c.b16 %v1053, %v1053
      %v1126 = vunpack.c.l.b16 %v984
      %v1127 = vunpack.c.l.b16 %v985
      %v1128 = vunpack.c.l.b16 %v986
      %v1129 = vunpack.c.l.b16 %v987
      %v1130 = vunpack.c.l.b16 %v988
      %v1131 = vunpack.c.l.b16 %v989
      %v1132 = vunpack.c.l.b16 %v990
      %v1133 = vunpack.c.l.b16 %v991
      %v1134 = vunpack.c.l.b16 %v992
      %v1135 = vunpack.c.l.b16 %v993
      %v1136 = vunpack.c.l.b16 %v994
      %v1137 = vunpack.c.l.b16 %v995
      %v1138 = vunpack.c.l.b16 %v996
      %v1139 = vunpack.c.l.b16 %v997
      %v1140 = vunpack.c.l.b16 %v998
      %v1141 = vunpack.c.l.b16 %v999
      %v1142 = vunpack.c.l.b16 %v1000
      %v1143 = vunpack.c.l.b16 %v1001
      %v1144 = vunpack.c.l.b16 %v1002
      %v1145 = vunpack.c.l.b16 %v1003
      %v1146 = vunpack.c.l.b16 %v1004
      %v1147 = vunpack.c.l.b16 %v1005
      %v1148 = vunpack.c.l.b16 %v1006
      %v1149 = vunpack.c.l.b16 %v1007
      %v1150 = vunpack.c.l.b16 %v1008
      %v1151 = vunpack.c.l.b16 %v1009
      %v1152 = vunpack.c.l.b16 %v1010
      %v1153 = vunpack.c.l.b16 %v1011
      %v1154 = vunpack.c.l.b16 %v1012
      %v1155 = vunpack.c.l.b16 %v1013
      %v1156 = vunpack.c.l.b16 %v1014
      %v1157 = vunpack.c.l.b16 %v1015
      %v1158 = vunpack.c.l.b16 %v1016
      %v1159 = vunpack.c.l.b16 %v1017
      %v1160 = vunpack.c.l.b16 %v1018
      %v1161 = vunpack.c.l.b16 %v1019
      %v1162 = vunpack.c.l.b16 %v1020
      %v1163 = vunpack.c.l.b16 %v1021
      %v1164 = vunpack.c.l.b16 %v1022
      %v1165 = vunpack.c.l.b16 %v1023
      %v1166 = vunpack.c.l.b16 %v1024
      %v1167 = vunpack.c.l.b16 %v1025
      %v1168 = vunpack.c.l.b16 %v1026
      %v1169 = vunpack.c.l.b16 %v1027
      %v1170 = vunpack.c.l.b16 %v1028
      %v1171 = vunpack.c.l.b16 %v1029
      %v1172 = vunpack.c.l.b16 %v1030
      %v1173 = vunpack.c.l.b16 %v1031
      %v1174 = vunpack.c.l.b16 %v1032
      %v1175 = vunpack.c.l.b16 %v1033
      %v1176 = vunpack.c.l.b16 %v1034
      %v1177 = vunpack.c.l.b16 %v1035
      %v1178 = vunpack.c.l.b16 %v1036
      %v1179 = vunpack.c.l.b16 %v1037
      %v1180 = vunpack.c.l.b16 %v1038
      %v1181 = vunpack.c.l.b16 %v1039
      %v1182 = vunpack.c.l.b16 %v1040
      %v1183 = vunpack.c.l.b16 %v1041
      %v1184 = vunpack.c.l.b16 %v1042
      %v1185 = vunpack.c.l.b16 %v1043
      %v1186 = vunpack.c.l.b16 %v1044
      %v1187 = vunpack.c.l.b16 %v1045
      %v1188 = vunpack.c.l.b16 %v1046
      %v1189 = vunpack.c.l.b16 %v1047
      %v1190 = vpack.c.b16 %v1127, %v1126
      %v1191 = vpack.c.b16 %v1129, %v1128
      %v1192 = vpack.c.b16 %v1131, %v1130
      %v1193 = vpack.c.b16 %v1133, %v1132
      %v1194 = vpack.c.b16 %v1135, %v1134
      %v1195 = vpack.c.b16 %v1137, %v1136
      %v1196 = vpack.c.b16 %v1139, %v1138
      %v1197 = vpack.c.b16 %v1141, %v1140
      %v1198 = vpack.c.b16 %v1143, %v1142
      %v1199 = vpack.c.b16 %v1145, %v1144
      %v1200 = vpack.c.b16 %v1147, %v1146
      %v1201 = vpack.c.b16 %v1149, %v1148
      %v1202 = vpack.c.b16 %v1151, %v1150
      %v1203 = vpack.c.b16 %v1153, %v1152
      %v1204 = vpack.c.b16 %v1155, %v1154
      %v1205 = vpack.c.b16 %v1157, %v1156
      %v1206 = vpack.c.b16 %v1159, %v1158
      %v1207 = vpack.c.b16 %v1161, %v1160
      %v1208 = vpack.c.b16 %v1163, %v1162
      %v1209 = vpack.c.b16 %v1165, %v1164
      %v1210 = vpack.c.b16 %v1167, %v1166
      %v1211 = vpack.c.b16 %v1169, %v1168
      %v1212 = vpack.c.b16 %v1171, %v1170
      %v1213 = vpack.c.b16 %v1173, %v1172
      %v1214 = vpack.c.b16 %v1175, %v1174
      %v1215 = vpack.c.b16 %v1177, %v1176
      %v1216 = vpack.c.b16 %v1179, %v1178
      %v1217 = vpack.c.b16 %v1181, %v1180
      %v1218 = vpack.c.b16 %v1183, %v1182
      %v1219 = vpack.c.b16 %v1185, %v1184
      %v1220 = vpack.c.b16 %v1187, %v1186
      %v1221 = vpack.c.b16 %v1189, %v1188
      %1254 = vmatprep.subr.bf16.mxu0 0
      %1255 = vmatpush1.bf16.msra.mxu0 %v1197
      %1256 = vmatprep.subr.bf16.mxu0 0
      %1257 = vmatpush1.bf16.msra.mxu0 %v1196
      %1258 = vmatprep.subr.bf16.mxu0 0
      %1259 = vmatpush1.bf16.msra.mxu0 %v1195
      %1260 = vmatprep.subr.bf16.mxu0 0
      %1261 = vmatpush1.bf16.msra.mxu0 %v1194
      %1262 = vmatprep.subr.bf16.mxu0 0
      %1263 = vmatpush1.bf16.msra.mxu0 %v1193
      %1264 = vmatprep.subr.bf16.mxu0 0
      %1265 = vmatpush1.bf16.msra.mxu0 %v1192
      %1266 = vmatprep.subr.bf16.mxu0 0
      %1267 = vmatpush1.bf16.msra.mxu0 %v1191
      %1268 = vmatprep.subr.bf16.mxu0 0
      %1269 = vmatpush1.bf16.msra.mxu0 %v1190
      %1270 = vmatprep.subr.bf16.mxu0 0
      %1271 = vmatpush2.bf16.msra.mxu0 %v1205
      %1272 = vmatprep.subr.bf16.mxu0 0
      %1273 = vmatpush2.bf16.msra.mxu0 %v1204
      %1274 = vmatprep.subr.bf16.mxu0 0
      %1275 = vmatpush2.bf16.msra.mxu0 %v1203
      %1276 = vmatprep.subr.bf16.mxu0 0
      %1277 = vmatpush2.bf16.msra.mxu0 %v1202
      %1278 = vmatprep.subr.bf16.mxu0 0
      %1279 = vmatpush2.bf16.msra.mxu0 %v1201
      %1280 = vmatprep.subr.bf16.mxu0 0
      %1281 = vmatpush2.bf16.msra.mxu0 %v1200
      %1282 = vmatprep.subr.bf16.mxu0 0
      %1283 = vmatpush2.bf16.msra.mxu0 %v1199
      %1284 = vmatprep.subr.bf16.mxu0 0
      %1285 = vmatpush2.bf16.msra.mxu0 %v1198
      %1286 = vmatprep.mubr.bf16.mxu0 %v1055
      %1287 = vmatmul.mubr.bf16.gmra.mxu0 %v1054
      %v1288 = vpop.f32.mrf.mxu0
      %v1289 = vadd.f32 0.0, %v1288
      %v1290 = vpop.f32.mrf.mxu0
      %v1291 = vpop.f32.mrf.mxu0
      %v1292 = vpop.f32.mrf.mxu0
      %1293 = vdwg.mxu0
      %1294 = vmatprep.subr.bf16.mxu0 0
      %1295 = vmatpush1.bf16.msra.mxu0 %v1213
      %1296 = vmatprep.subr.bf16.mxu0 0
      %1297 = vmatpush1.bf16.msra.mxu0 %v1212
      %1298 = vmatprep.subr.bf16.mxu0 0
      %1299 = vmatpush1.bf16.msra.mxu0 %v1211
      %1300 = vmatprep.subr.bf16.mxu0 0
      %1301 = vmatpush1.bf16.msra.mxu0 %v1210
      %1302 = vmatprep.subr.bf16.mxu0 0
      %1303 = vmatpush1.bf16.msra.mxu0 %v1209
      %1304 = vmatprep.subr.bf16.mxu0 0
      %1305 = vmatpush1.bf16.msra.mxu0 %v1208
      %1306 = vmatprep.subr.bf16.mxu0 0
      %1307 = vmatpush1.bf16.msra.mxu0 %v1207
      %1308 = vmatprep.subr.bf16.mxu0 0
      %1309 = vmatpush1.bf16.msra.mxu0 %v1206
      %1310 = vmatprep.subr.bf16.mxu0 0
      %1311 = vmatpush2.bf16.msra.mxu0 %v1221
      %1312 = vmatprep.subr.bf16.mxu0 0
      %1313 = vmatpush2.bf16.msra.mxu0 %v1220
      %1314 = vmatprep.subr.bf16.mxu0 0
      %1315 = vmatpush2.bf16.msra.mxu0 %v1219
      %1316 = vmatprep.subr.bf16.mxu0 0
      %1317 = vmatpush2.bf16.msra.mxu0 %v1218
      %1318 = vmatprep.subr.bf16.mxu0 0
      %1319 = vmatpush2.bf16.msra.mxu0 %v1217
      %1320 = vmatprep.subr.bf16.mxu0 0
      %1321 = vmatpush2.bf16.msra.mxu0 %v1216
      %1322 = vmatprep.subr.bf16.mxu0 0
      %1323 = vmatpush2.bf16.msra.mxu0 %v1215
      %1324 = vmatprep.subr.bf16.mxu0 0
      %1325 = vmatpush2.bf16.msra.mxu0 %v1214
      %1326 = vmatprep.mubr.bf16.mxu0 %v1057
      %1327 = vmatmul.mubr.bf16.gmra.mxu0 %v1056
      %v1328 = vpop.f32.mrf.mxu0
      %v1329 = vadd.f32 %v1289, %v1328
      %v1330 = vpop.f32.mrf.mxu0
      %v1331 = vpop.f32.mrf.mxu0
      %v1332 = vpop.f32.mrf.mxu0
      %1333 = vdwg.mxu0
      %v1334 = vadd.f32 %v972, %v1329
      %v1335 = vld [vmem:[%s980] sm:$0x77]
      %v1336 = vld [vmem:[%s980 + $0x8] sm:$0x77]
      %s1337 = scalar_lea.vmem %s1, 768
      %v1338 = vld [vmem:[%s1337] sm:$0xf]
      %v1339 = vld [vmem:[%s1337 + $0x4] sm:$0xf]
      %v1340 = vld [vmem:[%s1337 + $0x8] sm:$0xf]
      %v1341 = vld [vmem:[%s1337 + $0xc] sm:$0xf]
      %v1342 = vld [vmem:[%s1337 + $0x10] sm:$0xf]
      %v1343 = vld [vmem:[%s1337 + $0x14] sm:$0xf]
      %v1344 = vld [vmem:[%s1337 + $0x18] sm:$0xf]
      %v1345 = vld [vmem:[%s1337 + $0x1c] sm:$0xf]
      %v1346 = vld [vmem:[%s1337 + $0x20] sm:$0xf]
      %v1347 = vld [vmem:[%s1337 + $0x24] sm:$0xf]
      %v1348 = vld [vmem:[%s1337 + $0x28] sm:$0xf]
      %v1349 = vld [vmem:[%s1337 + $0x2c] sm:$0xf]
      %v1350 = vld [vmem:[%s1337 + $0x30] sm:$0xf]
      %v1351 = vld [vmem:[%s1337 + $0x34] sm:$0xf]
      %v1352 = vld [vmem:[%s1337 + $0x38] sm:$0xf]
      %v1353 = vld [vmem:[%s1337 + $0x3c] sm:$0xf]
      %v1354 = vld [vmem:[%s1337 + $0x40] sm:$0xf]
      %v1355 = vld [vmem:[%s1337 + $0x44] sm:$0xf]
      %v1356 = vld [vmem:[%s1337 + $0x48] sm:$0xf]
      %v1357 = vld [vmem:[%s1337 + $0x4c] sm:$0xf]
      %v1358 = vld [vmem:[%s1337 + $0x50] sm:$0xf]
      %v1359 = vld [vmem:[%s1337 + $0x54] sm:$0xf]
      %v1360 = vld [vmem:[%s1337 + $0x58] sm:$0xf]
      %v1361 = vld [vmem:[%s1337 + $0x5c] sm:$0xf]
      %v1362 = vld [vmem:[%s1337 + $0x60] sm:$0xf]
      %v1363 = vld [vmem:[%s1337 + $0x64] sm:$0xf]
      %v1364 = vld [vmem:[%s1337 + $0x68] sm:$0xf]
      %v1365 = vld [vmem:[%s1337 + $0x6c] sm:$0xf]
      %v1366 = vld [vmem:[%s1337 + $0x70] sm:$0xf]
      %v1367 = vld [vmem:[%s1337 + $0x74] sm:$0xf]
      %v1368 = vld [vmem:[%s1337 + $0x78] sm:$0xf]
      %v1369 = vld [vmem:[%s1337 + $0x7c] sm:$0xf]
      %v1370 = vld [vmem:[%s1337 + $0x80] sm:$0xf]
      %v1371 = vld [vmem:[%s1337 + $0x84] sm:$0xf]
      %v1372 = vld [vmem:[%s1337 + $0x88] sm:$0xf]
      %v1373 = vld [vmem:[%s1337 + $0x8c] sm:$0xf]
      %v1374 = vld [vmem:[%s1337 + $0x90] sm:$0xf]
      %v1375 = vld [vmem:[%s1337 + $0x94] sm:$0xf]
      %v1376 = vld [vmem:[%s1337 + $0x98] sm:$0xf]
      %v1377 = vld [vmem:[%s1337 + $0x9c] sm:$0xf]
      %v1378 = vld [vmem:[%s1337 + $0xa0] sm:$0xf]
      %v1379 = vld [vmem:[%s1337 + $0xa4] sm:$0xf]
      %v1380 = vld [vmem:[%s1337 + $0xa8] sm:$0xf]
      %v1381 = vld [vmem:[%s1337 + $0xac] sm:$0xf]
      %v1382 = vld [vmem:[%s1337 + $0xb0] sm:$0xf]
      %v1383 = vld [vmem:[%s1337 + $0xb4] sm:$0xf]
      %v1384 = vld [vmem:[%s1337 + $0xb8] sm:$0xf]
      %v1385 = vld [vmem:[%s1337 + $0xbc] sm:$0xf]
      %v1386 = vld [vmem:[%s1337 + $0xc0] sm:$0xf]
      %v1387 = vld [vmem:[%s1337 + $0xc4] sm:$0xf]
      %v1388 = vld [vmem:[%s1337 + $0xc8] sm:$0xf]
      %v1389 = vld [vmem:[%s1337 + $0xcc] sm:$0xf]
      %v1390 = vld [vmem:[%s1337 + $0xd0] sm:$0xf]
      %v1391 = vld [vmem:[%s1337 + $0xd4] sm:$0xf]
      %v1392 = vld [vmem:[%s1337 + $0xd8] sm:$0xf]
      %v1393 = vld [vmem:[%s1337 + $0xdc] sm:$0xf]
      %v1394 = vld [vmem:[%s1337 + $0xe0] sm:$0xf]
      %v1395 = vld [vmem:[%s1337 + $0xe4] sm:$0xf]
      %v1396 = vld [vmem:[%s1337 + $0xe8] sm:$0xf]
      %v1397 = vld [vmem:[%s1337 + $0xec] sm:$0xf]
      %v1398 = vld [vmem:[%s1337 + $0xf0] sm:$0xf]
      %v1399 = vld [vmem:[%s1337 + $0xf4] sm:$0xf]
      %v1400 = vld [vmem:[%s1337 + $0xf8] sm:$0xf]
      %v1401 = vld [vmem:[%s1337 + $0xfc] sm:$0xf]
      %v1404 = vunpack.c.l.b16 %v1335
      %v1405 = vunpack.c.h.b16 %v1335
      %v1406 = vunpack.c.l.b16 %v1336
      %v1407 = vunpack.c.h.b16 %v1336
      %v1408 = vpack.c.b16 %v1404, %v1404
      %v1409 = vpack.c.b16 %v1405, %v1405
      %v1410 = vpack.c.b16 %v1406, %v1406
      %v1411 = vpack.c.b16 %v1407, %v1407
      %v1413 = vshrl.u32 %v1408, 16
      %v1415 = vshll.u32 %v1408, 16
      %v1417 = vrot.slane %v1415, 1
      %v1418 = vor.u32 %v1413, %v1417
      %v1420 = vshrl.u32 %v1409, 16
      %v1422 = vshll.u32 %v1409, 16
      %v1424 = vrot.slane %v1422, 1
      %v1425 = vor.u32 %v1420, %v1424
      %v1427 = vshrl.u32 %v1410, 16
      %v1429 = vshll.u32 %v1410, 16
      %v1431 = vrot.slane %v1429, 1
      %v1432 = vor.u32 %v1427, %v1431
      %v1434 = vshrl.u32 %v1411, 16
      %v1436 = vshll.u32 %v1411, 16
      %v1438 = vrot.slane %v1436, 1
      %v1439 = vor.u32 %v1434, %v1438
      %v1508 = vunpack.c.l.b16 %v1338
      %v1509 = vunpack.c.l.b16 %v1339
      %v1510 = vunpack.c.l.b16 %v1340
      %v1511 = vunpack.c.l.b16 %v1341
      %v1512 = vunpack.c.l.b16 %v1342
      %v1513 = vunpack.c.l.b16 %v1343
      %v1514 = vunpack.c.l.b16 %v1344
      %v1515 = vunpack.c.l.b16 %v1345
      %v1516 = vunpack.c.l.b16 %v1346
      %v1517 = vunpack.c.l.b16 %v1347
      %v1518 = vunpack.c.l.b16 %v1348
      %v1519 = vunpack.c.l.b16 %v1349
      %v1520 = vunpack.c.l.b16 %v1350
      %v1521 = vunpack.c.l.b16 %v1351
      %v1522 = vunpack.c.l.b16 %v1352
      %v1523 = vunpack.c.l.b16 %v1353
      %v1524 = vunpack.c.l.b16 %v1354
      %v1525 = vunpack.c.l.b16 %v1355
      %v1526 = vunpack.c.l.b16 %v1356
      %v1527 = vunpack.c.l.b16 %v1357
      %v1528 = vunpack.c.l.b16 %v1358
      %v1529 = vunpack.c.l.b16 %v1359
      %v1530 = vunpack.c.l.b16 %v1360
      %v1531 = vunpack.c.l.b16 %v1361
      %v1532 = vunpack.c.l.b16 %v1362
      %v1533 = vunpack.c.l.b16 %v1363
      %v1534 = vunpack.c.l.b16 %v1364
      %v1535 = vunpack.c.l.b16 %v1365
      %v1536 = vunpack.c.l.b16 %v1366
      %v1537 = vunpack.c.l.b16 %v1367
      %v1538 = vunpack.c.l.b16 %v1368
      %v1539 = vunpack.c.l.b16 %v1369
      %v1540 = vunpack.c.l.b16 %v1370
      %v1541 = vunpack.c.l.b16 %v1371
      %v1542 = vunpack.c.l.b16 %v1372
      %v1543 = vunpack.c.l.b16 %v1373
      %v1544 = vunpack.c.l.b16 %v1374
      %v1545 = vunpack.c.l.b16 %v1375
      %v1546 = vunpack.c.l.b16 %v1376
      %v1547 = vunpack.c.l.b16 %v1377
      %v1548 = vunpack.c.l.b16 %v1378
      %v1549 = vunpack.c.l.b16 %v1379
      %v1550 = vunpack.c.l.b16 %v1380
      %v1551 = vunpack.c.l.b16 %v1381
      %v1552 = vunpack.c.l.b16 %v1382
      %v1553 = vunpack.c.l.b16 %v1383
      %v1554 = vunpack.c.l.b16 %v1384
      %v1555 = vunpack.c.l.b16 %v1385
      %v1556 = vunpack.c.l.b16 %v1386
      %v1557 = vunpack.c.l.b16 %v1387
      %v1558 = vunpack.c.l.b16 %v1388
      %v1559 = vunpack.c.l.b16 %v1389
      %v1560 = vunpack.c.l.b16 %v1390
      %v1561 = vunpack.c.l.b16 %v1391
      %v1562 = vunpack.c.l.b16 %v1392
      %v1563 = vunpack.c.l.b16 %v1393
      %v1564 = vunpack.c.l.b16 %v1394
      %v1565 = vunpack.c.l.b16 %v1395
      %v1566 = vunpack.c.l.b16 %v1396
      %v1567 = vunpack.c.l.b16 %v1397
      %v1568 = vunpack.c.l.b16 %v1398
      %v1569 = vunpack.c.l.b16 %v1399
      %v1570 = vunpack.c.l.b16 %v1400
      %v1571 = vunpack.c.l.b16 %v1401
      %v1572 = vpack.c.b16 %v1509, %v1508
      %v1573 = vpack.c.b16 %v1511, %v1510
      %v1574 = vpack.c.b16 %v1513, %v1512
      %v1575 = vpack.c.b16 %v1515, %v1514
      %v1576 = vpack.c.b16 %v1517, %v1516
      %v1577 = vpack.c.b16 %v1519, %v1518
      %v1578 = vpack.c.b16 %v1521, %v1520
      %v1579 = vpack.c.b16 %v1523, %v1522
      %v1580 = vpack.c.b16 %v1525, %v1524
      %v1581 = vpack.c.b16 %v1527, %v1526
      %v1582 = vpack.c.b16 %v1529, %v1528
      %v1583 = vpack.c.b16 %v1531, %v1530
      %v1584 = vpack.c.b16 %v1533, %v1532
      %v1585 = vpack.c.b16 %v1535, %v1534
      %v1586 = vpack.c.b16 %v1537, %v1536
      %v1587 = vpack.c.b16 %v1539, %v1538
      %v1588 = vpack.c.b16 %v1541, %v1540
      %v1589 = vpack.c.b16 %v1543, %v1542
      %v1590 = vpack.c.b16 %v1545, %v1544
      %v1591 = vpack.c.b16 %v1547, %v1546
      %v1592 = vpack.c.b16 %v1549, %v1548
      %v1593 = vpack.c.b16 %v1551, %v1550
      %v1594 = vpack.c.b16 %v1553, %v1552
      %v1595 = vpack.c.b16 %v1555, %v1554
      %v1596 = vpack.c.b16 %v1557, %v1556
      %v1597 = vpack.c.b16 %v1559, %v1558
      %v1598 = vpack.c.b16 %v1561, %v1560
      %v1599 = vpack.c.b16 %v1563, %v1562
      %v1600 = vpack.c.b16 %v1565, %v1564
      %v1601 = vpack.c.b16 %v1567, %v1566
      %v1602 = vpack.c.b16 %v1569, %v1568
      %v1603 = vpack.c.b16 %v1571, %v1570
      %1636 = vmatprep.subr.bf16.mxu0 0
      %1637 = vmatpush1.bf16.msra.mxu0 %v1579
      %1638 = vmatprep.subr.bf16.mxu0 0
      %1639 = vmatpush1.bf16.msra.mxu0 %v1578
      %1640 = vmatprep.subr.bf16.mxu0 0
      %1641 = vmatpush1.bf16.msra.mxu0 %v1577
      %1642 = vmatprep.subr.bf16.mxu0 0
      %1643 = vmatpush1.bf16.msra.mxu0 %v1576
      %1644 = vmatprep.subr.bf16.mxu0 0
      %1645 = vmatpush1.bf16.msra.mxu0 %v1575
      %1646 = vmatprep.subr.bf16.mxu0 0
      %1647 = vmatpush1.bf16.msra.mxu0 %v1574
      %1648 = vmatprep.subr.bf16.mxu0 0
      %1649 = vmatpush1.bf16.msra.mxu0 %v1573
      %1650 = vmatprep.subr.bf16.mxu0 0
      %1651 = vmatpush1.bf16.msra.mxu0 %v1572
      %1652 = vmatprep.subr.bf16.mxu0 0
      %1653 = vmatpush2.bf16.msra.mxu0 %v1587
      %1654 = vmatprep.subr.bf16.mxu0 0
      %1655 = vmatpush2.bf16.msra.mxu0 %v1586
      %1656 = vmatprep.subr.bf16.mxu0 0
      %1657 = vmatpush2.bf16.msra.mxu0 %v1585
      %1658 = vmatprep.subr.bf16.mxu0 0
      %1659 = vmatpush2.bf16.msra.mxu0 %v1584
      %1660 = vmatprep.subr.bf16.mxu0 0
      %1661 = vmatpush2.bf16.msra.mxu0 %v1583
      %1662 = vmatprep.subr.bf16.mxu0 0
      %1663 = vmatpush2.bf16.msra.mxu0 %v1582
      %1664 = vmatprep.subr.bf16.mxu0 0
      %1665 = vmatpush2.bf16.msra.mxu0 %v1581
      %1666 = vmatprep.subr.bf16.mxu0 0
      %1667 = vmatpush2.bf16.msra.mxu0 %v1580
      %1668 = vmatprep.mubr.bf16.mxu0 %v1425
      %1669 = vmatmul.mubr.bf16.gmra.mxu0 %v1418
      %v1670 = vpop.f32.mrf.mxu0
      %v1671 = vadd.f32 0.0, %v1670
      %v1672 = vpop.f32.mrf.mxu0
      %v1673 = vpop.f32.mrf.mxu0
      %v1674 = vpop.f32.mrf.mxu0
      %1675 = vdwg.mxu0
      %1676 = vmatprep.subr.bf16.mxu0 0
      %1677 = vmatpush1.bf16.msra.mxu0 %v1595
      %1678 = vmatprep.subr.bf16.mxu0 0
      %1679 = vmatpush1.bf16.msra.mxu0 %v1594
      %1680 = vmatprep.subr.bf16.mxu0 0
      %1681 = vmatpush1.bf16.msra.mxu0 %v1593
      %1682 = vmatprep.subr.bf16.mxu0 0
      %1683 = vmatpush1.bf16.msra.mxu0 %v1592
      %1684 = vmatprep.subr.bf16.mxu0 0
      %1685 = vmatpush1.bf16.msra.mxu0 %v1591
      %1686 = vmatprep.subr.bf16.mxu0 0
      %1687 = vmatpush1.bf16.msra.mxu0 %v1590
      %1688 = vmatprep.subr.bf16.mxu0 0
      %1689 = vmatpush1.bf16.msra.mxu0 %v1589
      %1690 = vmatprep.subr.bf16.mxu0 0
      %1691 = vmatpush1.bf16.msra.mxu0 %v1588
      %1692 = vmatprep.subr.bf16.mxu0 0
      %1693 = vmatpush2.bf16.msra.mxu0 %v1603
      %1694 = vmatprep.subr.bf16.mxu0 0
      %1695 = vmatpush2.bf16.msra.mxu0 %v1602
      %1696 = vmatprep.subr.bf16.mxu0 0
      %1697 = vmatpush2.bf16.msra.mxu0 %v1601
      %1698 = vmatprep.subr.bf16.mxu0 0
      %1699 = vmatpush2.bf16.msra.mxu0 %v1600
      %1700 = vmatprep.subr.bf16.mxu0 0
      %1701 = vmatpush2.bf16.msra.mxu0 %v1599
      %1702 = vmatprep.subr.bf16.mxu0 0
      %1703 = vmatpush2.bf16.msra.mxu0 %v1598
      %1704 = vmatprep.subr.bf16.mxu0 0
      %1705 = vmatpush2.bf16.msra.mxu0 %v1597
      %1706 = vmatprep.subr.bf16.mxu0 0
      %1707 = vmatpush2.bf16.msra.mxu0 %v1596
      %1708 = vmatprep.mubr.bf16.mxu0 %v1439
      %1709 = vmatmul.mubr.bf16.gmra.mxu0 %v1432
      %v1710 = vpop.f32.mrf.mxu0
      %v1711 = vadd.f32 %v1671, %v1710
      %v1712 = vpop.f32.mrf.mxu0
      %v1713 = vpop.f32.mrf.mxu0
      %v1714 = vpop.f32.mrf.mxu0
      %1715 = vdwg.mxu0
      %v1716 = vadd.f32 %v1334, %v1711
      %1717 = vst [vmem:[%s239] sm:$0xf] %v1716
      %p1718 = scmp.eq.s32.totalorder %s21, 0
      %p1719 = scmp.eq.s32.totalorder %s22, 0
      %p1720 = pnand %p1718, %p1719
      %p1721 = pneg %p1720
      // Predicated region
      $region33: #{_lambda_.11} parent=31 // pred_check
        _
      $region34: #{_lambda_.11} parent=31 // pred_check_branch
        %1723 = sbr.rel (%p1720) target = $region36
      $region35: #{_lambda_.11} parent=31 // pred_region
        %1724 = vst [vmem:[%s4] sm:$0x1] 0.0
        %1725 = vst [vmem:[%s5] sm:$0x1] 0.0
      $region36: #{_lambda_.11} parent=31 // pred_fallthru
        _
      %v1726 = vld [vmem:[%s4] sm:$0x1]
      %vm1727 = vcmask 1043456
      %v1728 = vsel %vm1727, %v1716, 0.0
      %v1729 = vrot.slane %v1728, 4
      %v1730 = vadd.f32 %v1728, %v1729
      %v1731 = vrot.slane %v1730, 2
      %v1732 = vadd.f32 %v1730, %v1731
      %v1733 = vrot.slane %v1732, 1
      %v1734 = vadd.f32 %v1732, %v1733
      %v1735 = vadd.f32 %v1726, %v1734
      %1736 = vst [vmem:[%s4] sm:$0x1] %v1735
      %v1737 = vld [vmem:[%s5] sm:$0x1]
      %v1738 = vmul.f32 %v1716, %v1716
      %v1739 = vsel %vm1727, %v1738, 0.0
      %v1740 = vrot.slane %v1739, 4
      %v1741 = vadd.f32 %v1739, %v1740
      %v1742 = vrot.slane %v1741, 2
      %v1743 = vadd.f32 %v1741, %v1742
      %v1744 = vrot.slane %v1743, 1
      %v1745 = vadd.f32 %v1743, %v1744
      %v1746 = vadd.f32 %v1737, %v1745
      %1747 = vst [vmem:[%s5] sm:$0x1] %v1746
      %p1748 = scmp.lt.s32.totalorder %s21, 1
      %s1749 = scalar_select %p1748, %s21, 1
      %p1750 = scmp.lt.s32.totalorder %s22, 3
      %s1751 = scalar_select %p1750, %s22, 3
      %s1752 = smul.addr %s1749, 4
      %s1753 = sadd.s32 %s1751, %s1752
      %s1754 = smul.addr %s1753, 4
      %s1755 = scalar_lea.vmem %s3, %s1754
      // Predicated region
      $region37: #{_lambda_.11} parent=31 // pred_check
        %p1756 = pneg %p117
      $region38: #{_lambda_.11} parent=31 // pred_check_branch
        %1758 = sbr.rel (%p1756) target = $region40
      $region39: #{_lambda_.11} parent=31 // pred_region
        _
      $region40: #{_lambda_.11} parent=31 // pred_fallthru
        _
      // Predicated region
      $region41: #{_lambda_.11} parent=31 // pred_check
        %p1759 = pneg %p138
      $region42: #{_lambda_.11} parent=31 // pred_check_branch
        %1761 = sbr.rel (%p1759) target = $region44
      $region43: #{_lambda_.11} parent=31 // pred_region
        _
      $region44: #{_lambda_.11} parent=31 // pred_fallthru
        _
      // Predicated region
      $region45: #{_lambda_.11} parent=31 // pred_check
        %p1762 = pneg %p159
      $region46: #{_lambda_.11} parent=31 // pred_check_branch
        %1764 = sbr.rel (%p1762) target = $region48
      $region47: #{_lambda_.11} parent=31 // pred_region
        _
      $region48: #{_lambda_.11} parent=31 // pred_fallthru
        _
      // Predicated region
      $region49: #{_lambda_.11} parent=31 // pred_check
        %p1765 = pneg %p138
      $region50: #{_lambda_.11} parent=31 // pred_check_branch
        %1767 = sbr.rel (%p1765) target = $region52
      $region51: #{_lambda_.11} parent=31 // pred_region
        _
      $region52: #{_lambda_.11} parent=31 // pred_fallthru
        _
      // Predicated region
      $region53: #{_lambda_.11} parent=31 // pred_check
        %p1768 = pneg %p159
      $region54: #{_lambda_.11} parent=31 // pred_check_branch
        %1770 = sbr.rel (%p1768) target = $region56
      $region55: #{_lambda_.11} parent=31 // pred_region
        _
      $region56: #{_lambda_.11} parent=31 // pred_fallthru
        _
    $region32: #{_lambda_.11} parent=5 // pred_fallthru
      _
    %p1771 = scmp.le.s32.totalorder 2, %s12
    // Predicated region
    $region57: #{_lambda_.11} parent=5 // pred_check
      %p1772 = pneg %p1771
    $region58: #{_lambda_.11} parent=5 // pred_check_branch
      %1774 = sbr.rel (%p1772) target = $region60
    $region59: #{_lambda_.11} parent=5 // pred_region
      %s1775 = ssub.s32 %s12, 2
      // Predicated region
      $region61: #{_lambda_.11} parent=59 // pred_check
        %p1776 = pneg %p123
      $region62: #{_lambda_.11} parent=59 // pred_check_branch
        %1778 = sbr.rel (%p1776) target = $region64
      $region63: #{_lambda_.11} parent=59 // pred_region
        %p1779 = scmp.lt.s32.totalorder %s23, 1
        %s1780 = scalar_select %p1779, %s23, 1
        %p1781 = scmp.lt.s32.totalorder %s24, 3
        %s1782 = scalar_select %p1781, %s24, 3
        %s1783 = smul.addr %s1780, 4
        %s1784 = sadd.s32 %s1782, %s1783
        %s1785 = smul.addr %s1784, 4
        %s1786 = scalar_lea.vmem %s3, %s1785
      $region64: #{_lambda_.11} parent=59 // pred_fallthru
        _
    $region60: #{_lambda_.11} parent=5 // pred_fallthru
      _
  $region6: #{_lambda_.11} parent=0 // loop_footer
    %s16 = sadd.s32 1, %s12
  $region7: #{_lambda_.11} parent=0 // loop_footer_branch
    %11 = sbr.rel target = $region3
  $region8: #{_lambda_.11} parent=0 // loop_exit
    _

// kernel: _lambda_.14
$region0: #{_lambda_.14}
  #allocation0 [shape = 'u32[]', space=smem, size = 0x4, offset = 0x4, fixed_abs, tag = 'smem constant byte address 0x4 - core index']
  #allocation1 [shape = 'u32[144,128]{1,0:T(1,128)}', space=vmem, size = 0x12000, scoped, tag = 'internal scratch']
  %s0 = inlined_call_operand.vmem [shape: f32[2,3,3,128], index: 0, kind: input, shape index: {}]
  %s1 = inlined_call_operand.vmem [shape: f32[1,128], index: 1, kind: input, shape index: {}]
  %s2 = inlined_call_operand.vmem [shape: f32[1,128], index: 2, kind: input, shape index: {}]
  %s3 = inlined_call_operand.vmem [shape: f32[1,128], index: 3, kind: input, shape index: {}]
  %s4 = inlined_call_operand.vmem [shape: f32[1,128], index: 4, kind: input, shape index: {}]
  %s5 = inlined_call_operand.vmem [shape: bf16[2,3,3,128], index: 5, kind: output, shape index: {}]
  %s6 = sld [smem:[#allocation0]]
  $region53: #{_lambda_.14} parent=0
    _
  %s8 = ssub.s32 1, %s6
  %s9 = scalar_select 0, %s8, %s6
  loop: start=0, step=1, limit=8
  $region2: #{_lambda_.14} parent=0 // loop_pre_header
    _
  $region3: #{_lambda_.14} parent=0 // loop_header
    %s11 = sphi 0, %s15
    %p12 = scmp.ge.s32.totalorder %s11, 8
    %s18 = sphi 0, %s30
    %s19 = sphi 0, %s26
    %s20 = sphi 0, %s18
    %s21 = sphi 0, %s19
    %s22 = sphi 0, %s20
    %s23 = sphi 0, %s21
    %s35 = sphi 0, %s37
    %s38 = sphi 0, %s35
    %s39 = sphi 0, %s38
    %s55 = sphi 0, %s39
    %s59 = sphi 0, %s59
    %s61 = sphi 0, %s59
    %s62 = sphi 0, %s61
    %s76 = sphi 0, %s62
    %s80 = sphi 0, %s80
    %s82 = sphi 0, %s80
    %s83 = sphi 0, %s82
    %s97 = sphi 0, %s83
    %s101 = sphi 0, %s101
    %s103 = sphi 0, %s101
    %s104 = sphi 0, %s103
    %s118 = sphi 0, %s104
    %s122 = sphi 0, %s122
    %s124 = sphi 0, %s122
    %s125 = sphi 0, %s124
    %s139 = sphi 0, %s125
    %s147 = sphi 0, %s149
    %s150 = sphi 0, %s147
    %s151 = sphi 0, %s150
    %s167 = sphi 0, %s151
  $region4: #{_lambda_.14} parent=0 // loop_header_branch
    %14 = sbr.rel (%p12) target = $region8
  $region5: #{_lambda_.14} parent=0 // loop_body
    %s16 = ssub.s32 %s11, 1
    %s17 = ssub.s32 %s11, 2
    %s24 = sadd.s32 1, %s19
    %p25 = scmp.ge.s32.totalorder %s24, 3
    %s26 = scalar_select %p25, 0, %s24
    %s27 = sadd.s32 1, %s18
    %s28 = scalar_select %p25, %s27, %s18
    %p29 = scmp.ge.s32.totalorder %s28, 2
    %s30 = scalar_select %p29, 0, %s28
    %s31 = ssub.s32 %s18, %s30
    %s32 = ssub.s32 %s19, %s26
    %s33 = sor.u32 %s31, %s32
    %p34 = scmp.eq.s32.totalorder %s33, 0
    %s36 = sadd.s32 %s35, 1
    %s37 = scalar_select %p34, %s35, %s36
    %p40 = pneg %p34
    %p41 = scmp.eq.s32.totalorder %s11, 5
    %p42 = por %p40, %p41
    %p43 = scmp.ne.s32.totalorder %s35, %s38
    %p44 = scmp.eq.s32.totalorder %s11, 0
    %p45 = por %p43, %p44
    %p46 = scmp.ne.s32.totalorder %s35, %s38
    %p47 = scmp.eq.s32.totalorder %s16, 5
    %p48 = por %p46, %p47
    %p49 = scmp.ne.s32.totalorder %s38, %s39
    %p50 = scmp.eq.s32.totalorder %s16, 0
    %p51 = por %p49, %p50
    %p52 = scmp.ne.s32.totalorder %s38, %s39
    %p53 = scmp.eq.s32.totalorder %s17, 5
    %p54 = por %p52, %p53
    %p56 = scmp.ne.s32.totalorder %s39, %s55
    %p57 = scmp.eq.s32.totalorder %s17, 0
    %p58 = por %p56, %p57
    %s60 = sadd.s32 %s59, 1
    %p63 = scmp.eq.s32.totalorder %s11, 5
    %p64 = scmp.ne.s32.totalorder %s59, %s61
    %p65 = scmp.eq.s32.totalorder %s11, 0
    %p66 = por %p64, %p65
    %p67 = scmp.ne.s32.totalorder %s59, %s61
    %p68 = scmp.eq.s32.totalorder %s16, 5
    %p69 = por %p67, %p68
    %p70 = scmp.ne.s32.totalorder %s61, %s62
    %p71 = scmp.eq.s32.totalorder %s16, 0
    %p72 = por %p70, %p71
    %p73 = scmp.ne.s32.totalorder %s61, %s62
    %p74 = scmp.eq.s32.totalorder %s17, 5
    %p75 = por %p73, %p74
    %p77 = scmp.ne.s32.totalorder %s62, %s76
    %p78 = scmp.eq.s32.totalorder %s17, 0
    %p79 = por %p77, %p78
    %s81 = sadd.s32 %s80, 1
    %p84 = scmp.eq.s32.totalorder %s11, 5
    %p85 = scmp.ne.s32.totalorder %s80, %s82
    %p86 = scmp.eq.s32.totalorder %s11, 0
    %p87 = por %p85, %p86
    %p88 = scmp.ne.s32.totalorder %s80, %s82
    %p89 = scmp.eq.s32.totalorder %s16, 5
    %p90 = por %p88, %p89
    %p91 = scmp.ne.s32.totalorder %s82, %s83
    %p92 = scmp.eq.s32.totalorder %s16, 0
    %p93 = por %p91, %p92
    %p94 = scmp.ne.s32.totalorder %s82, %s83
    %p95 = scmp.eq.s32.totalorder %s17, 5
    %p96 = por %p94, %p95
    %p98 = scmp.ne.s32.totalorder %s83, %s97
    %p99 = scmp.eq.s32.totalorder %s17, 0
    %p100 = por %p98, %p99
    %s102 = sadd.s32 %s101, 1
    %p105 = scmp.eq.s32.totalorder %s11, 5
    %p106 = scmp.ne.s32.totalorder %s101, %s103
    %p107 = scmp.eq.s32.totalorder %s11, 0
    %p108 = por %p106, %p107
    %p109 = scmp.ne.s32.totalorder %s101, %s103
    %p110 = scmp.eq.s32.totalorder %s16, 5
    %p111 = por %p109, %p110
    %p112 = scmp.ne.s32.totalorder %s103, %s104
    %p113 = scmp.eq.s32.totalorder %s16, 0
    %p114 = por %p112, %p113
    %p115 = scmp.ne.s32.totalorder %s103, %s104
    %p116 = scmp.eq.s32.totalorder %s17, 5
    %p117 = por %p115, %p116
    %p119 = scmp.ne.s32.totalorder %s104, %s118
    %p120 = scmp.eq.s32.totalorder %s17, 0
    %p121 = por %p119, %p120
    %s123 = sadd.s32 %s122, 1
    %p126 = scmp.eq.s32.totalorder %s11, 5
    %p127 = scmp.ne.s32.totalorder %s122, %s124
    %p128 = scmp.eq.s32.totalorder %s11, 0
    %p129 = por %p127, %p128
    %p130 = scmp.ne.s32.totalorder %s122, %s124
    %p131 = scmp.eq.s32.totalorder %s16, 5
    %p132 = por %p130, %p131
    %p133 = scmp.ne.s32.totalorder %s124, %s125
    %p134 = scmp.eq.s32.totalorder %s16, 0
    %p135 = por %p133, %p134
    %p136 = scmp.ne.s32.totalorder %s124, %s125
    %p137 = scmp.eq.s32.totalorder %s17, 5
    %p138 = por %p136, %p137
    %p140 = scmp.ne.s32.totalorder %s125, %s139
    %p141 = scmp.eq.s32.totalorder %s17, 0
    %p142 = por %p140, %p141
    %s143 = ssub.s32 %s18, %s30
    %s144 = ssub.s32 %s19, %s26
    %s145 = sor.u32 %s143, %s144
    %p146 = scmp.eq.s32.totalorder %s145, 0
    %s148 = sadd.s32 %s147, 1
    %s149 = scalar_select %p146, %s147, %s148
    %p152 = pneg %p146
    %p153 = scmp.eq.s32.totalorder %s11, 5
    %p154 = por %p152, %p153
    %p155 = scmp.ne.s32.totalorder %s147, %s150
    %p156 = scmp.eq.s32.totalorder %s11, 0
    %p157 = por %p155, %p156
    %p158 = scmp.ne.s32.totalorder %s147, %s150
    %p159 = scmp.eq.s32.totalorder %s16, 5
    %p160 = por %p158, %p159
    %p161 = scmp.ne.s32.totalorder %s150, %s151
    %p162 = scmp.eq.s32.totalorder %s16, 0
    %p163 = por %p161, %p162
    %p164 = scmp.ne.s32.totalorder %s150, %s151
    %p165 = scmp.eq.s32.totalorder %s17, 5
    %p166 = por %p164, %p165
    %p168 = scmp.ne.s32.totalorder %s151, %s167
    %p169 = scmp.eq.s32.totalorder %s17, 0
    %p170 = por %p168, %p169
    %p171 = scmp.le.s32.totalorder 1, %s11
    %p172 = scmp.lt.s32.totalorder %s11, 7
    %p173 = pnand %p171, %p172
    %p174 = pneg %p173
    // Predicated region
    $region9: #{_lambda_.14} parent=5 // pred_check
      _
    $region10: #{_lambda_.14} parent=5 // pred_check_branch
      %176 = sbr.rel (%p173) target = $region12
    $region11: #{_lambda_.14} parent=5 // pred_region
      %s177 = ssub.s32 %s11, 1
      // Predicated region
      $region13: #{_lambda_.14} parent=11 // pred_check
        %p178 = pneg %p72
      $region14: #{_lambda_.14} parent=11 // pred_check_branch
        %180 = sbr.rel (%p178) target = $region16
      $region15: #{_lambda_.14} parent=11 // pred_region
        _
      $region16: #{_lambda_.14} parent=11 // pred_fallthru
        _
      // Predicated region
      $region17: #{_lambda_.14} parent=11 // pred_check
        %p181 = pneg %p93
      $region18: #{_lambda_.14} parent=11 // pred_check_branch
        %183 = sbr.rel (%p181) target = $region20
      $region19: #{_lambda_.14} parent=11 // pred_region
        _
      $region20: #{_lambda_.14} parent=11 // pred_fallthru
        _
      // Predicated region
      $region21: #{_lambda_.14} parent=11 // pred_check
        %p184 = pneg %p114
      $region22: #{_lambda_.14} parent=11 // pred_check_branch
        %186 = sbr.rel (%p184) target = $region24
      $region23: #{_lambda_.14} parent=11 // pred_region
        _
      $region24: #{_lambda_.14} parent=11 // pred_fallthru
        _
      // Predicated region
      $region25: #{_lambda_.14} parent=11 // pred_check
        %p187 = pneg %p135
      $region26: #{_lambda_.14} parent=11 // pred_check_branch
        %189 = sbr.rel (%p187) target = $region28
      $region27: #{_lambda_.14} parent=11 // pred_region
        _
      $region28: #{_lambda_.14} parent=11 // pred_fallthru
        _
    $region12: #{_lambda_.14} parent=5 // pred_fallthru
      _
    %p190 = scmp.lt.s32.totalorder %s11, 6
    // Predicated region
    $region29: #{_lambda_.14} parent=5 // pred_check
      %p191 = pneg %p190
    $region30: #{_lambda_.14} parent=5 // pred_check_branch
      %193 = sbr.rel (%p191) target = $region32
    $region31: #{_lambda_.14} parent=5 // pred_region
      // Predicated region
      $region33: #{_lambda_.14} parent=31 // pred_check
        %p194 = pneg %p45
      $region34: #{_lambda_.14} parent=31 // pred_check_branch
        %196 = sbr.rel (%p194) target = $region36
      $region35: #{_lambda_.14} parent=31 // pred_region
        %p197 = scmp.lt.s32.totalorder %s18, 1
        %s198 = scalar_select %p197, %s18, 1
        %p199 = scmp.lt.s32.totalorder %s19, 2
        %s200 = scalar_select %p199, %s19, 2
        %s201 = smul.addr %s198, 3
        %s202 = sadd.s32 %s200, %s201
        %s203 = smul.addr %s202, 4
        %s204 = scalar_lea.vmem %s0, %s203
      $region36: #{_lambda_.14} parent=31 // pred_fallthru
        _
    $region32: #{_lambda_.14} parent=5 // pred_fallthru
      _
    %p205 = scmp.le.s32.totalorder 1, %s11
    %p206 = scmp.lt.s32.totalorder %s11, 7
    %p207 = pnand %p205, %p206
    %p208 = pneg %p207
    // Predicated region
    $region37: #{_lambda_.14} parent=5 // pred_check
      _
    $region38: #{_lambda_.14} parent=5 // pred_check_branch
      %210 = sbr.rel (%p207) target = $region40
    $region39: #{_lambda_.14} parent=5 // pred_region
      %s211 = ssub.s32 %s11, 1
      %p212 = scmp.lt.s32.totalorder %s20, 1
      %s213 = scalar_select %p212, %s20, 1
      %p214 = scmp.lt.s32.totalorder %s21, 2
      %s215 = scalar_select %p214, %s21, 2
      %s216 = smul.addr %s213, 3
      %s217 = sadd.s32 %s215, %s216
      %s218 = smul.addr %s217, 4
      %s219 = scalar_lea.vmem %s0, %s218
      %p220 = pneg %p51
      %p221 = pneg %p48
      %p222 = pneg %p72
      %p223 = pneg %p69
      %p224 = pneg %p93
      %p225 = pneg %p90
      %p226 = pneg %p114
      %p227 = pneg %p111
      %p228 = pneg %p135
      %p229 = pneg %p132
      %p230 = pneg %p163
      %p231 = pneg %p160
      %p232 = scmp.lt.s32.totalorder %s20, 1
      %s233 = scalar_select %p232, %s20, 1
      %p234 = scmp.lt.s32.totalorder %s21, 2
      %s235 = scalar_select %p234, %s21, 2
      %s236 = smul.addr %s233, 3
      %s237 = sadd.s32 %s235, %s236
      %s238 = smul.addr %s237, 2
      %s239 = scalar_lea.vmem %s5, %s238
      %p240 = scmp.lt.s32.totalorder %s20, 1
      %s241 = scalar_select %p240, %s20, 1
      %p242 = scmp.lt.s32.totalorder %s21, 2
      %s243 = scalar_select %p242, %s21, 2
      %s244 = smul.addr %s241, 3
      %s245 = sadd.s32 %s243, %s244
      %s246 = smul.addr %s245, 4
      %s247 = scalar_lea.vmem %s0, %s246
      %p248 = scmp.lt.s32.totalorder %s20, 1
      %s249 = scalar_select %p248, %s20, 1
      %p250 = scmp.lt.s32.totalorder %s21, 2
      %s251 = scalar_select %p250, %s21, 2
      %s252 = smul.addr %s249, 3
      %s253 = sadd.s32 %s251, %s252
      %s254 = smul.addr %s253, 2
      %s255 = scalar_lea.vmem %s5, %s254
      %v256 = vld [vmem:[%s1] sm:$0x1]
      %v257 = vmul.f32 %v256, 0.055555556
      %v258 = vld [vmem:[%s2] sm:$0x1]
      %v259 = vmul.f32 %v258, 0.055555556
      %v260 = vmul.f32 %v257, %v257
      %v261 = vsub.f32 %v259, %v260
      %v262 = vld [vmem:[%s3] sm:$0x1]
      %v263 = vadd.f32 %v261, 1e-05
      %v264 = vrsqrt.pop %v263
      %v265 = vmul.f32 %v262, %v264
      %v266 = vld [vmem:[%s4] sm:$0x1]
      %v267 = vmul.f32 %v257, %v265
      %v268 = vsub.f32 %v266, %v267
      %v269 = vld [vmem:[%s247] sm:$0x7]
      %v271 = vlaneseq
      %v272 = vshrl.u32 %v271, 7
      %v273 = vsub.s32 0, %v272
      %v274 = vrot.slane %v265, %v273
      %v276 = vmul.f32 %v269, %v274
      %v278 = vlaneseq
      %v279 = vshrl.u32 %v278, 7
      %v280 = vsub.s32 0, %v279
      %v281 = vrot.slane %v268, %v280
      %v283 = vadd.f32 %v276, %v281
      %vm284 = vcmp.gt.f32.partialorder %v283, 0.0
      %v285 = vmul.f32 %v283, 0.2
      %v286 = vsel %vm284, %v283, %v285
      %v287 = vpack.c.bf16 %v286, %v286
      %vm288 = vcmask 1041408
      %vm289 = vsmask.f32 1280
      %vm290 = vmand %vm288, %vm289
      %v291 = vld [vmem:[%s255] sm:$0x3]
      %v292 = vsel %vm290, %v287, %v291
      %293 = vst [vmem:[%s255] sm:$0x3] %v292
      %p294 = scmp.lt.s32.totalorder %s20, 1
      %s295 = scalar_select %p294, %s20, 1
      %p296 = scmp.lt.s32.totalorder %s21, 2
      %s297 = scalar_select %p296, %s21, 2
      %s298 = smul.addr %s295, 3
      %s299 = sadd.s32 %s297, %s298
      %s300 = smul.addr %s299, 2
      %s301 = scalar_lea.vmem %s5, %s300
      // Predicated region
      $region41: #{_lambda_.14} parent=39 // pred_check
        %p302 = pneg %p160
      $region42: #{_lambda_.14} parent=39 // pred_check_branch
        %304 = sbr.rel (%p302) target = $region44
      $region43: #{_lambda_.14} parent=39 // pred_region
        _
      $region44: #{_lambda_.14} parent=39 // pred_fallthru
        _
    $region40: #{_lambda_.14} parent=5 // pred_fallthru
      _
    %p305 = scmp.le.s32.totalorder 2, %s11
    // Predicated region
    $region45: #{_lambda_.14} parent=5 // pred_check
      %p306 = pneg %p305
    $region46: #{_lambda_.14} parent=5 // pred_check_branch
      %308 = sbr.rel (%p306) target = $region48
    $region47: #{_lambda_.14} parent=5 // pred_region
      %s309 = ssub.s32 %s11, 2
      // Predicated region
      $region49: #{_lambda_.14} parent=47 // pred_check
        %p310 = pneg %p166
      $region50: #{_lambda_.14} parent=47 // pred_check_branch
        %312 = sbr.rel (%p310) target = $region52
      $region51: #{_lambda_.14} parent=47 // pred_region
        %p313 = scmp.lt.s32.totalorder %s22, 1
        %s314 = scalar_select %p313, %s22, 1
        %p315 = scmp.lt.s32.totalorder %s23, 2
        %s316 = scalar_select %p315, %s23, 2
        %s317 = smul.addr %s314, 3
        %s318 = sadd.s32 %s316, %s317
        %s319 = smul.addr %s318, 2
        %s320 = scalar_lea.vmem %s5, %s319
      $region52: #{_lambda_.14} parent=47 // pred_fallthru
        _
    $region48: #{_lambda_.14} parent=5 // pred_fallthru
      _
  $region6: #{_lambda_.14} parent=0 // loop_footer
    %s15 = sadd.s32 1, %s11
  $region7: #{_lambda_.14} parent=0 // loop_footer_branch
    %10 = sbr.rel target = $region3
  $region8: #{_lambda_.14} parent=0 // loop_exit
    _

// kernel: _lambda_.13
$region0: #{_lambda_.13}
  #allocation0 [shape = 'u32[]', space=smem, size = 0x4, offset = 0x4, fixed_abs, tag = 'smem constant byte address 0x4 - core index']
  #allocation1 [shape = 'u32[144,128]{1,0:T(1,128)}', space=vmem, size = 0x12000, scoped, tag = 'internal scratch']
  %s0 = inlined_call_operand.vmem [shape: bf16[2,6,6,128], index: 0, kind: input, shape index: {}]
  %s1 = inlined_call_operand.vmem [shape: bf16[16,128,128], index: 1, kind: input, shape index: {}]
  %s2 = inlined_call_operand.vmem [shape: f32[1,128], index: 2, kind: input, shape index: {}]
  %s3 = inlined_call_operand.vmem [shape: f32[2,3,3,128], index: 3, kind: output, shape index: {0}]
  %s4 = inlined_call_operand.vmem [shape: f32[1,128], index: 4, kind: output, shape index: {1}]
  %s5 = inlined_call_operand.vmem [shape: f32[1,128], index: 5, kind: output, shape index: {2}]
  %6 = xla_tuple %s3, %s4, %s5
  %s7 = sld [smem:[#allocation0]]
  $region65: #{_lambda_.13} parent=0
    _
  %s9 = ssub.s32 1, %s7
  %s10 = scalar_select 0, %s9, %s7
  loop: start=0, step=1, limit=8
  $region2: #{_lambda_.13} parent=0 // loop_pre_header
    _
  $region3: #{_lambda_.13} parent=0 // loop_header
    %s12 = sphi 0, %s16
    %p13 = scmp.ge.s32.totalorder %s12, 8
    %s19 = sphi 0, %s31
    %s20 = sphi 0, %s27
    %s21 = sphi 0, %s19
    %s22 = sphi 0, %s20
    %s23 = sphi 0, %s21
    %s24 = sphi 0, %s22
    %s34 = sphi 0, %s36
    %s37 = sphi 0, %s34
    %s38 = sphi 0, %s37
    %s54 = sphi 0, %s38
    %s58 = sphi 0, %s58
    %s60 = sphi 0, %s58
    %s61 = sphi 0, %s60
    %s75 = sphi 0, %s61
    %s79 = sphi 0, %s79
    %s81 = sphi 0, %s79
    %s82 = sphi 0, %s81
    %s96 = sphi 0, %s82
    %s104 = sphi 0, %s106
    %s107 = sphi 0, %s104
    %s108 = sphi 0, %s107
    %s124 = sphi 0, %s108
    %s128 = sphi 0, %s128
    %s130 = sphi 0, %s128
    %s131 = sphi 0, %s130
    %s145 = sphi 0, %s131
    %s149 = sphi 0, %s149
    %s151 = sphi 0, %s149
    %s152 = sphi 0, %s151
    %s166 = sphi 0, %s152
  $region4: #{_lambda_.13} parent=0 // loop_header_branch
    %15 = sbr.rel (%p13) target = $region8
  $region5: #{_lambda_.13} parent=0 // loop_body
    %s17 = ssub.s32 %s12, 1
    %s18 = ssub.s32 %s12, 2
    %s25 = sadd.s32 1, %s20
    %p26 = scmp.ge.s32.totalorder %s25, 3
    %s27 = scalar_select %p26, 0, %s25
    %s28 = sadd.s32 1, %s19
    %s29 = scalar_select %p26, %s28, %s19
    %p30 = scmp.ge.s32.totalorder %s29, 2
    %s31 = scalar_select %p30, 0, %s29
    %s32 = ssub.s32 %s19, %s31
    %p33 = scmp.eq.s32.totalorder %s32, 0
    %s35 = sadd.s32 %s34, 1
    %s36 = scalar_select %p33, %s34, %s35
    %p39 = pneg %p33
    %p40 = scmp.eq.s32.totalorder %s12, 5
    %p41 = por %p39, %p40
    %p42 = scmp.ne.s32.totalorder %s34, %s37
    %p43 = scmp.eq.s32.totalorder %s12, 0
    %p44 = por %p42, %p43
    %p45 = scmp.ne.s32.totalorder %s34, %s37
    %p46 = scmp.eq.s32.totalorder %s17, 5
    %p47 = por %p45, %p46
    %p48 = scmp.ne.s32.totalorder %s37, %s38
    %p49 = scmp.eq.s32.totalorder %s17, 0
    %p50 = por %p48, %p49
    %p51 = scmp.ne.s32.totalorder %s37, %s38
    %p52 = scmp.eq.s32.totalorder %s18, 5
    %p53 = por %p51, %p52
    %p55 = scmp.ne.s32.totalorder %s38, %s54
    %p56 = scmp.eq.s32.totalorder %s18, 0
    %p57 = por %p55, %p56
    %s59 = sadd.s32 %s58, 1
    %p62 = scmp.eq.s32.totalorder %s12, 5
    %p63 = scmp.ne.s32.totalorder %s58, %s60
    %p64 = scmp.eq.s32.totalorder %s12, 0
    %p65 = por %p63, %p64
    %p66 = scmp.ne.s32.totalorder %s58, %s60
    %p67 = scmp.eq.s32.totalorder %s17, 5
    %p68 = por %p66, %p67
    %p69 = scmp.ne.s32.totalorder %s60, %s61
    %p70 = scmp.eq.s32.totalorder %s17, 0
    %p71 = por %p69, %p70
    %p72 = scmp.ne.s32.totalorder %s60, %s61
    %p73 = scmp.eq.s32.totalorder %s18, 5
    %p74 = por %p72, %p73
    %p76 = scmp.ne.s32.totalorder %s61, %s75
    %p77 = scmp.eq.s32.totalorder %s18, 0
    %p78 = por %p76, %p77
    %s80 = sadd.s32 %s79, 1
    %p83 = scmp.eq.s32.totalorder %s12, 5
    %p84 = scmp.ne.s32.totalorder %s79, %s81
    %p85 = scmp.eq.s32.totalorder %s12, 0
    %p86 = por %p84, %p85
    %p87 = scmp.ne.s32.totalorder %s79, %s81
    %p88 = scmp.eq.s32.totalorder %s17, 5
    %p89 = por %p87, %p88
    %p90 = scmp.ne.s32.totalorder %s81, %s82
    %p91 = scmp.eq.s32.totalorder %s17, 0
    %p92 = por %p90, %p91
    %p93 = scmp.ne.s32.totalorder %s81, %s82
    %p94 = scmp.eq.s32.totalorder %s18, 5
    %p95 = por %p93, %p94
    %p97 = scmp.ne.s32.totalorder %s82, %s96
    %p98 = scmp.eq.s32.totalorder %s18, 0
    %p99 = por %p97, %p98
    %s100 = ssub.s32 %s19, %s31
    %s101 = ssub.s32 %s20, %s27
    %s102 = sor.u32 %s100, %s101
    %p103 = scmp.eq.s32.totalorder %s102, 0
    %s105 = sadd.s32 %s104, 1
    %s106 = scalar_select %p103, %s104, %s105
    %p109 = pneg %p103
    %p110 = scmp.eq.s32.totalorder %s12, 5
    %p111 = por %p109, %p110
    %p112 = scmp.ne.s32.totalorder %s104, %s107
    %p113 = scmp.eq.s32.totalorder %s12, 0
    %p114 = por %p112, %p113
    %p115 = scmp.ne.s32.totalorder %s104, %s107
    %p116 = scmp.eq.s32.totalorder %s17, 5
    %p117 = por %p115, %p116
    %p118 = scmp.ne.s32.totalorder %s107, %s108
    %p119 = scmp.eq.s32.totalorder %s17, 0
    %p120 = por %p118, %p119
    %p121 = scmp.ne.s32.totalorder %s107, %s108
    %p122 = scmp.eq.s32.totalorder %s18, 5
    %p123 = por %p121, %p122
    %p125 = scmp.ne.s32.totalorder %s108, %s124
    %p126 = scmp.eq.s32.totalorder %s18, 0
    %p127 = por %p125, %p126
    %s129 = sadd.s32 %s128, 1
    %p132 = scmp.eq.s32.totalorder %s12, 5
    %p133 = scmp.ne.s32.totalorder %s128, %s130
    %p134 = scmp.eq.s32.totalorder %s12, 0
    %p135 = por %p133, %p134
    %p136 = scmp.ne.s32.totalorder %s128, %s130
    %p137 = scmp.eq.s32.totalorder %s17, 5
    %p138 = por %p136, %p137
    %p139 = scmp.ne.s32.totalorder %s130, %s131
    %p140 = scmp.eq.s32.totalorder %s17, 0
    %p141 = por %p139, %p140
    %p142 = scmp.ne.s32.totalorder %s130, %s131
    %p143 = scmp.eq.s32.totalorder %s18, 5
    %p144 = por %p142, %p143
    %p146 = scmp.ne.s32.totalorder %s131, %s145
    %p147 = scmp.eq.s32.totalorder %s18, 0
    %p148 = por %p146, %p147
    %s150 = sadd.s32 %s149, 1
    %p153 = scmp.eq.s32.totalorder %s12, 5
    %p154 = scmp.ne.s32.totalorder %s149, %s151
    %p155 = scmp.eq.s32.totalorder %s12, 0
    %p156 = por %p154, %p155
    %p157 = scmp.ne.s32.totalorder %s149, %s151
    %p158 = scmp.eq.s32.totalorder %s17, 5
    %p159 = por %p157, %p158
    %p160 = scmp.ne.s32.totalorder %s151, %s152
    %p161 = scmp.eq.s32.totalorder %s17, 0
    %p162 = por %p160, %p161
    %p163 = scmp.ne.s32.totalorder %s151, %s152
    %p164 = scmp.eq.s32.totalorder %s18, 5
    %p165 = por %p163, %p164
    %p167 = scmp.ne.s32.totalorder %s152, %s166
    %p168 = scmp.eq.s32.totalorder %s18, 0
    %p169 = por %p167, %p168
    %p170 = scmp.le.s32.totalorder 1, %s12
    %p171 = scmp.lt.s32.totalorder %s12, 7
    %p172 = pnand %p170, %p171
    %p173 = pneg %p172
    // Predicated region
    $region9: #{_lambda_.13} parent=5 // pred_check
      _
    $region10: #{_lambda_.13} parent=5 // pred_check_branch
      %175 = sbr.rel (%p172) target = $region12
    $region11: #{_lambda_.13} parent=5 // pred_region
      %s176 = ssub.s32 %s12, 1
      // Predicated region
      $region13: #{_lambda_.13} parent=11 // pred_check
        %p177 = pneg %p71
      $region14: #{_lambda_.13} parent=11 // pred_check_branch
        %179 = sbr.rel (%p177) target = $region16
      $region15: #{_lambda_.13} parent=11 // pred_region
        _
      $region16: #{_lambda_.13} parent=11 // pred_fallthru
        _
      // Predicated region
      $region17: #{_lambda_.13} parent=11 // pred_check
        %p180 = pneg %p92
      $region18: #{_lambda_.13} parent=11 // pred_check_branch
        %182 = sbr.rel (%p180) target = $region20
      $region19: #{_lambda_.13} parent=11 // pred_region
        _
      $region20: #{_lambda_.13} parent=11 // pred_fallthru
        _
    $region12: #{_lambda_.13} parent=5 // pred_fallthru
      _
    %p183 = scmp.lt.s32.totalorder %s12, 6
    // Predicated region
    $region21: #{_lambda_.13} parent=5 // pred_check
      %p184 = pneg %p183
    $region22: #{_lambda_.13} parent=5 // pred_check_branch
      %186 = sbr.rel (%p184) target = $region24
    $region23: #{_lambda_.13} parent=5 // pred_region
      // Predicated region
      $region25: #{_lambda_.13} parent=23 // pred_check
        %p187 = pneg %p44
      $region26: #{_lambda_.13} parent=23 // pred_check_branch
        %189 = sbr.rel (%p187) target = $region28
      $region27: #{_lambda_.13} parent=23 // pred_region
        %p190 = scmp.lt.s32.totalorder %s19, 1
        %s191 = scalar_select %p190, %s19, 1
        %s192 = smul.addr %s191, 6
        %s193 = smul.addr %s192, 4
        %s194 = scalar_lea.vmem %s0, %s193
      $region28: #{_lambda_.13} parent=23 // pred_fallthru
        _
    $region24: #{_lambda_.13} parent=5 // pred_fallthru
      _
    %p195 = scmp.le.s32.totalorder 1, %s12
    %p196 = scmp.lt.s32.totalorder %s12, 7
    %p197 = pnand %p195, %p196
    %p198 = pneg %p197
    // Predicated region
    $region29: #{_lambda_.13} parent=5 // pred_check
      _
    $region30: #{_lambda_.13} parent=5 // pred_check_branch
      %200 = sbr.rel (%p197) target = $region32
    $region31: #{_lambda_.13} parent=5 // pred_region
      %s201 = ssub.s32 %s12, 1
      %p202 = scmp.lt.s32.totalorder %s21, 1
      %s203 = scalar_select %p202, %s21, 1
      %s204 = smul.addr %s203, 6
      %s205 = smul.addr %s204, 4
      %s206 = scalar_lea.vmem %s0, %s205
      %p207 = pneg %p50
      %p208 = pneg %p47
      %p209 = pneg %p71
      %p210 = pneg %p68
      %p211 = pneg %p92
      %p212 = pneg %p89
      %p213 = pneg %p120
      %p214 = pneg %p117
      %p215 = scmp.lt.s32.totalorder %s21, 1
      %s216 = scalar_select %p215, %s21, 1
      %p217 = scmp.lt.s32.totalorder %s22, 2
      %s218 = scalar_select %p217, %s22, 2
      %s219 = smul.addr %s216, 3
      %s220 = sadd.s32 %s218, %s219
      %s221 = smul.addr %s220, 4
      %s222 = scalar_lea.vmem %s3, %s221
      %p223 = pneg %p141
      %p224 = pneg %p138
      %p225 = pneg %p162
      %p226 = pneg %p159
      %p227 = scmp.lt.s32.totalorder %s21, 1
      %s228 = scalar_select %p227, %s21, 1
      %s229 = smul.addr %s228, 6
      %s230 = smul.addr %s229, 4
      %s231 = scalar_lea.vmem %s0, %s230
      %p232 = scmp.lt.s32.totalorder %s21, 1
      %s233 = scalar_select %p232, %s21, 1
      %p234 = scmp.lt.s32.totalorder %s22, 2
      %s235 = scalar_select %p234, %s22, 2
      %s236 = smul.addr %s233, 3
      %s237 = sadd.s32 %s235, %s236
      %s238 = smul.addr %s237, 4
      %s239 = scalar_lea.vmem %s3, %s238
      %s241 = smul.addr %s22, 4
      %s242 = scalar_lea.vmem %s231, %s241
      %v243 = vld [vmem:[%s242] sm:$0x3]
      %v244 = vld [vmem:[%s1] sm:$0xf]
      %v245 = vld [vmem:[%s1 + $0x4] sm:$0xf]
      %v246 = vld [vmem:[%s1 + $0x8] sm:$0xf]
      %v247 = vld [vmem:[%s1 + $0xc] sm:$0xf]
      %v248 = vld [vmem:[%s1 + $0x10] sm:$0xf]
      %v249 = vld [vmem:[%s1 + $0x14] sm:$0xf]
      %v250 = vld [vmem:[%s1 + $0x18] sm:$0xf]
      %v251 = vld [vmem:[%s1 + $0x1c] sm:$0xf]
      %v252 = vld [vmem:[%s1 + $0x20] sm:$0xf]
      %v253 = vld [vmem:[%s1 + $0x24] sm:$0xf]
      %v254 = vld [vmem:[%s1 + $0x28] sm:$0xf]
      %v255 = vld [vmem:[%s1 + $0x2c] sm:$0xf]
      %v256 = vld [vmem:[%s1 + $0x30] sm:$0xf]
      %v257 = vld [vmem:[%s1 + $0x34] sm:$0xf]
      %v258 = vld [vmem:[%s1 + $0x38] sm:$0xf]
      %v259 = vld [vmem:[%s1 + $0x3c] sm:$0xf]
      %s260 = scalar_lea.vmem %s1, 64
      %v261 = vld [vmem:[%s260] sm:$0xf]
      %v262 = vld [vmem:[%s260 + $0x4] sm:$0xf]
      %v263 = vld [vmem:[%s260 + $0x8] sm:$0xf]
      %v264 = vld [vmem:[%s260 + $0xc] sm:$0xf]
      %v265 = vld [vmem:[%s260 + $0x10] sm:$0xf]
      %v266 = vld [vmem:[%s260 + $0x14] sm:$0xf]
      %v267 = vld [vmem:[%s260 + $0x18] sm:$0xf]
      %v268 = vld [vmem:[%s260 + $0x1c] sm:$0xf]
      %v269 = vld [vmem:[%s260 + $0x20] sm:$0xf]
      %v270 = vld [vmem:[%s260 + $0x24] sm:$0xf]
      %v271 = vld [vmem:[%s260 + $0x28] sm:$0xf]
      %v272 = vld [vmem:[%s260 + $0x2c] sm:$0xf]
      %v273 = vld [vmem:[%s260 + $0x30] sm:$0xf]
      %v274 = vld [vmem:[%s260 + $0x34] sm:$0xf]
      %v275 = vld [vmem:[%s260 + $0x38] sm:$0xf]
      %v276 = vld [vmem:[%s260 + $0x3c] sm:$0xf]
      %v278 = vunpack.c.l.b16 %v243
      %v279 = vpack.c.b16 %v278, %v278
      %v281 = vshrl.u32 %v279, 16
      %v283 = vshll.u32 %v279, 16
      %v285 = vrot.slane %v283, 1
      %v286 = vor.u32 %v281, %v285
      %v304 = vunpack.c.l.b16 %v261
      %v305 = vunpack.c.l.b16 %v262
      %v306 = vunpack.c.l.b16 %v263
      %v307 = vunpack.c.l.b16 %v264
      %v308 = vunpack.c.l.b16 %v265
      %v309 = vunpack.c.l.b16 %v266
      %v310 = vunpack.c.l.b16 %v267
      %v311 = vunpack.c.l.b16 %v268
      %v312 = vunpack.c.l.b16 %v269
      %v313 = vunpack.c.l.b16 %v270
      %v314 = vunpack.c.l.b16 %v271
      %v315 = vunpack.c.l.b16 %v272
      %v316 = vunpack.c.l.b16 %v273
      %v317 = vunpack.c.l.b16 %v274
      %v318 = vunpack.c.l.b16 %v275
      %v319 = vunpack.c.l.b16 %v276
      %v320 = vpack.c.b16 %v305, %v304
      %v321 = vpack.c.b16 %v307, %v306
      %v322 = vpack.c.b16 %v309, %v308
      %v323 = vpack.c.b16 %v311, %v310
      %v324 = vpack.c.b16 %v313, %v312
      %v325 = vpack.c.b16 %v315, %v314
      %v326 = vpack.c.b16 %v317, %v316
      %v327 = vpack.c.b16 %v319, %v318
      %336 = vmatprep.subr.bf16.mxu0 0
      %337 = vmatpush1.bf16.msra.mxu0 %v327
      %338 = vmatprep.subr.bf16.mxu0 0
      %339 = vmatpush1.bf16.msra.mxu0 %v326
      %340 = vmatprep.subr.bf16.mxu0 0
      %341 = vmatpush1.bf16.msra.mxu0 %v325
      %342 = vmatprep.subr.bf16.mxu0 0
      %343 = vmatpush1.bf16.msra.mxu0 %v324
      %344 = vmatprep.subr.bf16.mxu0 0
      %345 = vmatpush1.bf16.msra.mxu0 %v323
      %346 = vmatprep.subr.bf16.mxu0 0
      %347 = vmatpush1.bf16.msra.mxu0 %v322
      %348 = vmatprep.subr.bf16.mxu0 0
      %349 = vmatpush1.bf16.msra.mxu0 %v321
      %350 = vmatprep.subr.bf16.mxu0 0
      %351 = vmatpush1.bf16.msra.mxu0 %v320
      %352 = vmatprep.subr.bf16.mxu0 0
      %353 = vmatpush2.bf16.msra.mxu0 0
      %354 = vmatprep.subr.bf16.mxu0 0
      %355 = vmatpush2.bf16.msra.mxu0 0
      %356 = vmatprep.subr.bf16.mxu0 0
      %357 = vmatpush2.bf16.msra.mxu0 0
      %358 = vmatprep.subr.bf16.mxu0 0
      %359 = vmatpush2.bf16.msra.mxu0 0
      %360 = vmatprep.subr.bf16.mxu0 0
      %361 = vmatpush2.bf16.msra.mxu0 0
      %362 = vmatprep.subr.bf16.mxu0 0
      %363 = vmatpush2.bf16.msra.mxu0 0
      %364 = vmatprep.subr.bf16.mxu0 0
      %365 = vmatpush2.bf16.msra.mxu0 0
      %366 = vmatprep.subr.bf16.mxu0 0
      %367 = vmatpush2.bf16.msra.mxu0 0
      %368 = vmatprep.mubr.bf16.mxu0 0
      %369 = vmatmul.mubr.bf16.gmra.mxu0 %v286
      %v370 = vpop.f32.mrf.mxu0
      %v371 = vadd.f32 0.0, %v370
      %v372 = vpop.f32.mrf.mxu0
      %v373 = vpop.f32.mrf.mxu0
      %v374 = vpop.f32.mrf.mxu0
      %375 = vdwg.mxu0
      %v392 = vunpack.c.l.b16 %v244
      %v393 = vunpack.c.l.b16 %v245
      %v394 = vunpack.c.l.b16 %v246
      %v395 = vunpack.c.l.b16 %v247
      %v396 = vunpack.c.l.b16 %v248
      %v397 = vunpack.c.l.b16 %v249
      %v398 = vunpack.c.l.b16 %v250
      %v399 = vunpack.c.l.b16 %v251
      %v400 = vunpack.c.l.b16 %v252
      %v401 = vunpack.c.l.b16 %v253
      %v402 = vunpack.c.l.b16 %v254
      %v403 = vunpack.c.l.b16 %v255
      %v404 = vunpack.c.l.b16 %v256
      %v405 = vunpack.c.l.b16 %v257
      %v406 = vunpack.c.l.b16 %v258
      %v407 = vunpack.c.l.b16 %v259
      %v408 = vpack.c.b16 %v393, %v392
      %v409 = vpack.c.b16 %v395, %v394
      %v410 = vpack.c.b16 %v397, %v396
      %v411 = vpack.c.b16 %v399, %v398
      %v412 = vpack.c.b16 %v401, %v400
      %v413 = vpack.c.b16 %v403, %v402
      %v414 = vpack.c.b16 %v405, %v404
      %v415 = vpack.c.b16 %v407, %v406
      %424 = vmatprep.subr.bf16.mxu0 0
      %425 = vmatpush1.bf16.msra.mxu0 %v415
      %426 = vmatprep.subr.bf16.mxu0 0
      %427 = vmatpush1.bf16.msra.mxu0 %v414
      %428 = vmatprep.subr.bf16.mxu0 0
      %429 = vmatpush1.bf16.msra.mxu0 %v413
      %430 = vmatprep.subr.bf16.mxu0 0
      %431 = vmatpush1.bf16.msra.mxu0 %v412
      %432 = vmatprep.subr.bf16.mxu0 0
      %433 = vmatpush1.bf16.msra.mxu0 %v411
      %434 = vmatprep.subr.bf16.mxu0 0
      %435 = vmatpush1.bf16.msra.mxu0 %v410
      %436 = vmatprep.subr.bf16.mxu0 0
      %437 = vmatpush1.bf16.msra.mxu0 %v409
      %438 = vmatprep.subr.bf16.mxu0 0
      %439 = vmatpush1.bf16.msra.mxu0 %v408
      %440 = vmatprep.subr.bf16.mxu0 0
      %441 = vmatpush2.bf16.msra.mxu0 0
      %442 = vmatprep.subr.bf16.mxu0 0
      %443 = vmatpush2.bf16.msra.mxu0 0
      %444 = vmatprep.subr.bf16.mxu0 0
      %445 = vmatpush2.bf16.msra.mxu0 0
      %446 = vmatprep.subr.bf16.mxu0 0
      %447 = vmatpush2.bf16.msra.mxu0 0
      %448 = vmatprep.subr.bf16.mxu0 0
      %449 = vmatpush2.bf16.msra.mxu0 0
      %450 = vmatprep.subr.bf16.mxu0 0
      %451 = vmatpush2.bf16.msra.mxu0 0
      %452 = vmatprep.subr.bf16.mxu0 0
      %453 = vmatpush2.bf16.msra.mxu0 0
      %454 = vmatprep.subr.bf16.mxu0 0
      %455 = vmatpush2.bf16.msra.mxu0 0
      %456 = vmatprep.mubr.bf16.mxu0 0
      %457 = vmatmul.mubr.bf16.gmra.mxu0 %v243
      %v458 = vpop.f32.mrf.mxu0
      %v459 = vadd.f32 %v371, %v458
      %v460 = vpop.f32.mrf.mxu0
      %v461 = vpop.f32.mrf.mxu0
      %v462 = vpop.f32.mrf.mxu0
      %463 = vdwg.mxu0
      %v464 = vld [vmem:[%s242] sm:$0x6]
      %s465 = scalar_lea.vmem %s1, 128
      %v466 = vld [vmem:[%s465] sm:$0xf]
      %v467 = vld [vmem:[%s465 + $0x4] sm:$0xf]
      %v468 = vld [vmem:[%s465 + $0x8] sm:$0xf]
      %v469 = vld [vmem:[%s465 + $0xc] sm:$0xf]
      %v470 = vld [vmem:[%s465 + $0x10] sm:$0xf]
      %v471 = vld [vmem:[%s465 + $0x14] sm:$0xf]
      %v472 = vld [vmem:[%s465 + $0x18] sm:$0xf]
      %v473 = vld [vmem:[%s465 + $0x1c] sm:$0xf]
      %v474 = vld [vmem:[%s465 + $0x20] sm:$0xf]
      %v475 = vld [vmem:[%s465 + $0x24] sm:$0xf]
      %v476 = vld [vmem:[%s465 + $0x28] sm:$0xf]
      %v477 = vld [vmem:[%s465 + $0x2c] sm:$0xf]
      %v478 = vld [vmem:[%s465 + $0x30] sm:$0xf]
      %v479 = vld [vmem:[%s465 + $0x34] sm:$0xf]
      %v480 = vld [vmem:[%s465 + $0x38] sm:$0xf]
      %v481 = vld [vmem:[%s465 + $0x3c] sm:$0xf]
      %v483 = vunpack.c.l.b16 %v464
      %v484 = vpack.c.b16 %v483, %v483
      %v485 = vrot.slane %v484, 1
      %v503 = vunpack.c.l.b16 %v466
      %v504 = vunpack.c.l.b16 %v467
      %v505 = vunpack.c.l.b16 %v468
      %v506 = vunpack.c.l.b16 %v469
      %v507 = vunpack.c.l.b16 %v470
      %v508 = vunpack.c.l.b16 %v471
      %v509 = vunpack.c.l.b16 %v472
      %v510 = vunpack.c.l.b16 %v473
      %v511 = vunpack.c.l.b16 %v474
      %v512 = vunpack.c.l.b16 %v475
      %v513 = vunpack.c.l.b16 %v476
      %v514 = vunpack.c.l.b16 %v477
      %v515 = vunpack.c.l.b16 %v478
      %v516 = vunpack.c.l.b16 %v479
      %v517 = vunpack.c.l.b16 %v480
      %v518 = vunpack.c.l.b16 %v481
      %v519 = vpack.c.b16 %v504, %v503
      %v520 = vpack.c.b16 %v506, %v505
      %v521 = vpack.c.b16 %v508, %v507
      %v522 = vpack.c.b16 %v510, %v509
      %v523 = vpack.c.b16 %v512, %v511
      %v524 = vpack.c.b16 %v514, %v513
      %v525 = vpack.c.b16 %v516, %v515
      %v526 = vpack.c.b16 %v518, %v517
      %535 = vmatprep.subr.bf16.mxu0 0
      %536 = vmatpush1.bf16.msra.mxu0 %v526
      %537 = vmatprep.subr.bf16.mxu0 0
      %538 = vmatpush1.bf16.msra.mxu0 %v525
      %539 = vmatprep.subr.bf16.mxu0 0
      %540 = vmatpush1.bf16.msra.mxu0 %v524
      %541 = vmatprep.subr.bf16.mxu0 0
      %542 = vmatpush1.bf16.msra.mxu0 %v523
      %543 = vmatprep.subr.bf16.mxu0 0
      %544 = vmatpush1.bf16.msra.mxu0 %v522
      %545 = vmatprep.subr.bf16.mxu0 0
      %546 = vmatpush1.bf16.msra.mxu0 %v521
      %547 = vmatprep.subr.bf16.mxu0 0
      %548 = vmatpush1.bf16.msra.mxu0 %v520
      %549 = vmatprep.subr.bf16.mxu0 0
      %550 = vmatpush1.bf16.msra.mxu0 %v519
      %551 = vmatprep.subr.bf16.mxu0 0
      %552 = vmatpush2.bf16.msra.mxu0 0
      %553 = vmatprep.subr.bf16.mxu0 0
      %554 = vmatpush2.bf16.msra.mxu0 0
      %555 = vmatprep.subr.bf16.mxu0 0
      %556 = vmatpush2.bf16.msra.mxu0 0
      %557 = vmatprep.subr.bf16.mxu0 0
      %558 = vmatpush2.bf16.msra.mxu0 0
      %559 = vmatprep.subr.bf16.mxu0 0
      %560 = vmatpush2.bf16.msra.mxu0 0
      %561 = vmatprep.subr.bf16.mxu0 0
      %562 = vmatpush2.bf16.msra.mxu0 0
      %563 = vmatprep.subr.bf16.mxu0 0
      %564 = vmatpush2.bf16.msra.mxu0 0
      %565 = vmatprep.subr.bf16.mxu0 0
      %566 = vmatpush2.bf16.msra.mxu0 0
      %567 = vmatprep.mubr.bf16.mxu0 0
      %568 = vmatmul.mubr.bf16.gmra.mxu0 %v485
      %v569 = vpop.f32.mrf.mxu0
      %v570 = vadd.f32 0.0, %v569
      %v571 = vpop.f32.mrf.mxu0
      %v572 = vpop.f32.mrf.mxu0
      %v573 = vpop.f32.mrf.mxu0
      %574 = vdwg.mxu0
      %v575 = vadd.f32 %v459, %v570
      %s576 = scalar_lea.vmem %s1, 192
      %v577 = vld [vmem:[%s576] sm:$0xf]
      %v578 = vld [vmem:[%s576 + $0x4] sm:$0xf]
      %v579 = vld [vmem:[%s576 + $0x8] sm:$0xf]
      %v580 = vld [vmem:[%s576 + $0xc] sm:$0xf]
      %v581 = vld [vmem:[%s576 + $0x10] sm:$0xf]
      %v582 = vld [vmem:[%s576 + $0x14] sm:$0xf]
      %v583 = vld [vmem:[%s576 + $0x18] sm:$0xf]
      %v584 = vld [vmem:[%s576 + $0x1c] sm:$0xf]
      %v585 = vld [vmem:[%s576 + $0x20] sm:$0xf]
      %v586 = vld [vmem:[%s576 + $0x24] sm:$0xf]
      %v587 = vld [vmem:[%s576 + $0x28] sm:$0xf]
      %v588 = vld [vmem:[%s576 + $0x2c] sm:$0xf]
      %v589 = vld [vmem:[%s576 + $0x30] sm:$0xf]
      %v590 = vld [vmem:[%s576 + $0x34] sm:$0xf]
      %v591 = vld [vmem:[%s576 + $0x38] sm:$0xf]
      %v592 = vld [vmem:[%s576 + $0x3c] sm:$0xf]
      %v594 = vshrl.u32 %v484, 16
      %v596 = vrot.slane %v594, 1
      %v597 = vshll.u32 %v484, 16
      %v599 = vrot.slane %v597, 2
      %v600 = vor.u32 %v596, %v599
      %v618 = vunpack.c.l.b16 %v577
      %v619 = vunpack.c.l.b16 %v578
      %v620 = vunpack.c.l.b16 %v579
      %v621 = vunpack.c.l.b16 %v580
      %v622 = vunpack.c.l.b16 %v581
      %v623 = vunpack.c.l.b16 %v582
      %v624 = vunpack.c.l.b16 %v583
      %v625 = vunpack.c.l.b16 %v584
      %v626 = vunpack.c.l.b16 %v585
      %v627 = vunpack.c.l.b16 %v586
      %v628 = vunpack.c.l.b16 %v587
      %v629 = vunpack.c.l.b16 %v588
      %v630 = vunpack.c.l.b16 %v589
      %v631 = vunpack.c.l.b16 %v590
      %v632 = vunpack.c.l.b16 %v591
      %v633 = vunpack.c.l.b16 %v592
      %v634 = vpack.c.b16 %v619, %v618
      %v635 = vpack.c.b16 %v621, %v620
      %v636 = vpack.c.b16 %v623, %v622
      %v637 = vpack.c.b16 %v625, %v624
      %v638 = vpack.c.b16 %v627, %v626
      %v639 = vpack.c.b16 %v629, %v628
      %v640 = vpack.c.b16 %v631, %v630
      %v641 = vpack.c.b16 %v633, %v632
      %650 = vmatprep.subr.bf16.mxu0 0
      %651 = vmatpush1.bf16.msra.mxu0 %v641
      %652 = vmatprep.subr.bf16.mxu0 0
      %653 = vmatpush1.bf16.msra.mxu0 %v640
      %654 = vmatprep.subr.bf16.mxu0 0
      %655 = vmatpush1.bf16.msra.mxu0 %v639
      %656 = vmatprep.subr.bf16.mxu0 0
      %657 = vmatpush1.bf16.msra.mxu0 %v638
      %658 = vmatprep.subr.bf16.mxu0 0
      %659 = vmatpush1.bf16.msra.mxu0 %v637
      %660 = vmatprep.subr.bf16.mxu0 0
      %661 = vmatpush1.bf16.msra.mxu0 %v636
      %662 = vmatprep.subr.bf16.mxu0 0
      %663 = vmatpush1.bf16.msra.mxu0 %v635
      %664 = vmatprep.subr.bf16.mxu0 0
      %665 = vmatpush1.bf16.msra.mxu0 %v634
      %666 = vmatprep.subr.bf16.mxu0 0
      %667 = vmatpush2.bf16.msra.mxu0 0
      %668 = vmatprep.subr.bf16.mxu0 0
      %669 = vmatpush2.bf16.msra.mxu0 0
      %670 = vmatprep.subr.bf16.mxu0 0
      %671 = vmatpush2.bf16.msra.mxu0 0
      %672 = vmatprep.subr.bf16.mxu0 0
      %673 = vmatpush2.bf16.msra.mxu0 0
      %674 = vmatprep.subr.bf16.mxu0 0
      %675 = vmatpush2.bf16.msra.mxu0 0
      %676 = vmatprep.subr.bf16.mxu0 0
      %677 = vmatpush2.bf16.msra.mxu0 0
      %678 = vmatprep.subr.bf16.mxu0 0
      %679 = vmatpush2.bf16.msra.mxu0 0
      %680 = vmatprep.subr.bf16.mxu0 0
      %681 = vmatpush2.bf16.msra.mxu0 0
      %682 = vmatprep.mubr.bf16.mxu0 0
      %683 = vmatmul.mubr.bf16.gmra.mxu0 %v600
      %v684 = vpop.f32.mrf.mxu0
      %v685 = vadd.f32 0.0, %v684
      %v686 = vpop.f32.mrf.mxu0
      %v687 = vpop.f32.mrf.mxu0
      %v688 = vpop.f32.mrf.mxu0
      %689 = vdwg.mxu0
      %v690 = vadd.f32 %v575, %v685
      %s691 = sadd.s32 %s22, 1
      %s692 = smul.addr %s691, 4
      %s693 = scalar_lea.vmem %s231, %s692
      %v694 = vld [vmem:[%s693] sm:$0x3]
      %s695 = scalar_lea.vmem %s1, 256
      %v696 = vld [vmem:[%s695] sm:$0xf]
      %v697 = vld [vmem:[%s695 + $0x4] sm:$0xf]
      %v698 = vld [vmem:[%s695 + $0x8] sm:$0xf]
      %v699 = vld [vmem:[%s695 + $0xc] sm:$0xf]
      %v700 = vld [vmem:[%s695 + $0x10] sm:$0xf]
      %v701 = vld [vmem:[%s695 + $0x14] sm:$0xf]
      %v702 = vld [vmem:[%s695 + $0x18] sm:$0xf]
      %v703 = vld [vmem:[%s695 + $0x1c] sm:$0xf]
      %v704 = vld [vmem:[%s695 + $0x20] sm:$0xf]
      %v705 = vld [vmem:[%s695 + $0x24] sm:$0xf]
      %v706 = vld [vmem:[%s695 + $0x28] sm:$0xf]
      %v707 = vld [vmem:[%s695 + $0x2c] sm:$0xf]
      %v708 = vld [vmem:[%s695 + $0x30] sm:$0xf]
      %v709 = vld [vmem:[%s695 + $0x34] sm:$0xf]
      %v710 = vld [vmem:[%s695 + $0x38] sm:$0xf]
      %v711 = vld [vmem:[%s695 + $0x3c] sm:$0xf]
      %v728 = vunpack.c.l.b16 %v696
      %v729 = vunpack.c.l.b16 %v697
      %v730 = vunpack.c.l.b16 %v698
      %v731 = vunpack.c.l.b16 %v699
      %v732 = vunpack.c.l.b16 %v700
      %v733 = vunpack.c.l.b16 %v701
      %v734 = vunpack.c.l.b16 %v702
      %v735 = vunpack.c.l.b16 %v703
      %v736 = vunpack.c.l.b16 %v704
      %v737 = vunpack.c.l.b16 %v705
      %v738 = vunpack.c.l.b16 %v706
      %v739 = vunpack.c.l.b16 %v707
      %v740 = vunpack.c.l.b16 %v708
      %v741 = vunpack.c.l.b16 %v709
      %v742 = vunpack.c.l.b16 %v710
      %v743 = vunpack.c.l.b16 %v711
      %v744 = vpack.c.b16 %v729, %v728
      %v745 = vpack.c.b16 %v731, %v730
      %v746 = vpack.c.b16 %v733, %v732
      %v747 = vpack.c.b16 %v735, %v734
      %v748 = vpack.c.b16 %v737, %v736
      %v749 = vpack.c.b16 %v739, %v738
      %v750 = vpack.c.b16 %v741, %v740
      %v751 = vpack.c.b16 %v743, %v742
      %760 = vmatprep.subr.bf16.mxu0 0
      %761 = vmatpush1.bf16.msra.mxu0 %v751
      %762 = vmatprep.subr.bf16.mxu0 0
      %763 = vmatpush1.bf16.msra.mxu0 %v750
      %764 = vmatprep.subr.bf16.mxu0 0
      %765 = vmatpush1.bf16.msra.mxu0 %v749
      %766 = vmatprep.subr.bf16.mxu0 0
      %767 = vmatpush1.bf16.msra.mxu0 %v748
      %768 = vmatprep.subr.bf16.mxu0 0
      %769 = vmatpush1.bf16.msra.mxu0 %v747
      %770 = vmatprep.subr.bf16.mxu0 0
      %771 = vmatpush1.bf16.msra.mxu0 %v746
      %772 = vmatprep.subr.bf16.mxu0 0
      %773 = vmatpush1.bf16.msra.mxu0 %v745
      %774 = vmatprep.subr.bf16.mxu0 0
      %775 = vmatpush1.bf16.msra.mxu0 %v744
      %776 = vmatprep.subr.bf16.mxu0 0
      %777 = vmatpush2.bf16.msra.mxu0 0
      %778 = vmatprep.subr.bf16.mxu0 0
      %779 = vmatpush2.bf16.msra.mxu0 0
      %780 = vmatprep.subr.bf16.mxu0 0
      %781 = vmatpush2.bf16.msra.mxu0 0
      %782 = vmatprep.subr.bf16.mxu0 0
      %783 = vmatpush2.bf16.msra.mxu0 0
      %784 = vmatprep.subr.bf16.mxu0 0
      %785 = vmatpush2.bf16.msra.mxu0 0
      %786 = vmatprep.subr.bf16.mxu0 0
      %787 = vmatpush2.bf16.msra.mxu0 0
      %788 = vmatprep.subr.bf16.mxu0 0
      %789 = vmatpush2.bf16.msra.mxu0 0
      %790 = vmatprep.subr.bf16.mxu0 0
      %791 = vmatpush2.bf16.msra.mxu0 0
      %792 = vmatprep.mubr.bf16.mxu0 0
      %793 = vmatmul.mubr.bf16.gmra.mxu0 %v694
      %v794 = vpop.f32.mrf.mxu0
      %v795 = vadd.f32 0.0, %v794
      %v796 = vpop.f32.mrf.mxu0
      %v797 = vpop.f32.mrf.mxu0
      %v798 = vpop.f32.mrf.mxu0
      %799 = vdwg.mxu0
      %v800 = vadd.f32 %v690, %v795
      %s801 = scalar_lea.vmem %s1, 320
      %v802 = vld [vmem:[%s801] sm:$0xf]
      %v803 = vld [vmem:[%s801 + $0x4] sm:$0xf]
      %v804 = vld [vmem:[%s801 + $0x8] sm:$0xf]
      %v805 = vld [vmem:[%s801 + $0xc] sm:$0xf]
      %v806 = vld [vmem:[%s801 + $0x10] sm:$0xf]
      %v807 = vld [vmem:[%s801 + $0x14] sm:$0xf]
      %v808 = vld [vmem:[%s801 + $0x18] sm:$0xf]
      %v809 = vld [vmem:[%s801 + $0x1c] sm:$0xf]
      %v810 = vld [vmem:[%s801 + $0x20] sm:$0xf]
      %v811 = vld [vmem:[%s801 + $0x24] sm:$0xf]
      %v812 = vld [vmem:[%s801 + $0x28] sm:$0xf]
      %v813 = vld [vmem:[%s801 + $0x2c] sm:$0xf]
      %v814 = vld [vmem:[%s801 + $0x30] sm:$0xf]
      %v815 = vld [vmem:[%s801 + $0x34] sm:$0xf]
      %v816 = vld [vmem:[%s801 + $0x38] sm:$0xf]
      %v817 = vld [vmem:[%s801 + $0x3c] sm:$0xf]
      %v819 = vunpack.c.l.b16 %v694
      %v820 = vpack.c.b16 %v819, %v819
      %v822 = vshrl.u32 %v820, 16
      %v824 = vshll.u32 %v820, 16
      %v826 = vrot.slane %v824, 1
      %v827 = vor.u32 %v822, %v826
      %v845 = vunpack.c.l.b16 %v802
      %v846 = vunpack.c.l.b16 %v803
      %v847 = vunpack.c.l.b16 %v804
      %v848 = vunpack.c.l.b16 %v805
      %v849 = vunpack.c.l.b16 %v806
      %v850 = vunpack.c.l.b16 %v807
      %v851 = vunpack.c.l.b16 %v808
      %v852 = vunpack.c.l.b16 %v809
      %v853 = vunpack.c.l.b16 %v810
      %v854 = vunpack.c.l.b16 %v811
      %v855 = vunpack.c.l.b16 %v812
      %v856 = vunpack.c.l.b16 %v813
      %v857 = vunpack.c.l.b16 %v814
      %v858 = vunpack.c.l.b16 %v815
      %v859 = vunpack.c.l.b16 %v816
      %v860 = vunpack.c.l.b16 %v817
      %v861 = vpack.c.b16 %v846, %v845
      %v862 = vpack.c.b16 %v848, %v847
      %v863 = vpack.c.b16 %v850, %v849
      %v864 = vpack.c.b16 %v852, %v851
      %v865 = vpack.c.b16 %v854, %v853
      %v866 = vpack.c.b16 %v856, %v855
      %v867 = vpack.c.b16 %v858, %v857
      %v868 = vpack.c.b16 %v860, %v859
      %877 = vmatprep.subr.bf16.mxu0 0
      %878 = vmatpush1.bf16.msra.mxu0 %v868
      %879 = vmatprep.subr.bf16.mxu0 0
      %880 = vmatpush1.bf16.msra.mxu0 %v867
      %881 = vmatprep.subr.bf16.mxu0 0
      %882 = vmatpush1.bf16.msra.mxu0 %v866
      %883 = vmatprep.subr.bf16.mxu0 0
      %884 = vmatpush1.bf16.msra.mxu0 %v865
      %885 = vmatprep.subr.bf16.mxu0 0
      %886 = vmatpush1.bf16.msra.mxu0 %v864
      %887 = vmatprep.subr.bf16.mxu0 0
      %888 = vmatpush1.bf16.msra.mxu0 %v863
      %889 = vmatprep.subr.bf16.mxu0 0
      %890 = vmatpush1.bf16.msra.mxu0 %v862
      %891 = vmatprep.subr.bf16.mxu0 0
      %892 = vmatpush1.bf16.msra.mxu0 %v861
      %893 = vmatprep.subr.bf16.mxu0 0
      %894 = vmatpush2.bf16.msra.mxu0 0
      %895 = vmatprep.subr.bf16.mxu0 0
      %896 = vmatpush2.bf16.msra.mxu0 0
      %897 = vmatprep.subr.bf16.mxu0 0
      %898 = vmatpush2.bf16.msra.mxu0 0
      %899 = vmatprep.subr.bf16.mxu0 0
      %900 = vmatpush2.bf16.msra.mxu0 0
      %901 = vmatprep.subr.bf16.mxu0 0
      %902 = vmatpush2.bf16.msra.mxu0 0
      %903 = vmatprep.subr.bf16.mxu0 0
      %904 = vmatpush2.bf16.msra.mxu0 0
      %905 = vmatprep.subr.bf16.mxu0 0
      %906 = vmatpush2.bf16.msra.mxu0 0
      %907 = vmatprep.subr.bf16.mxu0 0
      %908 = vmatpush2.bf16.msra.mxu0 0
      %909 = vmatprep.mubr.bf16.mxu0 0
      %910 = vmatmul.mubr.bf16.gmra.mxu0 %v827
      %v911 = vpop.f32.mrf.mxu0
      %v912 = vadd.f32 0.0, %v911
      %v913 = vpop.f32.mrf.mxu0
      %v914 = vpop.f32.mrf.mxu0
      %v915 = vpop.f32.mrf.mxu0
      %916 = vdwg.mxu0
      %v917 = vadd.f32 %v800, %v912
      %v918 = vld [vmem:[%s693] sm:$0x6]
      %s919 = scalar_lea.vmem %s1, 384
      %v920 = vld [vmem:[%s919] sm:$0xf]
      %v921 = vld [vmem:[%s919 + $0x4] sm:$0xf]
      %v922 = vld [vmem:[%s919 + $0x8] sm:$0xf]
      %v923 = vld [vmem:[%s919 + $0xc] sm:$0xf]
      %v924 = vld [vmem:[%s919 + $0x10] sm:$0xf]
      %v925 = vld [vmem:[%s919 + $0x14] sm:$0xf]
      %v926 = vld [vmem:[%s919 + $0x18] sm:$0xf]
      %v927 = vld [vmem:[%s919 + $0x1c] sm:$0xf]
      %v928 = vld [vmem:[%s919 + $0x20] sm:$0xf]
      %v929 = vld [vmem:[%s919 + $0x24] sm:$0xf]
      %v930 = vld [vmem:[%s919 + $0x28] sm:$0xf]
      %v931 = vld [vmem:[%s919 + $0x2c] sm:$0xf]
      %v932 = vld [vmem:[%s919 + $0x30] sm:$0xf]
      %v933 = vld [vmem:[%s919 + $0x34] sm:$0xf]
      %v934 = vld [vmem:[%s919 + $0x38] sm:$0xf]
      %v935 = vld [vmem:[%s919 + $0x3c] sm:$0xf]
      %v937 = vunpack.c.l.b16 %v918
      %v938 = vpack.c.b16 %v937, %v937
      %v939 = vrot.slane %v938, 1
      %v957 = vunpack.c.l.b16 %v920
      %v958 = vunpack.c.l.b16 %v921
      %v959 = vunpack.c.l.b16 %v922
      %v960 = vunpack.c.l.b16 %v923
      %v961 = vunpack.c.l.b16 %v924
      %v962 = vunpack.c.l.b16 %v925
      %v963 = vunpack.c.l.b16 %v926
      %v964 = vunpack.c.l.b16 %v927
      %v965 = vunpack.c.l.b16 %v928
      %v966 = vunpack.c.l.b16 %v929
      %v967 = vunpack.c.l.b16 %v930
      %v968 = vunpack.c.l.b16 %v931
      %v969 = vunpack.c.l.b16 %v932
      %v970 = vunpack.c.l.b16 %v933
      %v971 = vunpack.c.l.b16 %v934
      %v972 = vunpack.c.l.b16 %v935
      %v973 = vpack.c.b16 %v958, %v957
      %v974 = vpack.c.b16 %v960, %v959
      %v975 = vpack.c.b16 %v962, %v961
      %v976 = vpack.c.b16 %v964, %v963
      %v977 = vpack.c.b16 %v966, %v965
      %v978 = vpack.c.b16 %v968, %v967
      %v979 = vpack.c.b16 %v970, %v969
      %v980 = vpack.c.b16 %v972, %v971
      %989 = vmatprep.subr.bf16.mxu0 0
      %990 = vmatpush1.bf16.msra.mxu0 %v980
      %991 = vmatprep.subr.bf16.mxu0 0
      %992 = vmatpush1.bf16.msra.mxu0 %v979
      %993 = vmatprep.subr.bf16.mxu0 0
      %994 = vmatpush1.bf16.msra.mxu0 %v978
      %995 = vmatprep.subr.bf16.mxu0 0
      %996 = vmatpush1.bf16.msra.mxu0 %v977
      %997 = vmatprep.subr.bf16.mxu0 0
      %998 = vmatpush1.bf16.msra.mxu0 %v976
      %999 = vmatprep.subr.bf16.mxu0 0
      %1000 = vmatpush1.bf16.msra.mxu0 %v975
      %1001 = vmatprep.subr.bf16.mxu0 0
      %1002 = vmatpush1.bf16.msra.mxu0 %v974
      %1003 = vmatprep.subr.bf16.mxu0 0
      %1004 = vmatpush1.bf16.msra.mxu0 %v973
      %1005 = vmatprep.subr.bf16.mxu0 0
      %1006 = vmatpush2.bf16.msra.mxu0 0
      %1007 = vmatprep.subr.bf16.mxu0 0
      %1008 = vmatpush2.bf16.msra.mxu0 0
      %1009 = vmatprep.subr.bf16.mxu0 0
      %1010 = vmatpush2.bf16.msra.mxu0 0
      %1011 = vmatprep.subr.bf16.mxu0 0
      %1012 = vmatpush2.bf16.msra.mxu0 0
      %1013 = vmatprep.subr.bf16.mxu0 0
      %1014 = vmatpush2.bf16.msra.mxu0 0
      %1015 = vmatprep.subr.bf16.mxu0 0
      %1016 = vmatpush2.bf16.msra.mxu0 0
      %1017 = vmatprep.subr.bf16.mxu0 0
      %1018 = vmatpush2.bf16.msra.mxu0 0
      %1019 = vmatprep.subr.bf16.mxu0 0
      %1020 = vmatpush2.bf16.msra.mxu0 0
      %1021 = vmatprep.mubr.bf16.mxu0 0
      %1022 = vmatmul.mubr.bf16.gmra.mxu0 %v939
      %v1023 = vpop.f32.mrf.mxu0
      %v1024 = vadd.f32 0.0, %v1023
      %v1025 = vpop.f32.mrf.mxu0
      %v1026 = vpop.f32.mrf.mxu0
      %v1027 = vpop.f32.mrf.mxu0
      %1028 = vdwg.mxu0
      %v1029 = vadd.f32 %v917, %v1024
      %s1030 = scalar_lea.vmem %s1, 448
      %v1031 = vld [vmem:[%s1030] sm:$0xf]
      %v1032 = vld [vmem:[%s1030 + $0x4] sm:$0xf]
      %v1033 = vld [vmem:[%s1030 + $0x8] sm:$0xf]
      %v1034 = vld [vmem:[%s1030 + $0xc] sm:$0xf]
      %v1035 = vld [vmem:[%s1030 + $0x10] sm:$0xf]
      %v1036 = vld [vmem:[%s1030 + $0x14] sm:$0xf]
      %v1037 = vld [vmem:[%s1030 + $0x18] sm:$0xf]
      %v1038 = vld [vmem:[%s1030 + $0x1c] sm:$0xf]
      %v1039 = vld [vmem:[%s1030 + $0x20] sm:$0xf]
      %v1040 = vld [vmem:[%s1030 + $0x24] sm:$0xf]
      %v1041 = vld [vmem:[%s1030 + $0x28] sm:$0xf]
      %v1042 = vld [vmem:[%s1030 + $0x2c] sm:$0xf]
      %v1043 = vld [vmem:[%s1030 + $0x30] sm:$0xf]
      %v1044 = vld [vmem:[%s1030 + $0x34] sm:$0xf]
      %v1045 = vld [vmem:[%s1030 + $0x38] sm:$0xf]
      %v1046 = vld [vmem:[%s1030 + $0x3c] sm:$0xf]
      %v1048 = vshrl.u32 %v938, 16
      %v1050 = vrot.slane %v1048, 1
      %v1051 = vshll.u32 %v938, 16
      %v1053 = vrot.slane %v1051, 2
      %v1054 = vor.u32 %v1050, %v1053
      %v1072 = vunpack.c.l.b16 %v1031
      %v1073 = vunpack.c.l.b16 %v1032
      %v1074 = vunpack.c.l.b16 %v1033
      %v1075 = vunpack.c.l.b16 %v1034
      %v1076 = vunpack.c.l.b16 %v1035
      %v1077 = vunpack.c.l.b16 %v1036
      %v1078 = vunpack.c.l.b16 %v1037
      %v1079 = vunpack.c.l.b16 %v1038
      %v1080 = vunpack.c.l.b16 %v1039
      %v1081 = vunpack.c.l.b16 %v1040
      %v1082 = vunpack.c.l.b16 %v1041
      %v1083 = vunpack.c.l.b16 %v1042
      %v1084 = vunpack.c.l.b16 %v1043
      %v1085 = vunpack.c.l.b16 %v1044
      %v1086 = vunpack.c.l.b16 %v1045
      %v1087 = vunpack.c.l.b16 %v1046
      %v1088 = vpack.c.b16 %v1073, %v1072
      %v1089 = vpack.c.b16 %v1075, %v1074
      %v1090 = vpack.c.b16 %v1077, %v1076
      %v1091 = vpack.c.b16 %v1079, %v1078
      %v1092 = vpack.c.b16 %v1081, %v1080
      %v1093 = vpack.c.b16 %v1083, %v1082
      %v1094 = vpack.c.b16 %v1085, %v1084
      %v1095 = vpack.c.b16 %v1087, %v1086
      %1104 = vmatprep.subr.bf16.mxu0 0
      %1105 = vmatpush1.bf16.msra.mxu0 %v1095
      %1106 = vmatprep.subr.bf16.mxu0 0
      %1107 = vmatpush1.bf16.msra.mxu0 %v1094
      %1108 = vmatprep.subr.bf16.mxu0 0
      %1109 = vmatpush1.bf16.msra.mxu0 %v1093
      %1110 = vmatprep.subr.bf16.mxu0 0
      %1111 = vmatpush1.bf16.msra.mxu0 %v1092
      %1112 = vmatprep.subr.bf16.mxu0 0
      %1113 = vmatpush1.bf16.msra.mxu0 %v1091
      %1114 = vmatprep.subr.bf16.mxu0 0
      %1115 = vmatpush1.bf16.msra.mxu0 %v1090
      %1116 = vmatprep.subr.bf16.mxu0 0
      %1117 = vmatpush1.bf16.msra.mxu0 %v1089
      %1118 = vmatprep.subr.bf16.mxu0 0
      %1119 = vmatpush1.bf16.msra.mxu0 %v1088
      %1120 = vmatprep.subr.bf16.mxu0 0
      %1121 = vmatpush2.bf16.msra.mxu0 0
      %1122 = vmatprep.subr.bf16.mxu0 0
      %1123 = vmatpush2.bf16.msra.mxu0 0
      %1124 = vmatprep.subr.bf16.mxu0 0
      %1125 = vmatpush2.bf16.msra.mxu0 0
      %1126 = vmatprep.subr.bf16.mxu0 0
      %1127 = vmatpush2.bf16.msra.mxu0 0
      %1128 = vmatprep.subr.bf16.mxu0 0
      %1129 = vmatpush2.bf16.msra.mxu0 0
      %1130 = vmatprep.subr.bf16.mxu0 0
      %1131 = vmatpush2.bf16.msra.mxu0 0
      %1132 = vmatprep.subr.bf16.mxu0 0
      %1133 = vmatpush2.bf16.msra.mxu0 0
      %1134 = vmatprep.subr.bf16.mxu0 0
      %1135 = vmatpush2.bf16.msra.mxu0 0
      %1136 = vmatprep.mubr.bf16.mxu0 0
      %1137 = vmatmul.mubr.bf16.gmra.mxu0 %v1054
      %v1138 = vpop.f32.mrf.mxu0
      %v1139 = vadd.f32 0.0, %v1138
      %v1140 = vpop.f32.mrf.mxu0
      %v1141 = vpop.f32.mrf.mxu0
      %v1142 = vpop.f32.mrf.mxu0
      %1143 = vdwg.mxu0
      %v1144 = vadd.f32 %v1029, %v1139
      %s1145 = sadd.s32 %s22, 2
      %s1146 = smul.addr %s1145, 4
      %s1147 = scalar_lea.vmem %s231, %s1146
      %v1148 = vld [vmem:[%s1147] sm:$0x3]
      %s1149 = scalar_lea.vmem %s1, 512
      %v1150 = vld [vmem:[%s1149] sm:$0xf]
      %v1151 = vld [vmem:[%s1149 + $0x4] sm:$0xf]
      %v1152 = vld [vmem:[%s1149 + $0x8] sm:$0xf]
      %v1153 = vld [vmem:[%s1149 + $0xc] sm:$0xf]
      %v1154 = vld [vmem:[%s1149 + $0x10] sm:$0xf]
      %v1155 = vld [vmem:[%s1149 + $0x14] sm:$0xf]
      %v1156 = vld [vmem:[%s1149 + $0x18] sm:$0xf]
      %v1157 = vld [vmem:[%s1149 + $0x1c] sm:$0xf]
      %v1158 = vld [vmem:[%s1149 + $0x20] sm:$0xf]
      %v1159 = vld [vmem:[%s1149 + $0x24] sm:$0xf]
      %v1160 = vld [vmem:[%s1149 + $0x28] sm:$0xf]
      %v1161 = vld [vmem:[%s1149 + $0x2c] sm:$0xf]
      %v1162 = vld [vmem:[%s1149 + $0x30] sm:$0xf]
      %v1163 = vld [vmem:[%s1149 + $0x34] sm:$0xf]
      %v1164 = vld [vmem:[%s1149 + $0x38] sm:$0xf]
      %v1165 = vld [vmem:[%s1149 + $0x3c] sm:$0xf]
      %v1182 = vunpack.c.l.b16 %v1150
      %v1183 = vunpack.c.l.b16 %v1151
      %v1184 = vunpack.c.l.b16 %v1152
      %v1185 = vunpack.c.l.b16 %v1153
      %v1186 = vunpack.c.l.b16 %v1154
      %v1187 = vunpack.c.l.b16 %v1155
      %v1188 = vunpack.c.l.b16 %v1156
      %v1189 = vunpack.c.l.b16 %v1157
      %v1190 = vunpack.c.l.b16 %v1158
      %v1191 = vunpack.c.l.b16 %v1159
      %v1192 = vunpack.c.l.b16 %v1160
      %v1193 = vunpack.c.l.b16 %v1161
      %v1194 = vunpack.c.l.b16 %v1162
      %v1195 = vunpack.c.l.b16 %v1163
      %v1196 = vunpack.c.l.b16 %v1164
      %v1197 = vunpack.c.l.b16 %v1165
      %v1198 = vpack.c.b16 %v1183, %v1182
      %v1199 = vpack.c.b16 %v1185, %v1184
      %v1200 = vpack.c.b16 %v1187, %v1186
      %v1201 = vpack.c.b16 %v1189, %v1188
      %v1202 = vpack.c.b16 %v1191, %v1190
      %v1203 = vpack.c.b16 %v1193, %v1192
      %v1204 = vpack.c.b16 %v1195, %v1194
      %v1205 = vpack.c.b16 %v1197, %v1196
      %1214 = vmatprep.subr.bf16.mxu0 0
      %1215 = vmatpush1.bf16.msra.mxu0 %v1205
      %1216 = vmatprep.subr.bf16.mxu0 0
      %1217 = vmatpush1.bf16.msra.mxu0 %v1204
      %1218 = vmatprep.subr.bf16.mxu0 0
      %1219 = vmatpush1.bf16.msra.mxu0 %v1203
      %1220 = vmatprep.subr.bf16.mxu0 0
      %1221 = vmatpush1.bf16.msra.mxu0 %v1202
      %1222 = vmatprep.subr.bf16.mxu0 0
      %1223 = vmatpush1.bf16.msra.mxu0 %v1201
      %1224 = vmatprep.subr.bf16.mxu0 0
      %1225 = vmatpush1.bf16.msra.mxu0 %v1200
      %1226 = vmatprep.subr.bf16.mxu0 0
      %1227 = vmatpush1.bf16.msra.mxu0 %v1199
      %1228 = vmatprep.subr.bf16.mxu0 0
      %1229 = vmatpush1.bf16.msra.mxu0 %v1198
      %1230 = vmatprep.subr.bf16.mxu0 0
      %1231 = vmatpush2.bf16.msra.mxu0 0
      %1232 = vmatprep.subr.bf16.mxu0 0
      %1233 = vmatpush2.bf16.msra.mxu0 0
      %1234 = vmatprep.subr.bf16.mxu0 0
      %1235 = vmatpush2.bf16.msra.mxu0 0
      %1236 = vmatprep.subr.bf16.mxu0 0
      %1237 = vmatpush2.bf16.msra.mxu0 0
      %1238 = vmatprep.subr.bf16.mxu0 0
      %1239 = vmatpush2.bf16.msra.mxu0 0
      %1240 = vmatprep.subr.bf16.mxu0 0
      %1241 = vmatpush2.bf16.msra.mxu0 0
      %1242 = vmatprep.subr.bf16.mxu0 0
      %1243 = vmatpush2.bf16.msra.mxu0 0
      %1244 = vmatprep.subr.bf16.mxu0 0
      %1245 = vmatpush2.bf16.msra.mxu0 0
      %1246 = vmatprep.mubr.bf16.mxu0 0
      %1247 = vmatmul.mubr.bf16.gmra.mxu0 %v1148
      %v1248 = vpop.f32.mrf.mxu0
      %v1249 = vadd.f32 0.0, %v1248
      %v1250 = vpop.f32.mrf.mxu0
      %v1251 = vpop.f32.mrf.mxu0
      %v1252 = vpop.f32.mrf.mxu0
      %1253 = vdwg.mxu0
      %v1254 = vadd.f32 %v1144, %v1249
      %s1255 = scalar_lea.vmem %s1, 576
      %v1256 = vld [vmem:[%s1255] sm:$0xf]
      %v1257 = vld [vmem:[%s1255 + $0x4] sm:$0xf]
      %v1258 = vld [vmem:[%s1255 + $0x8] sm:$0xf]
      %v1259 = vld [vmem:[%s1255 + $0xc] sm:$0xf]
      %v1260 = vld [vmem:[%s1255 + $0x10] sm:$0xf]
      %v1261 = vld [vmem:[%s1255 + $0x14] sm:$0xf]
      %v1262 = vld [vmem:[%s1255 + $0x18] sm:$0xf]
      %v1263 = vld [vmem:[%s1255 + $0x1c] sm:$0xf]
      %v1264 = vld [vmem:[%s1255 + $0x20] sm:$0xf]
      %v1265 = vld [vmem:[%s1255 + $0x24] sm:$0xf]
      %v1266 = vld [vmem:[%s1255 + $0x28] sm:$0xf]
      %v1267 = vld [vmem:[%s1255 + $0x2c] sm:$0xf]
      %v1268 = vld [vmem:[%s1255 + $0x30] sm:$0xf]
      %v1269 = vld [vmem:[%s1255 + $0x34] sm:$0xf]
      %v1270 = vld [vmem:[%s1255 + $0x38] sm:$0xf]
      %v1271 = vld [vmem:[%s1255 + $0x3c] sm:$0xf]
      %v1273 = vunpack.c.l.b16 %v1148
      %v1274 = vpack.c.b16 %v1273, %v1273
      %v1276 = vshrl.u32 %v1274, 16
      %v1278 = vshll.u32 %v1274, 16
      %v1280 = vrot.slane %v1278, 1
      %v1281 = vor.u32 %v1276, %v1280
      %v1299 = vunpack.c.l.b16 %v1256
      %v1300 = vunpack.c.l.b16 %v1257
      %v1301 = vunpack.c.l.b16 %v1258
      %v1302 = vunpack.c.l.b16 %v1259
      %v1303 = vunpack.c.l.b16 %v1260
      %v1304 = vunpack.c.l.b16 %v1261
      %v1305 = vunpack.c.l.b16 %v1262
      %v1306 = vunpack.c.l.b16 %v1263
      %v1307 = vunpack.c.l.b16 %v1264
      %v1308 = vunpack.c.l.b16 %v1265
      %v1309 = vunpack.c.l.b16 %v1266
      %v1310 = vunpack.c.l.b16 %v1267
      %v1311 = vunpack.c.l.b16 %v1268
      %v1312 = vunpack.c.l.b16 %v1269
      %v1313 = vunpack.c.l.b16 %v1270
      %v1314 = vunpack.c.l.b16 %v1271
      %v1315 = vpack.c.b16 %v1300, %v1299
      %v1316 = vpack.c.b16 %v1302, %v1301
      %v1317 = vpack.c.b16 %v1304, %v1303
      %v1318 = vpack.c.b16 %v1306, %v1305
      %v1319 = vpack.c.b16 %v1308, %v1307
      %v1320 = vpack.c.b16 %v1310, %v1309
      %v1321 = vpack.c.b16 %v1312, %v1311
      %v1322 = vpack.c.b16 %v1314, %v1313
      %1331 = vmatprep.subr.bf16.mxu0 0
      %1332 = vmatpush1.bf16.msra.mxu0 %v1322
      %1333 = vmatprep.subr.bf16.mxu0 0
      %1334 = vmatpush1.bf16.msra.mxu0 %v1321
      %1335 = vmatprep.subr.bf16.mxu0 0
      %1336 = vmatpush1.bf16.msra.mxu0 %v1320
      %1337 = vmatprep.subr.bf16.mxu0 0
      %1338 = vmatpush1.bf16.msra.mxu0 %v1319
      %1339 = vmatprep.subr.bf16.mxu0 0
      %1340 = vmatpush1.bf16.msra.mxu0 %v1318
      %1341 = vmatprep.subr.bf16.mxu0 0
      %1342 = vmatpush1.bf16.msra.mxu0 %v1317
      %1343 = vmatprep.subr.bf16.mxu0 0
      %1344 = vmatpush1.bf16.msra.mxu0 %v1316
      %1345 = vmatprep.subr.bf16.mxu0 0
      %1346 = vmatpush1.bf16.msra.mxu0 %v1315
      %1347 = vmatprep.subr.bf16.mxu0 0
      %1348 = vmatpush2.bf16.msra.mxu0 0
      %1349 = vmatprep.subr.bf16.mxu0 0
      %1350 = vmatpush2.bf16.msra.mxu0 0
      %1351 = vmatprep.subr.bf16.mxu0 0
      %1352 = vmatpush2.bf16.msra.mxu0 0
      %1353 = vmatprep.subr.bf16.mxu0 0
      %1354 = vmatpush2.bf16.msra.mxu0 0
      %1355 = vmatprep.subr.bf16.mxu0 0
      %1356 = vmatpush2.bf16.msra.mxu0 0
      %1357 = vmatprep.subr.bf16.mxu0 0
      %1358 = vmatpush2.bf16.msra.mxu0 0
      %1359 = vmatprep.subr.bf16.mxu0 0
      %1360 = vmatpush2.bf16.msra.mxu0 0
      %1361 = vmatprep.subr.bf16.mxu0 0
      %1362 = vmatpush2.bf16.msra.mxu0 0
      %1363 = vmatprep.mubr.bf16.mxu0 0
      %1364 = vmatmul.mubr.bf16.gmra.mxu0 %v1281
      %v1365 = vpop.f32.mrf.mxu0
      %v1366 = vadd.f32 0.0, %v1365
      %v1367 = vpop.f32.mrf.mxu0
      %v1368 = vpop.f32.mrf.mxu0
      %v1369 = vpop.f32.mrf.mxu0
      %1370 = vdwg.mxu0
      %v1371 = vadd.f32 %v1254, %v1366
      %v1372 = vld [vmem:[%s1147] sm:$0x6]
      %s1373 = scalar_lea.vmem %s1, 640
      %v1374 = vld [vmem:[%s1373] sm:$0xf]
      %v1375 = vld [vmem:[%s1373 + $0x4] sm:$0xf]
      %v1376 = vld [vmem:[%s1373 + $0x8] sm:$0xf]
      %v1377 = vld [vmem:[%s1373 + $0xc] sm:$0xf]
      %v1378 = vld [vmem:[%s1373 + $0x10] sm:$0xf]
      %v1379 = vld [vmem:[%s1373 + $0x14] sm:$0xf]
      %v1380 = vld [vmem:[%s1373 + $0x18] sm:$0xf]
      %v1381 = vld [vmem:[%s1373 + $0x1c] sm:$0xf]
      %v1382 = vld [vmem:[%s1373 + $0x20] sm:$0xf]
      %v1383 = vld [vmem:[%s1373 + $0x24] sm:$0xf]
      %v1384 = vld [vmem:[%s1373 + $0x28] sm:$0xf]
      %v1385 = vld [vmem:[%s1373 + $0x2c] sm:$0xf]
      %v1386 = vld [vmem:[%s1373 + $0x30] sm:$0xf]
      %v1387 = vld [vmem:[%s1373 + $0x34] sm:$0xf]
      %v1388 = vld [vmem:[%s1373 + $0x38] sm:$0xf]
      %v1389 = vld [vmem:[%s1373 + $0x3c] sm:$0xf]
      %v1391 = vunpack.c.l.b16 %v1372
      %v1392 = vpack.c.b16 %v1391, %v1391
      %v1393 = vrot.slane %v1392, 1
      %v1411 = vunpack.c.l.b16 %v1374
      %v1412 = vunpack.c.l.b16 %v1375
      %v1413 = vunpack.c.l.b16 %v1376
      %v1414 = vunpack.c.l.b16 %v1377
      %v1415 = vunpack.c.l.b16 %v1378
      %v1416 = vunpack.c.l.b16 %v1379
      %v1417 = vunpack.c.l.b16 %v1380
      %v1418 = vunpack.c.l.b16 %v1381
      %v1419 = vunpack.c.l.b16 %v1382
      %v1420 = vunpack.c.l.b16 %v1383
      %v1421 = vunpack.c.l.b16 %v1384
      %v1422 = vunpack.c.l.b16 %v1385
      %v1423 = vunpack.c.l.b16 %v1386
      %v1424 = vunpack.c.l.b16 %v1387
      %v1425 = vunpack.c.l.b16 %v1388
      %v1426 = vunpack.c.l.b16 %v1389
      %v1427 = vpack.c.b16 %v1412, %v1411
      %v1428 = vpack.c.b16 %v1414, %v1413
      %v1429 = vpack.c.b16 %v1416, %v1415
      %v1430 = vpack.c.b16 %v1418, %v1417
      %v1431 = vpack.c.b16 %v1420, %v1419
      %v1432 = vpack.c.b16 %v1422, %v1421
      %v1433 = vpack.c.b16 %v1424, %v1423
      %v1434 = vpack.c.b16 %v1426, %v1425
      %1443 = vmatprep.subr.bf16.mxu0 0
      %1444 = vmatpush1.bf16.msra.mxu0 %v1434
      %1445 = vmatprep.subr.bf16.mxu0 0
      %1446 = vmatpush1.bf16.msra.mxu0 %v1433
      %1447 = vmatprep.subr.bf16.mxu0 0
      %1448 = vmatpush1.bf16.msra.mxu0 %v1432
      %1449 = vmatprep.subr.bf16.mxu0 0
      %1450 = vmatpush1.bf16.msra.mxu0 %v1431
      %1451 = vmatprep.subr.bf16.mxu0 0
      %1452 = vmatpush1.bf16.msra.mxu0 %v1430
      %1453 = vmatprep.subr.bf16.mxu0 0
      %1454 = vmatpush1.bf16.msra.mxu0 %v1429
      %1455 = vmatprep.subr.bf16.mxu0 0
      %1456 = vmatpush1.bf16.msra.mxu0 %v1428
      %1457 = vmatprep.subr.bf16.mxu0 0
      %1458 = vmatpush1.bf16.msra.mxu0 %v1427
      %1459 = vmatprep.subr.bf16.mxu0 0
      %1460 = vmatpush2.bf16.msra.mxu0 0
      %1461 = vmatprep.subr.bf16.mxu0 0
      %1462 = vmatpush2.bf16.msra.mxu0 0
      %1463 = vmatprep.subr.bf16.mxu0 0
      %1464 = vmatpush2.bf16.msra.mxu0 0
      %1465 = vmatprep.subr.bf16.mxu0 0
      %1466 = vmatpush2.bf16.msra.mxu0 0
      %1467 = vmatprep.subr.bf16.mxu0 0
      %1468 = vmatpush2.bf16.msra.mxu0 0
      %1469 = vmatprep.subr.bf16.mxu0 0
      %1470 = vmatpush2.bf16.msra.mxu0 0
      %1471 = vmatprep.subr.bf16.mxu0 0
      %1472 = vmatpush2.bf16.msra.mxu0 0
      %1473 = vmatprep.subr.bf16.mxu0 0
      %1474 = vmatpush2.bf16.msra.mxu0 0
      %1475 = vmatprep.mubr.bf16.mxu0 0
      %1476 = vmatmul.mubr.bf16.gmra.mxu0 %v1393
      %v1477 = vpop.f32.mrf.mxu0
      %v1478 = vadd.f32 0.0, %v1477
      %v1479 = vpop.f32.mrf.mxu0
      %v1480 = vpop.f32.mrf.mxu0
      %v1481 = vpop.f32.mrf.mxu0
      %1482 = vdwg.mxu0
      %v1483 = vadd.f32 %v1371, %v1478
      %s1484 = scalar_lea.vmem %s1, 704
      %v1485 = vld [vmem:[%s1484] sm:$0xf]
      %v1486 = vld [vmem:[%s1484 + $0x4] sm:$0xf]
      %v1487 = vld [vmem:[%s1484 + $0x8] sm:$0xf]
      %v1488 = vld [vmem:[%s1484 + $0xc] sm:$0xf]
      %v1489 = vld [vmem:[%s1484 + $0x10] sm:$0xf]
      %v1490 = vld [vmem:[%s1484 + $0x14] sm:$0xf]
      %v1491 = vld [vmem:[%s1484 + $0x18] sm:$0xf]
      %v1492 = vld [vmem:[%s1484 + $0x1c] sm:$0xf]
      %v1493 = vld [vmem:[%s1484 + $0x20] sm:$0xf]
      %v1494 = vld [vmem:[%s1484 + $0x24] sm:$0xf]
      %v1495 = vld [vmem:[%s1484 + $0x28] sm:$0xf]
      %v1496 = vld [vmem:[%s1484 + $0x2c] sm:$0xf]
      %v1497 = vld [vmem:[%s1484 + $0x30] sm:$0xf]
      %v1498 = vld [vmem:[%s1484 + $0x34] sm:$0xf]
      %v1499 = vld [vmem:[%s1484 + $0x38] sm:$0xf]
      %v1500 = vld [vmem:[%s1484 + $0x3c] sm:$0xf]
      %v1502 = vshrl.u32 %v1392, 16
      %v1504 = vrot.slane %v1502, 1
      %v1505 = vshll.u32 %v1392, 16
      %v1507 = vrot.slane %v1505, 2
      %v1508 = vor.u32 %v1504, %v1507
      %v1526 = vunpack.c.l.b16 %v1485
      %v1527 = vunpack.c.l.b16 %v1486
      %v1528 = vunpack.c.l.b16 %v1487
      %v1529 = vunpack.c.l.b16 %v1488
      %v1530 = vunpack.c.l.b16 %v1489
      %v1531 = vunpack.c.l.b16 %v1490
      %v1532 = vunpack.c.l.b16 %v1491
      %v1533 = vunpack.c.l.b16 %v1492
      %v1534 = vunpack.c.l.b16 %v1493
      %v1535 = vunpack.c.l.b16 %v1494
      %v1536 = vunpack.c.l.b16 %v1495
      %v1537 = vunpack.c.l.b16 %v1496
      %v1538 = vunpack.c.l.b16 %v1497
      %v1539 = vunpack.c.l.b16 %v1498
      %v1540 = vunpack.c.l.b16 %v1499
      %v1541 = vunpack.c.l.b16 %v1500
      %v1542 = vpack.c.b16 %v1527, %v1526
      %v1543 = vpack.c.b16 %v1529, %v1528
      %v1544 = vpack.c.b16 %v1531, %v1530
      %v1545 = vpack.c.b16 %v1533, %v1532
      %v1546 = vpack.c.b16 %v1535, %v1534
      %v1547 = vpack.c.b16 %v1537, %v1536
      %v1548 = vpack.c.b16 %v1539, %v1538
      %v1549 = vpack.c.b16 %v1541, %v1540
      %1558 = vmatprep.subr.bf16.mxu0 0
      %1559 = vmatpush1.bf16.msra.mxu0 %v1549
      %1560 = vmatprep.subr.bf16.mxu0 0
      %1561 = vmatpush1.bf16.msra.mxu0 %v1548
      %1562 = vmatprep.subr.bf16.mxu0 0
      %1563 = vmatpush1.bf16.msra.mxu0 %v1547
      %1564 = vmatprep.subr.bf16.mxu0 0
      %1565 = vmatpush1.bf16.msra.mxu0 %v1546
      %1566 = vmatprep.subr.bf16.mxu0 0
      %1567 = vmatpush1.bf16.msra.mxu0 %v1545
      %1568 = vmatprep.subr.bf16.mxu0 0
      %1569 = vmatpush1.bf16.msra.mxu0 %v1544
      %1570 = vmatprep.subr.bf16.mxu0 0
      %1571 = vmatpush1.bf16.msra.mxu0 %v1543
      %1572 = vmatprep.subr.bf16.mxu0 0
      %1573 = vmatpush1.bf16.msra.mxu0 %v1542
      %1574 = vmatprep.subr.bf16.mxu0 0
      %1575 = vmatpush2.bf16.msra.mxu0 0
      %1576 = vmatprep.subr.bf16.mxu0 0
      %1577 = vmatpush2.bf16.msra.mxu0 0
      %1578 = vmatprep.subr.bf16.mxu0 0
      %1579 = vmatpush2.bf16.msra.mxu0 0
      %1580 = vmatprep.subr.bf16.mxu0 0
      %1581 = vmatpush2.bf16.msra.mxu0 0
      %1582 = vmatprep.subr.bf16.mxu0 0
      %1583 = vmatpush2.bf16.msra.mxu0 0
      %1584 = vmatprep.subr.bf16.mxu0 0
      %1585 = vmatpush2.bf16.msra.mxu0 0
      %1586 = vmatprep.subr.bf16.mxu0 0
      %1587 = vmatpush2.bf16.msra.mxu0 0
      %1588 = vmatprep.subr.bf16.mxu0 0
      %1589 = vmatpush2.bf16.msra.mxu0 0
      %1590 = vmatprep.mubr.bf16.mxu0 0
      %1591 = vmatmul.mubr.bf16.gmra.mxu0 %v1508
      %v1592 = vpop.f32.mrf.mxu0
      %v1593 = vadd.f32 0.0, %v1592
      %v1594 = vpop.f32.mrf.mxu0
      %v1595 = vpop.f32.mrf.mxu0
      %v1596 = vpop.f32.mrf.mxu0
      %1597 = vdwg.mxu0
      %v1598 = vadd.f32 %v1483, %v1593
      %s1599 = sadd.s32 %s22, 3
      %s1600 = smul.addr %s1599, 4
      %s1601 = scalar_lea.vmem %s231, %s1600
      %v1602 = vld [vmem:[%s1601] sm:$0x3]
      %s1603 = scalar_lea.vmem %s1, 768
      %v1604 = vld [vmem:[%s1603] sm:$0xf]
      %v1605 = vld [vmem:[%s1603 + $0x4] sm:$0xf]
      %v1606 = vld [vmem:[%s1603 + $0x8] sm:$0xf]
      %v1607 = vld [vmem:[%s1603 + $0xc] sm:$0xf]
      %v1608 = vld [vmem:[%s1603 + $0x10] sm:$0xf]
      %v1609 = vld [vmem:[%s1603 + $0x14] sm:$0xf]
      %v1610 = vld [vmem:[%s1603 + $0x18] sm:$0xf]
      %v1611 = vld [vmem:[%s1603 + $0x1c] sm:$0xf]
      %v1612 = vld [vmem:[%s1603 + $0x20] sm:$0xf]
      %v1613 = vld [vmem:[%s1603 + $0x24] sm:$0xf]
      %v1614 = vld [vmem:[%s1603 + $0x28] sm:$0xf]
      %v1615 = vld [vmem:[%s1603 + $0x2c] sm:$0xf]
      %v1616 = vld [vmem:[%s1603 + $0x30] sm:$0xf]
      %v1617 = vld [vmem:[%s1603 + $0x34] sm:$0xf]
      %v1618 = vld [vmem:[%s1603 + $0x38] sm:$0xf]
      %v1619 = vld [vmem:[%s1603 + $0x3c] sm:$0xf]
      %v1636 = vunpack.c.l.b16 %v1604
      %v1637 = vunpack.c.l.b16 %v1605
      %v1638 = vunpack.c.l.b16 %v1606
      %v1639 = vunpack.c.l.b16 %v1607
      %v1640 = vunpack.c.l.b16 %v1608
      %v1641 = vunpack.c.l.b16 %v1609
      %v1642 = vunpack.c.l.b16 %v1610
      %v1643 = vunpack.c.l.b16 %v1611
      %v1644 = vunpack.c.l.b16 %v1612
      %v1645 = vunpack.c.l.b16 %v1613
      %v1646 = vunpack.c.l.b16 %v1614
      %v1647 = vunpack.c.l.b16 %v1615
      %v1648 = vunpack.c.l.b16 %v1616
      %v1649 = vunpack.c.l.b16 %v1617
      %v1650 = vunpack.c.l.b16 %v1618
      %v1651 = vunpack.c.l.b16 %v1619
      %v1652 = vpack.c.b16 %v1637, %v1636
      %v1653 = vpack.c.b16 %v1639, %v1638
      %v1654 = vpack.c.b16 %v1641, %v1640
      %v1655 = vpack.c.b16 %v1643, %v1642
      %v1656 = vpack.c.b16 %v1645, %v1644
      %v1657 = vpack.c.b16 %v1647, %v1646
      %v1658 = vpack.c.b16 %v1649, %v1648
      %v1659 = vpack.c.b16 %v1651, %v1650
      %1668 = vmatprep.subr.bf16.mxu0 0
      %1669 = vmatpush1.bf16.msra.mxu0 %v1659
      %1670 = vmatprep.subr.bf16.mxu0 0
      %1671 = vmatpush1.bf16.msra.mxu0 %v1658
      %1672 = vmatprep.subr.bf16.mxu0 0
      %1673 = vmatpush1.bf16.msra.mxu0 %v1657
      %1674 = vmatprep.subr.bf16.mxu0 0
      %1675 = vmatpush1.bf16.msra.mxu0 %v1656
      %1676 = vmatprep.subr.bf16.mxu0 0
      %1677 = vmatpush1.bf16.msra.mxu0 %v1655
      %1678 = vmatprep.subr.bf16.mxu0 0
      %1679 = vmatpush1.bf16.msra.mxu0 %v1654
      %1680 = vmatprep.subr.bf16.mxu0 0
      %1681 = vmatpush1.bf16.msra.mxu0 %v1653
      %1682 = vmatprep.subr.bf16.mxu0 0
      %1683 = vmatpush1.bf16.msra.mxu0 %v1652
      %1684 = vmatprep.subr.bf16.mxu0 0
      %1685 = vmatpush2.bf16.msra.mxu0 0
      %1686 = vmatprep.subr.bf16.mxu0 0
      %1687 = vmatpush2.bf16.msra.mxu0 0
      %1688 = vmatprep.subr.bf16.mxu0 0
      %1689 = vmatpush2.bf16.msra.mxu0 0
      %1690 = vmatprep.subr.bf16.mxu0 0
      %1691 = vmatpush2.bf16.msra.mxu0 0
      %1692 = vmatprep.subr.bf16.mxu0 0
      %1693 = vmatpush2.bf16.msra.mxu0 0
      %1694 = vmatprep.subr.bf16.mxu0 0
      %1695 = vmatpush2.bf16.msra.mxu0 0
      %1696 = vmatprep.subr.bf16.mxu0 0
      %1697 = vmatpush2.bf16.msra.mxu0 0
      %1698 = vmatprep.subr.bf16.mxu0 0
      %1699 = vmatpush2.bf16.msra.mxu0 0
      %1700 = vmatprep.mubr.bf16.mxu0 0
      %1701 = vmatmul.mubr.bf16.gmra.mxu0 %v1602
      %v1702 = vpop.f32.mrf.mxu0
      %v1703 = vadd.f32 0.0, %v1702
      %v1704 = vpop.f32.mrf.mxu0
      %v1705 = vpop.f32.mrf.mxu0
      %v1706 = vpop.f32.mrf.mxu0
      %1707 = vdwg.mxu0
      %v1708 = vadd.f32 %v1598, %v1703
      %s1709 = scalar_lea.vmem %s1, 832
      %v1710 = vld [vmem:[%s1709] sm:$0xf]
      %v1711 = vld [vmem:[%s1709 + $0x4] sm:$0xf]
      %v1712 = vld [vmem:[%s1709 + $0x8] sm:$0xf]
      %v1713 = vld [vmem:[%s1709 + $0xc] sm:$0xf]
      %v1714 = vld [vmem:[%s1709 + $0x10] sm:$0xf]
      %v1715 = vld [vmem:[%s1709 + $0x14] sm:$0xf]
      %v1716 = vld [vmem:[%s1709 + $0x18] sm:$0xf]
      %v1717 = vld [vmem:[%s1709 + $0x1c] sm:$0xf]
      %v1718 = vld [vmem:[%s1709 + $0x20] sm:$0xf]
      %v1719 = vld [vmem:[%s1709 + $0x24] sm:$0xf]
      %v1720 = vld [vmem:[%s1709 + $0x28] sm:$0xf]
      %v1721 = vld [vmem:[%s1709 + $0x2c] sm:$0xf]
      %v1722 = vld [vmem:[%s1709 + $0x30] sm:$0xf]
      %v1723 = vld [vmem:[%s1709 + $0x34] sm:$0xf]
      %v1724 = vld [vmem:[%s1709 + $0x38] sm:$0xf]
      %v1725 = vld [vmem:[%s1709 + $0x3c] sm:$0xf]
      %v1727 = vunpack.c.l.b16 %v1602
      %v1728 = vpack.c.b16 %v1727, %v1727
      %v1730 = vshrl.u32 %v1728, 16
      %v1732 = vshll.u32 %v1728, 16
      %v1734 = vrot.slane %v1732, 1
      %v1735 = vor.u32 %v1730, %v1734
      %v1753 = vunpack.c.l.b16 %v1710
      %v1754 = vunpack.c.l.b16 %v1711
      %v1755 = vunpack.c.l.b16 %v1712
      %v1756 = vunpack.c.l.b16 %v1713
      %v1757 = vunpack.c.l.b16 %v1714
      %v1758 = vunpack.c.l.b16 %v1715
      %v1759 = vunpack.c.l.b16 %v1716
      %v1760 = vunpack.c.l.b16 %v1717
      %v1761 = vunpack.c.l.b16 %v1718
      %v1762 = vunpack.c.l.b16 %v1719
      %v1763 = vunpack.c.l.b16 %v1720
      %v1764 = vunpack.c.l.b16 %v1721
      %v1765 = vunpack.c.l.b16 %v1722
      %v1766 = vunpack.c.l.b16 %v1723
      %v1767 = vunpack.c.l.b16 %v1724
      %v1768 = vunpack.c.l.b16 %v1725
      %v1769 = vpack.c.b16 %v1754, %v1753
      %v1770 = vpack.c.b16 %v1756, %v1755
      %v1771 = vpack.c.b16 %v1758, %v1757
      %v1772 = vpack.c.b16 %v1760, %v1759
      %v1773 = vpack.c.b16 %v1762, %v1761
      %v1774 = vpack.c.b16 %v1764, %v1763
      %v1775 = vpack.c.b16 %v1766, %v1765
      %v1776 = vpack.c.b16 %v1768, %v1767
      %1785 = vmatprep.subr.bf16.mxu0 0
      %1786 = vmatpush1.bf16.msra.mxu0 %v1776
      %1787 = vmatprep.subr.bf16.mxu0 0
      %1788 = vmatpush1.bf16.msra.mxu0 %v1775
      %1789 = vmatprep.subr.bf16.mxu0 0
      %1790 = vmatpush1.bf16.msra.mxu0 %v1774
      %1791 = vmatprep.subr.bf16.mxu0 0
      %1792 = vmatpush1.bf16.msra.mxu0 %v1773
      %1793 = vmatprep.subr.bf16.mxu0 0
      %1794 = vmatpush1.bf16.msra.mxu0 %v1772
      %1795 = vmatprep.subr.bf16.mxu0 0
      %1796 = vmatpush1.bf16.msra.mxu0 %v1771
      %1797 = vmatprep.subr.bf16.mxu0 0
      %1798 = vmatpush1.bf16.msra.mxu0 %v1770
      %1799 = vmatprep.subr.bf16.mxu0 0
      %1800 = vmatpush1.bf16.msra.mxu0 %v1769
      %1801 = vmatprep.subr.bf16.mxu0 0
      %1802 = vmatpush2.bf16.msra.mxu0 0
      %1803 = vmatprep.subr.bf16.mxu0 0
      %1804 = vmatpush2.bf16.msra.mxu0 0
      %1805 = vmatprep.subr.bf16.mxu0 0
      %1806 = vmatpush2.bf16.msra.mxu0 0
      %1807 = vmatprep.subr.bf16.mxu0 0
      %1808 = vmatpush2.bf16.msra.mxu0 0
      %1809 = vmatprep.subr.bf16.mxu0 0
      %1810 = vmatpush2.bf16.msra.mxu0 0
      %1811 = vmatprep.subr.bf16.mxu0 0
      %1812 = vmatpush2.bf16.msra.mxu0 0
      %1813 = vmatprep.subr.bf16.mxu0 0
      %1814 = vmatpush2.bf16.msra.mxu0 0
      %1815 = vmatprep.subr.bf16.mxu0 0
      %1816 = vmatpush2.bf16.msra.mxu0 0
      %1817 = vmatprep.mubr.bf16.mxu0 0
      %1818 = vmatmul.mubr.bf16.gmra.mxu0 %v1735
      %v1819 = vpop.f32.mrf.mxu0
      %v1820 = vadd.f32 0.0, %v1819
      %v1821 = vpop.f32.mrf.mxu0
      %v1822 = vpop.f32.mrf.mxu0
      %v1823 = vpop.f32.mrf.mxu0
      %1824 = vdwg.mxu0
      %v1825 = vadd.f32 %v1708, %v1820
      %v1826 = vld [vmem:[%s1601] sm:$0x6]
      %s1827 = scalar_lea.vmem %s1, 896
      %v1828 = vld [vmem:[%s1827] sm:$0xf]
      %v1829 = vld [vmem:[%s1827 + $0x4] sm:$0xf]
      %v1830 = vld [vmem:[%s1827 + $0x8] sm:$0xf]
      %v1831 = vld [vmem:[%s1827 + $0xc] sm:$0xf]
      %v1832 = vld [vmem:[%s1827 + $0x10] sm:$0xf]
      %v1833 = vld [vmem:[%s1827 + $0x14] sm:$0xf]
      %v1834 = vld [vmem:[%s1827 + $0x18] sm:$0xf]
      %v1835 = vld [vmem:[%s1827 + $0x1c] sm:$0xf]
      %v1836 = vld [vmem:[%s1827 + $0x20] sm:$0xf]
      %v1837 = vld [vmem:[%s1827 + $0x24] sm:$0xf]
      %v1838 = vld [vmem:[%s1827 + $0x28] sm:$0xf]
      %v1839 = vld [vmem:[%s1827 + $0x2c] sm:$0xf]
      %v1840 = vld [vmem:[%s1827 + $0x30] sm:$0xf]
      %v1841 = vld [vmem:[%s1827 + $0x34] sm:$0xf]
      %v1842 = vld [vmem:[%s1827 + $0x38] sm:$0xf]
      %v1843 = vld [vmem:[%s1827 + $0x3c] sm:$0xf]
      %v1845 = vunpack.c.l.b16 %v1826
      %v1846 = vpack.c.b16 %v1845, %v1845
      %v1847 = vrot.slane %v1846, 1
      %v1865 = vunpack.c.l.b16 %v1828
      %v1866 = vunpack.c.l.b16 %v1829
      %v1867 = vunpack.c.l.b16 %v1830
      %v1868 = vunpack.c.l.b16 %v1831
      %v1869 = vunpack.c.l.b16 %v1832
      %v1870 = vunpack.c.l.b16 %v1833
      %v1871 = vunpack.c.l.b16 %v1834
      %v1872 = vunpack.c.l.b16 %v1835
      %v1873 = vunpack.c.l.b16 %v1836
      %v1874 = vunpack.c.l.b16 %v1837
      %v1875 = vunpack.c.l.b16 %v1838
      %v1876 = vunpack.c.l.b16 %v1839
      %v1877 = vunpack.c.l.b16 %v1840
      %v1878 = vunpack.c.l.b16 %v1841
      %v1879 = vunpack.c.l.b16 %v1842
      %v1880 = vunpack.c.l.b16 %v1843
      %v1881 = vpack.c.b16 %v1866, %v1865
      %v1882 = vpack.c.b16 %v1868, %v1867
      %v1883 = vpack.c.b16 %v1870, %v1869
      %v1884 = vpack.c.b16 %v1872, %v1871
      %v1885 = vpack.c.b16 %v1874, %v1873
      %v1886 = vpack.c.b16 %v1876, %v1875
      %v1887 = vpack.c.b16 %v1878, %v1877
      %v1888 = vpack.c.b16 %v1880, %v1879
      %1897 = vmatprep.subr.bf16.mxu0 0
      %1898 = vmatpush1.bf16.msra.mxu0 %v1888
      %1899 = vmatprep.subr.bf16.mxu0 0
      %1900 = vmatpush1.bf16.msra.mxu0 %v1887
      %1901 = vmatprep.subr.bf16.mxu0 0
      %1902 = vmatpush1.bf16.msra.mxu0 %v1886
      %1903 = vmatprep.subr.bf16.mxu0 0
      %1904 = vmatpush1.bf16.msra.mxu0 %v1885
      %1905 = vmatprep.subr.bf16.mxu0 0
      %1906 = vmatpush1.bf16.msra.mxu0 %v1884
      %1907 = vmatprep.subr.bf16.mxu0 0
      %1908 = vmatpush1.bf16.msra.mxu0 %v1883
      %1909 = vmatprep.subr.bf16.mxu0 0
      %1910 = vmatpush1.bf16.msra.mxu0 %v1882
      %1911 = vmatprep.subr.bf16.mxu0 0
      %1912 = vmatpush1.bf16.msra.mxu0 %v1881
      %1913 = vmatprep.subr.bf16.mxu0 0
      %1914 = vmatpush2.bf16.msra.mxu0 0
      %1915 = vmatprep.subr.bf16.mxu0 0
      %1916 = vmatpush2.bf16.msra.mxu0 0
      %1917 = vmatprep.subr.bf16.mxu0 0
      %1918 = vmatpush2.bf16.msra.mxu0 0
      %1919 = vmatprep.subr.bf16.mxu0 0
      %1920 = vmatpush2.bf16.msra.mxu0 0
      %1921 = vmatprep.subr.bf16.mxu0 0
      %1922 = vmatpush2.bf16.msra.mxu0 0
      %1923 = vmatprep.subr.bf16.mxu0 0
      %1924 = vmatpush2.bf16.msra.mxu0 0
      %1925 = vmatprep.subr.bf16.mxu0 0
      %1926 = vmatpush2.bf16.msra.mxu0 0
      %1927 = vmatprep.subr.bf16.mxu0 0
      %1928 = vmatpush2.bf16.msra.mxu0 0
      %1929 = vmatprep.mubr.bf16.mxu0 0
      %1930 = vmatmul.mubr.bf16.gmra.mxu0 %v1847
      %v1931 = vpop.f32.mrf.mxu0
      %v1932 = vadd.f32 0.0, %v1931
      %v1933 = vpop.f32.mrf.mxu0
      %v1934 = vpop.f32.mrf.mxu0
      %v1935 = vpop.f32.mrf.mxu0
      %1936 = vdwg.mxu0
      %v1937 = vadd.f32 %v1825, %v1932
      %s1938 = scalar_lea.vmem %s1, 960
      %v1939 = vld [vmem:[%s1938] sm:$0xf]
      %v1940 = vld [vmem:[%s1938 + $0x4] sm:$0xf]
      %v1941 = vld [vmem:[%s1938 + $0x8] sm:$0xf]
      %v1942 = vld [vmem:[%s1938 + $0xc] sm:$0xf]
      %v1943 = vld [vmem:[%s1938 + $0x10] sm:$0xf]
      %v1944 = vld [vmem:[%s1938 + $0x14] sm:$0xf]
      %v1945 = vld [vmem:[%s1938 + $0x18] sm:$0xf]
      %v1946 = vld [vmem:[%s1938 + $0x1c] sm:$0xf]
      %v1947 = vld [vmem:[%s1938 + $0x20] sm:$0xf]
      %v1948 = vld [vmem:[%s1938 + $0x24] sm:$0xf]
      %v1949 = vld [vmem:[%s1938 + $0x28] sm:$0xf]
      %v1950 = vld [vmem:[%s1938 + $0x2c] sm:$0xf]
      %v1951 = vld [vmem:[%s1938 + $0x30] sm:$0xf]
      %v1952 = vld [vmem:[%s1938 + $0x34] sm:$0xf]
      %v1953 = vld [vmem:[%s1938 + $0x38] sm:$0xf]
      %v1954 = vld [vmem:[%s1938 + $0x3c] sm:$0xf]
      %v1956 = vshrl.u32 %v1846, 16
      %v1958 = vrot.slane %v1956, 1
      %v1959 = vshll.u32 %v1846, 16
      %v1961 = vrot.slane %v1959, 2
      %v1962 = vor.u32 %v1958, %v1961
      %v1980 = vunpack.c.l.b16 %v1939
      %v1981 = vunpack.c.l.b16 %v1940
      %v1982 = vunpack.c.l.b16 %v1941
      %v1983 = vunpack.c.l.b16 %v1942
      %v1984 = vunpack.c.l.b16 %v1943
      %v1985 = vunpack.c.l.b16 %v1944
      %v1986 = vunpack.c.l.b16 %v1945
      %v1987 = vunpack.c.l.b16 %v1946
      %v1988 = vunpack.c.l.b16 %v1947
      %v1989 = vunpack.c.l.b16 %v1948
      %v1990 = vunpack.c.l.b16 %v1949
      %v1991 = vunpack.c.l.b16 %v1950
      %v1992 = vunpack.c.l.b16 %v1951
      %v1993 = vunpack.c.l.b16 %v1952
      %v1994 = vunpack.c.l.b16 %v1953
      %v1995 = vunpack.c.l.b16 %v1954
      %v1996 = vpack.c.b16 %v1981, %v1980
      %v1997 = vpack.c.b16 %v1983, %v1982
      %v1998 = vpack.c.b16 %v1985, %v1984
      %v1999 = vpack.c.b16 %v1987, %v1986
      %v2000 = vpack.c.b16 %v1989, %v1988
      %v2001 = vpack.c.b16 %v1991, %v1990
      %v2002 = vpack.c.b16 %v1993, %v1992
      %v2003 = vpack.c.b16 %v1995, %v1994
      %2012 = vmatprep.subr.bf16.mxu0 0
      %2013 = vmatpush1.bf16.msra.mxu0 %v2003
      %2014 = vmatprep.subr.bf16.mxu0 0
      %2015 = vmatpush1.bf16.msra.mxu0 %v2002
      %2016 = vmatprep.subr.bf16.mxu0 0
      %2017 = vmatpush1.bf16.msra.mxu0 %v2001
      %2018 = vmatprep.subr.bf16.mxu0 0
      %2019 = vmatpush1.bf16.msra.mxu0 %v2000
      %2020 = vmatprep.subr.bf16.mxu0 0
      %2021 = vmatpush1.bf16.msra.mxu0 %v1999
      %2022 = vmatprep.subr.bf16.mxu0 0
      %2023 = vmatpush1.bf16.msra.mxu0 %v1998
      %2024 = vmatprep.subr.bf16.mxu0 0
      %2025 = vmatpush1.bf16.msra.mxu0 %v1997
      %2026 = vmatprep.subr.bf16.mxu0 0
      %2027 = vmatpush1.bf16.msra.mxu0 %v1996
      %2028 = vmatprep.subr.bf16.mxu0 0
      %2029 = vmatpush2.bf16.msra.mxu0 0
      %2030 = vmatprep.subr.bf16.mxu0 0
      %2031 = vmatpush2.bf16.msra.mxu0 0
      %2032 = vmatprep.subr.bf16.mxu0 0
      %2033 = vmatpush2.bf16.msra.mxu0 0
      %2034 = vmatprep.subr.bf16.mxu0 0
      %2035 = vmatpush2.bf16.msra.mxu0 0
      %2036 = vmatprep.subr.bf16.mxu0 0
      %2037 = vmatpush2.bf16.msra.mxu0 0
      %2038 = vmatprep.subr.bf16.mxu0 0
      %2039 = vmatpush2.bf16.msra.mxu0 0
      %2040 = vmatprep.subr.bf16.mxu0 0
      %2041 = vmatpush2.bf16.msra.mxu0 0
      %2042 = vmatprep.subr.bf16.mxu0 0
      %2043 = vmatpush2.bf16.msra.mxu0 0
      %2044 = vmatprep.mubr.bf16.mxu0 0
      %2045 = vmatmul.mubr.bf16.gmra.mxu0 %v1962
      %v2046 = vpop.f32.mrf.mxu0
      %v2047 = vadd.f32 0.0, %v2046
      %v2048 = vpop.f32.mrf.mxu0
      %v2049 = vpop.f32.mrf.mxu0
      %v2050 = vpop.f32.mrf.mxu0
      %2051 = vdwg.mxu0
      %v2052 = vadd.f32 %v1937, %v2047
      %2053 = vst [vmem:[%s239] sm:$0x7] %v2052
      %p2054 = scmp.eq.s32.totalorder %s21, 0
      %p2055 = scmp.eq.s32.totalorder %s22, 0
      %p2056 = pnand %p2054, %p2055
      %p2057 = pneg %p2056
      // Predicated region
      $region33: #{_lambda_.13} parent=31 // pred_check
        _
      $region34: #{_lambda_.13} parent=31 // pred_check_branch
        %2059 = sbr.rel (%p2056) target = $region36
      $region35: #{_lambda_.13} parent=31 // pred_region
        %2060 = vst [vmem:[%s4] sm:$0x1] 0.0
        %2061 = vst [vmem:[%s5] sm:$0x1] 0.0
      $region36: #{_lambda_.13} parent=31 // pred_fallthru
        _
      %v2062 = vld [vmem:[%s4] sm:$0x1]
      %vm2063 = vcmask 1042432
      %v2064 = vsel %vm2063, %v2052, 0.0
      %v2065 = vrot.slane %v2064, 4
      %v2066 = vadd.f32 %v2064, %v2065
      %v2067 = vrot.slane %v2066, 2
      %v2068 = vadd.f32 %v2066, %v2067
      %v2069 = vrot.slane %v2068, 1
      %v2070 = vadd.f32 %v2068, %v2069
      %v2071 = vadd.f32 %v2062, %v2070
      %2072 = vst [vmem:[%s4] sm:$0x1] %v2071
      %v2073 = vld [vmem:[%s5] sm:$0x1]
      %v2074 = vmul.f32 %v2052, %v2052
      %v2075 = vsel %vm2063, %v2074, 0.0
      %v2076 = vrot.slane %v2075, 4
      %v2077 = vadd.f32 %v2075, %v2076
      %v2078 = vrot.slane %v2077, 2
      %v2079 = vadd.f32 %v2077, %v2078
      %v2080 = vrot.slane %v2079, 1
      %v2081 = vadd.f32 %v2079, %v2080
      %v2082 = vadd.f32 %v2073, %v2081
      %2083 = vst [vmem:[%s5] sm:$0x1] %v2082
      %p2084 = scmp.lt.s32.totalorder %s21, 1
      %s2085 = scalar_select %p2084, %s21, 1
      %p2086 = scmp.lt.s32.totalorder %s22, 2
      %s2087 = scalar_select %p2086, %s22, 2
      %s2088 = smul.addr %s2085, 3
      %s2089 = sadd.s32 %s2087, %s2088
      %s2090 = smul.addr %s2089, 4
      %s2091 = scalar_lea.vmem %s3, %s2090
      // Predicated region
      $region37: #{_lambda_.13} parent=31 // pred_check
        %p2092 = pneg %p117
      $region38: #{_lambda_.13} parent=31 // pred_check_branch
        %2094 = sbr.rel (%p2092) target = $region40
      $region39: #{_lambda_.13} parent=31 // pred_region
        _
      $region40: #{_lambda_.13} parent=31 // pred_fallthru
        _
      // Predicated region
      $region41: #{_lambda_.13} parent=31 // pred_check
        %p2095 = pneg %p138
      $region42: #{_lambda_.13} parent=31 // pred_check_branch
        %2097 = sbr.rel (%p2095) target = $region44
      $region43: #{_lambda_.13} parent=31 // pred_region
        _
      $region44: #{_lambda_.13} parent=31 // pred_fallthru
        _
      // Predicated region
      $region45: #{_lambda_.13} parent=31 // pred_check
        %p2098 = pneg %p159
      $region46: #{_lambda_.13} parent=31 // pred_check_branch
        %2100 = sbr.rel (%p2098) target = $region48
      $region47: #{_lambda_.13} parent=31 // pred_region
        _
      $region48: #{_lambda_.13} parent=31 // pred_fallthru
        _
      // Predicated region
      $region49: #{_lambda_.13} parent=31 // pred_check
        %p2101 = pneg %p138
      $region50: #{_lambda_.13} parent=31 // pred_check_branch
        %2103 = sbr.rel (%p2101) target = $region52
      $region51: #{_lambda_.13} parent=31 // pred_region
        _
      $region52: #{_lambda_.13} parent=31 // pred_fallthru
        _
      // Predicated region
      $region53: #{_lambda_.13} parent=31 // pred_check
        %p2104 = pneg %p159
      $region54: #{_lambda_.13} parent=31 // pred_check_branch
        %2106 = sbr.rel (%p2104) target = $region56
      $region55: #{_lambda_.13} parent=31 // pred_region
        _
      $region56: #{_lambda_.13} parent=31 // pred_fallthru
        _
    $region32: #{_lambda_.13} parent=5 // pred_fallthru
      _
    %p2107 = scmp.le.s32.totalorder 2, %s12
    // Predicated region
    $region57: #{_lambda_.13} parent=5 // pred_check
      %p2108 = pneg %p2107
    $region58: #{_lambda_.13} parent=5 // pred_check_branch
      %2110 = sbr.rel (%p2108) target = $region60
    $region59: #{_lambda_.13} parent=5 // pred_region
      %s2111 = ssub.s32 %s12, 2
      // Predicated region
      $region61: #{_lambda_.13} parent=59 // pred_check
        %p2112 = pneg %p123
      $region62: #{_lambda_.13} parent=59 // pred_check_branch
        %2114 = sbr.rel (%p2112) target = $region64
      $region63: #{_lambda_.13} parent=59 // pred_region
        %p2115 = scmp.lt.s32.totalorder %s23, 1
        %s2116 = scalar_select %p2115, %s23, 1
        %p2117 = scmp.lt.s32.totalorder %s24, 2
        %s2118 = scalar_select %p2117, %s24, 2
        %s2119 = smul.addr %s2116, 3
        %s2120 = sadd.s32 %s2118, %s2119
        %s2121 = smul.addr %s2120, 4
        %s2122 = scalar_lea.vmem %s3, %s2121
      $region64: #{_lambda_.13} parent=59 // pred_fallthru
        _
    $region60: #{_lambda_.13} parent=5 // pred_fallthru
      _
  $region6: #{_lambda_.13} parent=0 // loop_footer
    %s16 = sadd.s32 1, %s12
  $region7: #{_lambda_.13} parent=0 // loop_footer_branch
    %11 = sbr.rel target = $region3
  $region8: #{_lambda_.13} parent=0 // loop_exit
    _

// kernel: _lambda_.15
$region0: #{_lambda_.15}
  #allocation0 [shape = 'u32[]', space=smem, size = 0x4, offset = 0x4, fixed_abs, tag = 'smem constant byte address 0x4 - core index']
  #allocation1 [shape = 'u32[144,128]{1,0:T(1,128)}', space=vmem, size = 0x12000, scoped, tag = 'internal scratch']
  %s0 = inlined_call_operand.vmem [shape: bf16[2,5,5,128], index: 0, kind: input, shape index: {}]
  %s1 = inlined_call_operand.vmem [shape: bf16[16,128,128], index: 1, kind: input, shape index: {}]
  %s2 = inlined_call_operand.vmem [shape: f32[1,128], index: 2, kind: input, shape index: {}]
  %s3 = inlined_call_operand.vmem [shape: f32[2,2,2,128], index: 3, kind: output, shape index: {}]
  %s4 = sld [smem:[#allocation0]]
  $region45: #{_lambda_.15} parent=0
    _
  %s6 = ssub.s32 1, %s4
  %s7 = scalar_select 0, %s6, %s4
  loop: start=0, step=1, limit=6
  $region2: #{_lambda_.15} parent=0 // loop_pre_header
    _
  $region3: #{_lambda_.15} parent=0 // loop_header
    %s9 = sphi 0, %s13
    %p10 = scmp.ge.s32.totalorder %s9, 6
    %s16 = sphi 0, %s28
    %s17 = sphi 0, %s24
    %s18 = sphi 0, %s16
    %s19 = sphi 0, %s17
    %s20 = sphi 0, %s18
    %s21 = sphi 0, %s19
    %s31 = sphi 0, %s33
    %s34 = sphi 0, %s31
    %s35 = sphi 0, %s34
    %s51 = sphi 0, %s35
    %s55 = sphi 0, %s55
    %s57 = sphi 0, %s55
    %s58 = sphi 0, %s57
    %s72 = sphi 0, %s58
    %s76 = sphi 0, %s76
    %s78 = sphi 0, %s76
    %s79 = sphi 0, %s78
    %s93 = sphi 0, %s79
    %s101 = sphi 0, %s103
    %s104 = sphi 0, %s101
    %s105 = sphi 0, %s104
    %s121 = sphi 0, %s105
  $region4: #{_lambda_.15} parent=0 // loop_header_branch
    %12 = sbr.rel (%p10) target = $region8
  $region5: #{_lambda_.15} parent=0 // loop_body
    %s14 = ssub.s32 %s9, 1
    %s15 = ssub.s32 %s9, 2
    %s22 = sadd.s32 1, %s17
    %p23 = scmp.ge.s32.totalorder %s22, 2
    %s24 = scalar_select %p23, 0, %s22
    %s25 = sadd.s32 1, %s16
    %s26 = scalar_select %p23, %s25, %s16
    %p27 = scmp.ge.s32.totalorder %s26, 2
    %s28 = scalar_select %p27, 0, %s26
    %s29 = ssub.s32 %s16, %s28
    %p30 = scmp.eq.s32.totalorder %s29, 0
    %s32 = sadd.s32 %s31, 1
    %s33 = scalar_select %p30, %s31, %s32
    %p36 = pneg %p30
    %p37 = scmp.eq.s32.totalorder %s9, 3
    %p38 = por %p36, %p37
    %p39 = scmp.ne.s32.totalorder %s31, %s34
    %p40 = scmp.eq.s32.totalorder %s9, 0
    %p41 = por %p39, %p40
    %p42 = scmp.ne.s32.totalorder %s31, %s34
    %p43 = scmp.eq.s32.totalorder %s14, 3
    %p44 = por %p42, %p43
    %p45 = scmp.ne.s32.totalorder %s34, %s35
    %p46 = scmp.eq.s32.totalorder %s14, 0
    %p47 = por %p45, %p46
    %p48 = scmp.ne.s32.totalorder %s34, %s35
    %p49 = scmp.eq.s32.totalorder %s15, 3
    %p50 = por %p48, %p49
    %p52 = scmp.ne.s32.totalorder %s35, %s51
    %p53 = scmp.eq.s32.totalorder %s15, 0
    %p54 = por %p52, %p53
    %s56 = sadd.s32 %s55, 1
    %p59 = scmp.eq.s32.totalorder %s9, 3
    %p60 = scmp.ne.s32.totalorder %s55, %s57
    %p61 = scmp.eq.s32.totalorder %s9, 0
    %p62 = por %p60, %p61
    %p63 = scmp.ne.s32.totalorder %s55, %s57
    %p64 = scmp.eq.s32.totalorder %s14, 3
    %p65 = por %p63, %p64
    %p66 = scmp.ne.s32.totalorder %s57, %s58
    %p67 = scmp.eq.s32.totalorder %s14, 0
    %p68 = por %p66, %p67
    %p69 = scmp.ne.s32.totalorder %s57, %s58
    %p70 = scmp.eq.s32.totalorder %s15, 3
    %p71 = por %p69, %p70
    %p73 = scmp.ne.s32.totalorder %s58, %s72
    %p74 = scmp.eq.s32.totalorder %s15, 0
    %p75 = por %p73, %p74
    %s77 = sadd.s32 %s76, 1
    %p80 = scmp.eq.s32.totalorder %s9, 3
    %p81 = scmp.ne.s32.totalorder %s76, %s78
    %p82 = scmp.eq.s32.totalorder %s9, 0
    %p83 = por %p81, %p82
    %p84 = scmp.ne.s32.totalorder %s76, %s78
    %p85 = scmp.eq.s32.totalorder %s14, 3
    %p86 = por %p84, %p85
    %p87 = scmp.ne.s32.totalorder %s78, %s79
    %p88 = scmp.eq.s32.totalorder %s14, 0
    %p89 = por %p87, %p88
    %p90 = scmp.ne.s32.totalorder %s78, %s79
    %p91 = scmp.eq.s32.totalorder %s15, 3
    %p92 = por %p90, %p91
    %p94 = scmp.ne.s32.totalorder %s79, %s93
    %p95 = scmp.eq.s32.totalorder %s15, 0
    %p96 = por %p94, %p95
    %s97 = ssub.s32 %s16, %s28
    %s98 = ssub.s32 %s17, %s24
    %s99 = sor.u32 %s97, %s98
    %p100 = scmp.eq.s32.totalorder %s99, 0
    %s102 = sadd.s32 %s101, 1
    %s103 = scalar_select %p100, %s101, %s102
    %p106 = pneg %p100
    %p107 = scmp.eq.s32.totalorder %s9, 3
    %p108 = por %p106, %p107
    %p109 = scmp.ne.s32.totalorder %s101, %s104
    %p110 = scmp.eq.s32.totalorder %s9, 0
    %p111 = por %p109, %p110
    %p112 = scmp.ne.s32.totalorder %s101, %s104
    %p113 = scmp.eq.s32.totalorder %s14, 3
    %p114 = por %p112, %p113
    %p115 = scmp.ne.s32.totalorder %s104, %s105
    %p116 = scmp.eq.s32.totalorder %s14, 0
    %p117 = por %p115, %p116
    %p118 = scmp.ne.s32.totalorder %s104, %s105
    %p119 = scmp.eq.s32.totalorder %s15, 3
    %p120 = por %p118, %p119
    %p122 = scmp.ne.s32.totalorder %s105, %s121
    %p123 = scmp.eq.s32.totalorder %s15, 0
    %p124 = por %p122, %p123
    %p125 = scmp.le.s32.totalorder 1, %s9
    %p126 = scmp.lt.s32.totalorder %s9, 5
    %p127 = pnand %p125, %p126
    %p128 = pneg %p127
    // Predicated region
    $region9: #{_lambda_.15} parent=5 // pred_check
      _
    $region10: #{_lambda_.15} parent=5 // pred_check_branch
      %130 = sbr.rel (%p127) target = $region12
    $region11: #{_lambda_.15} parent=5 // pred_region
      %s131 = ssub.s32 %s9, 1
      // Predicated region
      $region13: #{_lambda_.15} parent=11 // pred_check
        %p132 = pneg %p68
      $region14: #{_lambda_.15} parent=11 // pred_check_branch
        %134 = sbr.rel (%p132) target = $region16
      $region15: #{_lambda_.15} parent=11 // pred_region
        _
      $region16: #{_lambda_.15} parent=11 // pred_fallthru
        _
      // Predicated region
      $region17: #{_lambda_.15} parent=11 // pred_check
        %p135 = pneg %p89
      $region18: #{_lambda_.15} parent=11 // pred_check_branch
        %137 = sbr.rel (%p135) target = $region20
      $region19: #{_lambda_.15} parent=11 // pred_region
        _
      $region20: #{_lambda_.15} parent=11 // pred_fallthru
        _
    $region12: #{_lambda_.15} parent=5 // pred_fallthru
      _
    %p138 = scmp.lt.s32.totalorder %s9, 4
    // Predicated region
    $region21: #{_lambda_.15} parent=5 // pred_check
      %p139 = pneg %p138
    $region22: #{_lambda_.15} parent=5 // pred_check_branch
      %141 = sbr.rel (%p139) target = $region24
    $region23: #{_lambda_.15} parent=5 // pred_region
      // Predicated region
      $region25: #{_lambda_.15} parent=23 // pred_check
        %p142 = pneg %p41
      $region26: #{_lambda_.15} parent=23 // pred_check_branch
        %144 = sbr.rel (%p142) target = $region28
      $region27: #{_lambda_.15} parent=23 // pred_region
        %p145 = scmp.lt.s32.totalorder %s16, 1
        %s146 = scalar_select %p145, %s16, 1
        %s147 = smul.addr %s146, 5
        %s148 = smul.addr %s147, 4
        %s149 = scalar_lea.vmem %s0, %s148
      $region28: #{_lambda_.15} parent=23 // pred_fallthru
        _
    $region24: #{_lambda_.15} parent=5 // pred_fallthru
      _
    %p150 = scmp.le.s32.totalorder 1, %s9
    %p151 = scmp.lt.s32.totalorder %s9, 5
    %p152 = pnand %p150, %p151
    %p153 = pneg %p152
    // Predicated region
    $region29: #{_lambda_.15} parent=5 // pred_check
      _
    $region30: #{_lambda_.15} parent=5 // pred_check_branch
      %155 = sbr.rel (%p152) target = $region32
    $region31: #{_lambda_.15} parent=5 // pred_region
      %s156 = ssub.s32 %s9, 1
      %p157 = scmp.lt.s32.totalorder %s18, 1
      %s158 = scalar_select %p157, %s18, 1
      %s159 = smul.addr %s158, 5
      %s160 = smul.addr %s159, 4
      %s161 = scalar_lea.vmem %s0, %s160
      %p162 = pneg %p47
      %p163 = pneg %p44
      %p164 = pneg %p68
      %p165 = pneg %p65
      %p166 = pneg %p89
      %p167 = pneg %p86
      %p168 = pneg %p117
      %p169 = pneg %p114
      %p170 = scmp.lt.s32.totalorder %s18, 1
      %s171 = scalar_select %p170, %s18, 1
      %p172 = scmp.lt.s32.totalorder %s19, 1
      %s173 = scalar_select %p172, %s19, 1
      %s174 = smul.addr %s171, 2
      %s175 = sadd.s32 %s173, %s174
      %s176 = smul.addr %s175, 2
      %s177 = scalar_lea.vmem %s3, %s176
      %p178 = scmp.lt.s32.totalorder %s18, 1
      %s179 = scalar_select %p178, %s18, 1
      %s180 = smul.addr %s179, 5
      %s181 = smul.addr %s180, 4
      %s182 = scalar_lea.vmem %s0, %s181
      %p183 = scmp.lt.s32.totalorder %s18, 1
      %s184 = scalar_select %p183, %s18, 1
      %p185 = scmp.lt.s32.totalorder %s19, 1
      %s186 = scalar_select %p185, %s19, 1
      %s187 = smul.addr %s184, 2
      %s188 = sadd.s32 %s186, %s187
      %s189 = smul.addr %s188, 2
      %s190 = scalar_lea.vmem %s3, %s189
      %s192 = smul.addr %s19, 4
      %s193 = scalar_lea.vmem %s182, %s192
      %v194 = vld [vmem:[%s193] sm:$0x1]
      %v195 = vld [vmem:[%s1] sm:$0xf]
      %v196 = vld [vmem:[%s1 + $0x4] sm:$0xf]
      %v197 = vld [vmem:[%s1 + $0x8] sm:$0xf]
      %v198 = vld [vmem:[%s1 + $0xc] sm:$0xf]
      %v199 = vld [vmem:[%s1 + $0x10] sm:$0xf]
      %v200 = vld [vmem:[%s1 + $0x14] sm:$0xf]
      %v201 = vld [vmem:[%s1 + $0x18] sm:$0xf]
      %v202 = vld [vmem:[%s1 + $0x1c] sm:$0xf]
      %v203 = vld [vmem:[%s1 + $0x20] sm:$0xf]
      %v204 = vld [vmem:[%s1 + $0x24] sm:$0xf]
      %v205 = vld [vmem:[%s1 + $0x28] sm:$0xf]
      %v206 = vld [vmem:[%s1 + $0x2c] sm:$0xf]
      %v207 = vld [vmem:[%s1 + $0x30] sm:$0xf]
      %v208 = vld [vmem:[%s1 + $0x34] sm:$0xf]
      %v209 = vld [vmem:[%s1 + $0x38] sm:$0xf]
      %v210 = vld [vmem:[%s1 + $0x3c] sm:$0xf]
      %v211 = vld [vmem:[%s193] sm:$0x3]
      %s212 = scalar_lea.vmem %s1, 64
      %v213 = vld [vmem:[%s212] sm:$0xf]
      %v214 = vld [vmem:[%s212 + $0x4] sm:$0xf]
      %v215 = vld [vmem:[%s212 + $0x8] sm:$0xf]
      %v216 = vld [vmem:[%s212 + $0xc] sm:$0xf]
      %v217 = vld [vmem:[%s212 + $0x10] sm:$0xf]
      %v218 = vld [vmem:[%s212 + $0x14] sm:$0xf]
      %v219 = vld [vmem:[%s212 + $0x18] sm:$0xf]
      %v220 = vld [vmem:[%s212 + $0x1c] sm:$0xf]
      %v221 = vld [vmem:[%s212 + $0x20] sm:$0xf]
      %v222 = vld [vmem:[%s212 + $0x24] sm:$0xf]
      %v223 = vld [vmem:[%s212 + $0x28] sm:$0xf]
      %v224 = vld [vmem:[%s212 + $0x2c] sm:$0xf]
      %v225 = vld [vmem:[%s212 + $0x30] sm:$0xf]
      %v226 = vld [vmem:[%s212 + $0x34] sm:$0xf]
      %v227 = vld [vmem:[%s212 + $0x38] sm:$0xf]
      %v228 = vld [vmem:[%s212 + $0x3c] sm:$0xf]
      %v230 = vunpack.c.l.b16 %v211
      %v231 = vpack.c.b16 %v230, %v230
      %v233 = vshrl.u32 %v231, 16
      %v235 = vshll.u32 %v231, 16
      %v237 = vrot.slane %v235, 1
      %v238 = vor.u32 %v233, %v237
      %v256 = vunpack.c.l.b16 %v213
      %v257 = vunpack.c.l.b16 %v214
      %v258 = vunpack.c.l.b16 %v215
      %v259 = vunpack.c.l.b16 %v216
      %v260 = vunpack.c.l.b16 %v217
      %v261 = vunpack.c.l.b16 %v218
      %v262 = vunpack.c.l.b16 %v219
      %v263 = vunpack.c.l.b16 %v220
      %v264 = vunpack.c.l.b16 %v221
      %v265 = vunpack.c.l.b16 %v222
      %v266 = vunpack.c.l.b16 %v223
      %v267 = vunpack.c.l.b16 %v224
      %v268 = vunpack.c.l.b16 %v225
      %v269 = vunpack.c.l.b16 %v226
      %v270 = vunpack.c.l.b16 %v227
      %v271 = vunpack.c.l.b16 %v228
      %v272 = vpack.c.b16 %v257, %v256
      %v273 = vpack.c.b16 %v259, %v258
      %v274 = vpack.c.b16 %v261, %v260
      %v275 = vpack.c.b16 %v263, %v262
      %v276 = vpack.c.b16 %v265, %v264
      %v277 = vpack.c.b16 %v267, %v266
      %v278 = vpack.c.b16 %v269, %v268
      %v279 = vpack.c.b16 %v271, %v270
      %288 = vmatprep.subr.bf16.mxu0 0
      %289 = vmatpush1.bf16.msra.mxu0 %v279
      %290 = vmatprep.subr.bf16.mxu0 0
      %291 = vmatpush1.bf16.msra.mxu0 %v278
      %292 = vmatprep.subr.bf16.mxu0 0
      %293 = vmatpush1.bf16.msra.mxu0 %v277
      %294 = vmatprep.subr.bf16.mxu0 0
      %295 = vmatpush1.bf16.msra.mxu0 %v276
      %296 = vmatprep.subr.bf16.mxu0 0
      %297 = vmatpush1.bf16.msra.mxu0 %v275
      %298 = vmatprep.subr.bf16.mxu0 0
      %299 = vmatpush1.bf16.msra.mxu0 %v274
      %300 = vmatprep.subr.bf16.mxu0 0
      %301 = vmatpush1.bf16.msra.mxu0 %v273
      %302 = vmatprep.subr.bf16.mxu0 0
      %303 = vmatpush1.bf16.msra.mxu0 %v272
      %304 = vmatprep.subr.bf16.mxu0 0
      %305 = vmatpush2.bf16.msra.mxu0 0
      %306 = vmatprep.subr.bf16.mxu0 0
      %307 = vmatpush2.bf16.msra.mxu0 0
      %308 = vmatprep.subr.bf16.mxu0 0
      %309 = vmatpush2.bf16.msra.mxu0 0
      %310 = vmatprep.subr.bf16.mxu0 0
      %311 = vmatpush2.bf16.msra.mxu0 0
      %312 = vmatprep.subr.bf16.mxu0 0
      %313 = vmatpush2.bf16.msra.mxu0 0
      %314 = vmatprep.subr.bf16.mxu0 0
      %315 = vmatpush2.bf16.msra.mxu0 0
      %316 = vmatprep.subr.bf16.mxu0 0
      %317 = vmatpush2.bf16.msra.mxu0 0
      %318 = vmatprep.subr.bf16.mxu0 0
      %319 = vmatpush2.bf16.msra.mxu0 0
      %320 = vmatprep.mubr.bf16.mxu0 0
      %321 = vmatmul.mubr.bf16.gmra.mxu0 %v238
      %v322 = vpop.f32.mrf.mxu0
      %v323 = vadd.f32 0.0, %v322
      %v324 = vpop.f32.mrf.mxu0
      %v325 = vpop.f32.mrf.mxu0
      %v326 = vpop.f32.mrf.mxu0
      %327 = vdwg.mxu0
      %v344 = vunpack.c.l.b16 %v195
      %v345 = vunpack.c.l.b16 %v196
      %v346 = vunpack.c.l.b16 %v197
      %v347 = vunpack.c.l.b16 %v198
      %v348 = vunpack.c.l.b16 %v199
      %v349 = vunpack.c.l.b16 %v200
      %v350 = vunpack.c.l.b16 %v201
      %v351 = vunpack.c.l.b16 %v202
      %v352 = vunpack.c.l.b16 %v203
      %v353 = vunpack.c.l.b16 %v204
      %v354 = vunpack.c.l.b16 %v205
      %v355 = vunpack.c.l.b16 %v206
      %v356 = vunpack.c.l.b16 %v207
      %v357 = vunpack.c.l.b16 %v208
      %v358 = vunpack.c.l.b16 %v209
      %v359 = vunpack.c.l.b16 %v210
      %v360 = vpack.c.b16 %v345, %v344
      %v361 = vpack.c.b16 %v347, %v346
      %v362 = vpack.c.b16 %v349, %v348
      %v363 = vpack.c.b16 %v351, %v350
      %v364 = vpack.c.b16 %v353, %v352
      %v365 = vpack.c.b16 %v355, %v354
      %v366 = vpack.c.b16 %v357, %v356
      %v367 = vpack.c.b16 %v359, %v358
      %376 = vmatprep.subr.bf16.mxu0 0
      %377 = vmatpush1.bf16.msra.mxu0 %v367
      %378 = vmatprep.subr.bf16.mxu0 0
      %379 = vmatpush1.bf16.msra.mxu0 %v366
      %380 = vmatprep.subr.bf16.mxu0 0
      %381 = vmatpush1.bf16.msra.mxu0 %v365
      %382 = vmatprep.subr.bf16.mxu0 0
      %383 = vmatpush1.bf16.msra.mxu0 %v364
      %384 = vmatprep.subr.bf16.mxu0 0
      %385 = vmatpush1.bf16.msra.mxu0 %v363
      %386 = vmatprep.subr.bf16.mxu0 0
      %387 = vmatpush1.bf16.msra.mxu0 %v362
      %388 = vmatprep.subr.bf16.mxu0 0
      %389 = vmatpush1.bf16.msra.mxu0 %v361
      %390 = vmatprep.subr.bf16.mxu0 0
      %391 = vmatpush1.bf16.msra.mxu0 %v360
      %392 = vmatprep.subr.bf16.mxu0 0
      %393 = vmatpush2.bf16.msra.mxu0 0
      %394 = vmatprep.subr.bf16.mxu0 0
      %395 = vmatpush2.bf16.msra.mxu0 0
      %396 = vmatprep.subr.bf16.mxu0 0
      %397 = vmatpush2.bf16.msra.mxu0 0
      %398 = vmatprep.subr.bf16.mxu0 0
      %399 = vmatpush2.bf16.msra.mxu0 0
      %400 = vmatprep.subr.bf16.mxu0 0
      %401 = vmatpush2.bf16.msra.mxu0 0
      %402 = vmatprep.subr.bf16.mxu0 0
      %403 = vmatpush2.bf16.msra.mxu0 0
      %404 = vmatprep.subr.bf16.mxu0 0
      %405 = vmatpush2.bf16.msra.mxu0 0
      %406 = vmatprep.subr.bf16.mxu0 0
      %407 = vmatpush2.bf16.msra.mxu0 0
      %408 = vmatprep.mubr.bf16.mxu0 0
      %409 = vmatmul.mubr.bf16.gmra.mxu0 %v194
      %v410 = vpop.f32.mrf.mxu0
      %v411 = vadd.f32 %v323, %v410
      %v412 = vpop.f32.mrf.mxu0
      %v413 = vpop.f32.mrf.mxu0
      %v414 = vpop.f32.mrf.mxu0
      %415 = vdwg.mxu0
      %v416 = vld [vmem:[%s193] sm:$0x2]
      %s417 = scalar_lea.vmem %s1, 128
      %v418 = vld [vmem:[%s417] sm:$0xf]
      %v419 = vld [vmem:[%s417 + $0x4] sm:$0xf]
      %v420 = vld [vmem:[%s417 + $0x8] sm:$0xf]
      %v421 = vld [vmem:[%s417 + $0xc] sm:$0xf]
      %v422 = vld [vmem:[%s417 + $0x10] sm:$0xf]
      %v423 = vld [vmem:[%s417 + $0x14] sm:$0xf]
      %v424 = vld [vmem:[%s417 + $0x18] sm:$0xf]
      %v425 = vld [vmem:[%s417 + $0x1c] sm:$0xf]
      %v426 = vld [vmem:[%s417 + $0x20] sm:$0xf]
      %v427 = vld [vmem:[%s417 + $0x24] sm:$0xf]
      %v428 = vld [vmem:[%s417 + $0x28] sm:$0xf]
      %v429 = vld [vmem:[%s417 + $0x2c] sm:$0xf]
      %v430 = vld [vmem:[%s417 + $0x30] sm:$0xf]
      %v431 = vld [vmem:[%s417 + $0x34] sm:$0xf]
      %v432 = vld [vmem:[%s417 + $0x38] sm:$0xf]
      %v433 = vld [vmem:[%s417 + $0x3c] sm:$0xf]
      %v435 = vunpack.c.l.b16 %v416
      %v436 = vpack.c.b16 %v435, %v435
      %v437 = vrot.slane %v436, 1
      %v455 = vunpack.c.l.b16 %v418
      %v456 = vunpack.c.l.b16 %v419
      %v457 = vunpack.c.l.b16 %v420
      %v458 = vunpack.c.l.b16 %v421
      %v459 = vunpack.c.l.b16 %v422
      %v460 = vunpack.c.l.b16 %v423
      %v461 = vunpack.c.l.b16 %v424
      %v462 = vunpack.c.l.b16 %v425
      %v463 = vunpack.c.l.b16 %v426
      %v464 = vunpack.c.l.b16 %v427
      %v465 = vunpack.c.l.b16 %v428
      %v466 = vunpack.c.l.b16 %v429
      %v467 = vunpack.c.l.b16 %v430
      %v468 = vunpack.c.l.b16 %v431
      %v469 = vunpack.c.l.b16 %v432
      %v470 = vunpack.c.l.b16 %v433
      %v471 = vpack.c.b16 %v456, %v455
      %v472 = vpack.c.b16 %v458, %v457
      %v473 = vpack.c.b16 %v460, %v459
      %v474 = vpack.c.b16 %v462, %v461
      %v475 = vpack.c.b16 %v464, %v463
      %v476 = vpack.c.b16 %v466, %v465
      %v477 = vpack.c.b16 %v468, %v467
      %v478 = vpack.c.b16 %v470, %v469
      %487 = vmatprep.subr.bf16.mxu0 0
      %488 = vmatpush1.bf16.msra.mxu0 %v478
      %489 = vmatprep.subr.bf16.mxu0 0
      %490 = vmatpush1.bf16.msra.mxu0 %v477
      %491 = vmatprep.subr.bf16.mxu0 0
      %492 = vmatpush1.bf16.msra.mxu0 %v476
      %493 = vmatprep.subr.bf16.mxu0 0
      %494 = vmatpush1.bf16.msra.mxu0 %v475
      %495 = vmatprep.subr.bf16.mxu0 0
      %496 = vmatpush1.bf16.msra.mxu0 %v474
      %497 = vmatprep.subr.bf16.mxu0 0
      %498 = vmatpush1.bf16.msra.mxu0 %v473
      %499 = vmatprep.subr.bf16.mxu0 0
      %500 = vmatpush1.bf16.msra.mxu0 %v472
      %501 = vmatprep.subr.bf16.mxu0 0
      %502 = vmatpush1.bf16.msra.mxu0 %v471
      %503 = vmatprep.subr.bf16.mxu0 0
      %504 = vmatpush2.bf16.msra.mxu0 0
      %505 = vmatprep.subr.bf16.mxu0 0
      %506 = vmatpush2.bf16.msra.mxu0 0
      %507 = vmatprep.subr.bf16.mxu0 0
      %508 = vmatpush2.bf16.msra.mxu0 0
      %509 = vmatprep.subr.bf16.mxu0 0
      %510 = vmatpush2.bf16.msra.mxu0 0
      %511 = vmatprep.subr.bf16.mxu0 0
      %512 = vmatpush2.bf16.msra.mxu0 0
      %513 = vmatprep.subr.bf16.mxu0 0
      %514 = vmatpush2.bf16.msra.mxu0 0
      %515 = vmatprep.subr.bf16.mxu0 0
      %516 = vmatpush2.bf16.msra.mxu0 0
      %517 = vmatprep.subr.bf16.mxu0 0
      %518 = vmatpush2.bf16.msra.mxu0 0
      %519 = vmatprep.mubr.bf16.mxu0 0
      %520 = vmatmul.mubr.bf16.gmra.mxu0 %v437
      %v521 = vpop.f32.mrf.mxu0
      %v522 = vadd.f32 0.0, %v521
      %v523 = vpop.f32.mrf.mxu0
      %v524 = vpop.f32.mrf.mxu0
      %v525 = vpop.f32.mrf.mxu0
      %526 = vdwg.mxu0
      %v527 = vadd.f32 %v411, %v522
      %v528 = vld [vmem:[%s193] sm:$0x6]
      %s529 = scalar_lea.vmem %s1, 192
      %v530 = vld [vmem:[%s529] sm:$0xf]
      %v531 = vld [vmem:[%s529 + $0x4] sm:$0xf]
      %v532 = vld [vmem:[%s529 + $0x8] sm:$0xf]
      %v533 = vld [vmem:[%s529 + $0xc] sm:$0xf]
      %v534 = vld [vmem:[%s529 + $0x10] sm:$0xf]
      %v535 = vld [vmem:[%s529 + $0x14] sm:$0xf]
      %v536 = vld [vmem:[%s529 + $0x18] sm:$0xf]
      %v537 = vld [vmem:[%s529 + $0x1c] sm:$0xf]
      %v538 = vld [vmem:[%s529 + $0x20] sm:$0xf]
      %v539 = vld [vmem:[%s529 + $0x24] sm:$0xf]
      %v540 = vld [vmem:[%s529 + $0x28] sm:$0xf]
      %v541 = vld [vmem:[%s529 + $0x2c] sm:$0xf]
      %v542 = vld [vmem:[%s529 + $0x30] sm:$0xf]
      %v543 = vld [vmem:[%s529 + $0x34] sm:$0xf]
      %v544 = vld [vmem:[%s529 + $0x38] sm:$0xf]
      %v545 = vld [vmem:[%s529 + $0x3c] sm:$0xf]
      %v547 = vunpack.c.l.b16 %v528
      %v548 = vpack.c.b16 %v547, %v547
      %v550 = vshrl.u32 %v548, 16
      %v552 = vrot.slane %v550, 1
      %v553 = vshll.u32 %v548, 16
      %v555 = vrot.slane %v553, 2
      %v556 = vor.u32 %v552, %v555
      %v574 = vunpack.c.l.b16 %v530
      %v575 = vunpack.c.l.b16 %v531
      %v576 = vunpack.c.l.b16 %v532
      %v577 = vunpack.c.l.b16 %v533
      %v578 = vunpack.c.l.b16 %v534
      %v579 = vunpack.c.l.b16 %v535
      %v580 = vunpack.c.l.b16 %v536
      %v581 = vunpack.c.l.b16 %v537
      %v582 = vunpack.c.l.b16 %v538
      %v583 = vunpack.c.l.b16 %v539
      %v584 = vunpack.c.l.b16 %v540
      %v585 = vunpack.c.l.b16 %v541
      %v586 = vunpack.c.l.b16 %v542
      %v587 = vunpack.c.l.b16 %v543
      %v588 = vunpack.c.l.b16 %v544
      %v589 = vunpack.c.l.b16 %v545
      %v590 = vpack.c.b16 %v575, %v574
      %v591 = vpack.c.b16 %v577, %v576
      %v592 = vpack.c.b16 %v579, %v578
      %v593 = vpack.c.b16 %v581, %v580
      %v594 = vpack.c.b16 %v583, %v582
      %v595 = vpack.c.b16 %v585, %v584
      %v596 = vpack.c.b16 %v587, %v586
      %v597 = vpack.c.b16 %v589, %v588
      %606 = vmatprep.subr.bf16.mxu0 0
      %607 = vmatpush1.bf16.msra.mxu0 %v597
      %608 = vmatprep.subr.bf16.mxu0 0
      %609 = vmatpush1.bf16.msra.mxu0 %v596
      %610 = vmatprep.subr.bf16.mxu0 0
      %611 = vmatpush1.bf16.msra.mxu0 %v595
      %612 = vmatprep.subr.bf16.mxu0 0
      %613 = vmatpush1.bf16.msra.mxu0 %v594
      %614 = vmatprep.subr.bf16.mxu0 0
      %615 = vmatpush1.bf16.msra.mxu0 %v593
      %616 = vmatprep.subr.bf16.mxu0 0
      %617 = vmatpush1.bf16.msra.mxu0 %v592
      %618 = vmatprep.subr.bf16.mxu0 0
      %619 = vmatpush1.bf16.msra.mxu0 %v591
      %620 = vmatprep.subr.bf16.mxu0 0
      %621 = vmatpush1.bf16.msra.mxu0 %v590
      %622 = vmatprep.subr.bf16.mxu0 0
      %623 = vmatpush2.bf16.msra.mxu0 0
      %624 = vmatprep.subr.bf16.mxu0 0
      %625 = vmatpush2.bf16.msra.mxu0 0
      %626 = vmatprep.subr.bf16.mxu0 0
      %627 = vmatpush2.bf16.msra.mxu0 0
      %628 = vmatprep.subr.bf16.mxu0 0
      %629 = vmatpush2.bf16.msra.mxu0 0
      %630 = vmatprep.subr.bf16.mxu0 0
      %631 = vmatpush2.bf16.msra.mxu0 0
      %632 = vmatprep.subr.bf16.mxu0 0
      %633 = vmatpush2.bf16.msra.mxu0 0
      %634 = vmatprep.subr.bf16.mxu0 0
      %635 = vmatpush2.bf16.msra.mxu0 0
      %636 = vmatprep.subr.bf16.mxu0 0
      %637 = vmatpush2.bf16.msra.mxu0 0
      %638 = vmatprep.mubr.bf16.mxu0 0
      %639 = vmatmul.mubr.bf16.gmra.mxu0 %v556
      %v640 = vpop.f32.mrf.mxu0
      %v641 = vadd.f32 0.0, %v640
      %v642 = vpop.f32.mrf.mxu0
      %v643 = vpop.f32.mrf.mxu0
      %v644 = vpop.f32.mrf.mxu0
      %645 = vdwg.mxu0
      %v646 = vadd.f32 %v527, %v641
      %s647 = sadd.s32 %s19, 1
      %s648 = smul.addr %s647, 4
      %s649 = scalar_lea.vmem %s182, %s648
      %v650 = vld [vmem:[%s649] sm:$0x1]
      %s651 = scalar_lea.vmem %s1, 256
      %v652 = vld [vmem:[%s651] sm:$0xf]
      %v653 = vld [vmem:[%s651 + $0x4] sm:$0xf]
      %v654 = vld [vmem:[%s651 + $0x8] sm:$0xf]
      %v655 = vld [vmem:[%s651 + $0xc] sm:$0xf]
      %v656 = vld [vmem:[%s651 + $0x10] sm:$0xf]
      %v657 = vld [vmem:[%s651 + $0x14] sm:$0xf]
      %v658 = vld [vmem:[%s651 + $0x18] sm:$0xf]
      %v659 = vld [vmem:[%s651 + $0x1c] sm:$0xf]
      %v660 = vld [vmem:[%s651 + $0x20] sm:$0xf]
      %v661 = vld [vmem:[%s651 + $0x24] sm:$0xf]
      %v662 = vld [vmem:[%s651 + $0x28] sm:$0xf]
      %v663 = vld [vmem:[%s651 + $0x2c] sm:$0xf]
      %v664 = vld [vmem:[%s651 + $0x30] sm:$0xf]
      %v665 = vld [vmem:[%s651 + $0x34] sm:$0xf]
      %v666 = vld [vmem:[%s651 + $0x38] sm:$0xf]
      %v667 = vld [vmem:[%s651 + $0x3c] sm:$0xf]
      %v684 = vunpack.c.l.b16 %v652
      %v685 = vunpack.c.l.b16 %v653
      %v686 = vunpack.c.l.b16 %v654
      %v687 = vunpack.c.l.b16 %v655
      %v688 = vunpack.c.l.b16 %v656
      %v689 = vunpack.c.l.b16 %v657
      %v690 = vunpack.c.l.b16 %v658
      %v691 = vunpack.c.l.b16 %v659
      %v692 = vunpack.c.l.b16 %v660
      %v693 = vunpack.c.l.b16 %v661
      %v694 = vunpack.c.l.b16 %v662
      %v695 = vunpack.c.l.b16 %v663
      %v696 = vunpack.c.l.b16 %v664
      %v697 = vunpack.c.l.b16 %v665
      %v698 = vunpack.c.l.b16 %v666
      %v699 = vunpack.c.l.b16 %v667
      %v700 = vpack.c.b16 %v685, %v684
      %v701 = vpack.c.b16 %v687, %v686
      %v702 = vpack.c.b16 %v689, %v688
      %v703 = vpack.c.b16 %v691, %v690
      %v704 = vpack.c.b16 %v693, %v692
      %v705 = vpack.c.b16 %v695, %v694
      %v706 = vpack.c.b16 %v697, %v696
      %v707 = vpack.c.b16 %v699, %v698
      %716 = vmatprep.subr.bf16.mxu0 0
      %717 = vmatpush1.bf16.msra.mxu0 %v707
      %718 = vmatprep.subr.bf16.mxu0 0
      %719 = vmatpush1.bf16.msra.mxu0 %v706
      %720 = vmatprep.subr.bf16.mxu0 0
      %721 = vmatpush1.bf16.msra.mxu0 %v705
      %722 = vmatprep.subr.bf16.mxu0 0
      %723 = vmatpush1.bf16.msra.mxu0 %v704
      %724 = vmatprep.subr.bf16.mxu0 0
      %725 = vmatpush1.bf16.msra.mxu0 %v703
      %726 = vmatprep.subr.bf16.mxu0 0
      %727 = vmatpush1.bf16.msra.mxu0 %v702
      %728 = vmatprep.subr.bf16.mxu0 0
      %729 = vmatpush1.bf16.msra.mxu0 %v701
      %730 = vmatprep.subr.bf16.mxu0 0
      %731 = vmatpush1.bf16.msra.mxu0 %v700
      %732 = vmatprep.subr.bf16.mxu0 0
      %733 = vmatpush2.bf16.msra.mxu0 0
      %734 = vmatprep.subr.bf16.mxu0 0
      %735 = vmatpush2.bf16.msra.mxu0 0
      %736 = vmatprep.subr.bf16.mxu0 0
      %737 = vmatpush2.bf16.msra.mxu0 0
      %738 = vmatprep.subr.bf16.mxu0 0
      %739 = vmatpush2.bf16.msra.mxu0 0
      %740 = vmatprep.subr.bf16.mxu0 0
      %741 = vmatpush2.bf16.msra.mxu0 0
      %742 = vmatprep.subr.bf16.mxu0 0
      %743 = vmatpush2.bf16.msra.mxu0 0
      %744 = vmatprep.subr.bf16.mxu0 0
      %745 = vmatpush2.bf16.msra.mxu0 0
      %746 = vmatprep.subr.bf16.mxu0 0
      %747 = vmatpush2.bf16.msra.mxu0 0
      %748 = vmatprep.mubr.bf16.mxu0 0
      %749 = vmatmul.mubr.bf16.gmra.mxu0 %v650
      %v750 = vpop.f32.mrf.mxu0
      %v751 = vadd.f32 0.0, %v750
      %v752 = vpop.f32.mrf.mxu0
      %v753 = vpop.f32.mrf.mxu0
      %v754 = vpop.f32.mrf.mxu0
      %755 = vdwg.mxu0
      %v756 = vadd.f32 %v646, %v751
      %v757 = vld [vmem:[%s649] sm:$0x3]
      %s758 = scalar_lea.vmem %s1, 320
      %v759 = vld [vmem:[%s758] sm:$0xf]
      %v760 = vld [vmem:[%s758 + $0x4] sm:$0xf]
      %v761 = vld [vmem:[%s758 + $0x8] sm:$0xf]
      %v762 = vld [vmem:[%s758 + $0xc] sm:$0xf]
      %v763 = vld [vmem:[%s758 + $0x10] sm:$0xf]
      %v764 = vld [vmem:[%s758 + $0x14] sm:$0xf]
      %v765 = vld [vmem:[%s758 + $0x18] sm:$0xf]
      %v766 = vld [vmem:[%s758 + $0x1c] sm:$0xf]
      %v767 = vld [vmem:[%s758 + $0x20] sm:$0xf]
      %v768 = vld [vmem:[%s758 + $0x24] sm:$0xf]
      %v769 = vld [vmem:[%s758 + $0x28] sm:$0xf]
      %v770 = vld [vmem:[%s758 + $0x2c] sm:$0xf]
      %v771 = vld [vmem:[%s758 + $0x30] sm:$0xf]
      %v772 = vld [vmem:[%s758 + $0x34] sm:$0xf]
      %v773 = vld [vmem:[%s758 + $0x38] sm:$0xf]
      %v774 = vld [vmem:[%s758 + $0x3c] sm:$0xf]
      %v776 = vunpack.c.l.b16 %v757
      %v777 = vpack.c.b16 %v776, %v776
      %v779 = vshrl.u32 %v777, 16
      %v781 = vshll.u32 %v777, 16
      %v783 = vrot.slane %v781, 1
      %v784 = vor.u32 %v779, %v783
      %v802 = vunpack.c.l.b16 %v759
      %v803 = vunpack.c.l.b16 %v760
      %v804 = vunpack.c.l.b16 %v761
      %v805 = vunpack.c.l.b16 %v762
      %v806 = vunpack.c.l.b16 %v763
      %v807 = vunpack.c.l.b16 %v764
      %v808 = vunpack.c.l.b16 %v765
      %v809 = vunpack.c.l.b16 %v766
      %v810 = vunpack.c.l.b16 %v767
      %v811 = vunpack.c.l.b16 %v768
      %v812 = vunpack.c.l.b16 %v769
      %v813 = vunpack.c.l.b16 %v770
      %v814 = vunpack.c.l.b16 %v771
      %v815 = vunpack.c.l.b16 %v772
      %v816 = vunpack.c.l.b16 %v773
      %v817 = vunpack.c.l.b16 %v774
      %v818 = vpack.c.b16 %v803, %v802
      %v819 = vpack.c.b16 %v805, %v804
      %v820 = vpack.c.b16 %v807, %v806
      %v821 = vpack.c.b16 %v809, %v808
      %v822 = vpack.c.b16 %v811, %v810
      %v823 = vpack.c.b16 %v813, %v812
      %v824 = vpack.c.b16 %v815, %v814
      %v825 = vpack.c.b16 %v817, %v816
      %834 = vmatprep.subr.bf16.mxu0 0
      %835 = vmatpush1.bf16.msra.mxu0 %v825
      %836 = vmatprep.subr.bf16.mxu0 0
      %837 = vmatpush1.bf16.msra.mxu0 %v824
      %838 = vmatprep.subr.bf16.mxu0 0
      %839 = vmatpush1.bf16.msra.mxu0 %v823
      %840 = vmatprep.subr.bf16.mxu0 0
      %841 = vmatpush1.bf16.msra.mxu0 %v822
      %842 = vmatprep.subr.bf16.mxu0 0
      %843 = vmatpush1.bf16.msra.mxu0 %v821
      %844 = vmatprep.subr.bf16.mxu0 0
      %845 = vmatpush1.bf16.msra.mxu0 %v820
      %846 = vmatprep.subr.bf16.mxu0 0
      %847 = vmatpush1.bf16.msra.mxu0 %v819
      %848 = vmatprep.subr.bf16.mxu0 0
      %849 = vmatpush1.bf16.msra.mxu0 %v818
      %850 = vmatprep.subr.bf16.mxu0 0
      %851 = vmatpush2.bf16.msra.mxu0 0
      %852 = vmatprep.subr.bf16.mxu0 0
      %853 = vmatpush2.bf16.msra.mxu0 0
      %854 = vmatprep.subr.bf16.mxu0 0
      %855 = vmatpush2.bf16.msra.mxu0 0
      %856 = vmatprep.subr.bf16.mxu0 0
      %857 = vmatpush2.bf16.msra.mxu0 0
      %858 = vmatprep.subr.bf16.mxu0 0
      %859 = vmatpush2.bf16.msra.mxu0 0
      %860 = vmatprep.subr.bf16.mxu0 0
      %861 = vmatpush2.bf16.msra.mxu0 0
      %862 = vmatprep.subr.bf16.mxu0 0
      %863 = vmatpush2.bf16.msra.mxu0 0
      %864 = vmatprep.subr.bf16.mxu0 0
      %865 = vmatpush2.bf16.msra.mxu0 0
      %866 = vmatprep.mubr.bf16.mxu0 0
      %867 = vmatmul.mubr.bf16.gmra.mxu0 %v784
      %v868 = vpop.f32.mrf.mxu0
      %v869 = vadd.f32 0.0, %v868
      %v870 = vpop.f32.mrf.mxu0
      %v871 = vpop.f32.mrf.mxu0
      %v872 = vpop.f32.mrf.mxu0
      %873 = vdwg.mxu0
      %v874 = vadd.f32 %v756, %v869
      %v875 = vld [vmem:[%s649] sm:$0x2]
      %s876 = scalar_lea.vmem %s1, 384
      %v877 = vld [vmem:[%s876] sm:$0xf]
      %v878 = vld [vmem:[%s876 + $0x4] sm:$0xf]
      %v879 = vld [vmem:[%s876 + $0x8] sm:$0xf]
      %v880 = vld [vmem:[%s876 + $0xc] sm:$0xf]
      %v881 = vld [vmem:[%s876 + $0x10] sm:$0xf]
      %v882 = vld [vmem:[%s876 + $0x14] sm:$0xf]
      %v883 = vld [vmem:[%s876 + $0x18] sm:$0xf]
      %v884 = vld [vmem:[%s876 + $0x1c] sm:$0xf]
      %v885 = vld [vmem:[%s876 + $0x20] sm:$0xf]
      %v886 = vld [vmem:[%s876 + $0x24] sm:$0xf]
      %v887 = vld [vmem:[%s876 + $0x28] sm:$0xf]
      %v888 = vld [vmem:[%s876 + $0x2c] sm:$0xf]
      %v889 = vld [vmem:[%s876 + $0x30] sm:$0xf]
      %v890 = vld [vmem:[%s876 + $0x34] sm:$0xf]
      %v891 = vld [vmem:[%s876 + $0x38] sm:$0xf]
      %v892 = vld [vmem:[%s876 + $0x3c] sm:$0xf]
      %v894 = vunpack.c.l.b16 %v875
      %v895 = vpack.c.b16 %v894, %v894
      %v896 = vrot.slane %v895, 1
      %v914 = vunpack.c.l.b16 %v877
      %v915 = vunpack.c.l.b16 %v878
      %v916 = vunpack.c.l.b16 %v879
      %v917 = vunpack.c.l.b16 %v880
      %v918 = vunpack.c.l.b16 %v881
      %v919 = vunpack.c.l.b16 %v882
      %v920 = vunpack.c.l.b16 %v883
      %v921 = vunpack.c.l.b16 %v884
      %v922 = vunpack.c.l.b16 %v885
      %v923 = vunpack.c.l.b16 %v886
      %v924 = vunpack.c.l.b16 %v887
      %v925 = vunpack.c.l.b16 %v888
      %v926 = vunpack.c.l.b16 %v889
      %v927 = vunpack.c.l.b16 %v890
      %v928 = vunpack.c.l.b16 %v891
      %v929 = vunpack.c.l.b16 %v892
      %v930 = vpack.c.b16 %v915, %v914
      %v931 = vpack.c.b16 %v917, %v916
      %v932 = vpack.c.b16 %v919, %v918
      %v933 = vpack.c.b16 %v921, %v920
      %v934 = vpack.c.b16 %v923, %v922
      %v935 = vpack.c.b16 %v925, %v924
      %v936 = vpack.c.b16 %v927, %v926
      %v937 = vpack.c.b16 %v929, %v928
      %946 = vmatprep.subr.bf16.mxu0 0
      %947 = vmatpush1.bf16.msra.mxu0 %v937
      %948 = vmatprep.subr.bf16.mxu0 0
      %949 = vmatpush1.bf16.msra.mxu0 %v936
      %950 = vmatprep.subr.bf16.mxu0 0
      %951 = vmatpush1.bf16.msra.mxu0 %v935
      %952 = vmatprep.subr.bf16.mxu0 0
      %953 = vmatpush1.bf16.msra.mxu0 %v934
      %954 = vmatprep.subr.bf16.mxu0 0
      %955 = vmatpush1.bf16.msra.mxu0 %v933
      %956 = vmatprep.subr.bf16.mxu0 0
      %957 = vmatpush1.bf16.msra.mxu0 %v932
      %958 = vmatprep.subr.bf16.mxu0 0
      %959 = vmatpush1.bf16.msra.mxu0 %v931
      %960 = vmatprep.subr.bf16.mxu0 0
      %961 = vmatpush1.bf16.msra.mxu0 %v930
      %962 = vmatprep.subr.bf16.mxu0 0
      %963 = vmatpush2.bf16.msra.mxu0 0
      %964 = vmatprep.subr.bf16.mxu0 0
      %965 = vmatpush2.bf16.msra.mxu0 0
      %966 = vmatprep.subr.bf16.mxu0 0
      %967 = vmatpush2.bf16.msra.mxu0 0
      %968 = vmatprep.subr.bf16.mxu0 0
      %969 = vmatpush2.bf16.msra.mxu0 0
      %970 = vmatprep.subr.bf16.mxu0 0
      %971 = vmatpush2.bf16.msra.mxu0 0
      %972 = vmatprep.subr.bf16.mxu0 0
      %973 = vmatpush2.bf16.msra.mxu0 0
      %974 = vmatprep.subr.bf16.mxu0 0
      %975 = vmatpush2.bf16.msra.mxu0 0
      %976 = vmatprep.subr.bf16.mxu0 0
      %977 = vmatpush2.bf16.msra.mxu0 0
      %978 = vmatprep.mubr.bf16.mxu0 0
      %979 = vmatmul.mubr.bf16.gmra.mxu0 %v896
      %v980 = vpop.f32.mrf.mxu0
      %v981 = vadd.f32 0.0, %v980
      %v982 = vpop.f32.mrf.mxu0
      %v983 = vpop.f32.mrf.mxu0
      %v984 = vpop.f32.mrf.mxu0
      %985 = vdwg.mxu0
      %v986 = vadd.f32 %v874, %v981
      %v987 = vld [vmem:[%s649] sm:$0x6]
      %s988 = scalar_lea.vmem %s1, 448
      %v989 = vld [vmem:[%s988] sm:$0xf]
      %v990 = vld [vmem:[%s988 + $0x4] sm:$0xf]
      %v991 = vld [vmem:[%s988 + $0x8] sm:$0xf]
      %v992 = vld [vmem:[%s988 + $0xc] sm:$0xf]
      %v993 = vld [vmem:[%s988 + $0x10] sm:$0xf]
      %v994 = vld [vmem:[%s988 + $0x14] sm:$0xf]
      %v995 = vld [vmem:[%s988 + $0x18] sm:$0xf]
      %v996 = vld [vmem:[%s988 + $0x1c] sm:$0xf]
      %v997 = vld [vmem:[%s988 + $0x20] sm:$0xf]
      %v998 = vld [vmem:[%s988 + $0x24] sm:$0xf]
      %v999 = vld [vmem:[%s988 + $0x28] sm:$0xf]
      %v1000 = vld [vmem:[%s988 + $0x2c] sm:$0xf]
      %v1001 = vld [vmem:[%s988 + $0x30] sm:$0xf]
      %v1002 = vld [vmem:[%s988 + $0x34] sm:$0xf]
      %v1003 = vld [vmem:[%s988 + $0x38] sm:$0xf]
      %v1004 = vld [vmem:[%s988 + $0x3c] sm:$0xf]
      %v1006 = vunpack.c.l.b16 %v987
      %v1007 = vpack.c.b16 %v1006, %v1006
      %v1009 = vshrl.u32 %v1007, 16
      %v1011 = vrot.slane %v1009, 1
      %v1012 = vshll.u32 %v1007, 16
      %v1014 = vrot.slane %v1012, 2
      %v1015 = vor.u32 %v1011, %v1014
      %v1033 = vunpack.c.l.b16 %v989
      %v1034 = vunpack.c.l.b16 %v990
      %v1035 = vunpack.c.l.b16 %v991
      %v1036 = vunpack.c.l.b16 %v992
      %v1037 = vunpack.c.l.b16 %v993
      %v1038 = vunpack.c.l.b16 %v994
      %v1039 = vunpack.c.l.b16 %v995
      %v1040 = vunpack.c.l.b16 %v996
      %v1041 = vunpack.c.l.b16 %v997
      %v1042 = vunpack.c.l.b16 %v998
      %v1043 = vunpack.c.l.b16 %v999
      %v1044 = vunpack.c.l.b16 %v1000
      %v1045 = vunpack.c.l.b16 %v1001
      %v1046 = vunpack.c.l.b16 %v1002
      %v1047 = vunpack.c.l.b16 %v1003
      %v1048 = vunpack.c.l.b16 %v1004
      %v1049 = vpack.c.b16 %v1034, %v1033
      %v1050 = vpack.c.b16 %v1036, %v1035
      %v1051 = vpack.c.b16 %v1038, %v1037
      %v1052 = vpack.c.b16 %v1040, %v1039
      %v1053 = vpack.c.b16 %v1042, %v1041
      %v1054 = vpack.c.b16 %v1044, %v1043
      %v1055 = vpack.c.b16 %v1046, %v1045
      %v1056 = vpack.c.b16 %v1048, %v1047
      %1065 = vmatprep.subr.bf16.mxu0 0
      %1066 = vmatpush1.bf16.msra.mxu0 %v1056
      %1067 = vmatprep.subr.bf16.mxu0 0
      %1068 = vmatpush1.bf16.msra.mxu0 %v1055
      %1069 = vmatprep.subr.bf16.mxu0 0
      %1070 = vmatpush1.bf16.msra.mxu0 %v1054
      %1071 = vmatprep.subr.bf16.mxu0 0
      %1072 = vmatpush1.bf16.msra.mxu0 %v1053
      %1073 = vmatprep.subr.bf16.mxu0 0
      %1074 = vmatpush1.bf16.msra.mxu0 %v1052
      %1075 = vmatprep.subr.bf16.mxu0 0
      %1076 = vmatpush1.bf16.msra.mxu0 %v1051
      %1077 = vmatprep.subr.bf16.mxu0 0
      %1078 = vmatpush1.bf16.msra.mxu0 %v1050
      %1079 = vmatprep.subr.bf16.mxu0 0
      %1080 = vmatpush1.bf16.msra.mxu0 %v1049
      %1081 = vmatprep.subr.bf16.mxu0 0
      %1082 = vmatpush2.bf16.msra.mxu0 0
      %1083 = vmatprep.subr.bf16.mxu0 0
      %1084 = vmatpush2.bf16.msra.mxu0 0
      %1085 = vmatprep.subr.bf16.mxu0 0
      %1086 = vmatpush2.bf16.msra.mxu0 0
      %1087 = vmatprep.subr.bf16.mxu0 0
      %1088 = vmatpush2.bf16.msra.mxu0 0
      %1089 = vmatprep.subr.bf16.mxu0 0
      %1090 = vmatpush2.bf16.msra.mxu0 0
      %1091 = vmatprep.subr.bf16.mxu0 0
      %1092 = vmatpush2.bf16.msra.mxu0 0
      %1093 = vmatprep.subr.bf16.mxu0 0
      %1094 = vmatpush2.bf16.msra.mxu0 0
      %1095 = vmatprep.subr.bf16.mxu0 0
      %1096 = vmatpush2.bf16.msra.mxu0 0
      %1097 = vmatprep.mubr.bf16.mxu0 0
      %1098 = vmatmul.mubr.bf16.gmra.mxu0 %v1015
      %v1099 = vpop.f32.mrf.mxu0
      %v1100 = vadd.f32 0.0, %v1099
      %v1101 = vpop.f32.mrf.mxu0
      %v1102 = vpop.f32.mrf.mxu0
      %v1103 = vpop.f32.mrf.mxu0
      %1104 = vdwg.mxu0
      %v1105 = vadd.f32 %v986, %v1100
      %s1106 = sadd.s32 %s19, 2
      %s1107 = smul.addr %s1106, 4
      %s1108 = scalar_lea.vmem %s182, %s1107
      %v1109 = vld [vmem:[%s1108] sm:$0x1]
      %s1110 = scalar_lea.vmem %s1, 512
      %v1111 = vld [vmem:[%s1110] sm:$0xf]
      %v1112 = vld [vmem:[%s1110 + $0x4] sm:$0xf]
      %v1113 = vld [vmem:[%s1110 + $0x8] sm:$0xf]
      %v1114 = vld [vmem:[%s1110 + $0xc] sm:$0xf]
      %v1115 = vld [vmem:[%s1110 + $0x10] sm:$0xf]
      %v1116 = vld [vmem:[%s1110 + $0x14] sm:$0xf]
      %v1117 = vld [vmem:[%s1110 + $0x18] sm:$0xf]
      %v1118 = vld [vmem:[%s1110 + $0x1c] sm:$0xf]
      %v1119 = vld [vmem:[%s1110 + $0x20] sm:$0xf]
      %v1120 = vld [vmem:[%s1110 + $0x24] sm:$0xf]
      %v1121 = vld [vmem:[%s1110 + $0x28] sm:$0xf]
      %v1122 = vld [vmem:[%s1110 + $0x2c] sm:$0xf]
      %v1123 = vld [vmem:[%s1110 + $0x30] sm:$0xf]
      %v1124 = vld [vmem:[%s1110 + $0x34] sm:$0xf]
      %v1125 = vld [vmem:[%s1110 + $0x38] sm:$0xf]
      %v1126 = vld [vmem:[%s1110 + $0x3c] sm:$0xf]
      %v1143 = vunpack.c.l.b16 %v1111
      %v1144 = vunpack.c.l.b16 %v1112
      %v1145 = vunpack.c.l.b16 %v1113
      %v1146 = vunpack.c.l.b16 %v1114
      %v1147 = vunpack.c.l.b16 %v1115
      %v1148 = vunpack.c.l.b16 %v1116
      %v1149 = vunpack.c.l.b16 %v1117
      %v1150 = vunpack.c.l.b16 %v1118
      %v1151 = vunpack.c.l.b16 %v1119
      %v1152 = vunpack.c.l.b16 %v1120
      %v1153 = vunpack.c.l.b16 %v1121
      %v1154 = vunpack.c.l.b16 %v1122
      %v1155 = vunpack.c.l.b16 %v1123
      %v1156 = vunpack.c.l.b16 %v1124
      %v1157 = vunpack.c.l.b16 %v1125
      %v1158 = vunpack.c.l.b16 %v1126
      %v1159 = vpack.c.b16 %v1144, %v1143
      %v1160 = vpack.c.b16 %v1146, %v1145
      %v1161 = vpack.c.b16 %v1148, %v1147
      %v1162 = vpack.c.b16 %v1150, %v1149
      %v1163 = vpack.c.b16 %v1152, %v1151
      %v1164 = vpack.c.b16 %v1154, %v1153
      %v1165 = vpack.c.b16 %v1156, %v1155
      %v1166 = vpack.c.b16 %v1158, %v1157
      %1175 = vmatprep.subr.bf16.mxu0 0
      %1176 = vmatpush1.bf16.msra.mxu0 %v1166
      %1177 = vmatprep.subr.bf16.mxu0 0
      %1178 = vmatpush1.bf16.msra.mxu0 %v1165
      %1179 = vmatprep.subr.bf16.mxu0 0
      %1180 = vmatpush1.bf16.msra.mxu0 %v1164
      %1181 = vmatprep.subr.bf16.mxu0 0
      %1182 = vmatpush1.bf16.msra.mxu0 %v1163
      %1183 = vmatprep.subr.bf16.mxu0 0
      %1184 = vmatpush1.bf16.msra.mxu0 %v1162
      %1185 = vmatprep.subr.bf16.mxu0 0
      %1186 = vmatpush1.bf16.msra.mxu0 %v1161
      %1187 = vmatprep.subr.bf16.mxu0 0
      %1188 = vmatpush1.bf16.msra.mxu0 %v1160
      %1189 = vmatprep.subr.bf16.mxu0 0
      %1190 = vmatpush1.bf16.msra.mxu0 %v1159
      %1191 = vmatprep.subr.bf16.mxu0 0
      %1192 = vmatpush2.bf16.msra.mxu0 0
      %1193 = vmatprep.subr.bf16.mxu0 0
      %1194 = vmatpush2.bf16.msra.mxu0 0
      %1195 = vmatprep.subr.bf16.mxu0 0
      %1196 = vmatpush2.bf16.msra.mxu0 0
      %1197 = vmatprep.subr.bf16.mxu0 0
      %1198 = vmatpush2.bf16.msra.mxu0 0
      %1199 = vmatprep.subr.bf16.mxu0 0
      %1200 = vmatpush2.bf16.msra.mxu0 0
      %1201 = vmatprep.subr.bf16.mxu0 0
      %1202 = vmatpush2.bf16.msra.mxu0 0
      %1203 = vmatprep.subr.bf16.mxu0 0
      %1204 = vmatpush2.bf16.msra.mxu0 0
      %1205 = vmatprep.subr.bf16.mxu0 0
      %1206 = vmatpush2.bf16.msra.mxu0 0
      %1207 = vmatprep.mubr.bf16.mxu0 0
      %1208 = vmatmul.mubr.bf16.gmra.mxu0 %v1109
      %v1209 = vpop.f32.mrf.mxu0
      %v1210 = vadd.f32 0.0, %v1209
      %v1211 = vpop.f32.mrf.mxu0
      %v1212 = vpop.f32.mrf.mxu0
      %v1213 = vpop.f32.mrf.mxu0
      %1214 = vdwg.mxu0
      %v1215 = vadd.f32 %v1105, %v1210
      %v1216 = vld [vmem:[%s1108] sm:$0x3]
      %s1217 = scalar_lea.vmem %s1, 576
      %v1218 = vld [vmem:[%s1217] sm:$0xf]
      %v1219 = vld [vmem:[%s1217 + $0x4] sm:$0xf]
      %v1220 = vld [vmem:[%s1217 + $0x8] sm:$0xf]
      %v1221 = vld [vmem:[%s1217 + $0xc] sm:$0xf]
      %v1222 = vld [vmem:[%s1217 + $0x10] sm:$0xf]
      %v1223 = vld [vmem:[%s1217 + $0x14] sm:$0xf]
      %v1224 = vld [vmem:[%s1217 + $0x18] sm:$0xf]
      %v1225 = vld [vmem:[%s1217 + $0x1c] sm:$0xf]
      %v1226 = vld [vmem:[%s1217 + $0x20] sm:$0xf]
      %v1227 = vld [vmem:[%s1217 + $0x24] sm:$0xf]
      %v1228 = vld [vmem:[%s1217 + $0x28] sm:$0xf]
      %v1229 = vld [vmem:[%s1217 + $0x2c] sm:$0xf]
      %v1230 = vld [vmem:[%s1217 + $0x30] sm:$0xf]
      %v1231 = vld [vmem:[%s1217 + $0x34] sm:$0xf]
      %v1232 = vld [vmem:[%s1217 + $0x38] sm:$0xf]
      %v1233 = vld [vmem:[%s1217 + $0x3c] sm:$0xf]
      %v1235 = vunpack.c.l.b16 %v1216
      %v1236 = vpack.c.b16 %v1235, %v1235
      %v1238 = vshrl.u32 %v1236, 16
      %v1240 = vshll.u32 %v1236, 16
      %v1242 = vrot.slane %v1240, 1
      %v1243 = vor.u32 %v1238, %v1242
      %v1261 = vunpack.c.l.b16 %v1218
      %v1262 = vunpack.c.l.b16 %v1219
      %v1263 = vunpack.c.l.b16 %v1220
      %v1264 = vunpack.c.l.b16 %v1221
      %v1265 = vunpack.c.l.b16 %v1222
      %v1266 = vunpack.c.l.b16 %v1223
      %v1267 = vunpack.c.l.b16 %v1224
      %v1268 = vunpack.c.l.b16 %v1225
      %v1269 = vunpack.c.l.b16 %v1226
      %v1270 = vunpack.c.l.b16 %v1227
      %v1271 = vunpack.c.l.b16 %v1228
      %v1272 = vunpack.c.l.b16 %v1229
      %v1273 = vunpack.c.l.b16 %v1230
      %v1274 = vunpack.c.l.b16 %v1231
      %v1275 = vunpack.c.l.b16 %v1232
      %v1276 = vunpack.c.l.b16 %v1233
      %v1277 = vpack.c.b16 %v1262, %v1261
      %v1278 = vpack.c.b16 %v1264, %v1263
      %v1279 = vpack.c.b16 %v1266, %v1265
      %v1280 = vpack.c.b16 %v1268, %v1267
      %v1281 = vpack.c.b16 %v1270, %v1269
      %v1282 = vpack.c.b16 %v1272, %v1271
      %v1283 = vpack.c.b16 %v1274, %v1273
      %v1284 = vpack.c.b16 %v1276, %v1275
      %1293 = vmatprep.subr.bf16.mxu0 0
      %1294 = vmatpush1.bf16.msra.mxu0 %v1284
      %1295 = vmatprep.subr.bf16.mxu0 0
      %1296 = vmatpush1.bf16.msra.mxu0 %v1283
      %1297 = vmatprep.subr.bf16.mxu0 0
      %1298 = vmatpush1.bf16.msra.mxu0 %v1282
      %1299 = vmatprep.subr.bf16.mxu0 0
      %1300 = vmatpush1.bf16.msra.mxu0 %v1281
      %1301 = vmatprep.subr.bf16.mxu0 0
      %1302 = vmatpush1.bf16.msra.mxu0 %v1280
      %1303 = vmatprep.subr.bf16.mxu0 0
      %1304 = vmatpush1.bf16.msra.mxu0 %v1279
      %1305 = vmatprep.subr.bf16.mxu0 0
      %1306 = vmatpush1.bf16.msra.mxu0 %v1278
      %1307 = vmatprep.subr.bf16.mxu0 0
      %1308 = vmatpush1.bf16.msra.mxu0 %v1277
      %1309 = vmatprep.subr.bf16.mxu0 0
      %1310 = vmatpush2.bf16.msra.mxu0 0
      %1311 = vmatprep.subr.bf16.mxu0 0
      %1312 = vmatpush2.bf16.msra.mxu0 0
      %1313 = vmatprep.subr.bf16.mxu0 0
      %1314 = vmatpush2.bf16.msra.mxu0 0
      %1315 = vmatprep.subr.bf16.mxu0 0
      %1316 = vmatpush2.bf16.msra.mxu0 0
      %1317 = vmatprep.subr.bf16.mxu0 0
      %1318 = vmatpush2.bf16.msra.mxu0 0
      %1319 = vmatprep.subr.bf16.mxu0 0
      %1320 = vmatpush2.bf16.msra.mxu0 0
      %1321 = vmatprep.subr.bf16.mxu0 0
      %1322 = vmatpush2.bf16.msra.mxu0 0
      %1323 = vmatprep.subr.bf16.mxu0 0
      %1324 = vmatpush2.bf16.msra.mxu0 0
      %1325 = vmatprep.mubr.bf16.mxu0 0
      %1326 = vmatmul.mubr.bf16.gmra.mxu0 %v1243
      %v1327 = vpop.f32.mrf.mxu0
      %v1328 = vadd.f32 0.0, %v1327
      %v1329 = vpop.f32.mrf.mxu0
      %v1330 = vpop.f32.mrf.mxu0
      %v1331 = vpop.f32.mrf.mxu0
      %1332 = vdwg.mxu0
      %v1333 = vadd.f32 %v1215, %v1328
      %v1334 = vld [vmem:[%s1108] sm:$0x2]
      %s1335 = scalar_lea.vmem %s1, 640
      %v1336 = vld [vmem:[%s1335] sm:$0xf]
      %v1337 = vld [vmem:[%s1335 + $0x4] sm:$0xf]
      %v1338 = vld [vmem:[%s1335 + $0x8] sm:$0xf]
      %v1339 = vld [vmem:[%s1335 + $0xc] sm:$0xf]
      %v1340 = vld [vmem:[%s1335 + $0x10] sm:$0xf]
      %v1341 = vld [vmem:[%s1335 + $0x14] sm:$0xf]
      %v1342 = vld [vmem:[%s1335 + $0x18] sm:$0xf]
      %v1343 = vld [vmem:[%s1335 + $0x1c] sm:$0xf]
      %v1344 = vld [vmem:[%s1335 + $0x20] sm:$0xf]
      %v1345 = vld [vmem:[%s1335 + $0x24] sm:$0xf]
      %v1346 = vld [vmem:[%s1335 + $0x28] sm:$0xf]
      %v1347 = vld [vmem:[%s1335 + $0x2c] sm:$0xf]
      %v1348 = vld [vmem:[%s1335 + $0x30] sm:$0xf]
      %v1349 = vld [vmem:[%s1335 + $0x34] sm:$0xf]
      %v1350 = vld [vmem:[%s1335 + $0x38] sm:$0xf]
      %v1351 = vld [vmem:[%s1335 + $0x3c] sm:$0xf]
      %v1353 = vunpack.c.l.b16 %v1334
      %v1354 = vpack.c.b16 %v1353, %v1353
      %v1355 = vrot.slane %v1354, 1
      %v1373 = vunpack.c.l.b16 %v1336
      %v1374 = vunpack.c.l.b16 %v1337
      %v1375 = vunpack.c.l.b16 %v1338
      %v1376 = vunpack.c.l.b16 %v1339
      %v1377 = vunpack.c.l.b16 %v1340
      %v1378 = vunpack.c.l.b16 %v1341
      %v1379 = vunpack.c.l.b16 %v1342
      %v1380 = vunpack.c.l.b16 %v1343
      %v1381 = vunpack.c.l.b16 %v1344
      %v1382 = vunpack.c.l.b16 %v1345
      %v1383 = vunpack.c.l.b16 %v1346
      %v1384 = vunpack.c.l.b16 %v1347
      %v1385 = vunpack.c.l.b16 %v1348
      %v1386 = vunpack.c.l.b16 %v1349
      %v1387 = vunpack.c.l.b16 %v1350
      %v1388 = vunpack.c.l.b16 %v1351
      %v1389 = vpack.c.b16 %v1374, %v1373
      %v1390 = vpack.c.b16 %v1376, %v1375
      %v1391 = vpack.c.b16 %v1378, %v1377
      %v1392 = vpack.c.b16 %v1380, %v1379
      %v1393 = vpack.c.b16 %v1382, %v1381
      %v1394 = vpack.c.b16 %v1384, %v1383
      %v1395 = vpack.c.b16 %v1386, %v1385
      %v1396 = vpack.c.b16 %v1388, %v1387
      %1405 = vmatprep.subr.bf16.mxu0 0
      %1406 = vmatpush1.bf16.msra.mxu0 %v1396
      %1407 = vmatprep.subr.bf16.mxu0 0
      %1408 = vmatpush1.bf16.msra.mxu0 %v1395
      %1409 = vmatprep.subr.bf16.mxu0 0
      %1410 = vmatpush1.bf16.msra.mxu0 %v1394
      %1411 = vmatprep.subr.bf16.mxu0 0
      %1412 = vmatpush1.bf16.msra.mxu0 %v1393
      %1413 = vmatprep.subr.bf16.mxu0 0
      %1414 = vmatpush1.bf16.msra.mxu0 %v1392
      %1415 = vmatprep.subr.bf16.mxu0 0
      %1416 = vmatpush1.bf16.msra.mxu0 %v1391
      %1417 = vmatprep.subr.bf16.mxu0 0
      %1418 = vmatpush1.bf16.msra.mxu0 %v1390
      %1419 = vmatprep.subr.bf16.mxu0 0
      %1420 = vmatpush1.bf16.msra.mxu0 %v1389
      %1421 = vmatprep.subr.bf16.mxu0 0
      %1422 = vmatpush2.bf16.msra.mxu0 0
      %1423 = vmatprep.subr.bf16.mxu0 0
      %1424 = vmatpush2.bf16.msra.mxu0 0
      %1425 = vmatprep.subr.bf16.mxu0 0
      %1426 = vmatpush2.bf16.msra.mxu0 0
      %1427 = vmatprep.subr.bf16.mxu0 0
      %1428 = vmatpush2.bf16.msra.mxu0 0
      %1429 = vmatprep.subr.bf16.mxu0 0
      %1430 = vmatpush2.bf16.msra.mxu0 0
      %1431 = vmatprep.subr.bf16.mxu0 0
      %1432 = vmatpush2.bf16.msra.mxu0 0
      %1433 = vmatprep.subr.bf16.mxu0 0
      %1434 = vmatpush2.bf16.msra.mxu0 0
      %1435 = vmatprep.subr.bf16.mxu0 0
      %1436 = vmatpush2.bf16.msra.mxu0 0
      %1437 = vmatprep.mubr.bf16.mxu0 0
      %1438 = vmatmul.mubr.bf16.gmra.mxu0 %v1355
      %v1439 = vpop.f32.mrf.mxu0
      %v1440 = vadd.f32 0.0, %v1439
      %v1441 = vpop.f32.mrf.mxu0
      %v1442 = vpop.f32.mrf.mxu0
      %v1443 = vpop.f32.mrf.mxu0
      %1444 = vdwg.mxu0
      %v1445 = vadd.f32 %v1333, %v1440
      %v1446 = vld [vmem:[%s1108] sm:$0x6]
      %s1447 = scalar_lea.vmem %s1, 704
      %v1448 = vld [vmem:[%s1447] sm:$0xf]
      %v1449 = vld [vmem:[%s1447 + $0x4] sm:$0xf]
      %v1450 = vld [vmem:[%s1447 + $0x8] sm:$0xf]
      %v1451 = vld [vmem:[%s1447 + $0xc] sm:$0xf]
      %v1452 = vld [vmem:[%s1447 + $0x10] sm:$0xf]
      %v1453 = vld [vmem:[%s1447 + $0x14] sm:$0xf]
      %v1454 = vld [vmem:[%s1447 + $0x18] sm:$0xf]
      %v1455 = vld [vmem:[%s1447 + $0x1c] sm:$0xf]
      %v1456 = vld [vmem:[%s1447 + $0x20] sm:$0xf]
      %v1457 = vld [vmem:[%s1447 + $0x24] sm:$0xf]
      %v1458 = vld [vmem:[%s1447 + $0x28] sm:$0xf]
      %v1459 = vld [vmem:[%s1447 + $0x2c] sm:$0xf]
      %v1460 = vld [vmem:[%s1447 + $0x30] sm:$0xf]
      %v1461 = vld [vmem:[%s1447 + $0x34] sm:$0xf]
      %v1462 = vld [vmem:[%s1447 + $0x38] sm:$0xf]
      %v1463 = vld [vmem:[%s1447 + $0x3c] sm:$0xf]
      %v1465 = vunpack.c.l.b16 %v1446
      %v1466 = vpack.c.b16 %v1465, %v1465
      %v1468 = vshrl.u32 %v1466, 16
      %v1470 = vrot.slane %v1468, 1
      %v1471 = vshll.u32 %v1466, 16
      %v1473 = vrot.slane %v1471, 2
      %v1474 = vor.u32 %v1470, %v1473
      %v1492 = vunpack.c.l.b16 %v1448
      %v1493 = vunpack.c.l.b16 %v1449
      %v1494 = vunpack.c.l.b16 %v1450
      %v1495 = vunpack.c.l.b16 %v1451
      %v1496 = vunpack.c.l.b16 %v1452
      %v1497 = vunpack.c.l.b16 %v1453
      %v1498 = vunpack.c.l.b16 %v1454
      %v1499 = vunpack.c.l.b16 %v1455
      %v1500 = vunpack.c.l.b16 %v1456
      %v1501 = vunpack.c.l.b16 %v1457
      %v1502 = vunpack.c.l.b16 %v1458
      %v1503 = vunpack.c.l.b16 %v1459
      %v1504 = vunpack.c.l.b16 %v1460
      %v1505 = vunpack.c.l.b16 %v1461
      %v1506 = vunpack.c.l.b16 %v1462
      %v1507 = vunpack.c.l.b16 %v1463
      %v1508 = vpack.c.b16 %v1493, %v1492
      %v1509 = vpack.c.b16 %v1495, %v1494
      %v1510 = vpack.c.b16 %v1497, %v1496
      %v1511 = vpack.c.b16 %v1499, %v1498
      %v1512 = vpack.c.b16 %v1501, %v1500
      %v1513 = vpack.c.b16 %v1503, %v1502
      %v1514 = vpack.c.b16 %v1505, %v1504
      %v1515 = vpack.c.b16 %v1507, %v1506
      %1524 = vmatprep.subr.bf16.mxu0 0
      %1525 = vmatpush1.bf16.msra.mxu0 %v1515
      %1526 = vmatprep.subr.bf16.mxu0 0
      %1527 = vmatpush1.bf16.msra.mxu0 %v1514
      %1528 = vmatprep.subr.bf16.mxu0 0
      %1529 = vmatpush1.bf16.msra.mxu0 %v1513
      %1530 = vmatprep.subr.bf16.mxu0 0
      %1531 = vmatpush1.bf16.msra.mxu0 %v1512
      %1532 = vmatprep.subr.bf16.mxu0 0
      %1533 = vmatpush1.bf16.msra.mxu0 %v1511
      %1534 = vmatprep.subr.bf16.mxu0 0
      %1535 = vmatpush1.bf16.msra.mxu0 %v1510
      %1536 = vmatprep.subr.bf16.mxu0 0
      %1537 = vmatpush1.bf16.msra.mxu0 %v1509
      %1538 = vmatprep.subr.bf16.mxu0 0
      %1539 = vmatpush1.bf16.msra.mxu0 %v1508
      %1540 = vmatprep.subr.bf16.mxu0 0
      %1541 = vmatpush2.bf16.msra.mxu0 0
      %1542 = vmatprep.subr.bf16.mxu0 0
      %1543 = vmatpush2.bf16.msra.mxu0 0
      %1544 = vmatprep.subr.bf16.mxu0 0
      %1545 = vmatpush2.bf16.msra.mxu0 0
      %1546 = vmatprep.subr.bf16.mxu0 0
      %1547 = vmatpush2.bf16.msra.mxu0 0
      %1548 = vmatprep.subr.bf16.mxu0 0
      %1549 = vmatpush2.bf16.msra.mxu0 0
      %1550 = vmatprep.subr.bf16.mxu0 0
      %1551 = vmatpush2.bf16.msra.mxu0 0
      %1552 = vmatprep.subr.bf16.mxu0 0
      %1553 = vmatpush2.bf16.msra.mxu0 0
      %1554 = vmatprep.subr.bf16.mxu0 0
      %1555 = vmatpush2.bf16.msra.mxu0 0
      %1556 = vmatprep.mubr.bf16.mxu0 0
      %1557 = vmatmul.mubr.bf16.gmra.mxu0 %v1474
      %v1558 = vpop.f32.mrf.mxu0
      %v1559 = vadd.f32 0.0, %v1558
      %v1560 = vpop.f32.mrf.mxu0
      %v1561 = vpop.f32.mrf.mxu0
      %v1562 = vpop.f32.mrf.mxu0
      %1563 = vdwg.mxu0
      %v1564 = vadd.f32 %v1445, %v1559
      %s1565 = sadd.s32 %s19, 3
      %s1566 = smul.addr %s1565, 4
      %s1567 = scalar_lea.vmem %s182, %s1566
      %v1568 = vld [vmem:[%s1567] sm:$0x1]
      %s1569 = scalar_lea.vmem %s1, 768
      %v1570 = vld [vmem:[%s1569] sm:$0xf]
      %v1571 = vld [vmem:[%s1569 + $0x4] sm:$0xf]
      %v1572 = vld [vmem:[%s1569 + $0x8] sm:$0xf]
      %v1573 = vld [vmem:[%s1569 + $0xc] sm:$0xf]
      %v1574 = vld [vmem:[%s1569 + $0x10] sm:$0xf]
      %v1575 = vld [vmem:[%s1569 + $0x14] sm:$0xf]
      %v1576 = vld [vmem:[%s1569 + $0x18] sm:$0xf]
      %v1577 = vld [vmem:[%s1569 + $0x1c] sm:$0xf]
      %v1578 = vld [vmem:[%s1569 + $0x20] sm:$0xf]
      %v1579 = vld [vmem:[%s1569 + $0x24] sm:$0xf]
      %v1580 = vld [vmem:[%s1569 + $0x28] sm:$0xf]
      %v1581 = vld [vmem:[%s1569 + $0x2c] sm:$0xf]
      %v1582 = vld [vmem:[%s1569 + $0x30] sm:$0xf]
      %v1583 = vld [vmem:[%s1569 + $0x34] sm:$0xf]
      %v1584 = vld [vmem:[%s1569 + $0x38] sm:$0xf]
      %v1585 = vld [vmem:[%s1569 + $0x3c] sm:$0xf]
      %v1602 = vunpack.c.l.b16 %v1570
      %v1603 = vunpack.c.l.b16 %v1571
      %v1604 = vunpack.c.l.b16 %v1572
      %v1605 = vunpack.c.l.b16 %v1573
      %v1606 = vunpack.c.l.b16 %v1574
      %v1607 = vunpack.c.l.b16 %v1575
      %v1608 = vunpack.c.l.b16 %v1576
      %v1609 = vunpack.c.l.b16 %v1577
      %v1610 = vunpack.c.l.b16 %v1578
      %v1611 = vunpack.c.l.b16 %v1579
      %v1612 = vunpack.c.l.b16 %v1580
      %v1613 = vunpack.c.l.b16 %v1581
      %v1614 = vunpack.c.l.b16 %v1582
      %v1615 = vunpack.c.l.b16 %v1583
      %v1616 = vunpack.c.l.b16 %v1584
      %v1617 = vunpack.c.l.b16 %v1585
      %v1618 = vpack.c.b16 %v1603, %v1602
      %v1619 = vpack.c.b16 %v1605, %v1604
      %v1620 = vpack.c.b16 %v1607, %v1606
      %v1621 = vpack.c.b16 %v1609, %v1608
      %v1622 = vpack.c.b16 %v1611, %v1610
      %v1623 = vpack.c.b16 %v1613, %v1612
      %v1624 = vpack.c.b16 %v1615, %v1614
      %v1625 = vpack.c.b16 %v1617, %v1616
      %1634 = vmatprep.subr.bf16.mxu0 0
      %1635 = vmatpush1.bf16.msra.mxu0 %v1625
      %1636 = vmatprep.subr.bf16.mxu0 0
      %1637 = vmatpush1.bf16.msra.mxu0 %v1624
      %1638 = vmatprep.subr.bf16.mxu0 0
      %1639 = vmatpush1.bf16.msra.mxu0 %v1623
      %1640 = vmatprep.subr.bf16.mxu0 0
      %1641 = vmatpush1.bf16.msra.mxu0 %v1622
      %1642 = vmatprep.subr.bf16.mxu0 0
      %1643 = vmatpush1.bf16.msra.mxu0 %v1621
      %1644 = vmatprep.subr.bf16.mxu0 0
      %1645 = vmatpush1.bf16.msra.mxu0 %v1620
      %1646 = vmatprep.subr.bf16.mxu0 0
      %1647 = vmatpush1.bf16.msra.mxu0 %v1619
      %1648 = vmatprep.subr.bf16.mxu0 0
      %1649 = vmatpush1.bf16.msra.mxu0 %v1618
      %1650 = vmatprep.subr.bf16.mxu0 0
      %1651 = vmatpush2.bf16.msra.mxu0 0
      %1652 = vmatprep.subr.bf16.mxu0 0
      %1653 = vmatpush2.bf16.msra.mxu0 0
      %1654 = vmatprep.subr.bf16.mxu0 0
      %1655 = vmatpush2.bf16.msra.mxu0 0
      %1656 = vmatprep.subr.bf16.mxu0 0
      %1657 = vmatpush2.bf16.msra.mxu0 0
      %1658 = vmatprep.subr.bf16.mxu0 0
      %1659 = vmatpush2.bf16.msra.mxu0 0
      %1660 = vmatprep.subr.bf16.mxu0 0
      %1661 = vmatpush2.bf16.msra.mxu0 0
      %1662 = vmatprep.subr.bf16.mxu0 0
      %1663 = vmatpush2.bf16.msra.mxu0 0
      %1664 = vmatprep.subr.bf16.mxu0 0
      %1665 = vmatpush2.bf16.msra.mxu0 0
      %1666 = vmatprep.mubr.bf16.mxu0 0
      %1667 = vmatmul.mubr.bf16.gmra.mxu0 %v1568
      %v1668 = vpop.f32.mrf.mxu0
      %v1669 = vadd.f32 0.0, %v1668
      %v1670 = vpop.f32.mrf.mxu0
      %v1671 = vpop.f32.mrf.mxu0
      %v1672 = vpop.f32.mrf.mxu0
      %1673 = vdwg.mxu0
      %v1674 = vadd.f32 %v1564, %v1669
      %v1675 = vld [vmem:[%s1567] sm:$0x3]
      %s1676 = scalar_lea.vmem %s1, 832
      %v1677 = vld [vmem:[%s1676] sm:$0xf]
      %v1678 = vld [vmem:[%s1676 + $0x4] sm:$0xf]
      %v1679 = vld [vmem:[%s1676 + $0x8] sm:$0xf]
      %v1680 = vld [vmem:[%s1676 + $0xc] sm:$0xf]
      %v1681 = vld [vmem:[%s1676 + $0x10] sm:$0xf]
      %v1682 = vld [vmem:[%s1676 + $0x14] sm:$0xf]
      %v1683 = vld [vmem:[%s1676 + $0x18] sm:$0xf]
      %v1684 = vld [vmem:[%s1676 + $0x1c] sm:$0xf]
      %v1685 = vld [vmem:[%s1676 + $0x20] sm:$0xf]
      %v1686 = vld [vmem:[%s1676 + $0x24] sm:$0xf]
      %v1687 = vld [vmem:[%s1676 + $0x28] sm:$0xf]
      %v1688 = vld [vmem:[%s1676 + $0x2c] sm:$0xf]
      %v1689 = vld [vmem:[%s1676 + $0x30] sm:$0xf]
      %v1690 = vld [vmem:[%s1676 + $0x34] sm:$0xf]
      %v1691 = vld [vmem:[%s1676 + $0x38] sm:$0xf]
      %v1692 = vld [vmem:[%s1676 + $0x3c] sm:$0xf]
      %v1694 = vunpack.c.l.b16 %v1675
      %v1695 = vpack.c.b16 %v1694, %v1694
      %v1697 = vshrl.u32 %v1695, 16
      %v1699 = vshll.u32 %v1695, 16
      %v1701 = vrot.slane %v1699, 1
      %v1702 = vor.u32 %v1697, %v1701
      %v1720 = vunpack.c.l.b16 %v1677
      %v1721 = vunpack.c.l.b16 %v1678
      %v1722 = vunpack.c.l.b16 %v1679
      %v1723 = vunpack.c.l.b16 %v1680
      %v1724 = vunpack.c.l.b16 %v1681
      %v1725 = vunpack.c.l.b16 %v1682
      %v1726 = vunpack.c.l.b16 %v1683
      %v1727 = vunpack.c.l.b16 %v1684
      %v1728 = vunpack.c.l.b16 %v1685
      %v1729 = vunpack.c.l.b16 %v1686
      %v1730 = vunpack.c.l.b16 %v1687
      %v1731 = vunpack.c.l.b16 %v1688
      %v1732 = vunpack.c.l.b16 %v1689
      %v1733 = vunpack.c.l.b16 %v1690
      %v1734 = vunpack.c.l.b16 %v1691
      %v1735 = vunpack.c.l.b16 %v1692
      %v1736 = vpack.c.b16 %v1721, %v1720
      %v1737 = vpack.c.b16 %v1723, %v1722
      %v1738 = vpack.c.b16 %v1725, %v1724
      %v1739 = vpack.c.b16 %v1727, %v1726
      %v1740 = vpack.c.b16 %v1729, %v1728
      %v1741 = vpack.c.b16 %v1731, %v1730
      %v1742 = vpack.c.b16 %v1733, %v1732
      %v1743 = vpack.c.b16 %v1735, %v1734
      %1752 = vmatprep.subr.bf16.mxu0 0
      %1753 = vmatpush1.bf16.msra.mxu0 %v1743
      %1754 = vmatprep.subr.bf16.mxu0 0
      %1755 = vmatpush1.bf16.msra.mxu0 %v1742
      %1756 = vmatprep.subr.bf16.mxu0 0
      %1757 = vmatpush1.bf16.msra.mxu0 %v1741
      %1758 = vmatprep.subr.bf16.mxu0 0
      %1759 = vmatpush1.bf16.msra.mxu0 %v1740
      %1760 = vmatprep.subr.bf16.mxu0 0
      %1761 = vmatpush1.bf16.msra.mxu0 %v1739
      %1762 = vmatprep.subr.bf16.mxu0 0
      %1763 = vmatpush1.bf16.msra.mxu0 %v1738
      %1764 = vmatprep.subr.bf16.mxu0 0
      %1765 = vmatpush1.bf16.msra.mxu0 %v1737
      %1766 = vmatprep.subr.bf16.mxu0 0
      %1767 = vmatpush1.bf16.msra.mxu0 %v1736
      %1768 = vmatprep.subr.bf16.mxu0 0
      %1769 = vmatpush2.bf16.msra.mxu0 0
      %1770 = vmatprep.subr.bf16.mxu0 0
      %1771 = vmatpush2.bf16.msra.mxu0 0
      %1772 = vmatprep.subr.bf16.mxu0 0
      %1773 = vmatpush2.bf16.msra.mxu0 0
      %1774 = vmatprep.subr.bf16.mxu0 0
      %1775 = vmatpush2.bf16.msra.mxu0 0
      %1776 = vmatprep.subr.bf16.mxu0 0
      %1777 = vmatpush2.bf16.msra.mxu0 0
      %1778 = vmatprep.subr.bf16.mxu0 0
      %1779 = vmatpush2.bf16.msra.mxu0 0
      %1780 = vmatprep.subr.bf16.mxu0 0
      %1781 = vmatpush2.bf16.msra.mxu0 0
      %1782 = vmatprep.subr.bf16.mxu0 0
      %1783 = vmatpush2.bf16.msra.mxu0 0
      %1784 = vmatprep.mubr.bf16.mxu0 0
      %1785 = vmatmul.mubr.bf16.gmra.mxu0 %v1702
      %v1786 = vpop.f32.mrf.mxu0
      %v1787 = vadd.f32 0.0, %v1786
      %v1788 = vpop.f32.mrf.mxu0
      %v1789 = vpop.f32.mrf.mxu0
      %v1790 = vpop.f32.mrf.mxu0
      %1791 = vdwg.mxu0
      %v1792 = vadd.f32 %v1674, %v1787
      %v1793 = vld [vmem:[%s1567] sm:$0x2]
      %s1794 = scalar_lea.vmem %s1, 896
      %v1795 = vld [vmem:[%s1794] sm:$0xf]
      %v1796 = vld [vmem:[%s1794 + $0x4] sm:$0xf]
      %v1797 = vld [vmem:[%s1794 + $0x8] sm:$0xf]
      %v1798 = vld [vmem:[%s1794 + $0xc] sm:$0xf]
      %v1799 = vld [vmem:[%s1794 + $0x10] sm:$0xf]
      %v1800 = vld [vmem:[%s1794 + $0x14] sm:$0xf]
      %v1801 = vld [vmem:[%s1794 + $0x18] sm:$0xf]
      %v1802 = vld [vmem:[%s1794 + $0x1c] sm:$0xf]
      %v1803 = vld [vmem:[%s1794 + $0x20] sm:$0xf]
      %v1804 = vld [vmem:[%s1794 + $0x24] sm:$0xf]
      %v1805 = vld [vmem:[%s1794 + $0x28] sm:$0xf]
      %v1806 = vld [vmem:[%s1794 + $0x2c] sm:$0xf]
      %v1807 = vld [vmem:[%s1794 + $0x30] sm:$0xf]
      %v1808 = vld [vmem:[%s1794 + $0x34] sm:$0xf]
      %v1809 = vld [vmem:[%s1794 + $0x38] sm:$0xf]
      %v1810 = vld [vmem:[%s1794 + $0x3c] sm:$0xf]
      %v1812 = vunpack.c.l.b16 %v1793
      %v1813 = vpack.c.b16 %v1812, %v1812
      %v1814 = vrot.slane %v1813, 1
      %v1832 = vunpack.c.l.b16 %v1795
      %v1833 = vunpack.c.l.b16 %v1796
      %v1834 = vunpack.c.l.b16 %v1797
      %v1835 = vunpack.c.l.b16 %v1798
      %v1836 = vunpack.c.l.b16 %v1799
      %v1837 = vunpack.c.l.b16 %v1800
      %v1838 = vunpack.c.l.b16 %v1801
      %v1839 = vunpack.c.l.b16 %v1802
      %v1840 = vunpack.c.l.b16 %v1803
      %v1841 = vunpack.c.l.b16 %v1804
      %v1842 = vunpack.c.l.b16 %v1805
      %v1843 = vunpack.c.l.b16 %v1806
      %v1844 = vunpack.c.l.b16 %v1807
      %v1845 = vunpack.c.l.b16 %v1808
      %v1846 = vunpack.c.l.b16 %v1809
      %v1847 = vunpack.c.l.b16 %v1810
      %v1848 = vpack.c.b16 %v1833, %v1832
      %v1849 = vpack.c.b16 %v1835, %v1834
      %v1850 = vpack.c.b16 %v1837, %v1836
      %v1851 = vpack.c.b16 %v1839, %v1838
      %v1852 = vpack.c.b16 %v1841, %v1840
      %v1853 = vpack.c.b16 %v1843, %v1842
      %v1854 = vpack.c.b16 %v1845, %v1844
      %v1855 = vpack.c.b16 %v1847, %v1846
      %1864 = vmatprep.subr.bf16.mxu0 0
      %1865 = vmatpush1.bf16.msra.mxu0 %v1855
      %1866 = vmatprep.subr.bf16.mxu0 0
      %1867 = vmatpush1.bf16.msra.mxu0 %v1854
      %1868 = vmatprep.subr.bf16.mxu0 0
      %1869 = vmatpush1.bf16.msra.mxu0 %v1853
      %1870 = vmatprep.subr.bf16.mxu0 0
      %1871 = vmatpush1.bf16.msra.mxu0 %v1852
      %1872 = vmatprep.subr.bf16.mxu0 0
      %1873 = vmatpush1.bf16.msra.mxu0 %v1851
      %1874 = vmatprep.subr.bf16.mxu0 0
      %1875 = vmatpush1.bf16.msra.mxu0 %v1850
      %1876 = vmatprep.subr.bf16.mxu0 0
      %1877 = vmatpush1.bf16.msra.mxu0 %v1849
      %1878 = vmatprep.subr.bf16.mxu0 0
      %1879 = vmatpush1.bf16.msra.mxu0 %v1848
      %1880 = vmatprep.subr.bf16.mxu0 0
      %1881 = vmatpush2.bf16.msra.mxu0 0
      %1882 = vmatprep.subr.bf16.mxu0 0
      %1883 = vmatpush2.bf16.msra.mxu0 0
      %1884 = vmatprep.subr.bf16.mxu0 0
      %1885 = vmatpush2.bf16.msra.mxu0 0
      %1886 = vmatprep.subr.bf16.mxu0 0
      %1887 = vmatpush2.bf16.msra.mxu0 0
      %1888 = vmatprep.subr.bf16.mxu0 0
      %1889 = vmatpush2.bf16.msra.mxu0 0
      %1890 = vmatprep.subr.bf16.mxu0 0
      %1891 = vmatpush2.bf16.msra.mxu0 0
      %1892 = vmatprep.subr.bf16.mxu0 0
      %1893 = vmatpush2.bf16.msra.mxu0 0
      %1894 = vmatprep.subr.bf16.mxu0 0
      %1895 = vmatpush2.bf16.msra.mxu0 0
      %1896 = vmatprep.mubr.bf16.mxu0 0
      %1897 = vmatmul.mubr.bf16.gmra.mxu0 %v1814
      %v1898 = vpop.f32.mrf.mxu0
      %v1899 = vadd.f32 0.0, %v1898
      %v1900 = vpop.f32.mrf.mxu0
      %v1901 = vpop.f32.mrf.mxu0
      %v1902 = vpop.f32.mrf.mxu0
      %1903 = vdwg.mxu0
      %v1904 = vadd.f32 %v1792, %v1899
      %v1905 = vld [vmem:[%s1567] sm:$0x6]
      %s1906 = scalar_lea.vmem %s1, 960
      %v1907 = vld [vmem:[%s1906] sm:$0xf]
      %v1908 = vld [vmem:[%s1906 + $0x4] sm:$0xf]
      %v1909 = vld [vmem:[%s1906 + $0x8] sm:$0xf]
      %v1910 = vld [vmem:[%s1906 + $0xc] sm:$0xf]
      %v1911 = vld [vmem:[%s1906 + $0x10] sm:$0xf]
      %v1912 = vld [vmem:[%s1906 + $0x14] sm:$0xf]
      %v1913 = vld [vmem:[%s1906 + $0x18] sm:$0xf]
      %v1914 = vld [vmem:[%s1906 + $0x1c] sm:$0xf]
      %v1915 = vld [vmem:[%s1906 + $0x20] sm:$0xf]
      %v1916 = vld [vmem:[%s1906 + $0x24] sm:$0xf]
      %v1917 = vld [vmem:[%s1906 + $0x28] sm:$0xf]
      %v1918 = vld [vmem:[%s1906 + $0x2c] sm:$0xf]
      %v1919 = vld [vmem:[%s1906 + $0x30] sm:$0xf]
      %v1920 = vld [vmem:[%s1906 + $0x34] sm:$0xf]
      %v1921 = vld [vmem:[%s1906 + $0x38] sm:$0xf]
      %v1922 = vld [vmem:[%s1906 + $0x3c] sm:$0xf]
      %v1924 = vunpack.c.l.b16 %v1905
      %v1925 = vpack.c.b16 %v1924, %v1924
      %v1927 = vshrl.u32 %v1925, 16
      %v1929 = vrot.slane %v1927, 1
      %v1930 = vshll.u32 %v1925, 16
      %v1932 = vrot.slane %v1930, 2
      %v1933 = vor.u32 %v1929, %v1932
      %v1951 = vunpack.c.l.b16 %v1907
      %v1952 = vunpack.c.l.b16 %v1908
      %v1953 = vunpack.c.l.b16 %v1909
      %v1954 = vunpack.c.l.b16 %v1910
      %v1955 = vunpack.c.l.b16 %v1911
      %v1956 = vunpack.c.l.b16 %v1912
      %v1957 = vunpack.c.l.b16 %v1913
      %v1958 = vunpack.c.l.b16 %v1914
      %v1959 = vunpack.c.l.b16 %v1915
      %v1960 = vunpack.c.l.b16 %v1916
      %v1961 = vunpack.c.l.b16 %v1917
      %v1962 = vunpack.c.l.b16 %v1918
      %v1963 = vunpack.c.l.b16 %v1919
      %v1964 = vunpack.c.l.b16 %v1920
      %v1965 = vunpack.c.l.b16 %v1921
      %v1966 = vunpack.c.l.b16 %v1922
      %v1967 = vpack.c.b16 %v1952, %v1951
      %v1968 = vpack.c.b16 %v1954, %v1953
      %v1969 = vpack.c.b16 %v1956, %v1955
      %v1970 = vpack.c.b16 %v1958, %v1957
      %v1971 = vpack.c.b16 %v1960, %v1959
      %v1972 = vpack.c.b16 %v1962, %v1961
      %v1973 = vpack.c.b16 %v1964, %v1963
      %v1974 = vpack.c.b16 %v1966, %v1965
      %1983 = vmatprep.subr.bf16.mxu0 0
      %1984 = vmatpush1.bf16.msra.mxu0 %v1974
      %1985 = vmatprep.subr.bf16.mxu0 0
      %1986 = vmatpush1.bf16.msra.mxu0 %v1973
      %1987 = vmatprep.subr.bf16.mxu0 0
      %1988 = vmatpush1.bf16.msra.mxu0 %v1972
      %1989 = vmatprep.subr.bf16.mxu0 0
      %1990 = vmatpush1.bf16.msra.mxu0 %v1971
      %1991 = vmatprep.subr.bf16.mxu0 0
      %1992 = vmatpush1.bf16.msra.mxu0 %v1970
      %1993 = vmatprep.subr.bf16.mxu0 0
      %1994 = vmatpush1.bf16.msra.mxu0 %v1969
      %1995 = vmatprep.subr.bf16.mxu0 0
      %1996 = vmatpush1.bf16.msra.mxu0 %v1968
      %1997 = vmatprep.subr.bf16.mxu0 0
      %1998 = vmatpush1.bf16.msra.mxu0 %v1967
      %1999 = vmatprep.subr.bf16.mxu0 0
      %2000 = vmatpush2.bf16.msra.mxu0 0
      %2001 = vmatprep.subr.bf16.mxu0 0
      %2002 = vmatpush2.bf16.msra.mxu0 0
      %2003 = vmatprep.subr.bf16.mxu0 0
      %2004 = vmatpush2.bf16.msra.mxu0 0
      %2005 = vmatprep.subr.bf16.mxu0 0
      %2006 = vmatpush2.bf16.msra.mxu0 0
      %2007 = vmatprep.subr.bf16.mxu0 0
      %2008 = vmatpush2.bf16.msra.mxu0 0
      %2009 = vmatprep.subr.bf16.mxu0 0
      %2010 = vmatpush2.bf16.msra.mxu0 0
      %2011 = vmatprep.subr.bf16.mxu0 0
      %2012 = vmatpush2.bf16.msra.mxu0 0
      %2013 = vmatprep.subr.bf16.mxu0 0
      %2014 = vmatpush2.bf16.msra.mxu0 0
      %2015 = vmatprep.mubr.bf16.mxu0 0
      %2016 = vmatmul.mubr.bf16.gmra.mxu0 %v1933
      %v2017 = vpop.f32.mrf.mxu0
      %v2018 = vadd.f32 0.0, %v2017
      %v2019 = vpop.f32.mrf.mxu0
      %v2020 = vpop.f32.mrf.mxu0
      %v2021 = vpop.f32.mrf.mxu0
      %2022 = vdwg.mxu0
      %v2023 = vadd.f32 %v1904, %v2018
      %v2024 = vld [vmem:[%s2] sm:$0x1]
      %v2026 = vlaneseq
      %v2027 = vshrl.u32 %v2026, 7
      %v2028 = vsub.s32 0, %v2027
      %v2029 = vrot.slane %v2024, %v2028
      %v2031 = vadd.f32 %v2023, %v2029
      %2032 = vst [vmem:[%s190] sm:$0x3] %v2031
      %p2033 = scmp.lt.s32.totalorder %s18, 1
      %s2034 = scalar_select %p2033, %s18, 1
      %p2035 = scmp.lt.s32.totalorder %s19, 1
      %s2036 = scalar_select %p2035, %s19, 1
      %s2037 = smul.addr %s2034, 2
      %s2038 = sadd.s32 %s2036, %s2037
      %s2039 = smul.addr %s2038, 2
      %s2040 = scalar_lea.vmem %s3, %s2039
      // Predicated region
      $region33: #{_lambda_.15} parent=31 // pred_check
        %p2041 = pneg %p114
      $region34: #{_lambda_.15} parent=31 // pred_check_branch
        %2043 = sbr.rel (%p2041) target = $region36
      $region35: #{_lambda_.15} parent=31 // pred_region
        _
      $region36: #{_lambda_.15} parent=31 // pred_fallthru
        _
    $region32: #{_lambda_.15} parent=5 // pred_fallthru
      _
    %p2044 = scmp.le.s32.totalorder 2, %s9
    // Predicated region
    $region37: #{_lambda_.15} parent=5 // pred_check
      %p2045 = pneg %p2044
    $region38: #{_lambda_.15} parent=5 // pred_check_branch
      %2047 = sbr.rel (%p2045) target = $region40
    $region39: #{_lambda_.15} parent=5 // pred_region
      %s2048 = ssub.s32 %s9, 2
      // Predicated region
      $region41: #{_lambda_.15} parent=39 // pred_check
        %p2049 = pneg %p120
      $region42: #{_lambda_.15} parent=39 // pred_check_branch
        %2051 = sbr.rel (%p2049) target = $region44
      $region43: #{_lambda_.15} parent=39 // pred_region
        %p2052 = scmp.lt.s32.totalorder %s20, 1
        %s2053 = scalar_select %p2052, %s20, 1
        %p2054 = scmp.lt.s32.totalorder %s21, 1
        %s2055 = scalar_select %p2054, %s21, 1
        %s2056 = smul.addr %s2053, 2
        %s2057 = sadd.s32 %s2055, %s2056
        %s2058 = smul.addr %s2057, 2
        %s2059 = scalar_lea.vmem %s3, %s2058
      $region44: #{_lambda_.15} parent=39 // pred_fallthru
        _
    $region40: #{_lambda_.15} parent=5 // pred_fallthru
      _
  $region6: #{_lambda_.15} parent=0 // loop_footer
    %s13 = sadd.s32 1, %s9
  $region7: #{_lambda_.15} parent=0 // loop_footer_branch
    %8 = sbr.rel target = $region3
  $region8: #{_lambda_.15} parent=0 // loop_exit
    _

</llo_original>
